<compile_context>
chip_gen: v5e
topology: v5e:2x2
jax: 0.10.0
libtpu: 0.0.40
codegen_flags: <defaults>
</compile_context>

<pallas_src>
import math

import jax
import jax.numpy as jnp
from jax.experimental import pallas as pl
from jax.experimental.pallas import tpu as pltpu

_ROW_TILE = 256  # multiple of 128; fits comfortably in v7x's 64 MiB VMEM budget


def _round_up(x: int, m: int) -> int:
    return (x + m - 1) // m * m


def _make_fused_kernel(tm: int, n_cols: int, n_neg: int):
    """Fused conv1x1 + InfoNCE loss kernel body for one (row tile, k) cell.

    Refs (scalar-prefetch first, then inputs, then output):
      offs_ref: (K,)          i32 SMEM  per-k column offset  cut*W*B
      ns_ref  : (K,)          i32 SMEM  per-k valid row/column count n_k
      z_ref   : (Cin, Ncols)  f32 VMEM  full encoder features, lane-dense (h,w,b)
      c_ref   : (TM, Cout)    f32 VMEM  context-feature row tile
      w_ref   : (Cout, Cin)   f32 VMEM  1x1-conv weight W_k
      idx_ref : (TM, S)       i32 VMEM  negative-sample indices, values in [0, n_k)
      o_ref   : (8, 128)      f32 VMEM  broadcast partial row-loss sum for this cell
    """

    def kernel(offs_ref, ns_ref, z_ref, c_ref, w_ref, idx_ref, o_ref):
        i = pl.program_id(0)
        k = pl.program_id(1)
        off = offs_ref[k]
        n_k = ns_ref[k]
        row0 = i * tm

        # Fully-invalid row tile for this k: emit zero partial sum, skip compute.
        @pl.when(row0 >= n_k)
        def _():
            o_ref[...] = jnp.zeros_like(o_ref)

        @pl.when(row0 < n_k)
        def _():
            # 1x1 conv as lane-dense MXU matmul: (Cout, Cin) @ (Cin, Ncols).
            ztwk = jnp.dot(w_ref[...], z_ref[...],
                           preferred_element_type=jnp.float32)
            # Score tile on the MXU: (TM, Cout) @ (Cout, Ncols).
            # scores[r, m] = <c_{row0+r}, W_k z_m>; positives / negatives are
            # picked below with iota masks, so the gather never leaves VMEM.
            scores = jnp.dot(c_ref[...], ztwk,
                             preferred_element_type=jnp.float32)

            col = jax.lax.broadcasted_iota(jnp.int32, (tm, n_cols), 1)
            row_loc = jax.lax.broadcasted_iota(jnp.int32, (tm, 1), 0)
            pos_col = row_loc + (row0 + off)          # positive column per row
            diag = col == pos_col                     # (TM, Ncols) bool

            # Column multiplicities of the 1 + S selected samples per row,
            # accumulated in int32 (single f32 cast after the loop).
            idx = idx_ref[...]                        # (TM, S) i32 in [0, n_k)
            cnt = diag.astype(jnp.int32)              # positive counted once
            for j in range(n_neg):
                cnt = cnt + (col == (idx[:, j:j + 1] + off)).astype(jnp.int32)

            # Stable softmax over the selected scores only (max over selected
            # columns — do NOT widen to a global row max, see reference).
            selected = cnt > 0
            m = jnp.max(jnp.where(selected, scores, -jnp.inf),
                        axis=-1, keepdims=True)                    # (TM, 1)
            e = jnp.exp(jnp.minimum(scores - m, 0.0))              # (TM, Ncols)
            denom = jnp.sum(cnt.astype(jnp.float32) * e,
                            axis=-1, keepdims=True)                # pos + negs
            e_pos = jnp.sum(jnp.where(diag, e, 0.0),
                            axis=-1, keepdims=True)
            p0 = e_pos / denom                                     # class-0 prob
            loss = -jnp.log(p0 + 1e-11)                            # ExpNLLLoss
            valid = (row_loc + row0) < n_k                         # mask pad rows
            loss = jnp.where(valid, loss, 0.0)
            tile_sum = jnp.sum(loss, axis=0, keepdims=True)        # (1, 1)
            o_ref[...] = jnp.zeros_like(o_ref) + tile_sum          # broadcast

    return kernel


def infonce_forward(z, c, weights, neg_indices, negative_samples, skip_step=1):
    """z: (B, Cin, H, W), c: (B, Cout, H, W), weights: list of (Cout, Cin),
    neg_indices: list (per k) of flat int32 index arrays of length n_k*S."""
    batch, c_in, height, width = z.shape
    c_out = c.shape[1]
    k_pred = len(weights)

    n0 = height * width * batch
    n_cols = _round_up(n0, 128)                 # lane-dense score-matrix width
    tm = min(_ROW_TILE, _round_up(n0, 128))     # row tile (multiple of 128)
    n_rows = _round_up(n0, tm)
    n_tiles = n_rows // tm

    # One-time layout transforms (hoisted out of the k loop entirely):
    #   z -> (Cin, H*W*B): channels on sublanes, (h, w, b) lane-dense columns
    #   c -> (H*W*B, Cout): rows in (h, w, b) order, channels last
    z_flat = jnp.transpose(z, (1, 2, 3, 0)).reshape(c_in, n0).astype(jnp.float32)
    c_flat = jnp.transpose(c, (2, 3, 0, 1)).reshape(n0, c_out).astype(jnp.float32)
    z_pad = jnp.pad(z_flat, ((0, 0), (0, n_cols - n0)))
    c_pad = jnp.pad(c_flat, ((0, n_rows - n0), (0, 0)))

    w_all = jnp.stack([w.astype(jnp.float32) for w in weights])   # (K, Cout, Cin)

    offs, ns, idx_list = [], [], []
    for k in range(1, k_pred + 1):
        cut = k + skip_step
        n_k = (height - cut) * width * batch
        offs.append(cut * width * batch)
        ns.append(n_k)
        idx_k = neg_indices[k - 1].reshape(n_k, negative_samples).astype(jnp.int32)
        idx_list.append(jnp.pad(idx_k, ((0, n_rows - n_k), (0, 0))))
    idx_all = jnp.stack(idx_list)                                  # (K, Nrows, S)
    offs = jnp.asarray(offs, jnp.int32)
    ns = jnp.asarray(ns, jnp.int32)

    grid_spec = pltpu.PrefetchScalarGridSpec(
        num_scalar_prefetch=2,
        grid=(n_tiles, k_pred),
        in_specs=[
            # z stays VMEM-resident across the whole grid (constant block index).
            pl.BlockSpec((c_in, n_cols), lambda i, k, offs, ns: (0, 0)),
            # c row tile: constant across the inner k axis -> fetched once per tile.
            pl.BlockSpec((tm, c_out), lambda i, k, offs, ns: (i, 0)),
            pl.BlockSpec((None, c_out, c_in), lambda i, k, offs, ns: (k, 0, 0)),
            pl.BlockSpec((None, tm, negative_samples),
                         lambda i, k, offs, ns: (k, i, 0)),
        ],
        out_specs=pl.BlockSpec((None, None, 8, 128),
                               lambda i, k, offs, ns: (i, k, 0, 0)),
    )

    out = pl.pallas_call(
        _make_fused_kernel(tm, n_cols, negative_samples),
        out_shape=jax.ShapeDtypeStruct((n_tiles, k_pred, 8, 128), jnp.float32),
        grid_spec=grid_spec,
        compiler_params=pltpu.CompilerParams(
            dimension_semantics=("parallel", "arbitrary"),
            vmem_limit_bytes=32 * 1024 * 1024),
    )(offs, ns, z_pad, c_pad, w_all, idx_all)

    # Tiny final reduction in XLA: sum per-(tile, k) partial sums over tiles,
    # 'mean' over the n_k valid rows of each step, then average over k.
    per_k_sum = jnp.sum(out[:, :, 0, 0], axis=0)                   # (K,)
    total = jnp.sum(per_k_sum / ns.astype(jnp.float32))
    return total / k_pred


if __name__ == "__main__":
    B, Cin, Cout, H, W = 2, 8, 16, 16, 16
    negative_samples = 10
    k_predictions = 5
    skip_step = 1

    key = jax.random.PRNGKey(0)
    kz, kc, kw, kidx = jax.random.split(key, 4)
    z = jax.random.normal(kz, (B, Cin, H, W), dtype=jnp.float32)
    c = jax.random.normal(kc, (B, Cout, H, W), dtype=jnp.float32)

    # W_k: nn.Conv2d(in, out, 1, bias=False) -> weight (Cout, Cin, 1, 1), stored (Cout, Cin).
    # TODO(synk): makeDeltaOrthogonal init not reproduced; deterministic Gaussian init used.
    wkeys = jax.random.split(kw, k_predictions)
    weights = [
        jax.random.normal(wk, (Cout, Cin), dtype=jnp.float32) / math.sqrt(Cin)
        for wk in wkeys
    ]

    # torch.randint equivalent: uniform row indices in [0, n_k) per prediction step.
    ikeys = jax.random.split(kidx, k_predictions)
    neg_indices = []
    for k in range(1, k_predictions + 1):
        hp = H - (k + skip_step)
        n = hp * W * B
        neg_indices.append(
            jax.random.randint(ikeys[k - 1], (n * negative_samples,), 0, n,
                               dtype=jnp.int32))

    loss_fn = jax.jit(infonce_forward,
                      static_argnames=("negative_samples", "skip_step"))
    loss = loss_fn(z, c, weights, neg_indices,
                   negative_samples=negative_samples, skip_step=skip_step)
    loss = jax.block_until_ready(loss)
    assert bool(jnp.isfinite(loss))
    print("KERNEL_OK")
</pallas_src>

<mosaic_0001>
module attributes {stable_mosaic.version = 11 : i64} {
  func.func @kernel(%arg0: i32, %arg1: i32, %arg2: memref<5xi32, #tpu.memory_space<smem>>, %arg3: memref<5xi32, #tpu.memory_space<smem>>, %arg4: memref<8x512xf32, #tpu.memory_space<vmem>>, %arg5: memref<256x16xf32, #tpu.memory_space<vmem>>, %arg6: memref<1x16x8xf32, #tpu.memory_space<vmem>>, %arg7: memref<1x256x10xi32, #tpu.memory_space<vmem>>, %arg8: memref<1x1x8x128xf32, #tpu.memory_space<vmem>>) attributes {dimension_semantics = [#tpu.dimension_semantics<parallel>, #tpu.dimension_semantics<arbitrary>], iteration_bounds = array<i64: 2, 5>, scalar_prefetch = 2 : i64, scratch_operands = 0 : i64, tpu.core_type = #tpu.core_type<tc>, window_params = [{pipeline_mode = #tpu.pipeline_mode<synchronous>, transform_indices = @transform_0, window_bounds = array<i64: 8, 512>}, {transform_indices = @transform_1, window_bounds = array<i64: 256, 16>}, {transform_indices = @transform_2, window_bounds = array<i64: 1, 16, 8>}, {transform_indices = @transform_3, window_bounds = array<i64: 1, 256, 10>}, {transform_indices = @transform_4, window_bounds = array<i64: 1, 1, 8, 128>}]} {
    %0 = arith.index_cast %arg1 : i32 to index
    %1 = memref.load %arg2[%0] : memref<5xi32, #tpu.memory_space<smem>>
    %2 = arith.index_cast %arg1 : i32 to index
    %3 = memref.load %arg3[%2] : memref<5xi32, #tpu.memory_space<smem>>
    %c256_i32 = arith.constant 256 : i32
    %4 = arith.muli %arg0, %c256_i32 : i32
    %5 = arith.cmpi sge, %4, %3 : i32
    %6 = arith.extui %5 : i1 to i32
    %c0_i32 = arith.constant 0 : i32
    %7 = arith.cmpi ne, %6, %c0_i32 : i32
    scf.if %7 {
      %cst = arith.constant 0.000000e+00 : f32
      %11 = vector.broadcast %cst : f32 to vector<8x128xf32>
      %c0 = arith.constant 0 : index
      %c0_1 = arith.constant 0 : index
      %c0_2 = arith.constant 0 : index
      %c0_3 = arith.constant 0 : index
      %12 = vector.load %arg8[%c0, %c0_1, %c0_2, %c0_3] : memref<1x1x8x128xf32, #tpu.memory_space<vmem>>, vector<1x1x8x128xf32>
      %13 = vector.shape_cast %12 : vector<1x1x8x128xf32> to vector<8x128xf32>
      %14 = vector.shape_cast %11 : vector<8x128xf32> to vector<1x1x8x128xf32>
      tpu.vector_store %arg8[%c0, %c0_1, %c0_2, %c0_3], %14 {strides = array<i32>} : memref<1x1x8x128xf32, #tpu.memory_space<vmem>>, vector<1x1x8x128xf32>,
    } else {
    }
    %8 = arith.cmpi slt, %4, %3 : i32
    %9 = arith.extui %8 : i1 to i32
    %c0_i32_0 = arith.constant 0 : i32
    %10 = arith.cmpi ne, %9, %c0_i32_0 : i32
    scf.if %10 {
      %c0 = arith.constant 0 : index
      %c0_1 = arith.constant 0 : index
      %c0_2 = arith.constant 0 : index
      %11 = vector.load %arg6[%c0, %c0_1, %c0_2] : memref<1x16x8xf32, #tpu.memory_space<vmem>>, vector<1x16x8xf32>
      %12 = vector.shape_cast %11 : vector<1x16x8xf32> to vector<16x8xf32>
      %c0_3 = arith.constant 0 : index
      %c0_4 = arith.constant 0 : index
      %13 = vector.load %arg4[%c0_3, %c0_4] : memref<8x512xf32, #tpu.memory_space<vmem>>, vector<8x512xf32>
      %cst = arith.constant dense<0.000000e+00> : vector<16x512xf32>
      %14 = tpu.matmul %12, %13, %cst {dimension_numbers = #tpu.dot_dimension_numbers<[1], [0], [0], [1], [0, 0, 1, 1], [], []>} : vector<16x8xf32>, vector<8x512xf32>, vector<16x512xf32> -> vector<16x512xf32>
      %c0_5 = arith.constant 0 : index
      %c0_6 = arith.constant 0 : index
      %15 = vector.load %arg5[%c0_5, %c0_6] : memref<256x16xf32, #tpu.memory_space<vmem>>, vector<256x16xf32>
      %cst_7 = arith.constant dense<0.000000e+00> : vector<256x512xf32>
      %16 = tpu.matmul %15, %14, %cst_7 {dimension_numbers = #tpu.dot_dimension_numbers<[1], [0], [0], [1], [0, 0, 1, 1], [], []>} : vector<256x16xf32>, vector<16x512xf32>, vector<256x512xf32> -> vector<256x512xf32>
      %17 = tpu.iota {dimensions = array<i32: 1>} : vector<256x512xi32>
      %18 = tpu.iota {dimensions = array<i32: 0>} : vector<256x1xi32>
      %19 = arith.addi %4, %1 : i32
      %20 = vector.broadcast %19 : i32 to vector<256x1xi32>
      %21 = arith.addi %18, %20 : vector<256x1xi32>
      %22 = vector.broadcast %21 : vector<256x1xi32> to vector<256x512xi32>
      %23 = arith.cmpi eq, %17, %22 : vector<256x512xi32>
      %c0_8 = arith.constant 0 : index
      %c0_9 = arith.constant 0 : index
      %c0_10 = arith.constant 0 : index
      %24 = vector.load %arg7[%c0_8, %c0_9, %c0_10] : memref<1x256x10xi32, #tpu.memory_space<vmem>>, vector<1x256x10xi32>
      %25 = vector.shape_cast %24 : vector<1x256x10xi32> to vector<256x10xi32>
      %26 = arith.extui %23 : vector<256x512xi1> to vector<256x512xi32>
      %27 = vector.extract_strided_slice %25 {offsets = [0, 0], sizes = [256, 1], strides = [1, 1]} : vector<256x10xi32> to vector<256x1xi32>
      %28 = vector.broadcast %1 : i32 to vector<256x1xi32>
      %29 = arith.addi %27, %28 : vector<256x1xi32>
      %30 = vector.broadcast %29 : vector<256x1xi32> to vector<256x512xi32>
      %31 = arith.cmpi eq, %17, %30 : vector<256x512xi32>
      %32 = arith.extui %31 : vector<256x512xi1> to vector<256x512xi32>
      %33 = arith.addi %26, %32 : vector<256x512xi32>
      %34 = vector.extract_strided_slice %25 {offsets = [0, 1], sizes = [256, 1], strides = [1, 1]} : vector<256x10xi32> to vector<256x1xi32>
      %35 = vector.broadcast %1 : i32 to vector<256x1xi32>
      %36 = arith.addi %34, %35 : vector<256x1xi32>
      %37 = vector.broadcast %36 : vector<256x1xi32> to vector<256x512xi32>
      %38 = arith.cmpi eq, %17, %37 : vector<256x512xi32>
      %39 = arith.extui %38 : vector<256x512xi1> to vector<256x512xi32>
      %40 = arith.addi %33, %39 : vector<256x512xi32>
      %41 = vector.extract_strided_slice %25 {offsets = [0, 2], sizes = [256, 1], strides = [1, 1]} : vector<256x10xi32> to vector<256x1xi32>
      %42 = vector.broadcast %1 : i32 to vector<256x1xi32>
      %43 = arith.addi %41, %42 : vector<256x1xi32>
      %44 = vector.broadcast %43 : vector<256x1xi32> to vector<256x512xi32>
      %45 = arith.cmpi eq, %17, %44 : vector<256x512xi32>
      %46 = arith.extui %45 : vector<256x512xi1> to vector<256x512xi32>
      %47 = arith.addi %40, %46 : vector<256x512xi32>
      %48 = vector.extract_strided_slice %25 {offsets = [0, 3], sizes = [256, 1], strides = [1, 1]} : vector<256x10xi32> to vector<256x1xi32>
      %49 = vector.broadcast %1 : i32 to vector<256x1xi32>
      %50 = arith.addi %48, %49 : vector<256x1xi32>
      %51 = vector.broadcast %50 : vector<256x1xi32> to vector<256x512xi32>
      %52 = arith.cmpi eq, %17, %51 : vector<256x512xi32>
      %53 = arith.extui %52 : vector<256x512xi1> to vector<256x512xi32>
      %54 = arith.addi %47, %53 : vector<256x512xi32>
      %55 = vector.extract_strided_slice %25 {offsets = [0, 4], sizes = [256, 1], strides = [1, 1]} : vector<256x10xi32> to vector<256x1xi32>
      %56 = vector.broadcast %1 : i32 to vector<256x1xi32>
      %57 = arith.addi %55, %56 : vector<256x1xi32>
      %58 = vector.broadcast %57 : vector<256x1xi32> to vector<256x512xi32>
      %59 = arith.cmpi eq, %17, %58 : vector<256x512xi32>
      %60 = arith.extui %59 : vector<256x512xi1> to vector<256x512xi32>
      %61 = arith.addi %54, %60 : vector<256x512xi32>
      %62 = vector.extract_strided_slice %25 {offsets = [0, 5], sizes = [256, 1], strides = [1, 1]} : vector<256x10xi32> to vector<256x1xi32>
      %63 = vector.broadcast %1 : i32 to vector<256x1xi32>
      %64 = arith.addi %62, %63 : vector<256x1xi32>
      %65 = vector.broadcast %64 : vector<256x1xi32> to vector<256x512xi32>
      %66 = arith.cmpi eq, %17, %65 : vector<256x512xi32>
      %67 = arith.extui %66 : vector<256x512xi1> to vector<256x512xi32>
      %68 = arith.addi %61, %67 : vector<256x512xi32>
      %69 = vector.extract_strided_slice %25 {offsets = [0, 6], sizes = [256, 1], strides = [1, 1]} : vector<256x10xi32> to vector<256x1xi32>
      %70 = vector.broadcast %1 : i32 to vector<256x1xi32>
      %71 = arith.addi %69, %70 : vector<256x1xi32>
      %72 = vector.broadcast %71 : vector<256x1xi32> to vector<256x512xi32>
      %73 = arith.cmpi eq, %17, %72 : vector<256x512xi32>
      %74 = arith.extui %73 : vector<256x512xi1> to vector<256x512xi32>
      %75 = arith.addi %68, %74 : vector<256x512xi32>
      %76 = vector.extract_strided_slice %25 {offsets = [0, 7], sizes = [256, 1], strides = [1, 1]} : vector<256x10xi32> to vector<256x1xi32>
      %77 = vector.broadcast %1 : i32 to vector<256x1xi32>
      %78 = arith.addi %76, %77 : vector<256x1xi32>
      %79 = vector.broadcast %78 : vector<256x1xi32> to vector<256x512xi32>
      %80 = arith.cmpi eq, %17, %79 : vector<256x512xi32>
      %81 = arith.extui %80 : vector<256x512xi1> to vector<256x512xi32>
      %82 = arith.addi %75, %81 : vector<256x512xi32>
      %83 = vector.extract_strided_slice %25 {offsets = [0, 8], sizes = [256, 1], strides = [1, 1]} : vector<256x10xi32> to vector<256x1xi32>
      %84 = vector.broadcast %1 : i32 to vector<256x1xi32>
      %85 = arith.addi %83, %84 : vector<256x1xi32>
      %86 = vector.broadcast %85 : vector<256x1xi32> to vector<256x512xi32>
      %87 = arith.cmpi eq, %17, %86 : vector<256x512xi32>
      %88 = arith.extui %87 : vector<256x512xi1> to vector<256x512xi32>
      %89 = arith.addi %82, %88 : vector<256x512xi32>
      %90 = vector.extract_strided_slice %25 {offsets = [0, 9], sizes = [256, 1], strides = [1, 1]} : vector<256x10xi32> to vector<256x1xi32>
      %91 = vector.broadcast %1 : i32 to vector<256x1xi32>
      %92 = arith.addi %90, %91 : vector<256x1xi32>
      %93 = vector.broadcast %92 : vector<256x1xi32> to vector<256x512xi32>
      %94 = arith.cmpi eq, %17, %93 : vector<256x512xi32>
      %95 = arith.extui %94 : vector<256x512xi1> to vector<256x512xi32>
      %96 = arith.addi %89, %95 : vector<256x512xi32>
      %c0_i32_11 = arith.constant 0 : i32
      %97 = vector.broadcast %c0_i32_11 : i32 to vector<256x512xi32>
      %98 = arith.cmpi sgt, %96, %97 : vector<256x512xi32>
      %cst_12 = arith.constant 0xFF800000 : f32
      %99 = vector.broadcast %cst_12 : f32 to vector<256x512xf32>
      %100 = arith.select %98, %16, %99 : vector<256x512xi1>, vector<256x512xf32>
      %cst_13 = arith.constant dense<0xFF800000> : vector<256xf32>
      %101 = vector.multi_reduction <maximumf>, %100, %cst_13 [1] : vector<256x512xf32> to vector<256xf32>
      %102 = vector.shape_cast %101 : vector<256xf32> to vector<256x1xf32>
      %103 = vector.broadcast %102 : vector<256x1xf32> to vector<256x512xf32>
      %104 = arith.subf %16, %103 : vector<256x512xf32>
      %cst_14 = arith.constant 0.000000e+00 : f32
      %105 = vector.broadcast %cst_14 : f32 to vector<256x512xf32>
      %106 = arith.minimumf %104, %105 : vector<256x512xf32>
      %107 = math.exp %106 : vector<256x512xf32>
      %108 = arith.sitofp %96 : vector<256x512xi32> to vector<256x512xf32>
      %109 = arith.mulf %108, %107 : vector<256x512xf32>
      %cst_15 = arith.constant dense<0.000000e+00> : vector<256xf32>
      %110 = vector.multi_reduction <add>, %109, %cst_15 [1] : vector<256x512xf32> to vector<256xf32>
      %111 = vector.shape_cast %110 : vector<256xf32> to vector<256x1xf32>
      %cst_16 = arith.constant 0.000000e+00 : f32
      %112 = vector.broadcast %cst_16 : f32 to vector<256x512xf32>
      %113 = arith.select %23, %107, %112 : vector<256x512xi1>, vector<256x512xf32>
      %cst_17 = arith.constant dense<0.000000e+00> : vector<256xf32>
      %114 = vector.multi_reduction <add>, %113, %cst_17 [1] : vector<256x512xf32> to vector<256xf32>
      %115 = vector.shape_cast %114 : vector<256xf32> to vector<256x1xf32>
      %116 = arith.divf %115, %111 : vector<256x1xf32>
      %cst_18 = arith.constant 9.99999996E-12 : f32
      %117 = vector.broadcast %cst_18 : f32 to vector<256x1xf32>
      %118 = arith.addf %116, %117 : vector<256x1xf32>
      %119 = math.log %118 : vector<256x1xf32>
      %cst_19 = arith.constant 0.000000e+00 : f32
      %120 = vector.broadcast %cst_19 : f32 to vector<256x1xf32>
      %121 = arith.subf %120, %119 : vector<256x1xf32>
      %122 = vector.broadcast %4 : i32 to vector<256x1xi32>
      %123 = arith.addi %18, %122 : vector<256x1xi32>
      %124 = vector.broadcast %3 : i32 to vector<256x1xi32>
      %125 = arith.cmpi slt, %123, %124 : vector<256x1xi32>
      %cst_20 = arith.constant 0.000000e+00 : f32
      %126 = vector.broadcast %cst_20 : f32 to vector<256x1xf32>
      %127 = arith.select %125, %121, %126 : vector<256x1xi1>, vector<256x1xf32>
      %cst_21 = arith.constant dense<0.000000e+00> : vector<1xf32>
      %128 = vector.multi_reduction <add>, %127, %cst_21 [0] : vector<256x1xf32> to vector<1xf32>
      %129 = vector.shape_cast %128 : vector<1xf32> to vector<1x1xf32>
      %cst_22 = arith.constant 0.000000e+00 : f32
      %130 = vector.broadcast %cst_22 : f32 to vector<8x128xf32>
      %131 = vector.broadcast %129 : vector<1x1xf32> to vector<8x128xf32>
      %132 = arith.addf %130, %131 : vector<8x128xf32>
      %c0_23 = arith.constant 0 : index
      %c0_24 = arith.constant 0 : index
      %c0_25 = arith.constant 0 : index
      %c0_26 = arith.constant 0 : index
      %133 = vector.load %arg8[%c0_23, %c0_24, %c0_25, %c0_26] : memref<1x1x8x128xf32, #tpu.memory_space<vmem>>, vector<1x1x8x128xf32>
      %134 = vector.shape_cast %133 : vector<1x1x8x128xf32> to vector<8x128xf32>
      %135 = vector.shape_cast %132 : vector<8x128xf32> to vector<1x1x8x128xf32>
      tpu.vector_store %arg8[%c0_23, %c0_24, %c0_25, %c0_26], %135 {strides = array<i32>} : memref<1x1x8x128xf32, #tpu.memory_space<vmem>>, vector<1x1x8x128xf32>,
    } else {
    }
    return
  }
  func.func @transform_0(%arg0: i32, %arg1: i32, %arg2: memref<5xi32, #tpu.memory_space<smem>>, %arg3: memref<5xi32, #tpu.memory_space<smem>>) -> (i32, i32) {
    %c0_i32 = arith.constant 0 : i32
    %c0_i32_0 = arith.constant 0 : i32
    %c0_i32_1 = arith.constant 0 : i32
    return %c0_i32, %c0_i32_0 : i32, i32
  }
  func.func @transform_1(%arg0: i32, %arg1: i32, %arg2: memref<5xi32, #tpu.memory_space<smem>>, %arg3: memref<5xi32, #tpu.memory_space<smem>>) -> (i32, i32) {
    %c0_i32 = arith.constant 0 : i32
    %c0_i32_0 = arith.constant 0 : i32
    return %arg0, %c0_i32 : i32, i32
  }
  func.func @transform_2(%arg0: i32, %arg1: i32, %arg2: memref<5xi32, #tpu.memory_space<smem>>, %arg3: memref<5xi32, #tpu.memory_space<smem>>) -> (i32, i32, i32) {
    %c0_i32 = arith.constant 0 : i32
    %c0_i32_0 = arith.constant 0 : i32
    %c0_i32_1 = arith.constant 0 : i32
    return %arg1, %c0_i32, %c0_i32_0 : i32, i32, i32
  }
  func.func @transform_3(%arg0: i32, %arg1: i32, %arg2: memref<5xi32, #tpu.memory_space<smem>>, %arg3: memref<5xi32, #tpu.memory_space<smem>>) -> (i32, i32, i32) {
    %c0_i32 = arith.constant 0 : i32
    %c0_i32_0 = arith.constant 0 : i32
    return %arg1, %arg0, %c0_i32 : i32, i32, i32
  }
  func.func @transform_4(%arg0: i32, %arg1: i32, %arg2: memref<5xi32, #tpu.memory_space<smem>>, %arg3: memref<5xi32, #tpu.memory_space<smem>>) -> (i32, i32, i32, i32) {
    %c0_i32 = arith.constant 0 : i32
    %c0_i32_0 = arith.constant 0 : i32
    %c0_i32_1 = arith.constant 0 : i32
    return %arg0, %arg1, %c0_i32, %c0_i32_0 : i32, i32, i32, i32
  }
}

</mosaic_0001>

<llo_original>
// kernel: infonce_forward.1
$region0: #{infonce_forward.1}
  #allocation0 [shape = 'u32[]', space=smem, size = 0x4, offset = 0x4, fixed_abs, tag = 'smem constant byte address 0x4 - core index']
  #allocation1 [shape = 'u32[72,128]{1,0:T(1,128)}', space=vmem, size = 0x9000, scoped, tag = 'internal scratch']
  #allocation2 [shape = 's32[1]{0}', space=sflag, size = 0x4, scoped, tag = 'scoped memory for infonce_forward.1']
  #allocation3 [shape = 'u8[512]{0}', space=smem, size = 0x200, scoped, tag = 'prefetched SMEM operand 0']
  #allocation4 [shape = 'u8[512]{0}', space=smem, size = 0x200, scoped, tag = 'prefetched SMEM operand 1']
  %s0 = inlined_call_operand.vmem [shape: s32[5], index: 0, kind: input, shape index: {}]
  %s1 = inlined_call_operand.vmem [shape: s32[5], index: 1, kind: input, shape index: {}]
  %s2 = inlined_call_operand.vmem [shape: f32[8,512], index: 2, kind: input, shape index: {}]
  %s3 = inlined_call_operand.vmem [shape: f32[512,16], index: 3, kind: input, shape index: {}]
  %s4 = inlined_call_operand.vmem [shape: f32[5,16,8], index: 4, kind: input, shape index: {}]
  %s5 = inlined_call_operand.vmem [shape: s32[5,512,10], index: 5, kind: input, shape index: {}]
  %s6 = inlined_call_operand.vmem [shape: f32[2,5,8,128], index: 6, kind: output, shape index: {}]
  %s7 = sld [smem:[#allocation0]]
  $region57: #{infonce_forward.1} parent=0
    _
  %s9 = ssub.s32 1, %s7
  %s10 = scalar_select 0, %s9, %s7
  %s12 = sshll.u32 %s0, 4
  %s13 = int_to_ptr.vmem [resolvable:$true] %s12
  %15 = dma.vmem_to_smem %s13, 16, [#allocation3], [#allocation2]
  %s17 = sshll.u32 %s1, 4
  %s18 = int_to_ptr.vmem [resolvable:$true] %s17
  %20 = dma.vmem_to_smem %s18, 16, [#allocation4], [#allocation2]
  %22 = dma.done [#allocation2], 32
  %23 = sfence
  loop: start=0, step=1, limit=12
  $region2: #{infonce_forward.1} parent=0 // loop_pre_header
    _
  $region3: #{infonce_forward.1} parent=0 // loop_header
    %s25 = sphi 0, %s29
    %p26 = scmp.ge.s32.totalorder %s25, 12
    %s32 = sphi 0, %s44
    %s33 = sphi 0, %s40
    %s34 = sphi 0, %s32
    %s35 = sphi 0, %s33
    %s36 = sphi 0, %s34
    %s37 = sphi 0, %s35
    %s45 = sphi 0, %s45
    %s47 = sphi 0, %s45
    %s48 = sphi 0, %s47
    %s62 = sphi 0, %s48
    %s68 = sphi 0, %s70
    %s71 = sphi 0, %s68
    %s72 = sphi 0, %s71
    %s88 = sphi 0, %s72
    %s94 = sphi 0, %s96
    %s97 = sphi 0, %s94
    %s98 = sphi 0, %s97
    %s114 = sphi 0, %s98
    %s122 = sphi 0, %s124
    %s125 = sphi 0, %s122
    %s126 = sphi 0, %s125
    %s142 = sphi 0, %s126
    %s150 = sphi 0, %s152
    %s153 = sphi 0, %s150
    %s154 = sphi 0, %s153
    %s170 = sphi 0, %s154
  $region4: #{infonce_forward.1} parent=0 // loop_header_branch
    %28 = sbr.rel (%p26) target = $region8
  $region5: #{infonce_forward.1} parent=0 // loop_body
    %s30 = ssub.s32 %s25, 1
    %s31 = ssub.s32 %s25, 2
    %s38 = sadd.s32 1, %s33
    %p39 = scmp.ge.s32.totalorder %s38, 5
    %s40 = scalar_select %p39, 0, %s38
    %s41 = sadd.s32 1, %s32
    %s42 = scalar_select %p39, %s41, %s32
    %p43 = scmp.ge.s32.totalorder %s42, 2
    %s44 = scalar_select %p43, 0, %s42
    %s46 = sadd.s32 %s45, 1
    %p49 = scmp.eq.s32.totalorder %s25, 9
    %p50 = scmp.ne.s32.totalorder %s45, %s47
    %p51 = scmp.eq.s32.totalorder %s25, 0
    %p52 = por %p50, %p51
    %p53 = scmp.ne.s32.totalorder %s45, %s47
    %p54 = scmp.eq.s32.totalorder %s30, 9
    %p55 = por %p53, %p54
    %p56 = scmp.ne.s32.totalorder %s47, %s48
    %p57 = scmp.eq.s32.totalorder %s30, 0
    %p58 = por %p56, %p57
    %p59 = scmp.ne.s32.totalorder %s47, %s48
    %p60 = scmp.eq.s32.totalorder %s31, 9
    %p61 = por %p59, %p60
    %p63 = scmp.ne.s32.totalorder %s48, %s62
    %p64 = scmp.eq.s32.totalorder %s31, 0
    %p65 = por %p63, %p64
    %s66 = ssub.s32 %s32, %s44
    %p67 = scmp.eq.s32.totalorder %s66, 0
    %s69 = sadd.s32 %s68, 1
    %s70 = scalar_select %p67, %s68, %s69
    %p73 = pneg %p67
    %p74 = scmp.eq.s32.totalorder %s25, 9
    %p75 = por %p73, %p74
    %p76 = scmp.ne.s32.totalorder %s68, %s71
    %p77 = scmp.eq.s32.totalorder %s25, 0
    %p78 = por %p76, %p77
    %p79 = scmp.ne.s32.totalorder %s68, %s71
    %p80 = scmp.eq.s32.totalorder %s30, 9
    %p81 = por %p79, %p80
    %p82 = scmp.ne.s32.totalorder %s71, %s72
    %p83 = scmp.eq.s32.totalorder %s30, 0
    %p84 = por %p82, %p83
    %p85 = scmp.ne.s32.totalorder %s71, %s72
    %p86 = scmp.eq.s32.totalorder %s31, 9
    %p87 = por %p85, %p86
    %p89 = scmp.ne.s32.totalorder %s72, %s88
    %p90 = scmp.eq.s32.totalorder %s31, 0
    %p91 = por %p89, %p90
    %s92 = ssub.s32 %s33, %s40
    %p93 = scmp.eq.s32.totalorder %s92, 0
    %s95 = sadd.s32 %s94, 1
    %s96 = scalar_select %p93, %s94, %s95
    %p99 = pneg %p93
    %p100 = scmp.eq.s32.totalorder %s25, 9
    %p101 = por %p99, %p100
    %p102 = scmp.ne.s32.totalorder %s94, %s97
    %p103 = scmp.eq.s32.totalorder %s25, 0
    %p104 = por %p102, %p103
    %p105 = scmp.ne.s32.totalorder %s94, %s97
    %p106 = scmp.eq.s32.totalorder %s30, 9
    %p107 = por %p105, %p106
    %p108 = scmp.ne.s32.totalorder %s97, %s98
    %p109 = scmp.eq.s32.totalorder %s30, 0
    %p110 = por %p108, %p109
    %p111 = scmp.ne.s32.totalorder %s97, %s98
    %p112 = scmp.eq.s32.totalorder %s31, 9
    %p113 = por %p111, %p112
    %p115 = scmp.ne.s32.totalorder %s98, %s114
    %p116 = scmp.eq.s32.totalorder %s31, 0
    %p117 = por %p115, %p116
    %s118 = ssub.s32 %s33, %s40
    %s119 = ssub.s32 %s32, %s44
    %s120 = sor.u32 %s118, %s119
    %p121 = scmp.eq.s32.totalorder %s120, 0
    %s123 = sadd.s32 %s122, 1
    %s124 = scalar_select %p121, %s122, %s123
    %p127 = pneg %p121
    %p128 = scmp.eq.s32.totalorder %s25, 9
    %p129 = por %p127, %p128
    %p130 = scmp.ne.s32.totalorder %s122, %s125
    %p131 = scmp.eq.s32.totalorder %s25, 0
    %p132 = por %p130, %p131
    %p133 = scmp.ne.s32.totalorder %s122, %s125
    %p134 = scmp.eq.s32.totalorder %s30, 9
    %p135 = por %p133, %p134
    %p136 = scmp.ne.s32.totalorder %s125, %s126
    %p137 = scmp.eq.s32.totalorder %s30, 0
    %p138 = por %p136, %p137
    %p139 = scmp.ne.s32.totalorder %s125, %s126
    %p140 = scmp.eq.s32.totalorder %s31, 9
    %p141 = por %p139, %p140
    %p143 = scmp.ne.s32.totalorder %s126, %s142
    %p144 = scmp.eq.s32.totalorder %s31, 0
    %p145 = por %p143, %p144
    %s146 = ssub.s32 %s32, %s44
    %s147 = ssub.s32 %s33, %s40
    %s148 = sor.u32 %s146, %s147
    %p149 = scmp.eq.s32.totalorder %s148, 0
    %s151 = sadd.s32 %s150, 1
    %s152 = scalar_select %p149, %s150, %s151
    %p155 = pneg %p149
    %p156 = scmp.eq.s32.totalorder %s25, 9
    %p157 = por %p155, %p156
    %p158 = scmp.ne.s32.totalorder %s150, %s153
    %p159 = scmp.eq.s32.totalorder %s25, 0
    %p160 = por %p158, %p159
    %p161 = scmp.ne.s32.totalorder %s150, %s153
    %p162 = scmp.eq.s32.totalorder %s30, 9
    %p163 = por %p161, %p162
    %p164 = scmp.ne.s32.totalorder %s153, %s154
    %p165 = scmp.eq.s32.totalorder %s30, 0
    %p166 = por %p164, %p165
    %p167 = scmp.ne.s32.totalorder %s153, %s154
    %p168 = scmp.eq.s32.totalorder %s31, 9
    %p169 = por %p167, %p168
    %p171 = scmp.ne.s32.totalorder %s154, %s170
    %p172 = scmp.eq.s32.totalorder %s31, 0
    %p173 = por %p171, %p172
    %p174 = scmp.le.s32.totalorder 1, %s25
    %p175 = scmp.lt.s32.totalorder %s25, 11
    %p176 = pnand %p174, %p175
    %p177 = pneg %p176
    // Predicated region
    $region9: #{infonce_forward.1} parent=5 // pred_check
      _
    $region10: #{infonce_forward.1} parent=5 // pred_check_branch
      %179 = sbr.rel (%p176) target = $region12
    $region11: #{infonce_forward.1} parent=5 // pred_region
      %s180 = ssub.s32 %s25, 1
      // Predicated region
      $region13: #{infonce_forward.1} parent=11 // pred_check
        %p181 = pneg %p58
      $region14: #{infonce_forward.1} parent=11 // pred_check_branch
        %183 = sbr.rel (%p181) target = $region16
      $region15: #{infonce_forward.1} parent=11 // pred_region
        _
      $region16: #{infonce_forward.1} parent=11 // pred_fallthru
        _
    $region12: #{infonce_forward.1} parent=5 // pred_fallthru
      _
    %p184 = scmp.lt.s32.totalorder %s25, 10
    // Predicated region
    $region17: #{infonce_forward.1} parent=5 // pred_check
      %p185 = pneg %p184
    $region18: #{infonce_forward.1} parent=5 // pred_check_branch
      %187 = sbr.rel (%p185) target = $region20
    $region19: #{infonce_forward.1} parent=5 // pred_region
      // Predicated region
      $region21: #{infonce_forward.1} parent=19 // pred_check
        %p188 = pneg %p78
      $region22: #{infonce_forward.1} parent=19 // pred_check_branch
        %190 = sbr.rel (%p188) target = $region24
      $region23: #{infonce_forward.1} parent=19 // pred_region
        %s191 = smul.u32 32, %s32
        %p192 = scmp.lt.s32.totalorder %s191, 63
        %s193 = scalar_select %p192, %s191, 63
        %s194 = smul.addr %s193, 8
        %s195 = scalar_lea.vmem %s3, %s194
        %s196 = smul.u32 32, %s32
      $region24: #{infonce_forward.1} parent=19 // pred_fallthru
        _
      // Predicated region
      $region25: #{infonce_forward.1} parent=19 // pred_check
        %p197 = pneg %p104
      $region26: #{infonce_forward.1} parent=19 // pred_check_branch
        %199 = sbr.rel (%p197) target = $region28
      $region27: #{infonce_forward.1} parent=19 // pred_region
        %p200 = scmp.lt.s32.totalorder %s33, 4
        %s201 = scalar_select %p200, %s33, 4
        %s202 = smul.addr %s201, 2
        %s203 = smul.addr %s202, 8
        %s204 = scalar_lea.vmem %s4, %s203
      $region28: #{infonce_forward.1} parent=19 // pred_fallthru
        _
      // Predicated region
      $region29: #{infonce_forward.1} parent=19 // pred_check
        %p205 = pneg %p132
      $region30: #{infonce_forward.1} parent=19 // pred_check_branch
        %207 = sbr.rel (%p205) target = $region32
      $region31: #{infonce_forward.1} parent=19 // pred_region
        %s208 = smul.u32 32, %s32
        %p209 = scmp.lt.s32.totalorder %s33, 4
        %s210 = scalar_select %p209, %s33, 4
        %p211 = scmp.lt.s32.totalorder %s208, 63
        %s212 = scalar_select %p211, %s208, 63
        %s213 = smul.addr %s210, 64
        %s214 = sadd.s32 %s212, %s213
        %s215 = smul.addr %s214, 8
        %s216 = scalar_lea.vmem %s5, %s215
        %s217 = smul.u32 32, %s32
      $region32: #{infonce_forward.1} parent=19 // pred_fallthru
        _
    $region20: #{infonce_forward.1} parent=5 // pred_fallthru
      _
    %p218 = scmp.le.s32.totalorder 1, %s25
    %p219 = scmp.lt.s32.totalorder %s25, 11
    %p220 = pnand %p218, %p219
    %p221 = pneg %p220
    // Predicated region
    $region33: #{infonce_forward.1} parent=5 // pred_check
      _
    $region34: #{infonce_forward.1} parent=5 // pred_check_branch
      %223 = sbr.rel (%p220) target = $region36
    $region35: #{infonce_forward.1} parent=5 // pred_region
      %s224 = ssub.s32 %s25, 1
      %p225 = pneg %p58
      %p226 = pneg %p55
      %s227 = smul.u32 32, %s34
      %p228 = scmp.lt.s32.totalorder %s227, 63
      %s229 = scalar_select %p228, %s227, 63
      %s230 = smul.addr %s229, 8
      %s231 = scalar_lea.vmem %s3, %s230
      %p232 = pneg %p84
      %p233 = pneg %p81
      %p234 = scmp.lt.s32.totalorder %s35, 4
      %s235 = scalar_select %p234, %s35, 4
      %s236 = smul.addr %s235, 2
      %s237 = smul.addr %s236, 8
      %s238 = scalar_lea.vmem %s4, %s237
      %p239 = pneg %p110
      %p240 = pneg %p107
      %s241 = smul.u32 32, %s34
      %p242 = scmp.lt.s32.totalorder %s35, 4
      %s243 = scalar_select %p242, %s35, 4
      %p244 = scmp.lt.s32.totalorder %s241, 63
      %s245 = scalar_select %p244, %s241, 63
      %s246 = smul.addr %s243, 64
      %s247 = sadd.s32 %s245, %s246
      %s248 = smul.addr %s247, 8
      %s249 = scalar_lea.vmem %s5, %s248
      %p250 = pneg %p138
      %p251 = pneg %p135
      %p252 = pneg %p166
      %p253 = pneg %p163
      %p254 = scmp.lt.s32.totalorder %s34, 1
      %s255 = scalar_select %p254, %s34, 1
      %p256 = scmp.lt.s32.totalorder %s35, 4
      %s257 = scalar_select %p256, %s35, 4
      %s258 = smul.addr %s255, 5
      %s259 = sadd.s32 %s257, %s258
      %s260 = smul.addr %s259, 8
      %s261 = scalar_lea.vmem %s6, %s260
      %s262 = smul.u32 32, %s34
      %p263 = scmp.lt.s32.totalorder %s262, 63
      %s264 = scalar_select %p263, %s262, 63
      %s265 = smul.addr %s264, 8
      %s266 = scalar_lea.vmem %s3, %s265
      %s267 = smul.u32 32, %s34
      %p268 = scmp.lt.s32.totalorder %s35, 4
      %s269 = scalar_select %p268, %s35, 4
      %s270 = smul.addr %s269, 2
      %s271 = smul.addr %s270, 8
      %s272 = scalar_lea.vmem %s4, %s271
      %s273 = smul.u32 32, %s34
      %p274 = scmp.lt.s32.totalorder %s35, 4
      %s275 = scalar_select %p274, %s35, 4
      %p276 = scmp.lt.s32.totalorder %s273, 63
      %s277 = scalar_select %p276, %s273, 63
      %s278 = smul.addr %s275, 64
      %s279 = sadd.s32 %s277, %s278
      %s280 = smul.addr %s279, 8
      %s281 = scalar_lea.vmem %s5, %s280
      %s282 = smul.u32 32, %s34
      %p283 = scmp.lt.s32.totalorder %s34, 1
      %s284 = scalar_select %p283, %s34, 1
      %p285 = scmp.lt.s32.totalorder %s35, 4
      %s286 = scalar_select %p285, %s35, 4
      %s287 = smul.addr %s284, 5
      %s288 = sadd.s32 %s286, %s287
      %s289 = smul.addr %s288, 8
      %s290 = scalar_lea.vmem %s6, %s289
      %s291 = sld [smem:[#allocation3 + %s35]]
      %s292 = sld [smem:[#allocation4 + %s35]]
      %s293 = smul.u32 %s34, 256
      %p294 = scmp.ge.s32.totalorder %s293, %s292
      // Predicated region
      $region37: #{infonce_forward.1} parent=35 // pred_check
        %p295 = pneg %p294
      $region38: #{infonce_forward.1} parent=35 // pred_check_branch
        %297 = sbr.rel (%p295) target = $region40
      $region39: #{infonce_forward.1} parent=35 // pred_region
        %298 = vst [vmem:[%s290] sm:$0xff] 0.0
      $region40: #{infonce_forward.1} parent=35 // pred_fallthru
        _
      %p299 = scmp.lt.s32.totalorder %s293, %s292
      // Predicated region
      $region41: #{infonce_forward.1} parent=35 // pred_check
        %p300 = pneg %p299
      $region42: #{infonce_forward.1} parent=35 // pred_check_branch
        %302 = sbr.rel (%p300) target = $region44
      $region43: #{infonce_forward.1} parent=35 // pred_region
        %v303 = vld [vmem:[%s272] sm:$0xff]
        %v304 = vld [vmem:[%s272 + $0x8] sm:$0xff]
        %v305 = vld [vmem:[%s2] sm:$0xff]
        %v306 = vld [vmem:[%s2 + $0x8] sm:$0xff]
        %v307 = vld [vmem:[%s2 + $0x10] sm:$0xff]
        %v308 = vld [vmem:[%s2 + $0x18] sm:$0xff]
        %vm309 = vcmask 64512
        %v311 = vsel %vm309, %v303, 0
        %v314 = vsel %vm309, %v304, 0
        %316 = vmatpush.msra.mxu0 0.0
        %317 = vmatpush.msra.mxu0 0.0
        %318 = vmatpush.msra.mxu0 0.0
        %319 = vmatpush.msra.mxu0 0.0
        %320 = vmatpush.msra.mxu0 0.0
        %321 = vmatpush.msra.mxu0 0.0
        %322 = vmatpush.msra.mxu0 0.0
        %323 = vmatpush.msra.mxu0 0.0
        %324 = vmatpush.msra.mxu0 0.0
        %325 = vmatpush.msra.mxu0 0.0
        %326 = vmatpush.msra.mxu0 0.0
        %327 = vmatpush.msra.mxu0 0.0
        %328 = vmatpush.msra.mxu0 0.0
        %329 = vmatpush.msra.mxu0 0.0
        %330 = vmatpush.msra.mxu0 0.0
        %331 = vmatpush.msra.mxu0 %v305
        %332 = vmatmul.f32.gmra.mxu0 %v311
        %v333 = vpop.f32.mrf.mxu0
        %v334 = vadd.f32 0.0, %v333
        %335 = vmatmul.f32.gmra.mxu0 %v314
        %v336 = vpop.f32.mrf.mxu0
        %v337 = vadd.f32 0.0, %v336
        %338 = vdwg.mxu0
        %339 = vmatpush.msra.mxu0 0.0
        %340 = vmatpush.msra.mxu0 0.0
        %341 = vmatpush.msra.mxu0 0.0
        %342 = vmatpush.msra.mxu0 0.0
        %343 = vmatpush.msra.mxu0 0.0
        %344 = vmatpush.msra.mxu0 0.0
        %345 = vmatpush.msra.mxu0 0.0
        %346 = vmatpush.msra.mxu0 0.0
        %347 = vmatpush.msra.mxu0 0.0
        %348 = vmatpush.msra.mxu0 0.0
        %349 = vmatpush.msra.mxu0 0.0
        %350 = vmatpush.msra.mxu0 0.0
        %351 = vmatpush.msra.mxu0 0.0
        %352 = vmatpush.msra.mxu0 0.0
        %353 = vmatpush.msra.mxu0 0.0
        %354 = vmatpush.msra.mxu0 %v306
        %355 = vmatmul.f32.gmra.mxu0 %v311
        %v356 = vpop.f32.mrf.mxu0
        %v357 = vadd.f32 0.0, %v356
        %358 = vmatmul.f32.gmra.mxu0 %v314
        %v359 = vpop.f32.mrf.mxu0
        %v360 = vadd.f32 0.0, %v359
        %361 = vdwg.mxu0
        %362 = vmatpush.msra.mxu0 0.0
        %363 = vmatpush.msra.mxu0 0.0
        %364 = vmatpush.msra.mxu0 0.0
        %365 = vmatpush.msra.mxu0 0.0
        %366 = vmatpush.msra.mxu0 0.0
        %367 = vmatpush.msra.mxu0 0.0
        %368 = vmatpush.msra.mxu0 0.0
        %369 = vmatpush.msra.mxu0 0.0
        %370 = vmatpush.msra.mxu0 0.0
        %371 = vmatpush.msra.mxu0 0.0
        %372 = vmatpush.msra.mxu0 0.0
        %373 = vmatpush.msra.mxu0 0.0
        %374 = vmatpush.msra.mxu0 0.0
        %375 = vmatpush.msra.mxu0 0.0
        %376 = vmatpush.msra.mxu0 0.0
        %377 = vmatpush.msra.mxu0 %v307
        %378 = vmatmul.f32.gmra.mxu0 %v311
        %v379 = vpop.f32.mrf.mxu0
        %v380 = vadd.f32 0.0, %v379
        %381 = vmatmul.f32.gmra.mxu0 %v314
        %v382 = vpop.f32.mrf.mxu0
        %v383 = vadd.f32 0.0, %v382
        %384 = vdwg.mxu0
        %385 = vmatpush.msra.mxu0 0.0
        %386 = vmatpush.msra.mxu0 0.0
        %387 = vmatpush.msra.mxu0 0.0
        %388 = vmatpush.msra.mxu0 0.0
        %389 = vmatpush.msra.mxu0 0.0
        %390 = vmatpush.msra.mxu0 0.0
        %391 = vmatpush.msra.mxu0 0.0
        %392 = vmatpush.msra.mxu0 0.0
        %393 = vmatpush.msra.mxu0 0.0
        %394 = vmatpush.msra.mxu0 0.0
        %395 = vmatpush.msra.mxu0 0.0
        %396 = vmatpush.msra.mxu0 0.0
        %397 = vmatpush.msra.mxu0 0.0
        %398 = vmatpush.msra.mxu0 0.0
        %399 = vmatpush.msra.mxu0 0.0
        %400 = vmatpush.msra.mxu0 %v308
        %401 = vmatmul.f32.gmra.mxu0 %v311
        %v402 = vpop.f32.mrf.mxu0
        %v403 = vadd.f32 0.0, %v402
        %404 = vmatmul.f32.gmra.mxu0 %v314
        %v405 = vpop.f32.mrf.mxu0
        %v406 = vadd.f32 0.0, %v405
        %407 = vdwg.mxu0
        %v408 = vld [vmem:[%s266] sm:$0xff]
        %v409 = vld [vmem:[%s266 + $0x8] sm:$0xff]
        %v410 = vld [vmem:[%s266 + $0x10] sm:$0xff]
        %v411 = vld [vmem:[%s266 + $0x18] sm:$0xff]
        %v412 = vld [vmem:[%s266 + $0x20] sm:$0xff]
        %v413 = vld [vmem:[%s266 + $0x28] sm:$0xff]
        %v414 = vld [vmem:[%s266 + $0x30] sm:$0xff]
        %v415 = vld [vmem:[%s266 + $0x38] sm:$0xff]
        %v416 = vld [vmem:[%s266 + $0x40] sm:$0xff]
        %v417 = vld [vmem:[%s266 + $0x48] sm:$0xff]
        %v418 = vld [vmem:[%s266 + $0x50] sm:$0xff]
        %v419 = vld [vmem:[%s266 + $0x58] sm:$0xff]
        %v420 = vld [vmem:[%s266 + $0x60] sm:$0xff]
        %v421 = vld [vmem:[%s266 + $0x68] sm:$0xff]
        %v422 = vld [vmem:[%s266 + $0x70] sm:$0xff]
        %v423 = vld [vmem:[%s266 + $0x78] sm:$0xff]
        %v424 = vld [vmem:[%s266 + $0x80] sm:$0xff]
        %v425 = vld [vmem:[%s266 + $0x88] sm:$0xff]
        %v426 = vld [vmem:[%s266 + $0x90] sm:$0xff]
        %v427 = vld [vmem:[%s266 + $0x98] sm:$0xff]
        %v428 = vld [vmem:[%s266 + $0xa0] sm:$0xff]
        %v429 = vld [vmem:[%s266 + $0xa8] sm:$0xff]
        %v430 = vld [vmem:[%s266 + $0xb0] sm:$0xff]
        %v431 = vld [vmem:[%s266 + $0xb8] sm:$0xff]
        %v432 = vld [vmem:[%s266 + $0xc0] sm:$0xff]
        %v433 = vld [vmem:[%s266 + $0xc8] sm:$0xff]
        %v434 = vld [vmem:[%s266 + $0xd0] sm:$0xff]
        %v435 = vld [vmem:[%s266 + $0xd8] sm:$0xff]
        %v436 = vld [vmem:[%s266 + $0xe0] sm:$0xff]
        %v437 = vld [vmem:[%s266 + $0xe8] sm:$0xff]
        %v438 = vld [vmem:[%s266 + $0xf0] sm:$0xff]
        %v439 = vld [vmem:[%s266 + $0xf8] sm:$0xff]
        %vm440 = vcmask 130048
        %v442 = vsel %vm440, %v408, 0
        %v445 = vsel %vm440, %v409, 0
        %v448 = vsel %vm440, %v410, 0
        %v451 = vsel %vm440, %v411, 0
        %v454 = vsel %vm440, %v412, 0
        %v457 = vsel %vm440, %v413, 0
        %v460 = vsel %vm440, %v414, 0
        %v463 = vsel %vm440, %v415, 0
        %v466 = vsel %vm440, %v416, 0
        %v469 = vsel %vm440, %v417, 0
        %v472 = vsel %vm440, %v418, 0
        %v475 = vsel %vm440, %v419, 0
        %v478 = vsel %vm440, %v420, 0
        %v481 = vsel %vm440, %v421, 0
        %v484 = vsel %vm440, %v422, 0
        %v487 = vsel %vm440, %v423, 0
        %v490 = vsel %vm440, %v424, 0
        %v493 = vsel %vm440, %v425, 0
        %v496 = vsel %vm440, %v426, 0
        %v499 = vsel %vm440, %v427, 0
        %v502 = vsel %vm440, %v428, 0
        %v505 = vsel %vm440, %v429, 0
        %v508 = vsel %vm440, %v430, 0
        %v511 = vsel %vm440, %v431, 0
        %v514 = vsel %vm440, %v432, 0
        %v517 = vsel %vm440, %v433, 0
        %v520 = vsel %vm440, %v434, 0
        %v523 = vsel %vm440, %v435, 0
        %v526 = vsel %vm440, %v436, 0
        %v529 = vsel %vm440, %v437, 0
        %v532 = vsel %vm440, %v438, 0
        %v535 = vsel %vm440, %v439, 0
        %537 = vmatpush.msra.mxu0 0.0
        %538 = vmatpush.msra.mxu0 0.0
        %539 = vmatpush.msra.mxu0 0.0
        %540 = vmatpush.msra.mxu0 0.0
        %541 = vmatpush.msra.mxu0 0.0
        %542 = vmatpush.msra.mxu0 0.0
        %543 = vmatpush.msra.mxu0 0.0
        %544 = vmatpush.msra.mxu0 0.0
        %545 = vmatpush.msra.mxu0 0.0
        %546 = vmatpush.msra.mxu0 0.0
        %547 = vmatpush.msra.mxu0 0.0
        %548 = vmatpush.msra.mxu0 0.0
        %549 = vmatpush.msra.mxu0 0.0
        %550 = vmatpush.msra.mxu0 0.0
        %551 = vmatpush.msra.mxu0 %v337
        %552 = vmatpush.msra.mxu0 %v334
        %553 = vmatmul.f32.gmra.mxu0 %v442
        %v554 = vpop.f32.mrf.mxu0
        %v555 = vadd.f32 0.0, %v554
        %556 = vmatmul.f32.gmra.mxu0 %v445
        %v557 = vpop.f32.mrf.mxu0
        %v558 = vadd.f32 0.0, %v557
        %559 = vmatmul.f32.gmra.mxu0 %v448
        %v560 = vpop.f32.mrf.mxu0
        %v561 = vadd.f32 0.0, %v560
        %562 = vmatmul.f32.gmra.mxu0 %v451
        %v563 = vpop.f32.mrf.mxu0
        %v564 = vadd.f32 0.0, %v563
        %565 = vmatmul.f32.gmra.mxu0 %v454
        %v566 = vpop.f32.mrf.mxu0
        %v567 = vadd.f32 0.0, %v566
        %568 = vmatmul.f32.gmra.mxu0 %v457
        %v569 = vpop.f32.mrf.mxu0
        %v570 = vadd.f32 0.0, %v569
        %571 = vmatmul.f32.gmra.mxu0 %v460
        %v572 = vpop.f32.mrf.mxu0
        %v573 = vadd.f32 0.0, %v572
        %574 = vmatmul.f32.gmra.mxu0 %v463
        %v575 = vpop.f32.mrf.mxu0
        %v576 = vadd.f32 0.0, %v575
        %577 = vmatmul.f32.gmra.mxu0 %v466
        %v578 = vpop.f32.mrf.mxu0
        %v579 = vadd.f32 0.0, %v578
        %580 = vmatmul.f32.gmra.mxu0 %v469
        %v581 = vpop.f32.mrf.mxu0
        %v582 = vadd.f32 0.0, %v581
        %583 = vmatmul.f32.gmra.mxu0 %v472
        %v584 = vpop.f32.mrf.mxu0
        %v585 = vadd.f32 0.0, %v584
        %586 = vmatmul.f32.gmra.mxu0 %v475
        %v587 = vpop.f32.mrf.mxu0
        %v588 = vadd.f32 0.0, %v587
        %589 = vmatmul.f32.gmra.mxu0 %v478
        %v590 = vpop.f32.mrf.mxu0
        %v591 = vadd.f32 0.0, %v590
        %592 = vmatmul.f32.gmra.mxu0 %v481
        %v593 = vpop.f32.mrf.mxu0
        %v594 = vadd.f32 0.0, %v593
        %595 = vmatmul.f32.gmra.mxu0 %v484
        %v596 = vpop.f32.mrf.mxu0
        %v597 = vadd.f32 0.0, %v596
        %598 = vmatmul.f32.gmra.mxu0 %v487
        %v599 = vpop.f32.mrf.mxu0
        %v600 = vadd.f32 0.0, %v599
        %601 = vmatmul.f32.gmra.mxu0 %v490
        %v602 = vpop.f32.mrf.mxu0
        %v603 = vadd.f32 0.0, %v602
        %604 = vmatmul.f32.gmra.mxu0 %v493
        %v605 = vpop.f32.mrf.mxu0
        %v606 = vadd.f32 0.0, %v605
        %607 = vmatmul.f32.gmra.mxu0 %v496
        %v608 = vpop.f32.mrf.mxu0
        %v609 = vadd.f32 0.0, %v608
        %610 = vmatmul.f32.gmra.mxu0 %v499
        %v611 = vpop.f32.mrf.mxu0
        %v612 = vadd.f32 0.0, %v611
        %613 = vmatmul.f32.gmra.mxu0 %v502
        %v614 = vpop.f32.mrf.mxu0
        %v615 = vadd.f32 0.0, %v614
        %616 = vmatmul.f32.gmra.mxu0 %v505
        %v617 = vpop.f32.mrf.mxu0
        %v618 = vadd.f32 0.0, %v617
        %619 = vmatmul.f32.gmra.mxu0 %v508
        %v620 = vpop.f32.mrf.mxu0
        %v621 = vadd.f32 0.0, %v620
        %622 = vmatmul.f32.gmra.mxu0 %v511
        %v623 = vpop.f32.mrf.mxu0
        %v624 = vadd.f32 0.0, %v623
        %625 = vmatmul.f32.gmra.mxu0 %v514
        %v626 = vpop.f32.mrf.mxu0
        %v627 = vadd.f32 0.0, %v626
        %628 = vmatmul.f32.gmra.mxu0 %v517
        %v629 = vpop.f32.mrf.mxu0
        %v630 = vadd.f32 0.0, %v629
        %631 = vmatmul.f32.gmra.mxu0 %v520
        %v632 = vpop.f32.mrf.mxu0
        %v633 = vadd.f32 0.0, %v632
        %634 = vmatmul.f32.gmra.mxu0 %v523
        %v635 = vpop.f32.mrf.mxu0
        %v636 = vadd.f32 0.0, %v635
        %637 = vmatmul.f32.gmra.mxu0 %v526
        %v638 = vpop.f32.mrf.mxu0
        %v639 = vadd.f32 0.0, %v638
        %640 = vmatmul.f32.gmra.mxu0 %v529
        %v641 = vpop.f32.mrf.mxu0
        %v642 = vadd.f32 0.0, %v641
        %643 = vmatmul.f32.gmra.mxu0 %v532
        %v644 = vpop.f32.mrf.mxu0
        %v645 = vadd.f32 0.0, %v644
        %646 = vmatmul.f32.gmra.mxu0 %v535
        %v647 = vpop.f32.mrf.mxu0
        %v648 = vadd.f32 0.0, %v647
        %649 = vdwg.mxu0
        %650 = vmatpush.msra.mxu0 0.0
        %651 = vmatpush.msra.mxu0 0.0
        %652 = vmatpush.msra.mxu0 0.0
        %653 = vmatpush.msra.mxu0 0.0
        %654 = vmatpush.msra.mxu0 0.0
        %655 = vmatpush.msra.mxu0 0.0
        %656 = vmatpush.msra.mxu0 0.0
        %657 = vmatpush.msra.mxu0 0.0
        %658 = vmatpush.msra.mxu0 0.0
        %659 = vmatpush.msra.mxu0 0.0
        %660 = vmatpush.msra.mxu0 0.0
        %661 = vmatpush.msra.mxu0 0.0
        %662 = vmatpush.msra.mxu0 0.0
        %663 = vmatpush.msra.mxu0 0.0
        %664 = vmatpush.msra.mxu0 %v360
        %665 = vmatpush.msra.mxu0 %v357
        %666 = vmatmul.f32.gmra.mxu0 %v442
        %v667 = vpop.f32.mrf.mxu0
        %v668 = vadd.f32 0.0, %v667
        %669 = vmatmul.f32.gmra.mxu0 %v445
        %v670 = vpop.f32.mrf.mxu0
        %v671 = vadd.f32 0.0, %v670
        %672 = vmatmul.f32.gmra.mxu0 %v448
        %v673 = vpop.f32.mrf.mxu0
        %v674 = vadd.f32 0.0, %v673
        %675 = vmatmul.f32.gmra.mxu0 %v451
        %v676 = vpop.f32.mrf.mxu0
        %v677 = vadd.f32 0.0, %v676
        %678 = vmatmul.f32.gmra.mxu0 %v454
        %v679 = vpop.f32.mrf.mxu0
        %v680 = vadd.f32 0.0, %v679
        %681 = vmatmul.f32.gmra.mxu0 %v457
        %v682 = vpop.f32.mrf.mxu0
        %v683 = vadd.f32 0.0, %v682
        %684 = vmatmul.f32.gmra.mxu0 %v460
        %v685 = vpop.f32.mrf.mxu0
        %v686 = vadd.f32 0.0, %v685
        %687 = vmatmul.f32.gmra.mxu0 %v463
        %v688 = vpop.f32.mrf.mxu0
        %v689 = vadd.f32 0.0, %v688
        %690 = vmatmul.f32.gmra.mxu0 %v466
        %v691 = vpop.f32.mrf.mxu0
        %v692 = vadd.f32 0.0, %v691
        %693 = vmatmul.f32.gmra.mxu0 %v469
        %v694 = vpop.f32.mrf.mxu0
        %v695 = vadd.f32 0.0, %v694
        %696 = vmatmul.f32.gmra.mxu0 %v472
        %v697 = vpop.f32.mrf.mxu0
        %v698 = vadd.f32 0.0, %v697
        %699 = vmatmul.f32.gmra.mxu0 %v475
        %v700 = vpop.f32.mrf.mxu0
        %v701 = vadd.f32 0.0, %v700
        %702 = vmatmul.f32.gmra.mxu0 %v478
        %v703 = vpop.f32.mrf.mxu0
        %v704 = vadd.f32 0.0, %v703
        %705 = vmatmul.f32.gmra.mxu0 %v481
        %v706 = vpop.f32.mrf.mxu0
        %v707 = vadd.f32 0.0, %v706
        %708 = vmatmul.f32.gmra.mxu0 %v484
        %v709 = vpop.f32.mrf.mxu0
        %v710 = vadd.f32 0.0, %v709
        %711 = vmatmul.f32.gmra.mxu0 %v487
        %v712 = vpop.f32.mrf.mxu0
        %v713 = vadd.f32 0.0, %v712
        %714 = vmatmul.f32.gmra.mxu0 %v490
        %v715 = vpop.f32.mrf.mxu0
        %v716 = vadd.f32 0.0, %v715
        %717 = vmatmul.f32.gmra.mxu0 %v493
        %v718 = vpop.f32.mrf.mxu0
        %v719 = vadd.f32 0.0, %v718
        %720 = vmatmul.f32.gmra.mxu0 %v496
        %v721 = vpop.f32.mrf.mxu0
        %v722 = vadd.f32 0.0, %v721
        %723 = vmatmul.f32.gmra.mxu0 %v499
        %v724 = vpop.f32.mrf.mxu0
        %v725 = vadd.f32 0.0, %v724
        %726 = vmatmul.f32.gmra.mxu0 %v502
        %v727 = vpop.f32.mrf.mxu0
        %v728 = vadd.f32 0.0, %v727
        %729 = vmatmul.f32.gmra.mxu0 %v505
        %v730 = vpop.f32.mrf.mxu0
        %v731 = vadd.f32 0.0, %v730
        %732 = vmatmul.f32.gmra.mxu0 %v508
        %v733 = vpop.f32.mrf.mxu0
        %v734 = vadd.f32 0.0, %v733
        %735 = vmatmul.f32.gmra.mxu0 %v511
        %v736 = vpop.f32.mrf.mxu0
        %v737 = vadd.f32 0.0, %v736
        %738 = vmatmul.f32.gmra.mxu0 %v514
        %v739 = vpop.f32.mrf.mxu0
        %v740 = vadd.f32 0.0, %v739
        %741 = vmatmul.f32.gmra.mxu0 %v517
        %v742 = vpop.f32.mrf.mxu0
        %v743 = vadd.f32 0.0, %v742
        %744 = vmatmul.f32.gmra.mxu0 %v520
        %v745 = vpop.f32.mrf.mxu0
        %v746 = vadd.f32 0.0, %v745
        %747 = vmatmul.f32.gmra.mxu0 %v523
        %v748 = vpop.f32.mrf.mxu0
        %v749 = vadd.f32 0.0, %v748
        %750 = vmatmul.f32.gmra.mxu0 %v526
        %v751 = vpop.f32.mrf.mxu0
        %v752 = vadd.f32 0.0, %v751
        %753 = vmatmul.f32.gmra.mxu0 %v529
        %v754 = vpop.f32.mrf.mxu0
        %v755 = vadd.f32 0.0, %v754
        %756 = vmatmul.f32.gmra.mxu0 %v532
        %v757 = vpop.f32.mrf.mxu0
        %v758 = vadd.f32 0.0, %v757
        %759 = vmatmul.f32.gmra.mxu0 %v535
        %v760 = vpop.f32.mrf.mxu0
        %v761 = vadd.f32 0.0, %v760
        %762 = vdwg.mxu0
        %763 = vmatpush.msra.mxu0 0.0
        %764 = vmatpush.msra.mxu0 0.0
        %765 = vmatpush.msra.mxu0 0.0
        %766 = vmatpush.msra.mxu0 0.0
        %767 = vmatpush.msra.mxu0 0.0
        %768 = vmatpush.msra.mxu0 0.0
        %769 = vmatpush.msra.mxu0 0.0
        %770 = vmatpush.msra.mxu0 0.0
        %771 = vmatpush.msra.mxu0 0.0
        %772 = vmatpush.msra.mxu0 0.0
        %773 = vmatpush.msra.mxu0 0.0
        %774 = vmatpush.msra.mxu0 0.0
        %775 = vmatpush.msra.mxu0 0.0
        %776 = vmatpush.msra.mxu0 0.0
        %777 = vmatpush.msra.mxu0 %v383
        %778 = vmatpush.msra.mxu0 %v380
        %779 = vmatmul.f32.gmra.mxu0 %v442
        %v780 = vpop.f32.mrf.mxu0
        %v781 = vadd.f32 0.0, %v780
        %782 = vmatmul.f32.gmra.mxu0 %v445
        %v783 = vpop.f32.mrf.mxu0
        %v784 = vadd.f32 0.0, %v783
        %785 = vmatmul.f32.gmra.mxu0 %v448
        %v786 = vpop.f32.mrf.mxu0
        %v787 = vadd.f32 0.0, %v786
        %788 = vmatmul.f32.gmra.mxu0 %v451
        %v789 = vpop.f32.mrf.mxu0
        %v790 = vadd.f32 0.0, %v789
        %791 = vmatmul.f32.gmra.mxu0 %v454
        %v792 = vpop.f32.mrf.mxu0
        %v793 = vadd.f32 0.0, %v792
        %794 = vmatmul.f32.gmra.mxu0 %v457
        %v795 = vpop.f32.mrf.mxu0
        %v796 = vadd.f32 0.0, %v795
        %797 = vmatmul.f32.gmra.mxu0 %v460
        %v798 = vpop.f32.mrf.mxu0
        %v799 = vadd.f32 0.0, %v798
        %800 = vmatmul.f32.gmra.mxu0 %v463
        %v801 = vpop.f32.mrf.mxu0
        %v802 = vadd.f32 0.0, %v801
        %803 = vmatmul.f32.gmra.mxu0 %v466
        %v804 = vpop.f32.mrf.mxu0
        %v805 = vadd.f32 0.0, %v804
        %806 = vmatmul.f32.gmra.mxu0 %v469
        %v807 = vpop.f32.mrf.mxu0
        %v808 = vadd.f32 0.0, %v807
        %809 = vmatmul.f32.gmra.mxu0 %v472
        %v810 = vpop.f32.mrf.mxu0
        %v811 = vadd.f32 0.0, %v810
        %812 = vmatmul.f32.gmra.mxu0 %v475
        %v813 = vpop.f32.mrf.mxu0
        %v814 = vadd.f32 0.0, %v813
        %815 = vmatmul.f32.gmra.mxu0 %v478
        %v816 = vpop.f32.mrf.mxu0
        %v817 = vadd.f32 0.0, %v816
        %818 = vmatmul.f32.gmra.mxu0 %v481
        %v819 = vpop.f32.mrf.mxu0
        %v820 = vadd.f32 0.0, %v819
        %821 = vmatmul.f32.gmra.mxu0 %v484
        %v822 = vpop.f32.mrf.mxu0
        %v823 = vadd.f32 0.0, %v822
        %824 = vmatmul.f32.gmra.mxu0 %v487
        %v825 = vpop.f32.mrf.mxu0
        %v826 = vadd.f32 0.0, %v825
        %827 = vmatmul.f32.gmra.mxu0 %v490
        %v828 = vpop.f32.mrf.mxu0
        %v829 = vadd.f32 0.0, %v828
        %830 = vmatmul.f32.gmra.mxu0 %v493
        %v831 = vpop.f32.mrf.mxu0
        %v832 = vadd.f32 0.0, %v831
        %833 = vmatmul.f32.gmra.mxu0 %v496
        %v834 = vpop.f32.mrf.mxu0
        %v835 = vadd.f32 0.0, %v834
        %836 = vmatmul.f32.gmra.mxu0 %v499
        %v837 = vpop.f32.mrf.mxu0
        %v838 = vadd.f32 0.0, %v837
        %839 = vmatmul.f32.gmra.mxu0 %v502
        %v840 = vpop.f32.mrf.mxu0
        %v841 = vadd.f32 0.0, %v840
        %842 = vmatmul.f32.gmra.mxu0 %v505
        %v843 = vpop.f32.mrf.mxu0
        %v844 = vadd.f32 0.0, %v843
        %845 = vmatmul.f32.gmra.mxu0 %v508
        %v846 = vpop.f32.mrf.mxu0
        %v847 = vadd.f32 0.0, %v846
        %848 = vmatmul.f32.gmra.mxu0 %v511
        %v849 = vpop.f32.mrf.mxu0
        %v850 = vadd.f32 0.0, %v849
        %851 = vmatmul.f32.gmra.mxu0 %v514
        %v852 = vpop.f32.mrf.mxu0
        %v853 = vadd.f32 0.0, %v852
        %854 = vmatmul.f32.gmra.mxu0 %v517
        %v855 = vpop.f32.mrf.mxu0
        %v856 = vadd.f32 0.0, %v855
        %857 = vmatmul.f32.gmra.mxu0 %v520
        %v858 = vpop.f32.mrf.mxu0
        %v859 = vadd.f32 0.0, %v858
        %860 = vmatmul.f32.gmra.mxu0 %v523
        %v861 = vpop.f32.mrf.mxu0
        %v862 = vadd.f32 0.0, %v861
        %863 = vmatmul.f32.gmra.mxu0 %v526
        %v864 = vpop.f32.mrf.mxu0
        %v865 = vadd.f32 0.0, %v864
        %866 = vmatmul.f32.gmra.mxu0 %v529
        %v867 = vpop.f32.mrf.mxu0
        %v868 = vadd.f32 0.0, %v867
        %869 = vmatmul.f32.gmra.mxu0 %v532
        %v870 = vpop.f32.mrf.mxu0
        %v871 = vadd.f32 0.0, %v870
        %872 = vmatmul.f32.gmra.mxu0 %v535
        %v873 = vpop.f32.mrf.mxu0
        %v874 = vadd.f32 0.0, %v873
        %875 = vdwg.mxu0
        %876 = vmatpush.msra.mxu0 0.0
        %877 = vmatpush.msra.mxu0 0.0
        %878 = vmatpush.msra.mxu0 0.0
        %879 = vmatpush.msra.mxu0 0.0
        %880 = vmatpush.msra.mxu0 0.0
        %881 = vmatpush.msra.mxu0 0.0
        %882 = vmatpush.msra.mxu0 0.0
        %883 = vmatpush.msra.mxu0 0.0
        %884 = vmatpush.msra.mxu0 0.0
        %885 = vmatpush.msra.mxu0 0.0
        %886 = vmatpush.msra.mxu0 0.0
        %887 = vmatpush.msra.mxu0 0.0
        %888 = vmatpush.msra.mxu0 0.0
        %889 = vmatpush.msra.mxu0 0.0
        %890 = vmatpush.msra.mxu0 %v406
        %891 = vmatpush.msra.mxu0 %v403
        %892 = vmatmul.f32.gmra.mxu0 %v442
        %v893 = vpop.f32.mrf.mxu0
        %v894 = vadd.f32 0.0, %v893
        %895 = vmatmul.f32.gmra.mxu0 %v445
        %v896 = vpop.f32.mrf.mxu0
        %v897 = vadd.f32 0.0, %v896
        %898 = vmatmul.f32.gmra.mxu0 %v448
        %v899 = vpop.f32.mrf.mxu0
        %v900 = vadd.f32 0.0, %v899
        %901 = vmatmul.f32.gmra.mxu0 %v451
        %v902 = vpop.f32.mrf.mxu0
        %v903 = vadd.f32 0.0, %v902
        %904 = vmatmul.f32.gmra.mxu0 %v454
        %v905 = vpop.f32.mrf.mxu0
        %v906 = vadd.f32 0.0, %v905
        %907 = vmatmul.f32.gmra.mxu0 %v457
        %v908 = vpop.f32.mrf.mxu0
        %v909 = vadd.f32 0.0, %v908
        %910 = vmatmul.f32.gmra.mxu0 %v460
        %v911 = vpop.f32.mrf.mxu0
        %v912 = vadd.f32 0.0, %v911
        %913 = vmatmul.f32.gmra.mxu0 %v463
        %v914 = vpop.f32.mrf.mxu0
        %v915 = vadd.f32 0.0, %v914
        %916 = vmatmul.f32.gmra.mxu0 %v466
        %v917 = vpop.f32.mrf.mxu0
        %v918 = vadd.f32 0.0, %v917
        %919 = vmatmul.f32.gmra.mxu0 %v469
        %v920 = vpop.f32.mrf.mxu0
        %v921 = vadd.f32 0.0, %v920
        %922 = vmatmul.f32.gmra.mxu0 %v472
        %v923 = vpop.f32.mrf.mxu0
        %v924 = vadd.f32 0.0, %v923
        %925 = vmatmul.f32.gmra.mxu0 %v475
        %v926 = vpop.f32.mrf.mxu0
        %v927 = vadd.f32 0.0, %v926
        %928 = vmatmul.f32.gmra.mxu0 %v478
        %v929 = vpop.f32.mrf.mxu0
        %v930 = vadd.f32 0.0, %v929
        %931 = vmatmul.f32.gmra.mxu0 %v481
        %v932 = vpop.f32.mrf.mxu0
        %v933 = vadd.f32 0.0, %v932
        %934 = vmatmul.f32.gmra.mxu0 %v484
        %v935 = vpop.f32.mrf.mxu0
        %v936 = vadd.f32 0.0, %v935
        %937 = vmatmul.f32.gmra.mxu0 %v487
        %v938 = vpop.f32.mrf.mxu0
        %v939 = vadd.f32 0.0, %v938
        %940 = vmatmul.f32.gmra.mxu0 %v490
        %v941 = vpop.f32.mrf.mxu0
        %v942 = vadd.f32 0.0, %v941
        %943 = vmatmul.f32.gmra.mxu0 %v493
        %v944 = vpop.f32.mrf.mxu0
        %v945 = vadd.f32 0.0, %v944
        %946 = vmatmul.f32.gmra.mxu0 %v496
        %v947 = vpop.f32.mrf.mxu0
        %v948 = vadd.f32 0.0, %v947
        %949 = vmatmul.f32.gmra.mxu0 %v499
        %v950 = vpop.f32.mrf.mxu0
        %v951 = vadd.f32 0.0, %v950
        %952 = vmatmul.f32.gmra.mxu0 %v502
        %v953 = vpop.f32.mrf.mxu0
        %v954 = vadd.f32 0.0, %v953
        %955 = vmatmul.f32.gmra.mxu0 %v505
        %v956 = vpop.f32.mrf.mxu0
        %v957 = vadd.f32 0.0, %v956
        %958 = vmatmul.f32.gmra.mxu0 %v508
        %v959 = vpop.f32.mrf.mxu0
        %v960 = vadd.f32 0.0, %v959
        %961 = vmatmul.f32.gmra.mxu0 %v511
        %v962 = vpop.f32.mrf.mxu0
        %v963 = vadd.f32 0.0, %v962
        %964 = vmatmul.f32.gmra.mxu0 %v514
        %v965 = vpop.f32.mrf.mxu0
        %v966 = vadd.f32 0.0, %v965
        %967 = vmatmul.f32.gmra.mxu0 %v517
        %v968 = vpop.f32.mrf.mxu0
        %v969 = vadd.f32 0.0, %v968
        %970 = vmatmul.f32.gmra.mxu0 %v520
        %v971 = vpop.f32.mrf.mxu0
        %v972 = vadd.f32 0.0, %v971
        %973 = vmatmul.f32.gmra.mxu0 %v523
        %v974 = vpop.f32.mrf.mxu0
        %v975 = vadd.f32 0.0, %v974
        %976 = vmatmul.f32.gmra.mxu0 %v526
        %v977 = vpop.f32.mrf.mxu0
        %v978 = vadd.f32 0.0, %v977
        %979 = vmatmul.f32.gmra.mxu0 %v529
        %v980 = vpop.f32.mrf.mxu0
        %v981 = vadd.f32 0.0, %v980
        %982 = vmatmul.f32.gmra.mxu0 %v532
        %v983 = vpop.f32.mrf.mxu0
        %v984 = vadd.f32 0.0, %v983
        %985 = vmatmul.f32.gmra.mxu0 %v535
        %v986 = vpop.f32.mrf.mxu0
        %v987 = vadd.f32 0.0, %v986
        %988 = vdwg.mxu0
        %v989 = vlaneseq
        %v990 = vand.u32 %v989, 127
        %v991 = vadd.s32 %v990, 128
        %v992 = vadd.s32 %v990, 256
        %v993 = vadd.s32 %v990, 384
        %v994 = vlaneseq
        %v995 = vshrl.u32 %v994, 7
        %v996 = vadd.s32 %v995, 8
        %v997 = vadd.s32 %v995, 16
        %v998 = vadd.s32 %v995, 24
        %v999 = vadd.s32 %v995, 32
        %v1000 = vadd.s32 %v995, 40
        %v1001 = vadd.s32 %v995, 48
        %v1002 = vadd.s32 %v995, 56
        %v1003 = vadd.s32 %v995, 64
        %v1004 = vadd.s32 %v995, 72
        %v1005 = vadd.s32 %v995, 80
        %v1006 = vadd.s32 %v995, 88
        %v1007 = vadd.s32 %v995, 96
        %v1008 = vadd.s32 %v995, 104
        %v1009 = vadd.s32 %v995, 112
        %v1010 = vadd.s32 %v995, 120
        %v1011 = vadd.s32 %v995, 128
        %v1012 = vadd.s32 %v995, 136
        %v1013 = vadd.s32 %v995, 144
        %v1014 = vadd.s32 %v995, 152
        %v1015 = vadd.s32 %v995, 160
        %v1016 = vadd.s32 %v995, 168
        %v1017 = vadd.s32 %v995, 176
        %v1018 = vadd.s32 %v995, 184
        %v1019 = vadd.s32 %v995, 192
        %v1020 = vadd.s32 %v995, 200
        %v1021 = vadd.s32 %v995, 208
        %v1022 = vadd.s32 %v995, 216
        %v1023 = vadd.s32 %v995, 224
        %v1024 = vadd.s32 %v995, 232
        %v1025 = vadd.s32 %v995, 240
        %v1026 = vadd.s32 %v995, 248
        %s1027 = sadd.s32 %s293, %s291
        %v1028 = vstv %s1027
        %v1029 = vadd.s32 %v995, %v1028
        %v1030 = vadd.s32 %v996, %v1028
        %v1031 = vadd.s32 %v997, %v1028
        %v1032 = vadd.s32 %v998, %v1028
        %v1033 = vadd.s32 %v999, %v1028
        %v1034 = vadd.s32 %v1000, %v1028
        %v1035 = vadd.s32 %v1001, %v1028
        %v1036 = vadd.s32 %v1002, %v1028
        %v1037 = vadd.s32 %v1003, %v1028
        %v1038 = vadd.s32 %v1004, %v1028
        %v1039 = vadd.s32 %v1005, %v1028
        %v1040 = vadd.s32 %v1006, %v1028
        %v1041 = vadd.s32 %v1007, %v1028
        %v1042 = vadd.s32 %v1008, %v1028
        %v1043 = vadd.s32 %v1009, %v1028
        %v1044 = vadd.s32 %v1010, %v1028
        %v1045 = vadd.s32 %v1011, %v1028
        %v1046 = vadd.s32 %v1012, %v1028
        %v1047 = vadd.s32 %v1013, %v1028
        %v1048 = vadd.s32 %v1014, %v1028
        %v1049 = vadd.s32 %v1015, %v1028
        %v1050 = vadd.s32 %v1016, %v1028
        %v1051 = vadd.s32 %v1017, %v1028
        %v1052 = vadd.s32 %v1018, %v1028
        %v1053 = vadd.s32 %v1019, %v1028
        %v1054 = vadd.s32 %v1020, %v1028
        %v1055 = vadd.s32 %v1021, %v1028
        %v1056 = vadd.s32 %v1022, %v1028
        %v1057 = vadd.s32 %v1023, %v1028
        %v1058 = vadd.s32 %v1024, %v1028
        %v1059 = vadd.s32 %v1025, %v1028
        %v1060 = vadd.s32 %v1026, %v1028
        %vm1061 = vcmp.eq.s32.totalorder %v990, %v1029
        %vm1062 = vcmp.eq.s32.totalorder %v991, %v1029
        %vm1063 = vcmp.eq.s32.totalorder %v992, %v1029
        %vm1064 = vcmp.eq.s32.totalorder %v993, %v1029
        %vm1065 = vcmp.eq.s32.totalorder %v990, %v1030
        %vm1066 = vcmp.eq.s32.totalorder %v991, %v1030
        %vm1067 = vcmp.eq.s32.totalorder %v992, %v1030
        %vm1068 = vcmp.eq.s32.totalorder %v993, %v1030
        %vm1069 = vcmp.eq.s32.totalorder %v990, %v1031
        %vm1070 = vcmp.eq.s32.totalorder %v991, %v1031
        %vm1071 = vcmp.eq.s32.totalorder %v992, %v1031
        %vm1072 = vcmp.eq.s32.totalorder %v993, %v1031
        %vm1073 = vcmp.eq.s32.totalorder %v990, %v1032
        %vm1074 = vcmp.eq.s32.totalorder %v991, %v1032
        %vm1075 = vcmp.eq.s32.totalorder %v992, %v1032
        %vm1076 = vcmp.eq.s32.totalorder %v993, %v1032
        %vm1077 = vcmp.eq.s32.totalorder %v990, %v1033
        %vm1078 = vcmp.eq.s32.totalorder %v991, %v1033
        %vm1079 = vcmp.eq.s32.totalorder %v992, %v1033
        %vm1080 = vcmp.eq.s32.totalorder %v993, %v1033
        %vm1081 = vcmp.eq.s32.totalorder %v990, %v1034
        %vm1082 = vcmp.eq.s32.totalorder %v991, %v1034
        %vm1083 = vcmp.eq.s32.totalorder %v992, %v1034
        %vm1084 = vcmp.eq.s32.totalorder %v993, %v1034
        %vm1085 = vcmp.eq.s32.totalorder %v990, %v1035
        %vm1086 = vcmp.eq.s32.totalorder %v991, %v1035
        %vm1087 = vcmp.eq.s32.totalorder %v992, %v1035
        %vm1088 = vcmp.eq.s32.totalorder %v993, %v1035
        %vm1089 = vcmp.eq.s32.totalorder %v990, %v1036
        %vm1090 = vcmp.eq.s32.totalorder %v991, %v1036
        %vm1091 = vcmp.eq.s32.totalorder %v992, %v1036
        %vm1092 = vcmp.eq.s32.totalorder %v993, %v1036
        %vm1093 = vcmp.eq.s32.totalorder %v990, %v1037
        %vm1094 = vcmp.eq.s32.totalorder %v991, %v1037
        %vm1095 = vcmp.eq.s32.totalorder %v992, %v1037
        %vm1096 = vcmp.eq.s32.totalorder %v993, %v1037
        %vm1097 = vcmp.eq.s32.totalorder %v990, %v1038
        %vm1098 = vcmp.eq.s32.totalorder %v991, %v1038
        %vm1099 = vcmp.eq.s32.totalorder %v992, %v1038
        %vm1100 = vcmp.eq.s32.totalorder %v993, %v1038
        %vm1101 = vcmp.eq.s32.totalorder %v990, %v1039
        %vm1102 = vcmp.eq.s32.totalorder %v991, %v1039
        %vm1103 = vcmp.eq.s32.totalorder %v992, %v1039
        %vm1104 = vcmp.eq.s32.totalorder %v993, %v1039
        %vm1105 = vcmp.eq.s32.totalorder %v990, %v1040
        %vm1106 = vcmp.eq.s32.totalorder %v991, %v1040
        %vm1107 = vcmp.eq.s32.totalorder %v992, %v1040
        %vm1108 = vcmp.eq.s32.totalorder %v993, %v1040
        %vm1109 = vcmp.eq.s32.totalorder %v990, %v1041
        %vm1110 = vcmp.eq.s32.totalorder %v991, %v1041
        %vm1111 = vcmp.eq.s32.totalorder %v992, %v1041
        %vm1112 = vcmp.eq.s32.totalorder %v993, %v1041
        %vm1113 = vcmp.eq.s32.totalorder %v990, %v1042
        %vm1114 = vcmp.eq.s32.totalorder %v991, %v1042
        %vm1115 = vcmp.eq.s32.totalorder %v992, %v1042
        %vm1116 = vcmp.eq.s32.totalorder %v993, %v1042
        %vm1117 = vcmp.eq.s32.totalorder %v990, %v1043
        %vm1118 = vcmp.eq.s32.totalorder %v991, %v1043
        %vm1119 = vcmp.eq.s32.totalorder %v992, %v1043
        %vm1120 = vcmp.eq.s32.totalorder %v993, %v1043
        %vm1121 = vcmp.eq.s32.totalorder %v990, %v1044
        %vm1122 = vcmp.eq.s32.totalorder %v991, %v1044
        %vm1123 = vcmp.eq.s32.totalorder %v992, %v1044
        %vm1124 = vcmp.eq.s32.totalorder %v993, %v1044
        %vm1125 = vcmp.eq.s32.totalorder %v990, %v1045
        %vm1126 = vcmp.eq.s32.totalorder %v991, %v1045
        %vm1127 = vcmp.eq.s32.totalorder %v992, %v1045
        %vm1128 = vcmp.eq.s32.totalorder %v993, %v1045
        %vm1129 = vcmp.eq.s32.totalorder %v990, %v1046
        %vm1130 = vcmp.eq.s32.totalorder %v991, %v1046
        %vm1131 = vcmp.eq.s32.totalorder %v992, %v1046
        %vm1132 = vcmp.eq.s32.totalorder %v993, %v1046
        %vm1133 = vcmp.eq.s32.totalorder %v990, %v1047
        %vm1134 = vcmp.eq.s32.totalorder %v991, %v1047
        %vm1135 = vcmp.eq.s32.totalorder %v992, %v1047
        %vm1136 = vcmp.eq.s32.totalorder %v993, %v1047
        %vm1137 = vcmp.eq.s32.totalorder %v990, %v1048
        %vm1138 = vcmp.eq.s32.totalorder %v991, %v1048
        %vm1139 = vcmp.eq.s32.totalorder %v992, %v1048
        %vm1140 = vcmp.eq.s32.totalorder %v993, %v1048
        %vm1141 = vcmp.eq.s32.totalorder %v990, %v1049
        %vm1142 = vcmp.eq.s32.totalorder %v991, %v1049
        %vm1143 = vcmp.eq.s32.totalorder %v992, %v1049
        %vm1144 = vcmp.eq.s32.totalorder %v993, %v1049
        %vm1145 = vcmp.eq.s32.totalorder %v990, %v1050
        %vm1146 = vcmp.eq.s32.totalorder %v991, %v1050
        %vm1147 = vcmp.eq.s32.totalorder %v992, %v1050
        %vm1148 = vcmp.eq.s32.totalorder %v993, %v1050
        %vm1149 = vcmp.eq.s32.totalorder %v990, %v1051
        %vm1150 = vcmp.eq.s32.totalorder %v991, %v1051
        %vm1151 = vcmp.eq.s32.totalorder %v992, %v1051
        %vm1152 = vcmp.eq.s32.totalorder %v993, %v1051
        %vm1153 = vcmp.eq.s32.totalorder %v990, %v1052
        %vm1154 = vcmp.eq.s32.totalorder %v991, %v1052
        %vm1155 = vcmp.eq.s32.totalorder %v992, %v1052
        %vm1156 = vcmp.eq.s32.totalorder %v993, %v1052
        %vm1157 = vcmp.eq.s32.totalorder %v990, %v1053
        %vm1158 = vcmp.eq.s32.totalorder %v991, %v1053
        %vm1159 = vcmp.eq.s32.totalorder %v992, %v1053
        %vm1160 = vcmp.eq.s32.totalorder %v993, %v1053
        %vm1161 = vcmp.eq.s32.totalorder %v990, %v1054
        %vm1162 = vcmp.eq.s32.totalorder %v991, %v1054
        %vm1163 = vcmp.eq.s32.totalorder %v992, %v1054
        %vm1164 = vcmp.eq.s32.totalorder %v993, %v1054
        %vm1165 = vcmp.eq.s32.totalorder %v990, %v1055
        %vm1166 = vcmp.eq.s32.totalorder %v991, %v1055
        %vm1167 = vcmp.eq.s32.totalorder %v992, %v1055
        %vm1168 = vcmp.eq.s32.totalorder %v993, %v1055
        %vm1169 = vcmp.eq.s32.totalorder %v990, %v1056
        %vm1170 = vcmp.eq.s32.totalorder %v991, %v1056
        %vm1171 = vcmp.eq.s32.totalorder %v992, %v1056
        %vm1172 = vcmp.eq.s32.totalorder %v993, %v1056
        %vm1173 = vcmp.eq.s32.totalorder %v990, %v1057
        %vm1174 = vcmp.eq.s32.totalorder %v991, %v1057
        %vm1175 = vcmp.eq.s32.totalorder %v992, %v1057
        %vm1176 = vcmp.eq.s32.totalorder %v993, %v1057
        %vm1177 = vcmp.eq.s32.totalorder %v990, %v1058
        %vm1178 = vcmp.eq.s32.totalorder %v991, %v1058
        %vm1179 = vcmp.eq.s32.totalorder %v992, %v1058
        %vm1180 = vcmp.eq.s32.totalorder %v993, %v1058
        %vm1181 = vcmp.eq.s32.totalorder %v990, %v1059
        %vm1182 = vcmp.eq.s32.totalorder %v991, %v1059
        %vm1183 = vcmp.eq.s32.totalorder %v992, %v1059
        %vm1184 = vcmp.eq.s32.totalorder %v993, %v1059
        %vm1185 = vcmp.eq.s32.totalorder %v990, %v1060
        %vm1186 = vcmp.eq.s32.totalorder %v991, %v1060
        %vm1187 = vcmp.eq.s32.totalorder %v992, %v1060
        %vm1188 = vcmp.eq.s32.totalorder %v993, %v1060
        %v1189 = vld [vmem:[%s281] sm:$0xff]
        %v1190 = vld [vmem:[%s281 + $0x8] sm:$0xff]
        %v1191 = vld [vmem:[%s281 + $0x10] sm:$0xff]
        %v1192 = vld [vmem:[%s281 + $0x18] sm:$0xff]
        %v1193 = vld [vmem:[%s281 + $0x20] sm:$0xff]
        %v1194 = vld [vmem:[%s281 + $0x28] sm:$0xff]
        %v1195 = vld [vmem:[%s281 + $0x30] sm:$0xff]
        %v1196 = vld [vmem:[%s281 + $0x38] sm:$0xff]
        %v1197 = vld [vmem:[%s281 + $0x40] sm:$0xff]
        %v1198 = vld [vmem:[%s281 + $0x48] sm:$0xff]
        %v1199 = vld [vmem:[%s281 + $0x50] sm:$0xff]
        %v1200 = vld [vmem:[%s281 + $0x58] sm:$0xff]
        %v1201 = vld [vmem:[%s281 + $0x60] sm:$0xff]
        %v1202 = vld [vmem:[%s281 + $0x68] sm:$0xff]
        %v1203 = vld [vmem:[%s281 + $0x70] sm:$0xff]
        %v1204 = vld [vmem:[%s281 + $0x78] sm:$0xff]
        %v1205 = vld [vmem:[%s281 + $0x80] sm:$0xff]
        %v1206 = vld [vmem:[%s281 + $0x88] sm:$0xff]
        %v1207 = vld [vmem:[%s281 + $0x90] sm:$0xff]
        %v1208 = vld [vmem:[%s281 + $0x98] sm:$0xff]
        %v1209 = vld [vmem:[%s281 + $0xa0] sm:$0xff]
        %v1210 = vld [vmem:[%s281 + $0xa8] sm:$0xff]
        %v1211 = vld [vmem:[%s281 + $0xb0] sm:$0xff]
        %v1212 = vld [vmem:[%s281 + $0xb8] sm:$0xff]
        %v1213 = vld [vmem:[%s281 + $0xc0] sm:$0xff]
        %v1214 = vld [vmem:[%s281 + $0xc8] sm:$0xff]
        %v1215 = vld [vmem:[%s281 + $0xd0] sm:$0xff]
        %v1216 = vld [vmem:[%s281 + $0xd8] sm:$0xff]
        %v1217 = vld [vmem:[%s281 + $0xe0] sm:$0xff]
        %v1218 = vld [vmem:[%s281 + $0xe8] sm:$0xff]
        %v1219 = vld [vmem:[%s281 + $0xf0] sm:$0xff]
        %v1220 = vld [vmem:[%s281 + $0xf8] sm:$0xff]
        %v1221 = vsel %vm1061, 1, 0
        %v1222 = vsel %vm1062, 1, 0
        %v1223 = vsel %vm1063, 1, 0
        %v1224 = vsel %vm1064, 1, 0
        %v1225 = vsel %vm1065, 1, 0
        %v1226 = vsel %vm1066, 1, 0
        %v1227 = vsel %vm1067, 1, 0
        %v1228 = vsel %vm1068, 1, 0
        %v1229 = vsel %vm1069, 1, 0
        %v1230 = vsel %vm1070, 1, 0
        %v1231 = vsel %vm1071, 1, 0
        %v1232 = vsel %vm1072, 1, 0
        %v1233 = vsel %vm1073, 1, 0
        %v1234 = vsel %vm1074, 1, 0
        %v1235 = vsel %vm1075, 1, 0
        %v1236 = vsel %vm1076, 1, 0
        %v1237 = vsel %vm1077, 1, 0
        %v1238 = vsel %vm1078, 1, 0
        %v1239 = vsel %vm1079, 1, 0
        %v1240 = vsel %vm1080, 1, 0
        %v1241 = vsel %vm1081, 1, 0
        %v1242 = vsel %vm1082, 1, 0
        %v1243 = vsel %vm1083, 1, 0
        %v1244 = vsel %vm1084, 1, 0
        %v1245 = vsel %vm1085, 1, 0
        %v1246 = vsel %vm1086, 1, 0
        %v1247 = vsel %vm1087, 1, 0
        %v1248 = vsel %vm1088, 1, 0
        %v1249 = vsel %vm1089, 1, 0
        %v1250 = vsel %vm1090, 1, 0
        %v1251 = vsel %vm1091, 1, 0
        %v1252 = vsel %vm1092, 1, 0
        %v1253 = vsel %vm1093, 1, 0
        %v1254 = vsel %vm1094, 1, 0
        %v1255 = vsel %vm1095, 1, 0
        %v1256 = vsel %vm1096, 1, 0
        %v1257 = vsel %vm1097, 1, 0
        %v1258 = vsel %vm1098, 1, 0
        %v1259 = vsel %vm1099, 1, 0
        %v1260 = vsel %vm1100, 1, 0
        %v1261 = vsel %vm1101, 1, 0
        %v1262 = vsel %vm1102, 1, 0
        %v1263 = vsel %vm1103, 1, 0
        %v1264 = vsel %vm1104, 1, 0
        %v1265 = vsel %vm1105, 1, 0
        %v1266 = vsel %vm1106, 1, 0
        %v1267 = vsel %vm1107, 1, 0
        %v1268 = vsel %vm1108, 1, 0
        %v1269 = vsel %vm1109, 1, 0
        %v1270 = vsel %vm1110, 1, 0
        %v1271 = vsel %vm1111, 1, 0
        %v1272 = vsel %vm1112, 1, 0
        %v1273 = vsel %vm1113, 1, 0
        %v1274 = vsel %vm1114, 1, 0
        %v1275 = vsel %vm1115, 1, 0
        %v1276 = vsel %vm1116, 1, 0
        %v1277 = vsel %vm1117, 1, 0
        %v1278 = vsel %vm1118, 1, 0
        %v1279 = vsel %vm1119, 1, 0
        %v1280 = vsel %vm1120, 1, 0
        %v1281 = vsel %vm1121, 1, 0
        %v1282 = vsel %vm1122, 1, 0
        %v1283 = vsel %vm1123, 1, 0
        %v1284 = vsel %vm1124, 1, 0
        %v1285 = vsel %vm1125, 1, 0
        %v1286 = vsel %vm1126, 1, 0
        %v1287 = vsel %vm1127, 1, 0
        %v1288 = vsel %vm1128, 1, 0
        %v1289 = vsel %vm1129, 1, 0
        %v1290 = vsel %vm1130, 1, 0
        %v1291 = vsel %vm1131, 1, 0
        %v1292 = vsel %vm1132, 1, 0
        %v1293 = vsel %vm1133, 1, 0
        %v1294 = vsel %vm1134, 1, 0
        %v1295 = vsel %vm1135, 1, 0
        %v1296 = vsel %vm1136, 1, 0
        %v1297 = vsel %vm1137, 1, 0
        %v1298 = vsel %vm1138, 1, 0
        %v1299 = vsel %vm1139, 1, 0
        %v1300 = vsel %vm1140, 1, 0
        %v1301 = vsel %vm1141, 1, 0
        %v1302 = vsel %vm1142, 1, 0
        %v1303 = vsel %vm1143, 1, 0
        %v1304 = vsel %vm1144, 1, 0
        %v1305 = vsel %vm1145, 1, 0
        %v1306 = vsel %vm1146, 1, 0
        %v1307 = vsel %vm1147, 1, 0
        %v1308 = vsel %vm1148, 1, 0
        %v1309 = vsel %vm1149, 1, 0
        %v1310 = vsel %vm1150, 1, 0
        %v1311 = vsel %vm1151, 1, 0
        %v1312 = vsel %vm1152, 1, 0
        %v1313 = vsel %vm1153, 1, 0
        %v1314 = vsel %vm1154, 1, 0
        %v1315 = vsel %vm1155, 1, 0
        %v1316 = vsel %vm1156, 1, 0
        %v1317 = vsel %vm1157, 1, 0
        %v1318 = vsel %vm1158, 1, 0
        %v1319 = vsel %vm1159, 1, 0
        %v1320 = vsel %vm1160, 1, 0
        %v1321 = vsel %vm1161, 1, 0
        %v1322 = vsel %vm1162, 1, 0
        %v1323 = vsel %vm1163, 1, 0
        %v1324 = vsel %vm1164, 1, 0
        %v1325 = vsel %vm1165, 1, 0
        %v1326 = vsel %vm1166, 1, 0
        %v1327 = vsel %vm1167, 1, 0
        %v1328 = vsel %vm1168, 1, 0
        %v1329 = vsel %vm1169, 1, 0
        %v1330 = vsel %vm1170, 1, 0
        %v1331 = vsel %vm1171, 1, 0
        %v1332 = vsel %vm1172, 1, 0
        %v1333 = vsel %vm1173, 1, 0
        %v1334 = vsel %vm1174, 1, 0
        %v1335 = vsel %vm1175, 1, 0
        %v1336 = vsel %vm1176, 1, 0
        %v1337 = vsel %vm1177, 1, 0
        %v1338 = vsel %vm1178, 1, 0
        %v1339 = vsel %vm1179, 1, 0
        %v1340 = vsel %vm1180, 1, 0
        %v1341 = vsel %vm1181, 1, 0
        %v1342 = vsel %vm1182, 1, 0
        %v1343 = vsel %vm1183, 1, 0
        %v1344 = vsel %vm1184, 1, 0
        %v1345 = vsel %vm1185, 1, 0
        %v1346 = vsel %vm1186, 1, 0
        %v1347 = vsel %vm1187, 1, 0
        %v1348 = vsel %vm1188, 1, 0
        %v1349 = vstv %s291
        %v1350 = vadd.s32 %v1189, %v1349
        %v1351 = vadd.s32 %v1190, %v1349
        %v1352 = vadd.s32 %v1191, %v1349
        %v1353 = vadd.s32 %v1192, %v1349
        %v1354 = vadd.s32 %v1193, %v1349
        %v1355 = vadd.s32 %v1194, %v1349
        %v1356 = vadd.s32 %v1195, %v1349
        %v1357 = vadd.s32 %v1196, %v1349
        %v1358 = vadd.s32 %v1197, %v1349
        %v1359 = vadd.s32 %v1198, %v1349
        %v1360 = vadd.s32 %v1199, %v1349
        %v1361 = vadd.s32 %v1200, %v1349
        %v1362 = vadd.s32 %v1201, %v1349
        %v1363 = vadd.s32 %v1202, %v1349
        %v1364 = vadd.s32 %v1203, %v1349
        %v1365 = vadd.s32 %v1204, %v1349
        %v1366 = vadd.s32 %v1205, %v1349
        %v1367 = vadd.s32 %v1206, %v1349
        %v1368 = vadd.s32 %v1207, %v1349
        %v1369 = vadd.s32 %v1208, %v1349
        %v1370 = vadd.s32 %v1209, %v1349
        %v1371 = vadd.s32 %v1210, %v1349
        %v1372 = vadd.s32 %v1211, %v1349
        %v1373 = vadd.s32 %v1212, %v1349
        %v1374 = vadd.s32 %v1213, %v1349
        %v1375 = vadd.s32 %v1214, %v1349
        %v1376 = vadd.s32 %v1215, %v1349
        %v1377 = vadd.s32 %v1216, %v1349
        %v1378 = vadd.s32 %v1217, %v1349
        %v1379 = vadd.s32 %v1218, %v1349
        %v1380 = vadd.s32 %v1219, %v1349
        %v1381 = vadd.s32 %v1220, %v1349
        %1382 = vset.pattern.permute.xlu0 0
        %1383 = vperm.xlu0 %1382, %v1350
        %v1384 = vpop.permute.xlu0 %1383
        %1385 = vset.pattern.permute.xlu0 0
        %1386 = vperm.xlu0 %1385, %v1351
        %v1387 = vpop.permute.xlu0 %1386
        %1388 = vset.pattern.permute.xlu0 0
        %1389 = vperm.xlu0 %1388, %v1352
        %v1390 = vpop.permute.xlu0 %1389
        %1391 = vset.pattern.permute.xlu0 0
        %1392 = vperm.xlu0 %1391, %v1353
        %v1393 = vpop.permute.xlu0 %1392
        %1394 = vset.pattern.permute.xlu0 0
        %1395 = vperm.xlu0 %1394, %v1354
        %v1396 = vpop.permute.xlu0 %1395
        %1397 = vset.pattern.permute.xlu0 0
        %1398 = vperm.xlu0 %1397, %v1355
        %v1399 = vpop.permute.xlu0 %1398
        %1400 = vset.pattern.permute.xlu0 0
        %1401 = vperm.xlu0 %1400, %v1356
        %v1402 = vpop.permute.xlu0 %1401
        %1403 = vset.pattern.permute.xlu0 0
        %1404 = vperm.xlu0 %1403, %v1357
        %v1405 = vpop.permute.xlu0 %1404
        %1406 = vset.pattern.permute.xlu0 0
        %1407 = vperm.xlu0 %1406, %v1358
        %v1408 = vpop.permute.xlu0 %1407
        %1409 = vset.pattern.permute.xlu0 0
        %1410 = vperm.xlu0 %1409, %v1359
        %v1411 = vpop.permute.xlu0 %1410
        %1412 = vset.pattern.permute.xlu0 0
        %1413 = vperm.xlu0 %1412, %v1360
        %v1414 = vpop.permute.xlu0 %1413
        %1415 = vset.pattern.permute.xlu0 0
        %1416 = vperm.xlu0 %1415, %v1361
        %v1417 = vpop.permute.xlu0 %1416
        %1418 = vset.pattern.permute.xlu0 0
        %1419 = vperm.xlu0 %1418, %v1362
        %v1420 = vpop.permute.xlu0 %1419
        %1421 = vset.pattern.permute.xlu0 0
        %1422 = vperm.xlu0 %1421, %v1363
        %v1423 = vpop.permute.xlu0 %1422
        %1424 = vset.pattern.permute.xlu0 0
        %1425 = vperm.xlu0 %1424, %v1364
        %v1426 = vpop.permute.xlu0 %1425
        %1427 = vset.pattern.permute.xlu0 0
        %1428 = vperm.xlu0 %1427, %v1365
        %v1429 = vpop.permute.xlu0 %1428
        %1430 = vset.pattern.permute.xlu0 0
        %1431 = vperm.xlu0 %1430, %v1366
        %v1432 = vpop.permute.xlu0 %1431
        %1433 = vset.pattern.permute.xlu0 0
        %1434 = vperm.xlu0 %1433, %v1367
        %v1435 = vpop.permute.xlu0 %1434
        %1436 = vset.pattern.permute.xlu0 0
        %1437 = vperm.xlu0 %1436, %v1368
        %v1438 = vpop.permute.xlu0 %1437
        %1439 = vset.pattern.permute.xlu0 0
        %1440 = vperm.xlu0 %1439, %v1369
        %v1441 = vpop.permute.xlu0 %1440
        %1442 = vset.pattern.permute.xlu0 0
        %1443 = vperm.xlu0 %1442, %v1370
        %v1444 = vpop.permute.xlu0 %1443
        %1445 = vset.pattern.permute.xlu0 0
        %1446 = vperm.xlu0 %1445, %v1371
        %v1447 = vpop.permute.xlu0 %1446
        %1448 = vset.pattern.permute.xlu0 0
        %1449 = vperm.xlu0 %1448, %v1372
        %v1450 = vpop.permute.xlu0 %1449
        %1451 = vset.pattern.permute.xlu0 0
        %1452 = vperm.xlu0 %1451, %v1373
        %v1453 = vpop.permute.xlu0 %1452
        %1454 = vset.pattern.permute.xlu0 0
        %1455 = vperm.xlu0 %1454, %v1374
        %v1456 = vpop.permute.xlu0 %1455
        %1457 = vset.pattern.permute.xlu0 0
        %1458 = vperm.xlu0 %1457, %v1375
        %v1459 = vpop.permute.xlu0 %1458
        %1460 = vset.pattern.permute.xlu0 0
        %1461 = vperm.xlu0 %1460, %v1376
        %v1462 = vpop.permute.xlu0 %1461
        %1463 = vset.pattern.permute.xlu0 0
        %1464 = vperm.xlu0 %1463, %v1377
        %v1465 = vpop.permute.xlu0 %1464
        %1466 = vset.pattern.permute.xlu0 0
        %1467 = vperm.xlu0 %1466, %v1378
        %v1468 = vpop.permute.xlu0 %1467
        %1469 = vset.pattern.permute.xlu0 0
        %1470 = vperm.xlu0 %1469, %v1379
        %v1471 = vpop.permute.xlu0 %1470
        %1472 = vset.pattern.permute.xlu0 0
        %1473 = vperm.xlu0 %1472, %v1380
        %v1474 = vpop.permute.xlu0 %1473
        %1475 = vset.pattern.permute.xlu0 0
        %1476 = vperm.xlu0 %1475, %v1381
        %v1477 = vpop.permute.xlu0 %1476
        %vm1478 = vcmp.eq.s32.totalorder %v990, %v1384
        %vm1479 = vcmp.eq.s32.totalorder %v991, %v1384
        %vm1480 = vcmp.eq.s32.totalorder %v992, %v1384
        %vm1481 = vcmp.eq.s32.totalorder %v993, %v1384
        %vm1482 = vcmp.eq.s32.totalorder %v990, %v1387
        %vm1483 = vcmp.eq.s32.totalorder %v991, %v1387
        %vm1484 = vcmp.eq.s32.totalorder %v992, %v1387
        %vm1485 = vcmp.eq.s32.totalorder %v993, %v1387
        %vm1486 = vcmp.eq.s32.totalorder %v990, %v1390
        %vm1487 = vcmp.eq.s32.totalorder %v991, %v1390
        %vm1488 = vcmp.eq.s32.totalorder %v992, %v1390
        %vm1489 = vcmp.eq.s32.totalorder %v993, %v1390
        %vm1490 = vcmp.eq.s32.totalorder %v990, %v1393
        %vm1491 = vcmp.eq.s32.totalorder %v991, %v1393
        %vm1492 = vcmp.eq.s32.totalorder %v992, %v1393
        %vm1493 = vcmp.eq.s32.totalorder %v993, %v1393
        %vm1494 = vcmp.eq.s32.totalorder %v990, %v1396
        %vm1495 = vcmp.eq.s32.totalorder %v991, %v1396
        %vm1496 = vcmp.eq.s32.totalorder %v992, %v1396
        %vm1497 = vcmp.eq.s32.totalorder %v993, %v1396
        %vm1498 = vcmp.eq.s32.totalorder %v990, %v1399
        %vm1499 = vcmp.eq.s32.totalorder %v991, %v1399
        %vm1500 = vcmp.eq.s32.totalorder %v992, %v1399
        %vm1501 = vcmp.eq.s32.totalorder %v993, %v1399
        %vm1502 = vcmp.eq.s32.totalorder %v990, %v1402
        %vm1503 = vcmp.eq.s32.totalorder %v991, %v1402
        %vm1504 = vcmp.eq.s32.totalorder %v992, %v1402
        %vm1505 = vcmp.eq.s32.totalorder %v993, %v1402
        %vm1506 = vcmp.eq.s32.totalorder %v990, %v1405
        %vm1507 = vcmp.eq.s32.totalorder %v991, %v1405
        %vm1508 = vcmp.eq.s32.totalorder %v992, %v1405
        %vm1509 = vcmp.eq.s32.totalorder %v993, %v1405
        %vm1510 = vcmp.eq.s32.totalorder %v990, %v1408
        %vm1511 = vcmp.eq.s32.totalorder %v991, %v1408
        %vm1512 = vcmp.eq.s32.totalorder %v992, %v1408
        %vm1513 = vcmp.eq.s32.totalorder %v993, %v1408
        %vm1514 = vcmp.eq.s32.totalorder %v990, %v1411
        %vm1515 = vcmp.eq.s32.totalorder %v991, %v1411
        %vm1516 = vcmp.eq.s32.totalorder %v992, %v1411
        %vm1517 = vcmp.eq.s32.totalorder %v993, %v1411
        %vm1518 = vcmp.eq.s32.totalorder %v990, %v1414
        %vm1519 = vcmp.eq.s32.totalorder %v991, %v1414
        %vm1520 = vcmp.eq.s32.totalorder %v992, %v1414
        %vm1521 = vcmp.eq.s32.totalorder %v993, %v1414
        %vm1522 = vcmp.eq.s32.totalorder %v990, %v1417
        %vm1523 = vcmp.eq.s32.totalorder %v991, %v1417
        %vm1524 = vcmp.eq.s32.totalorder %v992, %v1417
        %vm1525 = vcmp.eq.s32.totalorder %v993, %v1417
        %vm1526 = vcmp.eq.s32.totalorder %v990, %v1420
        %vm1527 = vcmp.eq.s32.totalorder %v991, %v1420
        %vm1528 = vcmp.eq.s32.totalorder %v992, %v1420
        %vm1529 = vcmp.eq.s32.totalorder %v993, %v1420
        %vm1530 = vcmp.eq.s32.totalorder %v990, %v1423
        %vm1531 = vcmp.eq.s32.totalorder %v991, %v1423
        %vm1532 = vcmp.eq.s32.totalorder %v992, %v1423
        %vm1533 = vcmp.eq.s32.totalorder %v993, %v1423
        %vm1534 = vcmp.eq.s32.totalorder %v990, %v1426
        %vm1535 = vcmp.eq.s32.totalorder %v991, %v1426
        %vm1536 = vcmp.eq.s32.totalorder %v992, %v1426
        %vm1537 = vcmp.eq.s32.totalorder %v993, %v1426
        %vm1538 = vcmp.eq.s32.totalorder %v990, %v1429
        %vm1539 = vcmp.eq.s32.totalorder %v991, %v1429
        %vm1540 = vcmp.eq.s32.totalorder %v992, %v1429
        %vm1541 = vcmp.eq.s32.totalorder %v993, %v1429
        %vm1542 = vcmp.eq.s32.totalorder %v990, %v1432
        %vm1543 = vcmp.eq.s32.totalorder %v991, %v1432
        %vm1544 = vcmp.eq.s32.totalorder %v992, %v1432
        %vm1545 = vcmp.eq.s32.totalorder %v993, %v1432
        %vm1546 = vcmp.eq.s32.totalorder %v990, %v1435
        %vm1547 = vcmp.eq.s32.totalorder %v991, %v1435
        %vm1548 = vcmp.eq.s32.totalorder %v992, %v1435
        %vm1549 = vcmp.eq.s32.totalorder %v993, %v1435
        %vm1550 = vcmp.eq.s32.totalorder %v990, %v1438
        %vm1551 = vcmp.eq.s32.totalorder %v991, %v1438
        %vm1552 = vcmp.eq.s32.totalorder %v992, %v1438
        %vm1553 = vcmp.eq.s32.totalorder %v993, %v1438
        %vm1554 = vcmp.eq.s32.totalorder %v990, %v1441
        %vm1555 = vcmp.eq.s32.totalorder %v991, %v1441
        %vm1556 = vcmp.eq.s32.totalorder %v992, %v1441
        %vm1557 = vcmp.eq.s32.totalorder %v993, %v1441
        %vm1558 = vcmp.eq.s32.totalorder %v990, %v1444
        %vm1559 = vcmp.eq.s32.totalorder %v991, %v1444
        %vm1560 = vcmp.eq.s32.totalorder %v992, %v1444
        %vm1561 = vcmp.eq.s32.totalorder %v993, %v1444
        %vm1562 = vcmp.eq.s32.totalorder %v990, %v1447
        %vm1563 = vcmp.eq.s32.totalorder %v991, %v1447
        %vm1564 = vcmp.eq.s32.totalorder %v992, %v1447
        %vm1565 = vcmp.eq.s32.totalorder %v993, %v1447
        %vm1566 = vcmp.eq.s32.totalorder %v990, %v1450
        %vm1567 = vcmp.eq.s32.totalorder %v991, %v1450
        %vm1568 = vcmp.eq.s32.totalorder %v992, %v1450
        %vm1569 = vcmp.eq.s32.totalorder %v993, %v1450
        %vm1570 = vcmp.eq.s32.totalorder %v990, %v1453
        %vm1571 = vcmp.eq.s32.totalorder %v991, %v1453
        %vm1572 = vcmp.eq.s32.totalorder %v992, %v1453
        %vm1573 = vcmp.eq.s32.totalorder %v993, %v1453
        %vm1574 = vcmp.eq.s32.totalorder %v990, %v1456
        %vm1575 = vcmp.eq.s32.totalorder %v991, %v1456
        %vm1576 = vcmp.eq.s32.totalorder %v992, %v1456
        %vm1577 = vcmp.eq.s32.totalorder %v993, %v1456
        %vm1578 = vcmp.eq.s32.totalorder %v990, %v1459
        %vm1579 = vcmp.eq.s32.totalorder %v991, %v1459
        %vm1580 = vcmp.eq.s32.totalorder %v992, %v1459
        %vm1581 = vcmp.eq.s32.totalorder %v993, %v1459
        %vm1582 = vcmp.eq.s32.totalorder %v990, %v1462
        %vm1583 = vcmp.eq.s32.totalorder %v991, %v1462
        %vm1584 = vcmp.eq.s32.totalorder %v992, %v1462
        %vm1585 = vcmp.eq.s32.totalorder %v993, %v1462
        %vm1586 = vcmp.eq.s32.totalorder %v990, %v1465
        %vm1587 = vcmp.eq.s32.totalorder %v991, %v1465
        %vm1588 = vcmp.eq.s32.totalorder %v992, %v1465
        %vm1589 = vcmp.eq.s32.totalorder %v993, %v1465
        %vm1590 = vcmp.eq.s32.totalorder %v990, %v1468
        %vm1591 = vcmp.eq.s32.totalorder %v991, %v1468
        %vm1592 = vcmp.eq.s32.totalorder %v992, %v1468
        %vm1593 = vcmp.eq.s32.totalorder %v993, %v1468
        %vm1594 = vcmp.eq.s32.totalorder %v990, %v1471
        %vm1595 = vcmp.eq.s32.totalorder %v991, %v1471
        %vm1596 = vcmp.eq.s32.totalorder %v992, %v1471
        %vm1597 = vcmp.eq.s32.totalorder %v993, %v1471
        %vm1598 = vcmp.eq.s32.totalorder %v990, %v1474
        %vm1599 = vcmp.eq.s32.totalorder %v991, %v1474
        %vm1600 = vcmp.eq.s32.totalorder %v992, %v1474
        %vm1601 = vcmp.eq.s32.totalorder %v993, %v1474
        %vm1602 = vcmp.eq.s32.totalorder %v990, %v1477
        %vm1603 = vcmp.eq.s32.totalorder %v991, %v1477
        %vm1604 = vcmp.eq.s32.totalorder %v992, %v1477
        %vm1605 = vcmp.eq.s32.totalorder %v993, %v1477
        %v1606 = vsel %vm1478, 1, 0
        %v1607 = vsel %vm1479, 1, 0
        %v1608 = vsel %vm1480, 1, 0
        %v1609 = vsel %vm1481, 1, 0
        %v1610 = vsel %vm1482, 1, 0
        %v1611 = vsel %vm1483, 1, 0
        %v1612 = vsel %vm1484, 1, 0
        %v1613 = vsel %vm1485, 1, 0
        %v1614 = vsel %vm1486, 1, 0
        %v1615 = vsel %vm1487, 1, 0
        %v1616 = vsel %vm1488, 1, 0
        %v1617 = vsel %vm1489, 1, 0
        %v1618 = vsel %vm1490, 1, 0
        %v1619 = vsel %vm1491, 1, 0
        %v1620 = vsel %vm1492, 1, 0
        %v1621 = vsel %vm1493, 1, 0
        %v1622 = vsel %vm1494, 1, 0
        %v1623 = vsel %vm1495, 1, 0
        %v1624 = vsel %vm1496, 1, 0
        %v1625 = vsel %vm1497, 1, 0
        %v1626 = vsel %vm1498, 1, 0
        %v1627 = vsel %vm1499, 1, 0
        %v1628 = vsel %vm1500, 1, 0
        %v1629 = vsel %vm1501, 1, 0
        %v1630 = vsel %vm1502, 1, 0
        %v1631 = vsel %vm1503, 1, 0
        %v1632 = vsel %vm1504, 1, 0
        %v1633 = vsel %vm1505, 1, 0
        %v1634 = vsel %vm1506, 1, 0
        %v1635 = vsel %vm1507, 1, 0
        %v1636 = vsel %vm1508, 1, 0
        %v1637 = vsel %vm1509, 1, 0
        %v1638 = vsel %vm1510, 1, 0
        %v1639 = vsel %vm1511, 1, 0
        %v1640 = vsel %vm1512, 1, 0
        %v1641 = vsel %vm1513, 1, 0
        %v1642 = vsel %vm1514, 1, 0
        %v1643 = vsel %vm1515, 1, 0
        %v1644 = vsel %vm1516, 1, 0
        %v1645 = vsel %vm1517, 1, 0
        %v1646 = vsel %vm1518, 1, 0
        %v1647 = vsel %vm1519, 1, 0
        %v1648 = vsel %vm1520, 1, 0
        %v1649 = vsel %vm1521, 1, 0
        %v1650 = vsel %vm1522, 1, 0
        %v1651 = vsel %vm1523, 1, 0
        %v1652 = vsel %vm1524, 1, 0
        %v1653 = vsel %vm1525, 1, 0
        %v1654 = vsel %vm1526, 1, 0
        %v1655 = vsel %vm1527, 1, 0
        %v1656 = vsel %vm1528, 1, 0
        %v1657 = vsel %vm1529, 1, 0
        %v1658 = vsel %vm1530, 1, 0
        %v1659 = vsel %vm1531, 1, 0
        %v1660 = vsel %vm1532, 1, 0
        %v1661 = vsel %vm1533, 1, 0
        %v1662 = vsel %vm1534, 1, 0
        %v1663 = vsel %vm1535, 1, 0
        %v1664 = vsel %vm1536, 1, 0
        %v1665 = vsel %vm1537, 1, 0
        %v1666 = vsel %vm1538, 1, 0
        %v1667 = vsel %vm1539, 1, 0
        %v1668 = vsel %vm1540, 1, 0
        %v1669 = vsel %vm1541, 1, 0
        %v1670 = vsel %vm1542, 1, 0
        %v1671 = vsel %vm1543, 1, 0
        %v1672 = vsel %vm1544, 1, 0
        %v1673 = vsel %vm1545, 1, 0
        %v1674 = vsel %vm1546, 1, 0
        %v1675 = vsel %vm1547, 1, 0
        %v1676 = vsel %vm1548, 1, 0
        %v1677 = vsel %vm1549, 1, 0
        %v1678 = vsel %vm1550, 1, 0
        %v1679 = vsel %vm1551, 1, 0
        %v1680 = vsel %vm1552, 1, 0
        %v1681 = vsel %vm1553, 1, 0
        %v1682 = vsel %vm1554, 1, 0
        %v1683 = vsel %vm1555, 1, 0
        %v1684 = vsel %vm1556, 1, 0
        %v1685 = vsel %vm1557, 1, 0
        %v1686 = vsel %vm1558, 1, 0
        %v1687 = vsel %vm1559, 1, 0
        %v1688 = vsel %vm1560, 1, 0
        %v1689 = vsel %vm1561, 1, 0
        %v1690 = vsel %vm1562, 1, 0
        %v1691 = vsel %vm1563, 1, 0
        %v1692 = vsel %vm1564, 1, 0
        %v1693 = vsel %vm1565, 1, 0
        %v1694 = vsel %vm1566, 1, 0
        %v1695 = vsel %vm1567, 1, 0
        %v1696 = vsel %vm1568, 1, 0
        %v1697 = vsel %vm1569, 1, 0
        %v1698 = vsel %vm1570, 1, 0
        %v1699 = vsel %vm1571, 1, 0
        %v1700 = vsel %vm1572, 1, 0
        %v1701 = vsel %vm1573, 1, 0
        %v1702 = vsel %vm1574, 1, 0
        %v1703 = vsel %vm1575, 1, 0
        %v1704 = vsel %vm1576, 1, 0
        %v1705 = vsel %vm1577, 1, 0
        %v1706 = vsel %vm1578, 1, 0
        %v1707 = vsel %vm1579, 1, 0
        %v1708 = vsel %vm1580, 1, 0
        %v1709 = vsel %vm1581, 1, 0
        %v1710 = vsel %vm1582, 1, 0
        %v1711 = vsel %vm1583, 1, 0
        %v1712 = vsel %vm1584, 1, 0
        %v1713 = vsel %vm1585, 1, 0
        %v1714 = vsel %vm1586, 1, 0
        %v1715 = vsel %vm1587, 1, 0
        %v1716 = vsel %vm1588, 1, 0
        %v1717 = vsel %vm1589, 1, 0
        %v1718 = vsel %vm1590, 1, 0
        %v1719 = vsel %vm1591, 1, 0
        %v1720 = vsel %vm1592, 1, 0
        %v1721 = vsel %vm1593, 1, 0
        %v1722 = vsel %vm1594, 1, 0
        %v1723 = vsel %vm1595, 1, 0
        %v1724 = vsel %vm1596, 1, 0
        %v1725 = vsel %vm1597, 1, 0
        %v1726 = vsel %vm1598, 1, 0
        %v1727 = vsel %vm1599, 1, 0
        %v1728 = vsel %vm1600, 1, 0
        %v1729 = vsel %vm1601, 1, 0
        %v1730 = vsel %vm1602, 1, 0
        %v1731 = vsel %vm1603, 1, 0
        %v1732 = vsel %vm1604, 1, 0
        %v1733 = vsel %vm1605, 1, 0
        %v1734 = vadd.s32 %v1221, %v1606
        %v1735 = vadd.s32 %v1222, %v1607
        %v1736 = vadd.s32 %v1223, %v1608
        %v1737 = vadd.s32 %v1224, %v1609
        %v1738 = vadd.s32 %v1225, %v1610
        %v1739 = vadd.s32 %v1226, %v1611
        %v1740 = vadd.s32 %v1227, %v1612
        %v1741 = vadd.s32 %v1228, %v1613
        %v1742 = vadd.s32 %v1229, %v1614
        %v1743 = vadd.s32 %v1230, %v1615
        %v1744 = vadd.s32 %v1231, %v1616
        %v1745 = vadd.s32 %v1232, %v1617
        %v1746 = vadd.s32 %v1233, %v1618
        %v1747 = vadd.s32 %v1234, %v1619
        %v1748 = vadd.s32 %v1235, %v1620
        %v1749 = vadd.s32 %v1236, %v1621
        %v1750 = vadd.s32 %v1237, %v1622
        %v1751 = vadd.s32 %v1238, %v1623
        %v1752 = vadd.s32 %v1239, %v1624
        %v1753 = vadd.s32 %v1240, %v1625
        %v1754 = vadd.s32 %v1241, %v1626
        %v1755 = vadd.s32 %v1242, %v1627
        %v1756 = vadd.s32 %v1243, %v1628
        %v1757 = vadd.s32 %v1244, %v1629
        %v1758 = vadd.s32 %v1245, %v1630
        %v1759 = vadd.s32 %v1246, %v1631
        %v1760 = vadd.s32 %v1247, %v1632
        %v1761 = vadd.s32 %v1248, %v1633
        %v1762 = vadd.s32 %v1249, %v1634
        %v1763 = vadd.s32 %v1250, %v1635
        %v1764 = vadd.s32 %v1251, %v1636
        %v1765 = vadd.s32 %v1252, %v1637
        %v1766 = vadd.s32 %v1253, %v1638
        %v1767 = vadd.s32 %v1254, %v1639
        %v1768 = vadd.s32 %v1255, %v1640
        %v1769 = vadd.s32 %v1256, %v1641
        %v1770 = vadd.s32 %v1257, %v1642
        %v1771 = vadd.s32 %v1258, %v1643
        %v1772 = vadd.s32 %v1259, %v1644
        %v1773 = vadd.s32 %v1260, %v1645
        %v1774 = vadd.s32 %v1261, %v1646
        %v1775 = vadd.s32 %v1262, %v1647
        %v1776 = vadd.s32 %v1263, %v1648
        %v1777 = vadd.s32 %v1264, %v1649
        %v1778 = vadd.s32 %v1265, %v1650
        %v1779 = vadd.s32 %v1266, %v1651
        %v1780 = vadd.s32 %v1267, %v1652
        %v1781 = vadd.s32 %v1268, %v1653
        %v1782 = vadd.s32 %v1269, %v1654
        %v1783 = vadd.s32 %v1270, %v1655
        %v1784 = vadd.s32 %v1271, %v1656
        %v1785 = vadd.s32 %v1272, %v1657
        %v1786 = vadd.s32 %v1273, %v1658
        %v1787 = vadd.s32 %v1274, %v1659
        %v1788 = vadd.s32 %v1275, %v1660
        %v1789 = vadd.s32 %v1276, %v1661
        %v1790 = vadd.s32 %v1277, %v1662
        %v1791 = vadd.s32 %v1278, %v1663
        %v1792 = vadd.s32 %v1279, %v1664
        %v1793 = vadd.s32 %v1280, %v1665
        %v1794 = vadd.s32 %v1281, %v1666
        %v1795 = vadd.s32 %v1282, %v1667
        %v1796 = vadd.s32 %v1283, %v1668
        %v1797 = vadd.s32 %v1284, %v1669
        %v1798 = vadd.s32 %v1285, %v1670
        %v1799 = vadd.s32 %v1286, %v1671
        %v1800 = vadd.s32 %v1287, %v1672
        %v1801 = vadd.s32 %v1288, %v1673
        %v1802 = vadd.s32 %v1289, %v1674
        %v1803 = vadd.s32 %v1290, %v1675
        %v1804 = vadd.s32 %v1291, %v1676
        %v1805 = vadd.s32 %v1292, %v1677
        %v1806 = vadd.s32 %v1293, %v1678
        %v1807 = vadd.s32 %v1294, %v1679
        %v1808 = vadd.s32 %v1295, %v1680
        %v1809 = vadd.s32 %v1296, %v1681
        %v1810 = vadd.s32 %v1297, %v1682
        %v1811 = vadd.s32 %v1298, %v1683
        %v1812 = vadd.s32 %v1299, %v1684
        %v1813 = vadd.s32 %v1300, %v1685
        %v1814 = vadd.s32 %v1301, %v1686
        %v1815 = vadd.s32 %v1302, %v1687
        %v1816 = vadd.s32 %v1303, %v1688
        %v1817 = vadd.s32 %v1304, %v1689
        %v1818 = vadd.s32 %v1305, %v1690
        %v1819 = vadd.s32 %v1306, %v1691
        %v1820 = vadd.s32 %v1307, %v1692
        %v1821 = vadd.s32 %v1308, %v1693
        %v1822 = vadd.s32 %v1309, %v1694
        %v1823 = vadd.s32 %v1310, %v1695
        %v1824 = vadd.s32 %v1311, %v1696
        %v1825 = vadd.s32 %v1312, %v1697
        %v1826 = vadd.s32 %v1313, %v1698
        %v1827 = vadd.s32 %v1314, %v1699
        %v1828 = vadd.s32 %v1315, %v1700
        %v1829 = vadd.s32 %v1316, %v1701
        %v1830 = vadd.s32 %v1317, %v1702
        %v1831 = vadd.s32 %v1318, %v1703
        %v1832 = vadd.s32 %v1319, %v1704
        %v1833 = vadd.s32 %v1320, %v1705
        %v1834 = vadd.s32 %v1321, %v1706
        %v1835 = vadd.s32 %v1322, %v1707
        %v1836 = vadd.s32 %v1323, %v1708
        %v1837 = vadd.s32 %v1324, %v1709
        %v1838 = vadd.s32 %v1325, %v1710
        %v1839 = vadd.s32 %v1326, %v1711
        %v1840 = vadd.s32 %v1327, %v1712
        %v1841 = vadd.s32 %v1328, %v1713
        %v1842 = vadd.s32 %v1329, %v1714
        %v1843 = vadd.s32 %v1330, %v1715
        %v1844 = vadd.s32 %v1331, %v1716
        %v1845 = vadd.s32 %v1332, %v1717
        %v1846 = vadd.s32 %v1333, %v1718
        %v1847 = vadd.s32 %v1334, %v1719
        %v1848 = vadd.s32 %v1335, %v1720
        %v1849 = vadd.s32 %v1336, %v1721
        %v1850 = vadd.s32 %v1337, %v1722
        %v1851 = vadd.s32 %v1338, %v1723
        %v1852 = vadd.s32 %v1339, %v1724
        %v1853 = vadd.s32 %v1340, %v1725
        %v1854 = vadd.s32 %v1341, %v1726
        %v1855 = vadd.s32 %v1342, %v1727
        %v1856 = vadd.s32 %v1343, %v1728
        %v1857 = vadd.s32 %v1344, %v1729
        %v1858 = vadd.s32 %v1345, %v1730
        %v1859 = vadd.s32 %v1346, %v1731
        %v1860 = vadd.s32 %v1347, %v1732
        %v1861 = vadd.s32 %v1348, %v1733
        %1862 = vset.pattern.permute.xlu0 1
        %1863 = vperm.xlu0 %1862, %v1350
        %v1864 = vpop.permute.xlu0 %1863
        %1865 = vset.pattern.permute.xlu0 1
        %1866 = vperm.xlu0 %1865, %v1351
        %v1867 = vpop.permute.xlu0 %1866
        %1868 = vset.pattern.permute.xlu0 1
        %1869 = vperm.xlu0 %1868, %v1352
        %v1870 = vpop.permute.xlu0 %1869
        %1871 = vset.pattern.permute.xlu0 1
        %1872 = vperm.xlu0 %1871, %v1353
        %v1873 = vpop.permute.xlu0 %1872
        %1874 = vset.pattern.permute.xlu0 1
        %1875 = vperm.xlu0 %1874, %v1354
        %v1876 = vpop.permute.xlu0 %1875
        %1877 = vset.pattern.permute.xlu0 1
        %1878 = vperm.xlu0 %1877, %v1355
        %v1879 = vpop.permute.xlu0 %1878
        %1880 = vset.pattern.permute.xlu0 1
        %1881 = vperm.xlu0 %1880, %v1356
        %v1882 = vpop.permute.xlu0 %1881
        %1883 = vset.pattern.permute.xlu0 1
        %1884 = vperm.xlu0 %1883, %v1357
        %v1885 = vpop.permute.xlu0 %1884
        %1886 = vset.pattern.permute.xlu0 1
        %1887 = vperm.xlu0 %1886, %v1358
        %v1888 = vpop.permute.xlu0 %1887
        %1889 = vset.pattern.permute.xlu0 1
        %1890 = vperm.xlu0 %1889, %v1359
        %v1891 = vpop.permute.xlu0 %1890
        %1892 = vset.pattern.permute.xlu0 1
        %1893 = vperm.xlu0 %1892, %v1360
        %v1894 = vpop.permute.xlu0 %1893
        %1895 = vset.pattern.permute.xlu0 1
        %1896 = vperm.xlu0 %1895, %v1361
        %v1897 = vpop.permute.xlu0 %1896
        %1898 = vset.pattern.permute.xlu0 1
        %1899 = vperm.xlu0 %1898, %v1362
        %v1900 = vpop.permute.xlu0 %1899
        %1901 = vset.pattern.permute.xlu0 1
        %1902 = vperm.xlu0 %1901, %v1363
        %v1903 = vpop.permute.xlu0 %1902
        %1904 = vset.pattern.permute.xlu0 1
        %1905 = vperm.xlu0 %1904, %v1364
        %v1906 = vpop.permute.xlu0 %1905
        %1907 = vset.pattern.permute.xlu0 1
        %1908 = vperm.xlu0 %1907, %v1365
        %v1909 = vpop.permute.xlu0 %1908
        %1910 = vset.pattern.permute.xlu0 1
        %1911 = vperm.xlu0 %1910, %v1366
        %v1912 = vpop.permute.xlu0 %1911
        %1913 = vset.pattern.permute.xlu0 1
        %1914 = vperm.xlu0 %1913, %v1367
        %v1915 = vpop.permute.xlu0 %1914
        %1916 = vset.pattern.permute.xlu0 1
        %1917 = vperm.xlu0 %1916, %v1368
        %v1918 = vpop.permute.xlu0 %1917
        %1919 = vset.pattern.permute.xlu0 1
        %1920 = vperm.xlu0 %1919, %v1369
        %v1921 = vpop.permute.xlu0 %1920
        %1922 = vset.pattern.permute.xlu0 1
        %1923 = vperm.xlu0 %1922, %v1370
        %v1924 = vpop.permute.xlu0 %1923
        %1925 = vset.pattern.permute.xlu0 1
        %1926 = vperm.xlu0 %1925, %v1371
        %v1927 = vpop.permute.xlu0 %1926
        %1928 = vset.pattern.permute.xlu0 1
        %1929 = vperm.xlu0 %1928, %v1372
        %v1930 = vpop.permute.xlu0 %1929
        %1931 = vset.pattern.permute.xlu0 1
        %1932 = vperm.xlu0 %1931, %v1373
        %v1933 = vpop.permute.xlu0 %1932
        %1934 = vset.pattern.permute.xlu0 1
        %1935 = vperm.xlu0 %1934, %v1374
        %v1936 = vpop.permute.xlu0 %1935
        %1937 = vset.pattern.permute.xlu0 1
        %1938 = vperm.xlu0 %1937, %v1375
        %v1939 = vpop.permute.xlu0 %1938
        %1940 = vset.pattern.permute.xlu0 1
        %1941 = vperm.xlu0 %1940, %v1376
        %v1942 = vpop.permute.xlu0 %1941
        %1943 = vset.pattern.permute.xlu0 1
        %1944 = vperm.xlu0 %1943, %v1377
        %v1945 = vpop.permute.xlu0 %1944
        %1946 = vset.pattern.permute.xlu0 1
        %1947 = vperm.xlu0 %1946, %v1378
        %v1948 = vpop.permute.xlu0 %1947
        %1949 = vset.pattern.permute.xlu0 1
        %1950 = vperm.xlu0 %1949, %v1379
        %v1951 = vpop.permute.xlu0 %1950
        %1952 = vset.pattern.permute.xlu0 1
        %1953 = vperm.xlu0 %1952, %v1380
        %v1954 = vpop.permute.xlu0 %1953
        %1955 = vset.pattern.permute.xlu0 1
        %1956 = vperm.xlu0 %1955, %v1381
        %v1957 = vpop.permute.xlu0 %1956
        %vm1958 = vcmp.eq.s32.totalorder %v990, %v1864
        %vm1959 = vcmp.eq.s32.totalorder %v991, %v1864
        %vm1960 = vcmp.eq.s32.totalorder %v992, %v1864
        %vm1961 = vcmp.eq.s32.totalorder %v993, %v1864
        %vm1962 = vcmp.eq.s32.totalorder %v990, %v1867
        %vm1963 = vcmp.eq.s32.totalorder %v991, %v1867
        %vm1964 = vcmp.eq.s32.totalorder %v992, %v1867
        %vm1965 = vcmp.eq.s32.totalorder %v993, %v1867
        %vm1966 = vcmp.eq.s32.totalorder %v990, %v1870
        %vm1967 = vcmp.eq.s32.totalorder %v991, %v1870
        %vm1968 = vcmp.eq.s32.totalorder %v992, %v1870
        %vm1969 = vcmp.eq.s32.totalorder %v993, %v1870
        %vm1970 = vcmp.eq.s32.totalorder %v990, %v1873
        %vm1971 = vcmp.eq.s32.totalorder %v991, %v1873
        %vm1972 = vcmp.eq.s32.totalorder %v992, %v1873
        %vm1973 = vcmp.eq.s32.totalorder %v993, %v1873
        %vm1974 = vcmp.eq.s32.totalorder %v990, %v1876
        %vm1975 = vcmp.eq.s32.totalorder %v991, %v1876
        %vm1976 = vcmp.eq.s32.totalorder %v992, %v1876
        %vm1977 = vcmp.eq.s32.totalorder %v993, %v1876
        %vm1978 = vcmp.eq.s32.totalorder %v990, %v1879
        %vm1979 = vcmp.eq.s32.totalorder %v991, %v1879
        %vm1980 = vcmp.eq.s32.totalorder %v992, %v1879
        %vm1981 = vcmp.eq.s32.totalorder %v993, %v1879
        %vm1982 = vcmp.eq.s32.totalorder %v990, %v1882
        %vm1983 = vcmp.eq.s32.totalorder %v991, %v1882
        %vm1984 = vcmp.eq.s32.totalorder %v992, %v1882
        %vm1985 = vcmp.eq.s32.totalorder %v993, %v1882
        %vm1986 = vcmp.eq.s32.totalorder %v990, %v1885
        %vm1987 = vcmp.eq.s32.totalorder %v991, %v1885
        %vm1988 = vcmp.eq.s32.totalorder %v992, %v1885
        %vm1989 = vcmp.eq.s32.totalorder %v993, %v1885
        %vm1990 = vcmp.eq.s32.totalorder %v990, %v1888
        %vm1991 = vcmp.eq.s32.totalorder %v991, %v1888
        %vm1992 = vcmp.eq.s32.totalorder %v992, %v1888
        %vm1993 = vcmp.eq.s32.totalorder %v993, %v1888
        %vm1994 = vcmp.eq.s32.totalorder %v990, %v1891
        %vm1995 = vcmp.eq.s32.totalorder %v991, %v1891
        %vm1996 = vcmp.eq.s32.totalorder %v992, %v1891
        %vm1997 = vcmp.eq.s32.totalorder %v993, %v1891
        %vm1998 = vcmp.eq.s32.totalorder %v990, %v1894
        %vm1999 = vcmp.eq.s32.totalorder %v991, %v1894
        %vm2000 = vcmp.eq.s32.totalorder %v992, %v1894
        %vm2001 = vcmp.eq.s32.totalorder %v993, %v1894
        %vm2002 = vcmp.eq.s32.totalorder %v990, %v1897
        %vm2003 = vcmp.eq.s32.totalorder %v991, %v1897
        %vm2004 = vcmp.eq.s32.totalorder %v992, %v1897
        %vm2005 = vcmp.eq.s32.totalorder %v993, %v1897
        %vm2006 = vcmp.eq.s32.totalorder %v990, %v1900
        %vm2007 = vcmp.eq.s32.totalorder %v991, %v1900
        %vm2008 = vcmp.eq.s32.totalorder %v992, %v1900
        %vm2009 = vcmp.eq.s32.totalorder %v993, %v1900
        %vm2010 = vcmp.eq.s32.totalorder %v990, %v1903
        %vm2011 = vcmp.eq.s32.totalorder %v991, %v1903
        %vm2012 = vcmp.eq.s32.totalorder %v992, %v1903
        %vm2013 = vcmp.eq.s32.totalorder %v993, %v1903
        %vm2014 = vcmp.eq.s32.totalorder %v990, %v1906
        %vm2015 = vcmp.eq.s32.totalorder %v991, %v1906
        %vm2016 = vcmp.eq.s32.totalorder %v992, %v1906
        %vm2017 = vcmp.eq.s32.totalorder %v993, %v1906
        %vm2018 = vcmp.eq.s32.totalorder %v990, %v1909
        %vm2019 = vcmp.eq.s32.totalorder %v991, %v1909
        %vm2020 = vcmp.eq.s32.totalorder %v992, %v1909
        %vm2021 = vcmp.eq.s32.totalorder %v993, %v1909
        %vm2022 = vcmp.eq.s32.totalorder %v990, %v1912
        %vm2023 = vcmp.eq.s32.totalorder %v991, %v1912
        %vm2024 = vcmp.eq.s32.totalorder %v992, %v1912
        %vm2025 = vcmp.eq.s32.totalorder %v993, %v1912
        %vm2026 = vcmp.eq.s32.totalorder %v990, %v1915
        %vm2027 = vcmp.eq.s32.totalorder %v991, %v1915
        %vm2028 = vcmp.eq.s32.totalorder %v992, %v1915
        %vm2029 = vcmp.eq.s32.totalorder %v993, %v1915
        %vm2030 = vcmp.eq.s32.totalorder %v990, %v1918
        %vm2031 = vcmp.eq.s32.totalorder %v991, %v1918
        %vm2032 = vcmp.eq.s32.totalorder %v992, %v1918
        %vm2033 = vcmp.eq.s32.totalorder %v993, %v1918
        %vm2034 = vcmp.eq.s32.totalorder %v990, %v1921
        %vm2035 = vcmp.eq.s32.totalorder %v991, %v1921
        %vm2036 = vcmp.eq.s32.totalorder %v992, %v1921
        %vm2037 = vcmp.eq.s32.totalorder %v993, %v1921
        %vm2038 = vcmp.eq.s32.totalorder %v990, %v1924
        %vm2039 = vcmp.eq.s32.totalorder %v991, %v1924
        %vm2040 = vcmp.eq.s32.totalorder %v992, %v1924
        %vm2041 = vcmp.eq.s32.totalorder %v993, %v1924
        %vm2042 = vcmp.eq.s32.totalorder %v990, %v1927
        %vm2043 = vcmp.eq.s32.totalorder %v991, %v1927
        %vm2044 = vcmp.eq.s32.totalorder %v992, %v1927
        %vm2045 = vcmp.eq.s32.totalorder %v993, %v1927
        %vm2046 = vcmp.eq.s32.totalorder %v990, %v1930
        %vm2047 = vcmp.eq.s32.totalorder %v991, %v1930
        %vm2048 = vcmp.eq.s32.totalorder %v992, %v1930
        %vm2049 = vcmp.eq.s32.totalorder %v993, %v1930
        %vm2050 = vcmp.eq.s32.totalorder %v990, %v1933
        %vm2051 = vcmp.eq.s32.totalorder %v991, %v1933
        %vm2052 = vcmp.eq.s32.totalorder %v992, %v1933
        %vm2053 = vcmp.eq.s32.totalorder %v993, %v1933
        %vm2054 = vcmp.eq.s32.totalorder %v990, %v1936
        %vm2055 = vcmp.eq.s32.totalorder %v991, %v1936
        %vm2056 = vcmp.eq.s32.totalorder %v992, %v1936
        %vm2057 = vcmp.eq.s32.totalorder %v993, %v1936
        %vm2058 = vcmp.eq.s32.totalorder %v990, %v1939
        %vm2059 = vcmp.eq.s32.totalorder %v991, %v1939
        %vm2060 = vcmp.eq.s32.totalorder %v992, %v1939
        %vm2061 = vcmp.eq.s32.totalorder %v993, %v1939
        %vm2062 = vcmp.eq.s32.totalorder %v990, %v1942
        %vm2063 = vcmp.eq.s32.totalorder %v991, %v1942
        %vm2064 = vcmp.eq.s32.totalorder %v992, %v1942
        %vm2065 = vcmp.eq.s32.totalorder %v993, %v1942
        %vm2066 = vcmp.eq.s32.totalorder %v990, %v1945
        %vm2067 = vcmp.eq.s32.totalorder %v991, %v1945
        %vm2068 = vcmp.eq.s32.totalorder %v992, %v1945
        %vm2069 = vcmp.eq.s32.totalorder %v993, %v1945
        %vm2070 = vcmp.eq.s32.totalorder %v990, %v1948
        %vm2071 = vcmp.eq.s32.totalorder %v991, %v1948
        %vm2072 = vcmp.eq.s32.totalorder %v992, %v1948
        %vm2073 = vcmp.eq.s32.totalorder %v993, %v1948
        %vm2074 = vcmp.eq.s32.totalorder %v990, %v1951
        %vm2075 = vcmp.eq.s32.totalorder %v991, %v1951
        %vm2076 = vcmp.eq.s32.totalorder %v992, %v1951
        %vm2077 = vcmp.eq.s32.totalorder %v993, %v1951
        %vm2078 = vcmp.eq.s32.totalorder %v990, %v1954
        %vm2079 = vcmp.eq.s32.totalorder %v991, %v1954
        %vm2080 = vcmp.eq.s32.totalorder %v992, %v1954
        %vm2081 = vcmp.eq.s32.totalorder %v993, %v1954
        %vm2082 = vcmp.eq.s32.totalorder %v990, %v1957
        %vm2083 = vcmp.eq.s32.totalorder %v991, %v1957
        %vm2084 = vcmp.eq.s32.totalorder %v992, %v1957
        %vm2085 = vcmp.eq.s32.totalorder %v993, %v1957
        %v2086 = vsel %vm1958, 1, 0
        %v2087 = vsel %vm1959, 1, 0
        %v2088 = vsel %vm1960, 1, 0
        %v2089 = vsel %vm1961, 1, 0
        %v2090 = vsel %vm1962, 1, 0
        %v2091 = vsel %vm1963, 1, 0
        %v2092 = vsel %vm1964, 1, 0
        %v2093 = vsel %vm1965, 1, 0
        %v2094 = vsel %vm1966, 1, 0
        %v2095 = vsel %vm1967, 1, 0
        %v2096 = vsel %vm1968, 1, 0
        %v2097 = vsel %vm1969, 1, 0
        %v2098 = vsel %vm1970, 1, 0
        %v2099 = vsel %vm1971, 1, 0
        %v2100 = vsel %vm1972, 1, 0
        %v2101 = vsel %vm1973, 1, 0
        %v2102 = vsel %vm1974, 1, 0
        %v2103 = vsel %vm1975, 1, 0
        %v2104 = vsel %vm1976, 1, 0
        %v2105 = vsel %vm1977, 1, 0
        %v2106 = vsel %vm1978, 1, 0
        %v2107 = vsel %vm1979, 1, 0
        %v2108 = vsel %vm1980, 1, 0
        %v2109 = vsel %vm1981, 1, 0
        %v2110 = vsel %vm1982, 1, 0
        %v2111 = vsel %vm1983, 1, 0
        %v2112 = vsel %vm1984, 1, 0
        %v2113 = vsel %vm1985, 1, 0
        %v2114 = vsel %vm1986, 1, 0
        %v2115 = vsel %vm1987, 1, 0
        %v2116 = vsel %vm1988, 1, 0
        %v2117 = vsel %vm1989, 1, 0
        %v2118 = vsel %vm1990, 1, 0
        %v2119 = vsel %vm1991, 1, 0
        %v2120 = vsel %vm1992, 1, 0
        %v2121 = vsel %vm1993, 1, 0
        %v2122 = vsel %vm1994, 1, 0
        %v2123 = vsel %vm1995, 1, 0
        %v2124 = vsel %vm1996, 1, 0
        %v2125 = vsel %vm1997, 1, 0
        %v2126 = vsel %vm1998, 1, 0
        %v2127 = vsel %vm1999, 1, 0
        %v2128 = vsel %vm2000, 1, 0
        %v2129 = vsel %vm2001, 1, 0
        %v2130 = vsel %vm2002, 1, 0
        %v2131 = vsel %vm2003, 1, 0
        %v2132 = vsel %vm2004, 1, 0
        %v2133 = vsel %vm2005, 1, 0
        %v2134 = vsel %vm2006, 1, 0
        %v2135 = vsel %vm2007, 1, 0
        %v2136 = vsel %vm2008, 1, 0
        %v2137 = vsel %vm2009, 1, 0
        %v2138 = vsel %vm2010, 1, 0
        %v2139 = vsel %vm2011, 1, 0
        %v2140 = vsel %vm2012, 1, 0
        %v2141 = vsel %vm2013, 1, 0
        %v2142 = vsel %vm2014, 1, 0
        %v2143 = vsel %vm2015, 1, 0
        %v2144 = vsel %vm2016, 1, 0
        %v2145 = vsel %vm2017, 1, 0
        %v2146 = vsel %vm2018, 1, 0
        %v2147 = vsel %vm2019, 1, 0
        %v2148 = vsel %vm2020, 1, 0
        %v2149 = vsel %vm2021, 1, 0
        %v2150 = vsel %vm2022, 1, 0
        %v2151 = vsel %vm2023, 1, 0
        %v2152 = vsel %vm2024, 1, 0
        %v2153 = vsel %vm2025, 1, 0
        %v2154 = vsel %vm2026, 1, 0
        %v2155 = vsel %vm2027, 1, 0
        %v2156 = vsel %vm2028, 1, 0
        %v2157 = vsel %vm2029, 1, 0
        %v2158 = vsel %vm2030, 1, 0
        %v2159 = vsel %vm2031, 1, 0
        %v2160 = vsel %vm2032, 1, 0
        %v2161 = vsel %vm2033, 1, 0
        %v2162 = vsel %vm2034, 1, 0
        %v2163 = vsel %vm2035, 1, 0
        %v2164 = vsel %vm2036, 1, 0
        %v2165 = vsel %vm2037, 1, 0
        %v2166 = vsel %vm2038, 1, 0
        %v2167 = vsel %vm2039, 1, 0
        %v2168 = vsel %vm2040, 1, 0
        %v2169 = vsel %vm2041, 1, 0
        %v2170 = vsel %vm2042, 1, 0
        %v2171 = vsel %vm2043, 1, 0
        %v2172 = vsel %vm2044, 1, 0
        %v2173 = vsel %vm2045, 1, 0
        %v2174 = vsel %vm2046, 1, 0
        %v2175 = vsel %vm2047, 1, 0
        %v2176 = vsel %vm2048, 1, 0
        %v2177 = vsel %vm2049, 1, 0
        %v2178 = vsel %vm2050, 1, 0
        %v2179 = vsel %vm2051, 1, 0
        %v2180 = vsel %vm2052, 1, 0
        %v2181 = vsel %vm2053, 1, 0
        %v2182 = vsel %vm2054, 1, 0
        %v2183 = vsel %vm2055, 1, 0
        %v2184 = vsel %vm2056, 1, 0
        %v2185 = vsel %vm2057, 1, 0
        %v2186 = vsel %vm2058, 1, 0
        %v2187 = vsel %vm2059, 1, 0
        %v2188 = vsel %vm2060, 1, 0
        %v2189 = vsel %vm2061, 1, 0
        %v2190 = vsel %vm2062, 1, 0
        %v2191 = vsel %vm2063, 1, 0
        %v2192 = vsel %vm2064, 1, 0
        %v2193 = vsel %vm2065, 1, 0
        %v2194 = vsel %vm2066, 1, 0
        %v2195 = vsel %vm2067, 1, 0
        %v2196 = vsel %vm2068, 1, 0
        %v2197 = vsel %vm2069, 1, 0
        %v2198 = vsel %vm2070, 1, 0
        %v2199 = vsel %vm2071, 1, 0
        %v2200 = vsel %vm2072, 1, 0
        %v2201 = vsel %vm2073, 1, 0
        %v2202 = vsel %vm2074, 1, 0
        %v2203 = vsel %vm2075, 1, 0
        %v2204 = vsel %vm2076, 1, 0
        %v2205 = vsel %vm2077, 1, 0
        %v2206 = vsel %vm2078, 1, 0
        %v2207 = vsel %vm2079, 1, 0
        %v2208 = vsel %vm2080, 1, 0
        %v2209 = vsel %vm2081, 1, 0
        %v2210 = vsel %vm2082, 1, 0
        %v2211 = vsel %vm2083, 1, 0
        %v2212 = vsel %vm2084, 1, 0
        %v2213 = vsel %vm2085, 1, 0
        %v2214 = vadd.s32 %v1734, %v2086
        %v2215 = vadd.s32 %v1735, %v2087
        %v2216 = vadd.s32 %v1736, %v2088
        %v2217 = vadd.s32 %v1737, %v2089
        %v2218 = vadd.s32 %v1738, %v2090
        %v2219 = vadd.s32 %v1739, %v2091
        %v2220 = vadd.s32 %v1740, %v2092
        %v2221 = vadd.s32 %v1741, %v2093
        %v2222 = vadd.s32 %v1742, %v2094
        %v2223 = vadd.s32 %v1743, %v2095
        %v2224 = vadd.s32 %v1744, %v2096
        %v2225 = vadd.s32 %v1745, %v2097
        %v2226 = vadd.s32 %v1746, %v2098
        %v2227 = vadd.s32 %v1747, %v2099
        %v2228 = vadd.s32 %v1748, %v2100
        %v2229 = vadd.s32 %v1749, %v2101
        %v2230 = vadd.s32 %v1750, %v2102
        %v2231 = vadd.s32 %v1751, %v2103
        %v2232 = vadd.s32 %v1752, %v2104
        %v2233 = vadd.s32 %v1753, %v2105
        %v2234 = vadd.s32 %v1754, %v2106
        %v2235 = vadd.s32 %v1755, %v2107
        %v2236 = vadd.s32 %v1756, %v2108
        %v2237 = vadd.s32 %v1757, %v2109
        %v2238 = vadd.s32 %v1758, %v2110
        %v2239 = vadd.s32 %v1759, %v2111
        %v2240 = vadd.s32 %v1760, %v2112
        %v2241 = vadd.s32 %v1761, %v2113
        %v2242 = vadd.s32 %v1762, %v2114
        %v2243 = vadd.s32 %v1763, %v2115
        %v2244 = vadd.s32 %v1764, %v2116
        %v2245 = vadd.s32 %v1765, %v2117
        %v2246 = vadd.s32 %v1766, %v2118
        %v2247 = vadd.s32 %v1767, %v2119
        %v2248 = vadd.s32 %v1768, %v2120
        %v2249 = vadd.s32 %v1769, %v2121
        %v2250 = vadd.s32 %v1770, %v2122
        %v2251 = vadd.s32 %v1771, %v2123
        %v2252 = vadd.s32 %v1772, %v2124
        %v2253 = vadd.s32 %v1773, %v2125
        %v2254 = vadd.s32 %v1774, %v2126
        %v2255 = vadd.s32 %v1775, %v2127
        %v2256 = vadd.s32 %v1776, %v2128
        %v2257 = vadd.s32 %v1777, %v2129
        %v2258 = vadd.s32 %v1778, %v2130
        %v2259 = vadd.s32 %v1779, %v2131
        %v2260 = vadd.s32 %v1780, %v2132
        %v2261 = vadd.s32 %v1781, %v2133
        %v2262 = vadd.s32 %v1782, %v2134
        %v2263 = vadd.s32 %v1783, %v2135
        %v2264 = vadd.s32 %v1784, %v2136
        %v2265 = vadd.s32 %v1785, %v2137
        %v2266 = vadd.s32 %v1786, %v2138
        %v2267 = vadd.s32 %v1787, %v2139
        %v2268 = vadd.s32 %v1788, %v2140
        %v2269 = vadd.s32 %v1789, %v2141
        %v2270 = vadd.s32 %v1790, %v2142
        %v2271 = vadd.s32 %v1791, %v2143
        %v2272 = vadd.s32 %v1792, %v2144
        %v2273 = vadd.s32 %v1793, %v2145
        %v2274 = vadd.s32 %v1794, %v2146
        %v2275 = vadd.s32 %v1795, %v2147
        %v2276 = vadd.s32 %v1796, %v2148
        %v2277 = vadd.s32 %v1797, %v2149
        %v2278 = vadd.s32 %v1798, %v2150
        %v2279 = vadd.s32 %v1799, %v2151
        %v2280 = vadd.s32 %v1800, %v2152
        %v2281 = vadd.s32 %v1801, %v2153
        %v2282 = vadd.s32 %v1802, %v2154
        %v2283 = vadd.s32 %v1803, %v2155
        %v2284 = vadd.s32 %v1804, %v2156
        %v2285 = vadd.s32 %v1805, %v2157
        %v2286 = vadd.s32 %v1806, %v2158
        %v2287 = vadd.s32 %v1807, %v2159
        %v2288 = vadd.s32 %v1808, %v2160
        %v2289 = vadd.s32 %v1809, %v2161
        %v2290 = vadd.s32 %v1810, %v2162
        %v2291 = vadd.s32 %v1811, %v2163
        %v2292 = vadd.s32 %v1812, %v2164
        %v2293 = vadd.s32 %v1813, %v2165
        %v2294 = vadd.s32 %v1814, %v2166
        %v2295 = vadd.s32 %v1815, %v2167
        %v2296 = vadd.s32 %v1816, %v2168
        %v2297 = vadd.s32 %v1817, %v2169
        %v2298 = vadd.s32 %v1818, %v2170
        %v2299 = vadd.s32 %v1819, %v2171
        %v2300 = vadd.s32 %v1820, %v2172
        %v2301 = vadd.s32 %v1821, %v2173
        %v2302 = vadd.s32 %v1822, %v2174
        %v2303 = vadd.s32 %v1823, %v2175
        %v2304 = vadd.s32 %v1824, %v2176
        %v2305 = vadd.s32 %v1825, %v2177
        %v2306 = vadd.s32 %v1826, %v2178
        %v2307 = vadd.s32 %v1827, %v2179
        %v2308 = vadd.s32 %v1828, %v2180
        %v2309 = vadd.s32 %v1829, %v2181
        %v2310 = vadd.s32 %v1830, %v2182
        %v2311 = vadd.s32 %v1831, %v2183
        %v2312 = vadd.s32 %v1832, %v2184
        %v2313 = vadd.s32 %v1833, %v2185
        %v2314 = vadd.s32 %v1834, %v2186
        %v2315 = vadd.s32 %v1835, %v2187
        %v2316 = vadd.s32 %v1836, %v2188
        %v2317 = vadd.s32 %v1837, %v2189
        %v2318 = vadd.s32 %v1838, %v2190
        %v2319 = vadd.s32 %v1839, %v2191
        %v2320 = vadd.s32 %v1840, %v2192
        %v2321 = vadd.s32 %v1841, %v2193
        %v2322 = vadd.s32 %v1842, %v2194
        %v2323 = vadd.s32 %v1843, %v2195
        %v2324 = vadd.s32 %v1844, %v2196
        %v2325 = vadd.s32 %v1845, %v2197
        %v2326 = vadd.s32 %v1846, %v2198
        %v2327 = vadd.s32 %v1847, %v2199
        %v2328 = vadd.s32 %v1848, %v2200
        %v2329 = vadd.s32 %v1849, %v2201
        %v2330 = vadd.s32 %v1850, %v2202
        %v2331 = vadd.s32 %v1851, %v2203
        %v2332 = vadd.s32 %v1852, %v2204
        %v2333 = vadd.s32 %v1853, %v2205
        %v2334 = vadd.s32 %v1854, %v2206
        %v2335 = vadd.s32 %v1855, %v2207
        %v2336 = vadd.s32 %v1856, %v2208
        %v2337 = vadd.s32 %v1857, %v2209
        %v2338 = vadd.s32 %v1858, %v2210
        %v2339 = vadd.s32 %v1859, %v2211
        %v2340 = vadd.s32 %v1860, %v2212
        %v2341 = vadd.s32 %v1861, %v2213
        %2342 = vset.pattern.permute.xlu0 2
        %2343 = vperm.xlu0 %2342, %v1350
        %v2344 = vpop.permute.xlu0 %2343
        %2345 = vset.pattern.permute.xlu0 2
        %2346 = vperm.xlu0 %2345, %v1351
        %v2347 = vpop.permute.xlu0 %2346
        %2348 = vset.pattern.permute.xlu0 2
        %2349 = vperm.xlu0 %2348, %v1352
        %v2350 = vpop.permute.xlu0 %2349
        %2351 = vset.pattern.permute.xlu0 2
        %2352 = vperm.xlu0 %2351, %v1353
        %v2353 = vpop.permute.xlu0 %2352
        %2354 = vset.pattern.permute.xlu0 2
        %2355 = vperm.xlu0 %2354, %v1354
        %v2356 = vpop.permute.xlu0 %2355
        %2357 = vset.pattern.permute.xlu0 2
        %2358 = vperm.xlu0 %2357, %v1355
        %v2359 = vpop.permute.xlu0 %2358
        %2360 = vset.pattern.permute.xlu0 2
        %2361 = vperm.xlu0 %2360, %v1356
        %v2362 = vpop.permute.xlu0 %2361
        %2363 = vset.pattern.permute.xlu0 2
        %2364 = vperm.xlu0 %2363, %v1357
        %v2365 = vpop.permute.xlu0 %2364
        %2366 = vset.pattern.permute.xlu0 2
        %2367 = vperm.xlu0 %2366, %v1358
        %v2368 = vpop.permute.xlu0 %2367
        %2369 = vset.pattern.permute.xlu0 2
        %2370 = vperm.xlu0 %2369, %v1359
        %v2371 = vpop.permute.xlu0 %2370
        %2372 = vset.pattern.permute.xlu0 2
        %2373 = vperm.xlu0 %2372, %v1360
        %v2374 = vpop.permute.xlu0 %2373
        %2375 = vset.pattern.permute.xlu0 2
        %2376 = vperm.xlu0 %2375, %v1361
        %v2377 = vpop.permute.xlu0 %2376
        %2378 = vset.pattern.permute.xlu0 2
        %2379 = vperm.xlu0 %2378, %v1362
        %v2380 = vpop.permute.xlu0 %2379
        %2381 = vset.pattern.permute.xlu0 2
        %2382 = vperm.xlu0 %2381, %v1363
        %v2383 = vpop.permute.xlu0 %2382
        %2384 = vset.pattern.permute.xlu0 2
        %2385 = vperm.xlu0 %2384, %v1364
        %v2386 = vpop.permute.xlu0 %2385
        %2387 = vset.pattern.permute.xlu0 2
        %2388 = vperm.xlu0 %2387, %v1365
        %v2389 = vpop.permute.xlu0 %2388
        %2390 = vset.pattern.permute.xlu0 2
        %2391 = vperm.xlu0 %2390, %v1366
        %v2392 = vpop.permute.xlu0 %2391
        %2393 = vset.pattern.permute.xlu0 2
        %2394 = vperm.xlu0 %2393, %v1367
        %v2395 = vpop.permute.xlu0 %2394
        %2396 = vset.pattern.permute.xlu0 2
        %2397 = vperm.xlu0 %2396, %v1368
        %v2398 = vpop.permute.xlu0 %2397
        %2399 = vset.pattern.permute.xlu0 2
        %2400 = vperm.xlu0 %2399, %v1369
        %v2401 = vpop.permute.xlu0 %2400
        %2402 = vset.pattern.permute.xlu0 2
        %2403 = vperm.xlu0 %2402, %v1370
        %v2404 = vpop.permute.xlu0 %2403
        %2405 = vset.pattern.permute.xlu0 2
        %2406 = vperm.xlu0 %2405, %v1371
        %v2407 = vpop.permute.xlu0 %2406
        %2408 = vset.pattern.permute.xlu0 2
        %2409 = vperm.xlu0 %2408, %v1372
        %v2410 = vpop.permute.xlu0 %2409
        %2411 = vset.pattern.permute.xlu0 2
        %2412 = vperm.xlu0 %2411, %v1373
        %v2413 = vpop.permute.xlu0 %2412
        %2414 = vset.pattern.permute.xlu0 2
        %2415 = vperm.xlu0 %2414, %v1374
        %v2416 = vpop.permute.xlu0 %2415
        %2417 = vset.pattern.permute.xlu0 2
        %2418 = vperm.xlu0 %2417, %v1375
        %v2419 = vpop.permute.xlu0 %2418
        %2420 = vset.pattern.permute.xlu0 2
        %2421 = vperm.xlu0 %2420, %v1376
        %v2422 = vpop.permute.xlu0 %2421
        %2423 = vset.pattern.permute.xlu0 2
        %2424 = vperm.xlu0 %2423, %v1377
        %v2425 = vpop.permute.xlu0 %2424
        %2426 = vset.pattern.permute.xlu0 2
        %2427 = vperm.xlu0 %2426, %v1378
        %v2428 = vpop.permute.xlu0 %2427
        %2429 = vset.pattern.permute.xlu0 2
        %2430 = vperm.xlu0 %2429, %v1379
        %v2431 = vpop.permute.xlu0 %2430
        %2432 = vset.pattern.permute.xlu0 2
        %2433 = vperm.xlu0 %2432, %v1380
        %v2434 = vpop.permute.xlu0 %2433
        %2435 = vset.pattern.permute.xlu0 2
        %2436 = vperm.xlu0 %2435, %v1381
        %v2437 = vpop.permute.xlu0 %2436
        %vm2438 = vcmp.eq.s32.totalorder %v990, %v2344
        %vm2439 = vcmp.eq.s32.totalorder %v991, %v2344
        %vm2440 = vcmp.eq.s32.totalorder %v992, %v2344
        %vm2441 = vcmp.eq.s32.totalorder %v993, %v2344
        %vm2442 = vcmp.eq.s32.totalorder %v990, %v2347
        %vm2443 = vcmp.eq.s32.totalorder %v991, %v2347
        %vm2444 = vcmp.eq.s32.totalorder %v992, %v2347
        %vm2445 = vcmp.eq.s32.totalorder %v993, %v2347
        %vm2446 = vcmp.eq.s32.totalorder %v990, %v2350
        %vm2447 = vcmp.eq.s32.totalorder %v991, %v2350
        %vm2448 = vcmp.eq.s32.totalorder %v992, %v2350
        %vm2449 = vcmp.eq.s32.totalorder %v993, %v2350
        %vm2450 = vcmp.eq.s32.totalorder %v990, %v2353
        %vm2451 = vcmp.eq.s32.totalorder %v991, %v2353
        %vm2452 = vcmp.eq.s32.totalorder %v992, %v2353
        %vm2453 = vcmp.eq.s32.totalorder %v993, %v2353
        %vm2454 = vcmp.eq.s32.totalorder %v990, %v2356
        %vm2455 = vcmp.eq.s32.totalorder %v991, %v2356
        %vm2456 = vcmp.eq.s32.totalorder %v992, %v2356
        %vm2457 = vcmp.eq.s32.totalorder %v993, %v2356
        %vm2458 = vcmp.eq.s32.totalorder %v990, %v2359
        %vm2459 = vcmp.eq.s32.totalorder %v991, %v2359
        %vm2460 = vcmp.eq.s32.totalorder %v992, %v2359
        %vm2461 = vcmp.eq.s32.totalorder %v993, %v2359
        %vm2462 = vcmp.eq.s32.totalorder %v990, %v2362
        %vm2463 = vcmp.eq.s32.totalorder %v991, %v2362
        %vm2464 = vcmp.eq.s32.totalorder %v992, %v2362
        %vm2465 = vcmp.eq.s32.totalorder %v993, %v2362
        %vm2466 = vcmp.eq.s32.totalorder %v990, %v2365
        %vm2467 = vcmp.eq.s32.totalorder %v991, %v2365
        %vm2468 = vcmp.eq.s32.totalorder %v992, %v2365
        %vm2469 = vcmp.eq.s32.totalorder %v993, %v2365
        %vm2470 = vcmp.eq.s32.totalorder %v990, %v2368
        %vm2471 = vcmp.eq.s32.totalorder %v991, %v2368
        %vm2472 = vcmp.eq.s32.totalorder %v992, %v2368
        %vm2473 = vcmp.eq.s32.totalorder %v993, %v2368
        %vm2474 = vcmp.eq.s32.totalorder %v990, %v2371
        %vm2475 = vcmp.eq.s32.totalorder %v991, %v2371
        %vm2476 = vcmp.eq.s32.totalorder %v992, %v2371
        %vm2477 = vcmp.eq.s32.totalorder %v993, %v2371
        %vm2478 = vcmp.eq.s32.totalorder %v990, %v2374
        %vm2479 = vcmp.eq.s32.totalorder %v991, %v2374
        %vm2480 = vcmp.eq.s32.totalorder %v992, %v2374
        %vm2481 = vcmp.eq.s32.totalorder %v993, %v2374
        %vm2482 = vcmp.eq.s32.totalorder %v990, %v2377
        %vm2483 = vcmp.eq.s32.totalorder %v991, %v2377
        %vm2484 = vcmp.eq.s32.totalorder %v992, %v2377
        %vm2485 = vcmp.eq.s32.totalorder %v993, %v2377
        %vm2486 = vcmp.eq.s32.totalorder %v990, %v2380
        %vm2487 = vcmp.eq.s32.totalorder %v991, %v2380
        %vm2488 = vcmp.eq.s32.totalorder %v992, %v2380
        %vm2489 = vcmp.eq.s32.totalorder %v993, %v2380
        %vm2490 = vcmp.eq.s32.totalorder %v990, %v2383
        %vm2491 = vcmp.eq.s32.totalorder %v991, %v2383
        %vm2492 = vcmp.eq.s32.totalorder %v992, %v2383
        %vm2493 = vcmp.eq.s32.totalorder %v993, %v2383
        %vm2494 = vcmp.eq.s32.totalorder %v990, %v2386
        %vm2495 = vcmp.eq.s32.totalorder %v991, %v2386
        %vm2496 = vcmp.eq.s32.totalorder %v992, %v2386
        %vm2497 = vcmp.eq.s32.totalorder %v993, %v2386
        %vm2498 = vcmp.eq.s32.totalorder %v990, %v2389
        %vm2499 = vcmp.eq.s32.totalorder %v991, %v2389
        %vm2500 = vcmp.eq.s32.totalorder %v992, %v2389
        %vm2501 = vcmp.eq.s32.totalorder %v993, %v2389
        %vm2502 = vcmp.eq.s32.totalorder %v990, %v2392
        %vm2503 = vcmp.eq.s32.totalorder %v991, %v2392
        %vm2504 = vcmp.eq.s32.totalorder %v992, %v2392
        %vm2505 = vcmp.eq.s32.totalorder %v993, %v2392
        %vm2506 = vcmp.eq.s32.totalorder %v990, %v2395
        %vm2507 = vcmp.eq.s32.totalorder %v991, %v2395
        %vm2508 = vcmp.eq.s32.totalorder %v992, %v2395
        %vm2509 = vcmp.eq.s32.totalorder %v993, %v2395
        %vm2510 = vcmp.eq.s32.totalorder %v990, %v2398
        %vm2511 = vcmp.eq.s32.totalorder %v991, %v2398
        %vm2512 = vcmp.eq.s32.totalorder %v992, %v2398
        %vm2513 = vcmp.eq.s32.totalorder %v993, %v2398
        %vm2514 = vcmp.eq.s32.totalorder %v990, %v2401
        %vm2515 = vcmp.eq.s32.totalorder %v991, %v2401
        %vm2516 = vcmp.eq.s32.totalorder %v992, %v2401
        %vm2517 = vcmp.eq.s32.totalorder %v993, %v2401
        %vm2518 = vcmp.eq.s32.totalorder %v990, %v2404
        %vm2519 = vcmp.eq.s32.totalorder %v991, %v2404
        %vm2520 = vcmp.eq.s32.totalorder %v992, %v2404
        %vm2521 = vcmp.eq.s32.totalorder %v993, %v2404
        %vm2522 = vcmp.eq.s32.totalorder %v990, %v2407
        %vm2523 = vcmp.eq.s32.totalorder %v991, %v2407
        %vm2524 = vcmp.eq.s32.totalorder %v992, %v2407
        %vm2525 = vcmp.eq.s32.totalorder %v993, %v2407
        %vm2526 = vcmp.eq.s32.totalorder %v990, %v2410
        %vm2527 = vcmp.eq.s32.totalorder %v991, %v2410
        %vm2528 = vcmp.eq.s32.totalorder %v992, %v2410
        %vm2529 = vcmp.eq.s32.totalorder %v993, %v2410
        %vm2530 = vcmp.eq.s32.totalorder %v990, %v2413
        %vm2531 = vcmp.eq.s32.totalorder %v991, %v2413
        %vm2532 = vcmp.eq.s32.totalorder %v992, %v2413
        %vm2533 = vcmp.eq.s32.totalorder %v993, %v2413
        %vm2534 = vcmp.eq.s32.totalorder %v990, %v2416
        %vm2535 = vcmp.eq.s32.totalorder %v991, %v2416
        %vm2536 = vcmp.eq.s32.totalorder %v992, %v2416
        %vm2537 = vcmp.eq.s32.totalorder %v993, %v2416
        %vm2538 = vcmp.eq.s32.totalorder %v990, %v2419
        %vm2539 = vcmp.eq.s32.totalorder %v991, %v2419
        %vm2540 = vcmp.eq.s32.totalorder %v992, %v2419
        %vm2541 = vcmp.eq.s32.totalorder %v993, %v2419
        %vm2542 = vcmp.eq.s32.totalorder %v990, %v2422
        %vm2543 = vcmp.eq.s32.totalorder %v991, %v2422
        %vm2544 = vcmp.eq.s32.totalorder %v992, %v2422
        %vm2545 = vcmp.eq.s32.totalorder %v993, %v2422
        %vm2546 = vcmp.eq.s32.totalorder %v990, %v2425
        %vm2547 = vcmp.eq.s32.totalorder %v991, %v2425
        %vm2548 = vcmp.eq.s32.totalorder %v992, %v2425
        %vm2549 = vcmp.eq.s32.totalorder %v993, %v2425
        %vm2550 = vcmp.eq.s32.totalorder %v990, %v2428
        %vm2551 = vcmp.eq.s32.totalorder %v991, %v2428
        %vm2552 = vcmp.eq.s32.totalorder %v992, %v2428
        %vm2553 = vcmp.eq.s32.totalorder %v993, %v2428
        %vm2554 = vcmp.eq.s32.totalorder %v990, %v2431
        %vm2555 = vcmp.eq.s32.totalorder %v991, %v2431
        %vm2556 = vcmp.eq.s32.totalorder %v992, %v2431
        %vm2557 = vcmp.eq.s32.totalorder %v993, %v2431
        %vm2558 = vcmp.eq.s32.totalorder %v990, %v2434
        %vm2559 = vcmp.eq.s32.totalorder %v991, %v2434
        %vm2560 = vcmp.eq.s32.totalorder %v992, %v2434
        %vm2561 = vcmp.eq.s32.totalorder %v993, %v2434
        %vm2562 = vcmp.eq.s32.totalorder %v990, %v2437
        %vm2563 = vcmp.eq.s32.totalorder %v991, %v2437
        %vm2564 = vcmp.eq.s32.totalorder %v992, %v2437
        %vm2565 = vcmp.eq.s32.totalorder %v993, %v2437
        %v2566 = vsel %vm2438, 1, 0
        %v2567 = vsel %vm2439, 1, 0
        %v2568 = vsel %vm2440, 1, 0
        %v2569 = vsel %vm2441, 1, 0
        %v2570 = vsel %vm2442, 1, 0
        %v2571 = vsel %vm2443, 1, 0
        %v2572 = vsel %vm2444, 1, 0
        %v2573 = vsel %vm2445, 1, 0
        %v2574 = vsel %vm2446, 1, 0
        %v2575 = vsel %vm2447, 1, 0
        %v2576 = vsel %vm2448, 1, 0
        %v2577 = vsel %vm2449, 1, 0
        %v2578 = vsel %vm2450, 1, 0
        %v2579 = vsel %vm2451, 1, 0
        %v2580 = vsel %vm2452, 1, 0
        %v2581 = vsel %vm2453, 1, 0
        %v2582 = vsel %vm2454, 1, 0
        %v2583 = vsel %vm2455, 1, 0
        %v2584 = vsel %vm2456, 1, 0
        %v2585 = vsel %vm2457, 1, 0
        %v2586 = vsel %vm2458, 1, 0
        %v2587 = vsel %vm2459, 1, 0
        %v2588 = vsel %vm2460, 1, 0
        %v2589 = vsel %vm2461, 1, 0
        %v2590 = vsel %vm2462, 1, 0
        %v2591 = vsel %vm2463, 1, 0
        %v2592 = vsel %vm2464, 1, 0
        %v2593 = vsel %vm2465, 1, 0
        %v2594 = vsel %vm2466, 1, 0
        %v2595 = vsel %vm2467, 1, 0
        %v2596 = vsel %vm2468, 1, 0
        %v2597 = vsel %vm2469, 1, 0
        %v2598 = vsel %vm2470, 1, 0
        %v2599 = vsel %vm2471, 1, 0
        %v2600 = vsel %vm2472, 1, 0
        %v2601 = vsel %vm2473, 1, 0
        %v2602 = vsel %vm2474, 1, 0
        %v2603 = vsel %vm2475, 1, 0
        %v2604 = vsel %vm2476, 1, 0
        %v2605 = vsel %vm2477, 1, 0
        %v2606 = vsel %vm2478, 1, 0
        %v2607 = vsel %vm2479, 1, 0
        %v2608 = vsel %vm2480, 1, 0
        %v2609 = vsel %vm2481, 1, 0
        %v2610 = vsel %vm2482, 1, 0
        %v2611 = vsel %vm2483, 1, 0
        %v2612 = vsel %vm2484, 1, 0
        %v2613 = vsel %vm2485, 1, 0
        %v2614 = vsel %vm2486, 1, 0
        %v2615 = vsel %vm2487, 1, 0
        %v2616 = vsel %vm2488, 1, 0
        %v2617 = vsel %vm2489, 1, 0
        %v2618 = vsel %vm2490, 1, 0
        %v2619 = vsel %vm2491, 1, 0
        %v2620 = vsel %vm2492, 1, 0
        %v2621 = vsel %vm2493, 1, 0
        %v2622 = vsel %vm2494, 1, 0
        %v2623 = vsel %vm2495, 1, 0
        %v2624 = vsel %vm2496, 1, 0
        %v2625 = vsel %vm2497, 1, 0
        %v2626 = vsel %vm2498, 1, 0
        %v2627 = vsel %vm2499, 1, 0
        %v2628 = vsel %vm2500, 1, 0
        %v2629 = vsel %vm2501, 1, 0
        %v2630 = vsel %vm2502, 1, 0
        %v2631 = vsel %vm2503, 1, 0
        %v2632 = vsel %vm2504, 1, 0
        %v2633 = vsel %vm2505, 1, 0
        %v2634 = vsel %vm2506, 1, 0
        %v2635 = vsel %vm2507, 1, 0
        %v2636 = vsel %vm2508, 1, 0
        %v2637 = vsel %vm2509, 1, 0
        %v2638 = vsel %vm2510, 1, 0
        %v2639 = vsel %vm2511, 1, 0
        %v2640 = vsel %vm2512, 1, 0
        %v2641 = vsel %vm2513, 1, 0
        %v2642 = vsel %vm2514, 1, 0
        %v2643 = vsel %vm2515, 1, 0
        %v2644 = vsel %vm2516, 1, 0
        %v2645 = vsel %vm2517, 1, 0
        %v2646 = vsel %vm2518, 1, 0
        %v2647 = vsel %vm2519, 1, 0
        %v2648 = vsel %vm2520, 1, 0
        %v2649 = vsel %vm2521, 1, 0
        %v2650 = vsel %vm2522, 1, 0
        %v2651 = vsel %vm2523, 1, 0
        %v2652 = vsel %vm2524, 1, 0
        %v2653 = vsel %vm2525, 1, 0
        %v2654 = vsel %vm2526, 1, 0
        %v2655 = vsel %vm2527, 1, 0
        %v2656 = vsel %vm2528, 1, 0
        %v2657 = vsel %vm2529, 1, 0
        %v2658 = vsel %vm2530, 1, 0
        %v2659 = vsel %vm2531, 1, 0
        %v2660 = vsel %vm2532, 1, 0
        %v2661 = vsel %vm2533, 1, 0
        %v2662 = vsel %vm2534, 1, 0
        %v2663 = vsel %vm2535, 1, 0
        %v2664 = vsel %vm2536, 1, 0
        %v2665 = vsel %vm2537, 1, 0
        %v2666 = vsel %vm2538, 1, 0
        %v2667 = vsel %vm2539, 1, 0
        %v2668 = vsel %vm2540, 1, 0
        %v2669 = vsel %vm2541, 1, 0
        %v2670 = vsel %vm2542, 1, 0
        %v2671 = vsel %vm2543, 1, 0
        %v2672 = vsel %vm2544, 1, 0
        %v2673 = vsel %vm2545, 1, 0
        %v2674 = vsel %vm2546, 1, 0
        %v2675 = vsel %vm2547, 1, 0
        %v2676 = vsel %vm2548, 1, 0
        %v2677 = vsel %vm2549, 1, 0
        %v2678 = vsel %vm2550, 1, 0
        %v2679 = vsel %vm2551, 1, 0
        %v2680 = vsel %vm2552, 1, 0
        %v2681 = vsel %vm2553, 1, 0
        %v2682 = vsel %vm2554, 1, 0
        %v2683 = vsel %vm2555, 1, 0
        %v2684 = vsel %vm2556, 1, 0
        %v2685 = vsel %vm2557, 1, 0
        %v2686 = vsel %vm2558, 1, 0
        %v2687 = vsel %vm2559, 1, 0
        %v2688 = vsel %vm2560, 1, 0
        %v2689 = vsel %vm2561, 1, 0
        %v2690 = vsel %vm2562, 1, 0
        %v2691 = vsel %vm2563, 1, 0
        %v2692 = vsel %vm2564, 1, 0
        %v2693 = vsel %vm2565, 1, 0
        %v2694 = vadd.s32 %v2214, %v2566
        %v2695 = vadd.s32 %v2215, %v2567
        %v2696 = vadd.s32 %v2216, %v2568
        %v2697 = vadd.s32 %v2217, %v2569
        %v2698 = vadd.s32 %v2218, %v2570
        %v2699 = vadd.s32 %v2219, %v2571
        %v2700 = vadd.s32 %v2220, %v2572
        %v2701 = vadd.s32 %v2221, %v2573
        %v2702 = vadd.s32 %v2222, %v2574
        %v2703 = vadd.s32 %v2223, %v2575
        %v2704 = vadd.s32 %v2224, %v2576
        %v2705 = vadd.s32 %v2225, %v2577
        %v2706 = vadd.s32 %v2226, %v2578
        %v2707 = vadd.s32 %v2227, %v2579
        %v2708 = vadd.s32 %v2228, %v2580
        %v2709 = vadd.s32 %v2229, %v2581
        %v2710 = vadd.s32 %v2230, %v2582
        %v2711 = vadd.s32 %v2231, %v2583
        %v2712 = vadd.s32 %v2232, %v2584
        %v2713 = vadd.s32 %v2233, %v2585
        %v2714 = vadd.s32 %v2234, %v2586
        %v2715 = vadd.s32 %v2235, %v2587
        %v2716 = vadd.s32 %v2236, %v2588
        %v2717 = vadd.s32 %v2237, %v2589
        %v2718 = vadd.s32 %v2238, %v2590
        %v2719 = vadd.s32 %v2239, %v2591
        %v2720 = vadd.s32 %v2240, %v2592
        %v2721 = vadd.s32 %v2241, %v2593
        %v2722 = vadd.s32 %v2242, %v2594
        %v2723 = vadd.s32 %v2243, %v2595
        %v2724 = vadd.s32 %v2244, %v2596
        %v2725 = vadd.s32 %v2245, %v2597
        %v2726 = vadd.s32 %v2246, %v2598
        %v2727 = vadd.s32 %v2247, %v2599
        %v2728 = vadd.s32 %v2248, %v2600
        %v2729 = vadd.s32 %v2249, %v2601
        %v2730 = vadd.s32 %v2250, %v2602
        %v2731 = vadd.s32 %v2251, %v2603
        %v2732 = vadd.s32 %v2252, %v2604
        %v2733 = vadd.s32 %v2253, %v2605
        %v2734 = vadd.s32 %v2254, %v2606
        %v2735 = vadd.s32 %v2255, %v2607
        %v2736 = vadd.s32 %v2256, %v2608
        %v2737 = vadd.s32 %v2257, %v2609
        %v2738 = vadd.s32 %v2258, %v2610
        %v2739 = vadd.s32 %v2259, %v2611
        %v2740 = vadd.s32 %v2260, %v2612
        %v2741 = vadd.s32 %v2261, %v2613
        %v2742 = vadd.s32 %v2262, %v2614
        %v2743 = vadd.s32 %v2263, %v2615
        %v2744 = vadd.s32 %v2264, %v2616
        %v2745 = vadd.s32 %v2265, %v2617
        %v2746 = vadd.s32 %v2266, %v2618
        %v2747 = vadd.s32 %v2267, %v2619
        %v2748 = vadd.s32 %v2268, %v2620
        %v2749 = vadd.s32 %v2269, %v2621
        %v2750 = vadd.s32 %v2270, %v2622
        %v2751 = vadd.s32 %v2271, %v2623
        %v2752 = vadd.s32 %v2272, %v2624
        %v2753 = vadd.s32 %v2273, %v2625
        %v2754 = vadd.s32 %v2274, %v2626
        %v2755 = vadd.s32 %v2275, %v2627
        %v2756 = vadd.s32 %v2276, %v2628
        %v2757 = vadd.s32 %v2277, %v2629
        %v2758 = vadd.s32 %v2278, %v2630
        %v2759 = vadd.s32 %v2279, %v2631
        %v2760 = vadd.s32 %v2280, %v2632
        %v2761 = vadd.s32 %v2281, %v2633
        %v2762 = vadd.s32 %v2282, %v2634
        %v2763 = vadd.s32 %v2283, %v2635
        %v2764 = vadd.s32 %v2284, %v2636
        %v2765 = vadd.s32 %v2285, %v2637
        %v2766 = vadd.s32 %v2286, %v2638
        %v2767 = vadd.s32 %v2287, %v2639
        %v2768 = vadd.s32 %v2288, %v2640
        %v2769 = vadd.s32 %v2289, %v2641
        %v2770 = vadd.s32 %v2290, %v2642
        %v2771 = vadd.s32 %v2291, %v2643
        %v2772 = vadd.s32 %v2292, %v2644
        %v2773 = vadd.s32 %v2293, %v2645
        %v2774 = vadd.s32 %v2294, %v2646
        %v2775 = vadd.s32 %v2295, %v2647
        %v2776 = vadd.s32 %v2296, %v2648
        %v2777 = vadd.s32 %v2297, %v2649
        %v2778 = vadd.s32 %v2298, %v2650
        %v2779 = vadd.s32 %v2299, %v2651
        %v2780 = vadd.s32 %v2300, %v2652
        %v2781 = vadd.s32 %v2301, %v2653
        %v2782 = vadd.s32 %v2302, %v2654
        %v2783 = vadd.s32 %v2303, %v2655
        %v2784 = vadd.s32 %v2304, %v2656
        %v2785 = vadd.s32 %v2305, %v2657
        %v2786 = vadd.s32 %v2306, %v2658
        %v2787 = vadd.s32 %v2307, %v2659
        %v2788 = vadd.s32 %v2308, %v2660
        %v2789 = vadd.s32 %v2309, %v2661
        %v2790 = vadd.s32 %v2310, %v2662
        %v2791 = vadd.s32 %v2311, %v2663
        %v2792 = vadd.s32 %v2312, %v2664
        %v2793 = vadd.s32 %v2313, %v2665
        %v2794 = vadd.s32 %v2314, %v2666
        %v2795 = vadd.s32 %v2315, %v2667
        %v2796 = vadd.s32 %v2316, %v2668
        %v2797 = vadd.s32 %v2317, %v2669
        %v2798 = vadd.s32 %v2318, %v2670
        %v2799 = vadd.s32 %v2319, %v2671
        %v2800 = vadd.s32 %v2320, %v2672
        %v2801 = vadd.s32 %v2321, %v2673
        %v2802 = vadd.s32 %v2322, %v2674
        %v2803 = vadd.s32 %v2323, %v2675
        %v2804 = vadd.s32 %v2324, %v2676
        %v2805 = vadd.s32 %v2325, %v2677
        %v2806 = vadd.s32 %v2326, %v2678
        %v2807 = vadd.s32 %v2327, %v2679
        %v2808 = vadd.s32 %v2328, %v2680
        %v2809 = vadd.s32 %v2329, %v2681
        %v2810 = vadd.s32 %v2330, %v2682
        %v2811 = vadd.s32 %v2331, %v2683
        %v2812 = vadd.s32 %v2332, %v2684
        %v2813 = vadd.s32 %v2333, %v2685
        %v2814 = vadd.s32 %v2334, %v2686
        %v2815 = vadd.s32 %v2335, %v2687
        %v2816 = vadd.s32 %v2336, %v2688
        %v2817 = vadd.s32 %v2337, %v2689
        %v2818 = vadd.s32 %v2338, %v2690
        %v2819 = vadd.s32 %v2339, %v2691
        %v2820 = vadd.s32 %v2340, %v2692
        %v2821 = vadd.s32 %v2341, %v2693
        %2822 = vset.pattern.permute.xlu0 3
        %2823 = vperm.xlu0 %2822, %v1350
        %v2824 = vpop.permute.xlu0 %2823
        %2825 = vset.pattern.permute.xlu0 3
        %2826 = vperm.xlu0 %2825, %v1351
        %v2827 = vpop.permute.xlu0 %2826
        %2828 = vset.pattern.permute.xlu0 3
        %2829 = vperm.xlu0 %2828, %v1352
        %v2830 = vpop.permute.xlu0 %2829
        %2831 = vset.pattern.permute.xlu0 3
        %2832 = vperm.xlu0 %2831, %v1353
        %v2833 = vpop.permute.xlu0 %2832
        %2834 = vset.pattern.permute.xlu0 3
        %2835 = vperm.xlu0 %2834, %v1354
        %v2836 = vpop.permute.xlu0 %2835
        %2837 = vset.pattern.permute.xlu0 3
        %2838 = vperm.xlu0 %2837, %v1355
        %v2839 = vpop.permute.xlu0 %2838
        %2840 = vset.pattern.permute.xlu0 3
        %2841 = vperm.xlu0 %2840, %v1356
        %v2842 = vpop.permute.xlu0 %2841
        %2843 = vset.pattern.permute.xlu0 3
        %2844 = vperm.xlu0 %2843, %v1357
        %v2845 = vpop.permute.xlu0 %2844
        %2846 = vset.pattern.permute.xlu0 3
        %2847 = vperm.xlu0 %2846, %v1358
        %v2848 = vpop.permute.xlu0 %2847
        %2849 = vset.pattern.permute.xlu0 3
        %2850 = vperm.xlu0 %2849, %v1359
        %v2851 = vpop.permute.xlu0 %2850
        %2852 = vset.pattern.permute.xlu0 3
        %2853 = vperm.xlu0 %2852, %v1360
        %v2854 = vpop.permute.xlu0 %2853
        %2855 = vset.pattern.permute.xlu0 3
        %2856 = vperm.xlu0 %2855, %v1361
        %v2857 = vpop.permute.xlu0 %2856
        %2858 = vset.pattern.permute.xlu0 3
        %2859 = vperm.xlu0 %2858, %v1362
        %v2860 = vpop.permute.xlu0 %2859
        %2861 = vset.pattern.permute.xlu0 3
        %2862 = vperm.xlu0 %2861, %v1363
        %v2863 = vpop.permute.xlu0 %2862
        %2864 = vset.pattern.permute.xlu0 3
        %2865 = vperm.xlu0 %2864, %v1364
        %v2866 = vpop.permute.xlu0 %2865
        %2867 = vset.pattern.permute.xlu0 3
        %2868 = vperm.xlu0 %2867, %v1365
        %v2869 = vpop.permute.xlu0 %2868
        %2870 = vset.pattern.permute.xlu0 3
        %2871 = vperm.xlu0 %2870, %v1366
        %v2872 = vpop.permute.xlu0 %2871
        %2873 = vset.pattern.permute.xlu0 3
        %2874 = vperm.xlu0 %2873, %v1367
        %v2875 = vpop.permute.xlu0 %2874
        %2876 = vset.pattern.permute.xlu0 3
        %2877 = vperm.xlu0 %2876, %v1368
        %v2878 = vpop.permute.xlu0 %2877
        %2879 = vset.pattern.permute.xlu0 3
        %2880 = vperm.xlu0 %2879, %v1369
        %v2881 = vpop.permute.xlu0 %2880
        %2882 = vset.pattern.permute.xlu0 3
        %2883 = vperm.xlu0 %2882, %v1370
        %v2884 = vpop.permute.xlu0 %2883
        %2885 = vset.pattern.permute.xlu0 3
        %2886 = vperm.xlu0 %2885, %v1371
        %v2887 = vpop.permute.xlu0 %2886
        %2888 = vset.pattern.permute.xlu0 3
        %2889 = vperm.xlu0 %2888, %v1372
        %v2890 = vpop.permute.xlu0 %2889
        %2891 = vset.pattern.permute.xlu0 3
        %2892 = vperm.xlu0 %2891, %v1373
        %v2893 = vpop.permute.xlu0 %2892
        %2894 = vset.pattern.permute.xlu0 3
        %2895 = vperm.xlu0 %2894, %v1374
        %v2896 = vpop.permute.xlu0 %2895
        %2897 = vset.pattern.permute.xlu0 3
        %2898 = vperm.xlu0 %2897, %v1375
        %v2899 = vpop.permute.xlu0 %2898
        %2900 = vset.pattern.permute.xlu0 3
        %2901 = vperm.xlu0 %2900, %v1376
        %v2902 = vpop.permute.xlu0 %2901
        %2903 = vset.pattern.permute.xlu0 3
        %2904 = vperm.xlu0 %2903, %v1377
        %v2905 = vpop.permute.xlu0 %2904
        %2906 = vset.pattern.permute.xlu0 3
        %2907 = vperm.xlu0 %2906, %v1378
        %v2908 = vpop.permute.xlu0 %2907
        %2909 = vset.pattern.permute.xlu0 3
        %2910 = vperm.xlu0 %2909, %v1379
        %v2911 = vpop.permute.xlu0 %2910
        %2912 = vset.pattern.permute.xlu0 3
        %2913 = vperm.xlu0 %2912, %v1380
        %v2914 = vpop.permute.xlu0 %2913
        %2915 = vset.pattern.permute.xlu0 3
        %2916 = vperm.xlu0 %2915, %v1381
        %v2917 = vpop.permute.xlu0 %2916
        %vm2918 = vcmp.eq.s32.totalorder %v990, %v2824
        %vm2919 = vcmp.eq.s32.totalorder %v991, %v2824
        %vm2920 = vcmp.eq.s32.totalorder %v992, %v2824
        %vm2921 = vcmp.eq.s32.totalorder %v993, %v2824
        %vm2922 = vcmp.eq.s32.totalorder %v990, %v2827
        %vm2923 = vcmp.eq.s32.totalorder %v991, %v2827
        %vm2924 = vcmp.eq.s32.totalorder %v992, %v2827
        %vm2925 = vcmp.eq.s32.totalorder %v993, %v2827
        %vm2926 = vcmp.eq.s32.totalorder %v990, %v2830
        %vm2927 = vcmp.eq.s32.totalorder %v991, %v2830
        %vm2928 = vcmp.eq.s32.totalorder %v992, %v2830
        %vm2929 = vcmp.eq.s32.totalorder %v993, %v2830
        %vm2930 = vcmp.eq.s32.totalorder %v990, %v2833
        %vm2931 = vcmp.eq.s32.totalorder %v991, %v2833
        %vm2932 = vcmp.eq.s32.totalorder %v992, %v2833
        %vm2933 = vcmp.eq.s32.totalorder %v993, %v2833
        %vm2934 = vcmp.eq.s32.totalorder %v990, %v2836
        %vm2935 = vcmp.eq.s32.totalorder %v991, %v2836
        %vm2936 = vcmp.eq.s32.totalorder %v992, %v2836
        %vm2937 = vcmp.eq.s32.totalorder %v993, %v2836
        %vm2938 = vcmp.eq.s32.totalorder %v990, %v2839
        %vm2939 = vcmp.eq.s32.totalorder %v991, %v2839
        %vm2940 = vcmp.eq.s32.totalorder %v992, %v2839
        %vm2941 = vcmp.eq.s32.totalorder %v993, %v2839
        %vm2942 = vcmp.eq.s32.totalorder %v990, %v2842
        %vm2943 = vcmp.eq.s32.totalorder %v991, %v2842
        %vm2944 = vcmp.eq.s32.totalorder %v992, %v2842
        %vm2945 = vcmp.eq.s32.totalorder %v993, %v2842
        %vm2946 = vcmp.eq.s32.totalorder %v990, %v2845
        %vm2947 = vcmp.eq.s32.totalorder %v991, %v2845
        %vm2948 = vcmp.eq.s32.totalorder %v992, %v2845
        %vm2949 = vcmp.eq.s32.totalorder %v993, %v2845
        %vm2950 = vcmp.eq.s32.totalorder %v990, %v2848
        %vm2951 = vcmp.eq.s32.totalorder %v991, %v2848
        %vm2952 = vcmp.eq.s32.totalorder %v992, %v2848
        %vm2953 = vcmp.eq.s32.totalorder %v993, %v2848
        %vm2954 = vcmp.eq.s32.totalorder %v990, %v2851
        %vm2955 = vcmp.eq.s32.totalorder %v991, %v2851
        %vm2956 = vcmp.eq.s32.totalorder %v992, %v2851
        %vm2957 = vcmp.eq.s32.totalorder %v993, %v2851
        %vm2958 = vcmp.eq.s32.totalorder %v990, %v2854
        %vm2959 = vcmp.eq.s32.totalorder %v991, %v2854
        %vm2960 = vcmp.eq.s32.totalorder %v992, %v2854
        %vm2961 = vcmp.eq.s32.totalorder %v993, %v2854
        %vm2962 = vcmp.eq.s32.totalorder %v990, %v2857
        %vm2963 = vcmp.eq.s32.totalorder %v991, %v2857
        %vm2964 = vcmp.eq.s32.totalorder %v992, %v2857
        %vm2965 = vcmp.eq.s32.totalorder %v993, %v2857
        %vm2966 = vcmp.eq.s32.totalorder %v990, %v2860
        %vm2967 = vcmp.eq.s32.totalorder %v991, %v2860
        %vm2968 = vcmp.eq.s32.totalorder %v992, %v2860
        %vm2969 = vcmp.eq.s32.totalorder %v993, %v2860
        %vm2970 = vcmp.eq.s32.totalorder %v990, %v2863
        %vm2971 = vcmp.eq.s32.totalorder %v991, %v2863
        %vm2972 = vcmp.eq.s32.totalorder %v992, %v2863
        %vm2973 = vcmp.eq.s32.totalorder %v993, %v2863
        %vm2974 = vcmp.eq.s32.totalorder %v990, %v2866
        %vm2975 = vcmp.eq.s32.totalorder %v991, %v2866
        %vm2976 = vcmp.eq.s32.totalorder %v992, %v2866
        %vm2977 = vcmp.eq.s32.totalorder %v993, %v2866
        %vm2978 = vcmp.eq.s32.totalorder %v990, %v2869
        %vm2979 = vcmp.eq.s32.totalorder %v991, %v2869
        %vm2980 = vcmp.eq.s32.totalorder %v992, %v2869
        %vm2981 = vcmp.eq.s32.totalorder %v993, %v2869
        %vm2982 = vcmp.eq.s32.totalorder %v990, %v2872
        %vm2983 = vcmp.eq.s32.totalorder %v991, %v2872
        %vm2984 = vcmp.eq.s32.totalorder %v992, %v2872
        %vm2985 = vcmp.eq.s32.totalorder %v993, %v2872
        %vm2986 = vcmp.eq.s32.totalorder %v990, %v2875
        %vm2987 = vcmp.eq.s32.totalorder %v991, %v2875
        %vm2988 = vcmp.eq.s32.totalorder %v992, %v2875
        %vm2989 = vcmp.eq.s32.totalorder %v993, %v2875
        %vm2990 = vcmp.eq.s32.totalorder %v990, %v2878
        %vm2991 = vcmp.eq.s32.totalorder %v991, %v2878
        %vm2992 = vcmp.eq.s32.totalorder %v992, %v2878
        %vm2993 = vcmp.eq.s32.totalorder %v993, %v2878
        %vm2994 = vcmp.eq.s32.totalorder %v990, %v2881
        %vm2995 = vcmp.eq.s32.totalorder %v991, %v2881
        %vm2996 = vcmp.eq.s32.totalorder %v992, %v2881
        %vm2997 = vcmp.eq.s32.totalorder %v993, %v2881
        %vm2998 = vcmp.eq.s32.totalorder %v990, %v2884
        %vm2999 = vcmp.eq.s32.totalorder %v991, %v2884
        %vm3000 = vcmp.eq.s32.totalorder %v992, %v2884
        %vm3001 = vcmp.eq.s32.totalorder %v993, %v2884
        %vm3002 = vcmp.eq.s32.totalorder %v990, %v2887
        %vm3003 = vcmp.eq.s32.totalorder %v991, %v2887
        %vm3004 = vcmp.eq.s32.totalorder %v992, %v2887
        %vm3005 = vcmp.eq.s32.totalorder %v993, %v2887
        %vm3006 = vcmp.eq.s32.totalorder %v990, %v2890
        %vm3007 = vcmp.eq.s32.totalorder %v991, %v2890
        %vm3008 = vcmp.eq.s32.totalorder %v992, %v2890
        %vm3009 = vcmp.eq.s32.totalorder %v993, %v2890
        %vm3010 = vcmp.eq.s32.totalorder %v990, %v2893
        %vm3011 = vcmp.eq.s32.totalorder %v991, %v2893
        %vm3012 = vcmp.eq.s32.totalorder %v992, %v2893
        %vm3013 = vcmp.eq.s32.totalorder %v993, %v2893
        %vm3014 = vcmp.eq.s32.totalorder %v990, %v2896
        %vm3015 = vcmp.eq.s32.totalorder %v991, %v2896
        %vm3016 = vcmp.eq.s32.totalorder %v992, %v2896
        %vm3017 = vcmp.eq.s32.totalorder %v993, %v2896
        %vm3018 = vcmp.eq.s32.totalorder %v990, %v2899
        %vm3019 = vcmp.eq.s32.totalorder %v991, %v2899
        %vm3020 = vcmp.eq.s32.totalorder %v992, %v2899
        %vm3021 = vcmp.eq.s32.totalorder %v993, %v2899
        %vm3022 = vcmp.eq.s32.totalorder %v990, %v2902
        %vm3023 = vcmp.eq.s32.totalorder %v991, %v2902
        %vm3024 = vcmp.eq.s32.totalorder %v992, %v2902
        %vm3025 = vcmp.eq.s32.totalorder %v993, %v2902
        %vm3026 = vcmp.eq.s32.totalorder %v990, %v2905
        %vm3027 = vcmp.eq.s32.totalorder %v991, %v2905
        %vm3028 = vcmp.eq.s32.totalorder %v992, %v2905
        %vm3029 = vcmp.eq.s32.totalorder %v993, %v2905
        %vm3030 = vcmp.eq.s32.totalorder %v990, %v2908
        %vm3031 = vcmp.eq.s32.totalorder %v991, %v2908
        %vm3032 = vcmp.eq.s32.totalorder %v992, %v2908
        %vm3033 = vcmp.eq.s32.totalorder %v993, %v2908
        %vm3034 = vcmp.eq.s32.totalorder %v990, %v2911
        %vm3035 = vcmp.eq.s32.totalorder %v991, %v2911
        %vm3036 = vcmp.eq.s32.totalorder %v992, %v2911
        %vm3037 = vcmp.eq.s32.totalorder %v993, %v2911
        %vm3038 = vcmp.eq.s32.totalorder %v990, %v2914
        %vm3039 = vcmp.eq.s32.totalorder %v991, %v2914
        %vm3040 = vcmp.eq.s32.totalorder %v992, %v2914
        %vm3041 = vcmp.eq.s32.totalorder %v993, %v2914
        %vm3042 = vcmp.eq.s32.totalorder %v990, %v2917
        %vm3043 = vcmp.eq.s32.totalorder %v991, %v2917
        %vm3044 = vcmp.eq.s32.totalorder %v992, %v2917
        %vm3045 = vcmp.eq.s32.totalorder %v993, %v2917
        %v3046 = vsel %vm2918, 1, 0
        %v3047 = vsel %vm2919, 1, 0
        %v3048 = vsel %vm2920, 1, 0
        %v3049 = vsel %vm2921, 1, 0
        %v3050 = vsel %vm2922, 1, 0
        %v3051 = vsel %vm2923, 1, 0
        %v3052 = vsel %vm2924, 1, 0
        %v3053 = vsel %vm2925, 1, 0
        %v3054 = vsel %vm2926, 1, 0
        %v3055 = vsel %vm2927, 1, 0
        %v3056 = vsel %vm2928, 1, 0
        %v3057 = vsel %vm2929, 1, 0
        %v3058 = vsel %vm2930, 1, 0
        %v3059 = vsel %vm2931, 1, 0
        %v3060 = vsel %vm2932, 1, 0
        %v3061 = vsel %vm2933, 1, 0
        %v3062 = vsel %vm2934, 1, 0
        %v3063 = vsel %vm2935, 1, 0
        %v3064 = vsel %vm2936, 1, 0
        %v3065 = vsel %vm2937, 1, 0
        %v3066 = vsel %vm2938, 1, 0
        %v3067 = vsel %vm2939, 1, 0
        %v3068 = vsel %vm2940, 1, 0
        %v3069 = vsel %vm2941, 1, 0
        %v3070 = vsel %vm2942, 1, 0
        %v3071 = vsel %vm2943, 1, 0
        %v3072 = vsel %vm2944, 1, 0
        %v3073 = vsel %vm2945, 1, 0
        %v3074 = vsel %vm2946, 1, 0
        %v3075 = vsel %vm2947, 1, 0
        %v3076 = vsel %vm2948, 1, 0
        %v3077 = vsel %vm2949, 1, 0
        %v3078 = vsel %vm2950, 1, 0
        %v3079 = vsel %vm2951, 1, 0
        %v3080 = vsel %vm2952, 1, 0
        %v3081 = vsel %vm2953, 1, 0
        %v3082 = vsel %vm2954, 1, 0
        %v3083 = vsel %vm2955, 1, 0
        %v3084 = vsel %vm2956, 1, 0
        %v3085 = vsel %vm2957, 1, 0
        %v3086 = vsel %vm2958, 1, 0
        %v3087 = vsel %vm2959, 1, 0
        %v3088 = vsel %vm2960, 1, 0
        %v3089 = vsel %vm2961, 1, 0
        %v3090 = vsel %vm2962, 1, 0
        %v3091 = vsel %vm2963, 1, 0
        %v3092 = vsel %vm2964, 1, 0
        %v3093 = vsel %vm2965, 1, 0
        %v3094 = vsel %vm2966, 1, 0
        %v3095 = vsel %vm2967, 1, 0
        %v3096 = vsel %vm2968, 1, 0
        %v3097 = vsel %vm2969, 1, 0
        %v3098 = vsel %vm2970, 1, 0
        %v3099 = vsel %vm2971, 1, 0
        %v3100 = vsel %vm2972, 1, 0
        %v3101 = vsel %vm2973, 1, 0
        %v3102 = vsel %vm2974, 1, 0
        %v3103 = vsel %vm2975, 1, 0
        %v3104 = vsel %vm2976, 1, 0
        %v3105 = vsel %vm2977, 1, 0
        %v3106 = vsel %vm2978, 1, 0
        %v3107 = vsel %vm2979, 1, 0
        %v3108 = vsel %vm2980, 1, 0
        %v3109 = vsel %vm2981, 1, 0
        %v3110 = vsel %vm2982, 1, 0
        %v3111 = vsel %vm2983, 1, 0
        %v3112 = vsel %vm2984, 1, 0
        %v3113 = vsel %vm2985, 1, 0
        %v3114 = vsel %vm2986, 1, 0
        %v3115 = vsel %vm2987, 1, 0
        %v3116 = vsel %vm2988, 1, 0
        %v3117 = vsel %vm2989, 1, 0
        %v3118 = vsel %vm2990, 1, 0
        %v3119 = vsel %vm2991, 1, 0
        %v3120 = vsel %vm2992, 1, 0
        %v3121 = vsel %vm2993, 1, 0
        %v3122 = vsel %vm2994, 1, 0
        %v3123 = vsel %vm2995, 1, 0
        %v3124 = vsel %vm2996, 1, 0
        %v3125 = vsel %vm2997, 1, 0
        %v3126 = vsel %vm2998, 1, 0
        %v3127 = vsel %vm2999, 1, 0
        %v3128 = vsel %vm3000, 1, 0
        %v3129 = vsel %vm3001, 1, 0
        %v3130 = vsel %vm3002, 1, 0
        %v3131 = vsel %vm3003, 1, 0
        %v3132 = vsel %vm3004, 1, 0
        %v3133 = vsel %vm3005, 1, 0
        %v3134 = vsel %vm3006, 1, 0
        %v3135 = vsel %vm3007, 1, 0
        %v3136 = vsel %vm3008, 1, 0
        %v3137 = vsel %vm3009, 1, 0
        %v3138 = vsel %vm3010, 1, 0
        %v3139 = vsel %vm3011, 1, 0
        %v3140 = vsel %vm3012, 1, 0
        %v3141 = vsel %vm3013, 1, 0
        %v3142 = vsel %vm3014, 1, 0
        %v3143 = vsel %vm3015, 1, 0
        %v3144 = vsel %vm3016, 1, 0
        %v3145 = vsel %vm3017, 1, 0
        %v3146 = vsel %vm3018, 1, 0
        %v3147 = vsel %vm3019, 1, 0
        %v3148 = vsel %vm3020, 1, 0
        %v3149 = vsel %vm3021, 1, 0
        %v3150 = vsel %vm3022, 1, 0
        %v3151 = vsel %vm3023, 1, 0
        %v3152 = vsel %vm3024, 1, 0
        %v3153 = vsel %vm3025, 1, 0
        %v3154 = vsel %vm3026, 1, 0
        %v3155 = vsel %vm3027, 1, 0
        %v3156 = vsel %vm3028, 1, 0
        %v3157 = vsel %vm3029, 1, 0
        %v3158 = vsel %vm3030, 1, 0
        %v3159 = vsel %vm3031, 1, 0
        %v3160 = vsel %vm3032, 1, 0
        %v3161 = vsel %vm3033, 1, 0
        %v3162 = vsel %vm3034, 1, 0
        %v3163 = vsel %vm3035, 1, 0
        %v3164 = vsel %vm3036, 1, 0
        %v3165 = vsel %vm3037, 1, 0
        %v3166 = vsel %vm3038, 1, 0
        %v3167 = vsel %vm3039, 1, 0
        %v3168 = vsel %vm3040, 1, 0
        %v3169 = vsel %vm3041, 1, 0
        %v3170 = vsel %vm3042, 1, 0
        %v3171 = vsel %vm3043, 1, 0
        %v3172 = vsel %vm3044, 1, 0
        %v3173 = vsel %vm3045, 1, 0
        %v3174 = vadd.s32 %v2694, %v3046
        %v3175 = vadd.s32 %v2695, %v3047
        %v3176 = vadd.s32 %v2696, %v3048
        %v3177 = vadd.s32 %v2697, %v3049
        %v3178 = vadd.s32 %v2698, %v3050
        %v3179 = vadd.s32 %v2699, %v3051
        %v3180 = vadd.s32 %v2700, %v3052
        %v3181 = vadd.s32 %v2701, %v3053
        %v3182 = vadd.s32 %v2702, %v3054
        %v3183 = vadd.s32 %v2703, %v3055
        %v3184 = vadd.s32 %v2704, %v3056
        %v3185 = vadd.s32 %v2705, %v3057
        %v3186 = vadd.s32 %v2706, %v3058
        %v3187 = vadd.s32 %v2707, %v3059
        %v3188 = vadd.s32 %v2708, %v3060
        %v3189 = vadd.s32 %v2709, %v3061
        %v3190 = vadd.s32 %v2710, %v3062
        %v3191 = vadd.s32 %v2711, %v3063
        %v3192 = vadd.s32 %v2712, %v3064
        %v3193 = vadd.s32 %v2713, %v3065
        %v3194 = vadd.s32 %v2714, %v3066
        %v3195 = vadd.s32 %v2715, %v3067
        %v3196 = vadd.s32 %v2716, %v3068
        %v3197 = vadd.s32 %v2717, %v3069
        %v3198 = vadd.s32 %v2718, %v3070
        %v3199 = vadd.s32 %v2719, %v3071
        %v3200 = vadd.s32 %v2720, %v3072
        %v3201 = vadd.s32 %v2721, %v3073
        %v3202 = vadd.s32 %v2722, %v3074
        %v3203 = vadd.s32 %v2723, %v3075
        %v3204 = vadd.s32 %v2724, %v3076
        %v3205 = vadd.s32 %v2725, %v3077
        %v3206 = vadd.s32 %v2726, %v3078
        %v3207 = vadd.s32 %v2727, %v3079
        %v3208 = vadd.s32 %v2728, %v3080
        %v3209 = vadd.s32 %v2729, %v3081
        %v3210 = vadd.s32 %v2730, %v3082
        %v3211 = vadd.s32 %v2731, %v3083
        %v3212 = vadd.s32 %v2732, %v3084
        %v3213 = vadd.s32 %v2733, %v3085
        %v3214 = vadd.s32 %v2734, %v3086
        %v3215 = vadd.s32 %v2735, %v3087
        %v3216 = vadd.s32 %v2736, %v3088
        %v3217 = vadd.s32 %v2737, %v3089
        %v3218 = vadd.s32 %v2738, %v3090
        %v3219 = vadd.s32 %v2739, %v3091
        %v3220 = vadd.s32 %v2740, %v3092
        %v3221 = vadd.s32 %v2741, %v3093
        %v3222 = vadd.s32 %v2742, %v3094
        %v3223 = vadd.s32 %v2743, %v3095
        %v3224 = vadd.s32 %v2744, %v3096
        %v3225 = vadd.s32 %v2745, %v3097
        %v3226 = vadd.s32 %v2746, %v3098
        %v3227 = vadd.s32 %v2747, %v3099
        %v3228 = vadd.s32 %v2748, %v3100
        %v3229 = vadd.s32 %v2749, %v3101
        %v3230 = vadd.s32 %v2750, %v3102
        %v3231 = vadd.s32 %v2751, %v3103
        %v3232 = vadd.s32 %v2752, %v3104
        %v3233 = vadd.s32 %v2753, %v3105
        %v3234 = vadd.s32 %v2754, %v3106
        %v3235 = vadd.s32 %v2755, %v3107
        %v3236 = vadd.s32 %v2756, %v3108
        %v3237 = vadd.s32 %v2757, %v3109
        %v3238 = vadd.s32 %v2758, %v3110
        %v3239 = vadd.s32 %v2759, %v3111
        %v3240 = vadd.s32 %v2760, %v3112
        %v3241 = vadd.s32 %v2761, %v3113
        %v3242 = vadd.s32 %v2762, %v3114
        %v3243 = vadd.s32 %v2763, %v3115
        %v3244 = vadd.s32 %v2764, %v3116
        %v3245 = vadd.s32 %v2765, %v3117
        %v3246 = vadd.s32 %v2766, %v3118
        %v3247 = vadd.s32 %v2767, %v3119
        %v3248 = vadd.s32 %v2768, %v3120
        %v3249 = vadd.s32 %v2769, %v3121
        %v3250 = vadd.s32 %v2770, %v3122
        %v3251 = vadd.s32 %v2771, %v3123
        %v3252 = vadd.s32 %v2772, %v3124
        %v3253 = vadd.s32 %v2773, %v3125
        %v3254 = vadd.s32 %v2774, %v3126
        %v3255 = vadd.s32 %v2775, %v3127
        %v3256 = vadd.s32 %v2776, %v3128
        %v3257 = vadd.s32 %v2777, %v3129
        %v3258 = vadd.s32 %v2778, %v3130
        %v3259 = vadd.s32 %v2779, %v3131
        %v3260 = vadd.s32 %v2780, %v3132
        %v3261 = vadd.s32 %v2781, %v3133
        %v3262 = vadd.s32 %v2782, %v3134
        %v3263 = vadd.s32 %v2783, %v3135
        %v3264 = vadd.s32 %v2784, %v3136
        %v3265 = vadd.s32 %v2785, %v3137
        %v3266 = vadd.s32 %v2786, %v3138
        %v3267 = vadd.s32 %v2787, %v3139
        %v3268 = vadd.s32 %v2788, %v3140
        %v3269 = vadd.s32 %v2789, %v3141
        %v3270 = vadd.s32 %v2790, %v3142
        %v3271 = vadd.s32 %v2791, %v3143
        %v3272 = vadd.s32 %v2792, %v3144
        %v3273 = vadd.s32 %v2793, %v3145
        %v3274 = vadd.s32 %v2794, %v3146
        %v3275 = vadd.s32 %v2795, %v3147
        %v3276 = vadd.s32 %v2796, %v3148
        %v3277 = vadd.s32 %v2797, %v3149
        %v3278 = vadd.s32 %v2798, %v3150
        %v3279 = vadd.s32 %v2799, %v3151
        %v3280 = vadd.s32 %v2800, %v3152
        %v3281 = vadd.s32 %v2801, %v3153
        %v3282 = vadd.s32 %v2802, %v3154
        %v3283 = vadd.s32 %v2803, %v3155
        %v3284 = vadd.s32 %v2804, %v3156
        %v3285 = vadd.s32 %v2805, %v3157
        %v3286 = vadd.s32 %v2806, %v3158
        %v3287 = vadd.s32 %v2807, %v3159
        %v3288 = vadd.s32 %v2808, %v3160
        %v3289 = vadd.s32 %v2809, %v3161
        %v3290 = vadd.s32 %v2810, %v3162
        %v3291 = vadd.s32 %v2811, %v3163
        %v3292 = vadd.s32 %v2812, %v3164
        %v3293 = vadd.s32 %v2813, %v3165
        %v3294 = vadd.s32 %v2814, %v3166
        %v3295 = vadd.s32 %v2815, %v3167
        %v3296 = vadd.s32 %v2816, %v3168
        %v3297 = vadd.s32 %v2817, %v3169
        %v3298 = vadd.s32 %v2818, %v3170
        %v3299 = vadd.s32 %v2819, %v3171
        %v3300 = vadd.s32 %v2820, %v3172
        %v3301 = vadd.s32 %v2821, %v3173
        %3302 = vset.pattern.permute.xlu0 4
        %3303 = vperm.xlu0 %3302, %v1350
        %v3304 = vpop.permute.xlu0 %3303
        %3305 = vset.pattern.permute.xlu0 4
        %3306 = vperm.xlu0 %3305, %v1351
        %v3307 = vpop.permute.xlu0 %3306
        %3308 = vset.pattern.permute.xlu0 4
        %3309 = vperm.xlu0 %3308, %v1352
        %v3310 = vpop.permute.xlu0 %3309
        %3311 = vset.pattern.permute.xlu0 4
        %3312 = vperm.xlu0 %3311, %v1353
        %v3313 = vpop.permute.xlu0 %3312
        %3314 = vset.pattern.permute.xlu0 4
        %3315 = vperm.xlu0 %3314, %v1354
        %v3316 = vpop.permute.xlu0 %3315
        %3317 = vset.pattern.permute.xlu0 4
        %3318 = vperm.xlu0 %3317, %v1355
        %v3319 = vpop.permute.xlu0 %3318
        %3320 = vset.pattern.permute.xlu0 4
        %3321 = vperm.xlu0 %3320, %v1356
        %v3322 = vpop.permute.xlu0 %3321
        %3323 = vset.pattern.permute.xlu0 4
        %3324 = vperm.xlu0 %3323, %v1357
        %v3325 = vpop.permute.xlu0 %3324
        %3326 = vset.pattern.permute.xlu0 4
        %3327 = vperm.xlu0 %3326, %v1358
        %v3328 = vpop.permute.xlu0 %3327
        %3329 = vset.pattern.permute.xlu0 4
        %3330 = vperm.xlu0 %3329, %v1359
        %v3331 = vpop.permute.xlu0 %3330
        %3332 = vset.pattern.permute.xlu0 4
        %3333 = vperm.xlu0 %3332, %v1360
        %v3334 = vpop.permute.xlu0 %3333
        %3335 = vset.pattern.permute.xlu0 4
        %3336 = vperm.xlu0 %3335, %v1361
        %v3337 = vpop.permute.xlu0 %3336
        %3338 = vset.pattern.permute.xlu0 4
        %3339 = vperm.xlu0 %3338, %v1362
        %v3340 = vpop.permute.xlu0 %3339
        %3341 = vset.pattern.permute.xlu0 4
        %3342 = vperm.xlu0 %3341, %v1363
        %v3343 = vpop.permute.xlu0 %3342
        %3344 = vset.pattern.permute.xlu0 4
        %3345 = vperm.xlu0 %3344, %v1364
        %v3346 = vpop.permute.xlu0 %3345
        %3347 = vset.pattern.permute.xlu0 4
        %3348 = vperm.xlu0 %3347, %v1365
        %v3349 = vpop.permute.xlu0 %3348
        %3350 = vset.pattern.permute.xlu0 4
        %3351 = vperm.xlu0 %3350, %v1366
        %v3352 = vpop.permute.xlu0 %3351
        %3353 = vset.pattern.permute.xlu0 4
        %3354 = vperm.xlu0 %3353, %v1367
        %v3355 = vpop.permute.xlu0 %3354
        %3356 = vset.pattern.permute.xlu0 4
        %3357 = vperm.xlu0 %3356, %v1368
        %v3358 = vpop.permute.xlu0 %3357
        %3359 = vset.pattern.permute.xlu0 4
        %3360 = vperm.xlu0 %3359, %v1369
        %v3361 = vpop.permute.xlu0 %3360
        %3362 = vset.pattern.permute.xlu0 4
        %3363 = vperm.xlu0 %3362, %v1370
        %v3364 = vpop.permute.xlu0 %3363
        %3365 = vset.pattern.permute.xlu0 4
        %3366 = vperm.xlu0 %3365, %v1371
        %v3367 = vpop.permute.xlu0 %3366
        %3368 = vset.pattern.permute.xlu0 4
        %3369 = vperm.xlu0 %3368, %v1372
        %v3370 = vpop.permute.xlu0 %3369
        %3371 = vset.pattern.permute.xlu0 4
        %3372 = vperm.xlu0 %3371, %v1373
        %v3373 = vpop.permute.xlu0 %3372
        %3374 = vset.pattern.permute.xlu0 4
        %3375 = vperm.xlu0 %3374, %v1374
        %v3376 = vpop.permute.xlu0 %3375
        %3377 = vset.pattern.permute.xlu0 4
        %3378 = vperm.xlu0 %3377, %v1375
        %v3379 = vpop.permute.xlu0 %3378
        %3380 = vset.pattern.permute.xlu0 4
        %3381 = vperm.xlu0 %3380, %v1376
        %v3382 = vpop.permute.xlu0 %3381
        %3383 = vset.pattern.permute.xlu0 4
        %3384 = vperm.xlu0 %3383, %v1377
        %v3385 = vpop.permute.xlu0 %3384
        %3386 = vset.pattern.permute.xlu0 4
        %3387 = vperm.xlu0 %3386, %v1378
        %v3388 = vpop.permute.xlu0 %3387
        %3389 = vset.pattern.permute.xlu0 4
        %3390 = vperm.xlu0 %3389, %v1379
        %v3391 = vpop.permute.xlu0 %3390
        %3392 = vset.pattern.permute.xlu0 4
        %3393 = vperm.xlu0 %3392, %v1380
        %v3394 = vpop.permute.xlu0 %3393
        %3395 = vset.pattern.permute.xlu0 4
        %3396 = vperm.xlu0 %3395, %v1381
        %v3397 = vpop.permute.xlu0 %3396
        %vm3398 = vcmp.eq.s32.totalorder %v990, %v3304
        %vm3399 = vcmp.eq.s32.totalorder %v991, %v3304
        %vm3400 = vcmp.eq.s32.totalorder %v992, %v3304
        %vm3401 = vcmp.eq.s32.totalorder %v993, %v3304
        %vm3402 = vcmp.eq.s32.totalorder %v990, %v3307
        %vm3403 = vcmp.eq.s32.totalorder %v991, %v3307
        %vm3404 = vcmp.eq.s32.totalorder %v992, %v3307
        %vm3405 = vcmp.eq.s32.totalorder %v993, %v3307
        %vm3406 = vcmp.eq.s32.totalorder %v990, %v3310
        %vm3407 = vcmp.eq.s32.totalorder %v991, %v3310
        %vm3408 = vcmp.eq.s32.totalorder %v992, %v3310
        %vm3409 = vcmp.eq.s32.totalorder %v993, %v3310
        %vm3410 = vcmp.eq.s32.totalorder %v990, %v3313
        %vm3411 = vcmp.eq.s32.totalorder %v991, %v3313
        %vm3412 = vcmp.eq.s32.totalorder %v992, %v3313
        %vm3413 = vcmp.eq.s32.totalorder %v993, %v3313
        %vm3414 = vcmp.eq.s32.totalorder %v990, %v3316
        %vm3415 = vcmp.eq.s32.totalorder %v991, %v3316
        %vm3416 = vcmp.eq.s32.totalorder %v992, %v3316
        %vm3417 = vcmp.eq.s32.totalorder %v993, %v3316
        %vm3418 = vcmp.eq.s32.totalorder %v990, %v3319
        %vm3419 = vcmp.eq.s32.totalorder %v991, %v3319
        %vm3420 = vcmp.eq.s32.totalorder %v992, %v3319
        %vm3421 = vcmp.eq.s32.totalorder %v993, %v3319
        %vm3422 = vcmp.eq.s32.totalorder %v990, %v3322
        %vm3423 = vcmp.eq.s32.totalorder %v991, %v3322
        %vm3424 = vcmp.eq.s32.totalorder %v992, %v3322
        %vm3425 = vcmp.eq.s32.totalorder %v993, %v3322
        %vm3426 = vcmp.eq.s32.totalorder %v990, %v3325
        %vm3427 = vcmp.eq.s32.totalorder %v991, %v3325
        %vm3428 = vcmp.eq.s32.totalorder %v992, %v3325
        %vm3429 = vcmp.eq.s32.totalorder %v993, %v3325
        %vm3430 = vcmp.eq.s32.totalorder %v990, %v3328
        %vm3431 = vcmp.eq.s32.totalorder %v991, %v3328
        %vm3432 = vcmp.eq.s32.totalorder %v992, %v3328
        %vm3433 = vcmp.eq.s32.totalorder %v993, %v3328
        %vm3434 = vcmp.eq.s32.totalorder %v990, %v3331
        %vm3435 = vcmp.eq.s32.totalorder %v991, %v3331
        %vm3436 = vcmp.eq.s32.totalorder %v992, %v3331
        %vm3437 = vcmp.eq.s32.totalorder %v993, %v3331
        %vm3438 = vcmp.eq.s32.totalorder %v990, %v3334
        %vm3439 = vcmp.eq.s32.totalorder %v991, %v3334
        %vm3440 = vcmp.eq.s32.totalorder %v992, %v3334
        %vm3441 = vcmp.eq.s32.totalorder %v993, %v3334
        %vm3442 = vcmp.eq.s32.totalorder %v990, %v3337
        %vm3443 = vcmp.eq.s32.totalorder %v991, %v3337
        %vm3444 = vcmp.eq.s32.totalorder %v992, %v3337
        %vm3445 = vcmp.eq.s32.totalorder %v993, %v3337
        %vm3446 = vcmp.eq.s32.totalorder %v990, %v3340
        %vm3447 = vcmp.eq.s32.totalorder %v991, %v3340
        %vm3448 = vcmp.eq.s32.totalorder %v992, %v3340
        %vm3449 = vcmp.eq.s32.totalorder %v993, %v3340
        %vm3450 = vcmp.eq.s32.totalorder %v990, %v3343
        %vm3451 = vcmp.eq.s32.totalorder %v991, %v3343
        %vm3452 = vcmp.eq.s32.totalorder %v992, %v3343
        %vm3453 = vcmp.eq.s32.totalorder %v993, %v3343
        %vm3454 = vcmp.eq.s32.totalorder %v990, %v3346
        %vm3455 = vcmp.eq.s32.totalorder %v991, %v3346
        %vm3456 = vcmp.eq.s32.totalorder %v992, %v3346
        %vm3457 = vcmp.eq.s32.totalorder %v993, %v3346
        %vm3458 = vcmp.eq.s32.totalorder %v990, %v3349
        %vm3459 = vcmp.eq.s32.totalorder %v991, %v3349
        %vm3460 = vcmp.eq.s32.totalorder %v992, %v3349
        %vm3461 = vcmp.eq.s32.totalorder %v993, %v3349
        %vm3462 = vcmp.eq.s32.totalorder %v990, %v3352
        %vm3463 = vcmp.eq.s32.totalorder %v991, %v3352
        %vm3464 = vcmp.eq.s32.totalorder %v992, %v3352
        %vm3465 = vcmp.eq.s32.totalorder %v993, %v3352
        %vm3466 = vcmp.eq.s32.totalorder %v990, %v3355
        %vm3467 = vcmp.eq.s32.totalorder %v991, %v3355
        %vm3468 = vcmp.eq.s32.totalorder %v992, %v3355
        %vm3469 = vcmp.eq.s32.totalorder %v993, %v3355
        %vm3470 = vcmp.eq.s32.totalorder %v990, %v3358
        %vm3471 = vcmp.eq.s32.totalorder %v991, %v3358
        %vm3472 = vcmp.eq.s32.totalorder %v992, %v3358
        %vm3473 = vcmp.eq.s32.totalorder %v993, %v3358
        %vm3474 = vcmp.eq.s32.totalorder %v990, %v3361
        %vm3475 = vcmp.eq.s32.totalorder %v991, %v3361
        %vm3476 = vcmp.eq.s32.totalorder %v992, %v3361
        %vm3477 = vcmp.eq.s32.totalorder %v993, %v3361
        %vm3478 = vcmp.eq.s32.totalorder %v990, %v3364
        %vm3479 = vcmp.eq.s32.totalorder %v991, %v3364
        %vm3480 = vcmp.eq.s32.totalorder %v992, %v3364
        %vm3481 = vcmp.eq.s32.totalorder %v993, %v3364
        %vm3482 = vcmp.eq.s32.totalorder %v990, %v3367
        %vm3483 = vcmp.eq.s32.totalorder %v991, %v3367
        %vm3484 = vcmp.eq.s32.totalorder %v992, %v3367
        %vm3485 = vcmp.eq.s32.totalorder %v993, %v3367
        %vm3486 = vcmp.eq.s32.totalorder %v990, %v3370
        %vm3487 = vcmp.eq.s32.totalorder %v991, %v3370
        %vm3488 = vcmp.eq.s32.totalorder %v992, %v3370
        %vm3489 = vcmp.eq.s32.totalorder %v993, %v3370
        %vm3490 = vcmp.eq.s32.totalorder %v990, %v3373
        %vm3491 = vcmp.eq.s32.totalorder %v991, %v3373
        %vm3492 = vcmp.eq.s32.totalorder %v992, %v3373
        %vm3493 = vcmp.eq.s32.totalorder %v993, %v3373
        %vm3494 = vcmp.eq.s32.totalorder %v990, %v3376
        %vm3495 = vcmp.eq.s32.totalorder %v991, %v3376
        %vm3496 = vcmp.eq.s32.totalorder %v992, %v3376
        %vm3497 = vcmp.eq.s32.totalorder %v993, %v3376
        %vm3498 = vcmp.eq.s32.totalorder %v990, %v3379
        %vm3499 = vcmp.eq.s32.totalorder %v991, %v3379
        %vm3500 = vcmp.eq.s32.totalorder %v992, %v3379
        %vm3501 = vcmp.eq.s32.totalorder %v993, %v3379
        %vm3502 = vcmp.eq.s32.totalorder %v990, %v3382
        %vm3503 = vcmp.eq.s32.totalorder %v991, %v3382
        %vm3504 = vcmp.eq.s32.totalorder %v992, %v3382
        %vm3505 = vcmp.eq.s32.totalorder %v993, %v3382
        %vm3506 = vcmp.eq.s32.totalorder %v990, %v3385
        %vm3507 = vcmp.eq.s32.totalorder %v991, %v3385
        %vm3508 = vcmp.eq.s32.totalorder %v992, %v3385
        %vm3509 = vcmp.eq.s32.totalorder %v993, %v3385
        %vm3510 = vcmp.eq.s32.totalorder %v990, %v3388
        %vm3511 = vcmp.eq.s32.totalorder %v991, %v3388
        %vm3512 = vcmp.eq.s32.totalorder %v992, %v3388
        %vm3513 = vcmp.eq.s32.totalorder %v993, %v3388
        %vm3514 = vcmp.eq.s32.totalorder %v990, %v3391
        %vm3515 = vcmp.eq.s32.totalorder %v991, %v3391
        %vm3516 = vcmp.eq.s32.totalorder %v992, %v3391
        %vm3517 = vcmp.eq.s32.totalorder %v993, %v3391
        %vm3518 = vcmp.eq.s32.totalorder %v990, %v3394
        %vm3519 = vcmp.eq.s32.totalorder %v991, %v3394
        %vm3520 = vcmp.eq.s32.totalorder %v992, %v3394
        %vm3521 = vcmp.eq.s32.totalorder %v993, %v3394
        %vm3522 = vcmp.eq.s32.totalorder %v990, %v3397
        %vm3523 = vcmp.eq.s32.totalorder %v991, %v3397
        %vm3524 = vcmp.eq.s32.totalorder %v992, %v3397
        %vm3525 = vcmp.eq.s32.totalorder %v993, %v3397
        %v3526 = vsel %vm3398, 1, 0
        %v3527 = vsel %vm3399, 1, 0
        %v3528 = vsel %vm3400, 1, 0
        %v3529 = vsel %vm3401, 1, 0
        %v3530 = vsel %vm3402, 1, 0
        %v3531 = vsel %vm3403, 1, 0
        %v3532 = vsel %vm3404, 1, 0
        %v3533 = vsel %vm3405, 1, 0
        %v3534 = vsel %vm3406, 1, 0
        %v3535 = vsel %vm3407, 1, 0
        %v3536 = vsel %vm3408, 1, 0
        %v3537 = vsel %vm3409, 1, 0
        %v3538 = vsel %vm3410, 1, 0
        %v3539 = vsel %vm3411, 1, 0
        %v3540 = vsel %vm3412, 1, 0
        %v3541 = vsel %vm3413, 1, 0
        %v3542 = vsel %vm3414, 1, 0
        %v3543 = vsel %vm3415, 1, 0
        %v3544 = vsel %vm3416, 1, 0
        %v3545 = vsel %vm3417, 1, 0
        %v3546 = vsel %vm3418, 1, 0
        %v3547 = vsel %vm3419, 1, 0
        %v3548 = vsel %vm3420, 1, 0
        %v3549 = vsel %vm3421, 1, 0
        %v3550 = vsel %vm3422, 1, 0
        %v3551 = vsel %vm3423, 1, 0
        %v3552 = vsel %vm3424, 1, 0
        %v3553 = vsel %vm3425, 1, 0
        %v3554 = vsel %vm3426, 1, 0
        %v3555 = vsel %vm3427, 1, 0
        %v3556 = vsel %vm3428, 1, 0
        %v3557 = vsel %vm3429, 1, 0
        %v3558 = vsel %vm3430, 1, 0
        %v3559 = vsel %vm3431, 1, 0
        %v3560 = vsel %vm3432, 1, 0
        %v3561 = vsel %vm3433, 1, 0
        %v3562 = vsel %vm3434, 1, 0
        %v3563 = vsel %vm3435, 1, 0
        %v3564 = vsel %vm3436, 1, 0
        %v3565 = vsel %vm3437, 1, 0
        %v3566 = vsel %vm3438, 1, 0
        %v3567 = vsel %vm3439, 1, 0
        %v3568 = vsel %vm3440, 1, 0
        %v3569 = vsel %vm3441, 1, 0
        %v3570 = vsel %vm3442, 1, 0
        %v3571 = vsel %vm3443, 1, 0
        %v3572 = vsel %vm3444, 1, 0
        %v3573 = vsel %vm3445, 1, 0
        %v3574 = vsel %vm3446, 1, 0
        %v3575 = vsel %vm3447, 1, 0
        %v3576 = vsel %vm3448, 1, 0
        %v3577 = vsel %vm3449, 1, 0
        %v3578 = vsel %vm3450, 1, 0
        %v3579 = vsel %vm3451, 1, 0
        %v3580 = vsel %vm3452, 1, 0
        %v3581 = vsel %vm3453, 1, 0
        %v3582 = vsel %vm3454, 1, 0
        %v3583 = vsel %vm3455, 1, 0
        %v3584 = vsel %vm3456, 1, 0
        %v3585 = vsel %vm3457, 1, 0
        %v3586 = vsel %vm3458, 1, 0
        %v3587 = vsel %vm3459, 1, 0
        %v3588 = vsel %vm3460, 1, 0
        %v3589 = vsel %vm3461, 1, 0
        %v3590 = vsel %vm3462, 1, 0
        %v3591 = vsel %vm3463, 1, 0
        %v3592 = vsel %vm3464, 1, 0
        %v3593 = vsel %vm3465, 1, 0
        %v3594 = vsel %vm3466, 1, 0
        %v3595 = vsel %vm3467, 1, 0
        %v3596 = vsel %vm3468, 1, 0
        %v3597 = vsel %vm3469, 1, 0
        %v3598 = vsel %vm3470, 1, 0
        %v3599 = vsel %vm3471, 1, 0
        %v3600 = vsel %vm3472, 1, 0
        %v3601 = vsel %vm3473, 1, 0
        %v3602 = vsel %vm3474, 1, 0
        %v3603 = vsel %vm3475, 1, 0
        %v3604 = vsel %vm3476, 1, 0
        %v3605 = vsel %vm3477, 1, 0
        %v3606 = vsel %vm3478, 1, 0
        %v3607 = vsel %vm3479, 1, 0
        %v3608 = vsel %vm3480, 1, 0
        %v3609 = vsel %vm3481, 1, 0
        %v3610 = vsel %vm3482, 1, 0
        %v3611 = vsel %vm3483, 1, 0
        %v3612 = vsel %vm3484, 1, 0
        %v3613 = vsel %vm3485, 1, 0
        %v3614 = vsel %vm3486, 1, 0
        %v3615 = vsel %vm3487, 1, 0
        %v3616 = vsel %vm3488, 1, 0
        %v3617 = vsel %vm3489, 1, 0
        %v3618 = vsel %vm3490, 1, 0
        %v3619 = vsel %vm3491, 1, 0
        %v3620 = vsel %vm3492, 1, 0
        %v3621 = vsel %vm3493, 1, 0
        %v3622 = vsel %vm3494, 1, 0
        %v3623 = vsel %vm3495, 1, 0
        %v3624 = vsel %vm3496, 1, 0
        %v3625 = vsel %vm3497, 1, 0
        %v3626 = vsel %vm3498, 1, 0
        %v3627 = vsel %vm3499, 1, 0
        %v3628 = vsel %vm3500, 1, 0
        %v3629 = vsel %vm3501, 1, 0
        %v3630 = vsel %vm3502, 1, 0
        %v3631 = vsel %vm3503, 1, 0
        %v3632 = vsel %vm3504, 1, 0
        %v3633 = vsel %vm3505, 1, 0
        %v3634 = vsel %vm3506, 1, 0
        %v3635 = vsel %vm3507, 1, 0
        %v3636 = vsel %vm3508, 1, 0
        %v3637 = vsel %vm3509, 1, 0
        %v3638 = vsel %vm3510, 1, 0
        %v3639 = vsel %vm3511, 1, 0
        %v3640 = vsel %vm3512, 1, 0
        %v3641 = vsel %vm3513, 1, 0
        %v3642 = vsel %vm3514, 1, 0
        %v3643 = vsel %vm3515, 1, 0
        %v3644 = vsel %vm3516, 1, 0
        %v3645 = vsel %vm3517, 1, 0
        %v3646 = vsel %vm3518, 1, 0
        %v3647 = vsel %vm3519, 1, 0
        %v3648 = vsel %vm3520, 1, 0
        %v3649 = vsel %vm3521, 1, 0
        %v3650 = vsel %vm3522, 1, 0
        %v3651 = vsel %vm3523, 1, 0
        %v3652 = vsel %vm3524, 1, 0
        %v3653 = vsel %vm3525, 1, 0
        %v3654 = vadd.s32 %v3174, %v3526
        %v3655 = vadd.s32 %v3175, %v3527
        %v3656 = vadd.s32 %v3176, %v3528
        %v3657 = vadd.s32 %v3177, %v3529
        %v3658 = vadd.s32 %v3178, %v3530
        %v3659 = vadd.s32 %v3179, %v3531
        %v3660 = vadd.s32 %v3180, %v3532
        %v3661 = vadd.s32 %v3181, %v3533
        %v3662 = vadd.s32 %v3182, %v3534
        %v3663 = vadd.s32 %v3183, %v3535
        %v3664 = vadd.s32 %v3184, %v3536
        %v3665 = vadd.s32 %v3185, %v3537
        %v3666 = vadd.s32 %v3186, %v3538
        %v3667 = vadd.s32 %v3187, %v3539
        %v3668 = vadd.s32 %v3188, %v3540
        %v3669 = vadd.s32 %v3189, %v3541
        %v3670 = vadd.s32 %v3190, %v3542
        %v3671 = vadd.s32 %v3191, %v3543
        %v3672 = vadd.s32 %v3192, %v3544
        %v3673 = vadd.s32 %v3193, %v3545
        %v3674 = vadd.s32 %v3194, %v3546
        %v3675 = vadd.s32 %v3195, %v3547
        %v3676 = vadd.s32 %v3196, %v3548
        %v3677 = vadd.s32 %v3197, %v3549
        %v3678 = vadd.s32 %v3198, %v3550
        %v3679 = vadd.s32 %v3199, %v3551
        %v3680 = vadd.s32 %v3200, %v3552
        %v3681 = vadd.s32 %v3201, %v3553
        %v3682 = vadd.s32 %v3202, %v3554
        %v3683 = vadd.s32 %v3203, %v3555
        %v3684 = vadd.s32 %v3204, %v3556
        %v3685 = vadd.s32 %v3205, %v3557
        %v3686 = vadd.s32 %v3206, %v3558
        %v3687 = vadd.s32 %v3207, %v3559
        %v3688 = vadd.s32 %v3208, %v3560
        %v3689 = vadd.s32 %v3209, %v3561
        %v3690 = vadd.s32 %v3210, %v3562
        %v3691 = vadd.s32 %v3211, %v3563
        %v3692 = vadd.s32 %v3212, %v3564
        %v3693 = vadd.s32 %v3213, %v3565
        %v3694 = vadd.s32 %v3214, %v3566
        %v3695 = vadd.s32 %v3215, %v3567
        %v3696 = vadd.s32 %v3216, %v3568
        %v3697 = vadd.s32 %v3217, %v3569
        %v3698 = vadd.s32 %v3218, %v3570
        %v3699 = vadd.s32 %v3219, %v3571
        %v3700 = vadd.s32 %v3220, %v3572
        %v3701 = vadd.s32 %v3221, %v3573
        %v3702 = vadd.s32 %v3222, %v3574
        %v3703 = vadd.s32 %v3223, %v3575
        %v3704 = vadd.s32 %v3224, %v3576
        %v3705 = vadd.s32 %v3225, %v3577
        %v3706 = vadd.s32 %v3226, %v3578
        %v3707 = vadd.s32 %v3227, %v3579
        %v3708 = vadd.s32 %v3228, %v3580
        %v3709 = vadd.s32 %v3229, %v3581
        %v3710 = vadd.s32 %v3230, %v3582
        %v3711 = vadd.s32 %v3231, %v3583
        %v3712 = vadd.s32 %v3232, %v3584
        %v3713 = vadd.s32 %v3233, %v3585
        %v3714 = vadd.s32 %v3234, %v3586
        %v3715 = vadd.s32 %v3235, %v3587
        %v3716 = vadd.s32 %v3236, %v3588
        %v3717 = vadd.s32 %v3237, %v3589
        %v3718 = vadd.s32 %v3238, %v3590
        %v3719 = vadd.s32 %v3239, %v3591
        %v3720 = vadd.s32 %v3240, %v3592
        %v3721 = vadd.s32 %v3241, %v3593
        %v3722 = vadd.s32 %v3242, %v3594
        %v3723 = vadd.s32 %v3243, %v3595
        %v3724 = vadd.s32 %v3244, %v3596
        %v3725 = vadd.s32 %v3245, %v3597
        %v3726 = vadd.s32 %v3246, %v3598
        %v3727 = vadd.s32 %v3247, %v3599
        %v3728 = vadd.s32 %v3248, %v3600
        %v3729 = vadd.s32 %v3249, %v3601
        %v3730 = vadd.s32 %v3250, %v3602
        %v3731 = vadd.s32 %v3251, %v3603
        %v3732 = vadd.s32 %v3252, %v3604
        %v3733 = vadd.s32 %v3253, %v3605
        %v3734 = vadd.s32 %v3254, %v3606
        %v3735 = vadd.s32 %v3255, %v3607
        %v3736 = vadd.s32 %v3256, %v3608
        %v3737 = vadd.s32 %v3257, %v3609
        %v3738 = vadd.s32 %v3258, %v3610
        %v3739 = vadd.s32 %v3259, %v3611
        %v3740 = vadd.s32 %v3260, %v3612
        %v3741 = vadd.s32 %v3261, %v3613
        %v3742 = vadd.s32 %v3262, %v3614
        %v3743 = vadd.s32 %v3263, %v3615
        %v3744 = vadd.s32 %v3264, %v3616
        %v3745 = vadd.s32 %v3265, %v3617
        %v3746 = vadd.s32 %v3266, %v3618
        %v3747 = vadd.s32 %v3267, %v3619
        %v3748 = vadd.s32 %v3268, %v3620
        %v3749 = vadd.s32 %v3269, %v3621
        %v3750 = vadd.s32 %v3270, %v3622
        %v3751 = vadd.s32 %v3271, %v3623
        %v3752 = vadd.s32 %v3272, %v3624
        %v3753 = vadd.s32 %v3273, %v3625
        %v3754 = vadd.s32 %v3274, %v3626
        %v3755 = vadd.s32 %v3275, %v3627
        %v3756 = vadd.s32 %v3276, %v3628
        %v3757 = vadd.s32 %v3277, %v3629
        %v3758 = vadd.s32 %v3278, %v3630
        %v3759 = vadd.s32 %v3279, %v3631
        %v3760 = vadd.s32 %v3280, %v3632
        %v3761 = vadd.s32 %v3281, %v3633
        %v3762 = vadd.s32 %v3282, %v3634
        %v3763 = vadd.s32 %v3283, %v3635
        %v3764 = vadd.s32 %v3284, %v3636
        %v3765 = vadd.s32 %v3285, %v3637
        %v3766 = vadd.s32 %v3286, %v3638
        %v3767 = vadd.s32 %v3287, %v3639
        %v3768 = vadd.s32 %v3288, %v3640
        %v3769 = vadd.s32 %v3289, %v3641
        %v3770 = vadd.s32 %v3290, %v3642
        %v3771 = vadd.s32 %v3291, %v3643
        %v3772 = vadd.s32 %v3292, %v3644
        %v3773 = vadd.s32 %v3293, %v3645
        %v3774 = vadd.s32 %v3294, %v3646
        %v3775 = vadd.s32 %v3295, %v3647
        %v3776 = vadd.s32 %v3296, %v3648
        %v3777 = vadd.s32 %v3297, %v3649
        %v3778 = vadd.s32 %v3298, %v3650
        %v3779 = vadd.s32 %v3299, %v3651
        %v3780 = vadd.s32 %v3300, %v3652
        %v3781 = vadd.s32 %v3301, %v3653
        %3782 = vset.pattern.permute.xlu0 5
        %3783 = vperm.xlu0 %3782, %v1350
        %v3784 = vpop.permute.xlu0 %3783
        %3785 = vset.pattern.permute.xlu0 5
        %3786 = vperm.xlu0 %3785, %v1351
        %v3787 = vpop.permute.xlu0 %3786
        %3788 = vset.pattern.permute.xlu0 5
        %3789 = vperm.xlu0 %3788, %v1352
        %v3790 = vpop.permute.xlu0 %3789
        %3791 = vset.pattern.permute.xlu0 5
        %3792 = vperm.xlu0 %3791, %v1353
        %v3793 = vpop.permute.xlu0 %3792
        %3794 = vset.pattern.permute.xlu0 5
        %3795 = vperm.xlu0 %3794, %v1354
        %v3796 = vpop.permute.xlu0 %3795
        %3797 = vset.pattern.permute.xlu0 5
        %3798 = vperm.xlu0 %3797, %v1355
        %v3799 = vpop.permute.xlu0 %3798
        %3800 = vset.pattern.permute.xlu0 5
        %3801 = vperm.xlu0 %3800, %v1356
        %v3802 = vpop.permute.xlu0 %3801
        %3803 = vset.pattern.permute.xlu0 5
        %3804 = vperm.xlu0 %3803, %v1357
        %v3805 = vpop.permute.xlu0 %3804
        %3806 = vset.pattern.permute.xlu0 5
        %3807 = vperm.xlu0 %3806, %v1358
        %v3808 = vpop.permute.xlu0 %3807
        %3809 = vset.pattern.permute.xlu0 5
        %3810 = vperm.xlu0 %3809, %v1359
        %v3811 = vpop.permute.xlu0 %3810
        %3812 = vset.pattern.permute.xlu0 5
        %3813 = vperm.xlu0 %3812, %v1360
        %v3814 = vpop.permute.xlu0 %3813
        %3815 = vset.pattern.permute.xlu0 5
        %3816 = vperm.xlu0 %3815, %v1361
        %v3817 = vpop.permute.xlu0 %3816
        %3818 = vset.pattern.permute.xlu0 5
        %3819 = vperm.xlu0 %3818, %v1362
        %v3820 = vpop.permute.xlu0 %3819
        %3821 = vset.pattern.permute.xlu0 5
        %3822 = vperm.xlu0 %3821, %v1363
        %v3823 = vpop.permute.xlu0 %3822
        %3824 = vset.pattern.permute.xlu0 5
        %3825 = vperm.xlu0 %3824, %v1364
        %v3826 = vpop.permute.xlu0 %3825
        %3827 = vset.pattern.permute.xlu0 5
        %3828 = vperm.xlu0 %3827, %v1365
        %v3829 = vpop.permute.xlu0 %3828
        %3830 = vset.pattern.permute.xlu0 5
        %3831 = vperm.xlu0 %3830, %v1366
        %v3832 = vpop.permute.xlu0 %3831
        %3833 = vset.pattern.permute.xlu0 5
        %3834 = vperm.xlu0 %3833, %v1367
        %v3835 = vpop.permute.xlu0 %3834
        %3836 = vset.pattern.permute.xlu0 5
        %3837 = vperm.xlu0 %3836, %v1368
        %v3838 = vpop.permute.xlu0 %3837
        %3839 = vset.pattern.permute.xlu0 5
        %3840 = vperm.xlu0 %3839, %v1369
        %v3841 = vpop.permute.xlu0 %3840
        %3842 = vset.pattern.permute.xlu0 5
        %3843 = vperm.xlu0 %3842, %v1370
        %v3844 = vpop.permute.xlu0 %3843
        %3845 = vset.pattern.permute.xlu0 5
        %3846 = vperm.xlu0 %3845, %v1371
        %v3847 = vpop.permute.xlu0 %3846
        %3848 = vset.pattern.permute.xlu0 5
        %3849 = vperm.xlu0 %3848, %v1372
        %v3850 = vpop.permute.xlu0 %3849
        %3851 = vset.pattern.permute.xlu0 5
        %3852 = vperm.xlu0 %3851, %v1373
        %v3853 = vpop.permute.xlu0 %3852
        %3854 = vset.pattern.permute.xlu0 5
        %3855 = vperm.xlu0 %3854, %v1374
        %v3856 = vpop.permute.xlu0 %3855
        %3857 = vset.pattern.permute.xlu0 5
        %3858 = vperm.xlu0 %3857, %v1375
        %v3859 = vpop.permute.xlu0 %3858
        %3860 = vset.pattern.permute.xlu0 5
        %3861 = vperm.xlu0 %3860, %v1376
        %v3862 = vpop.permute.xlu0 %3861
        %3863 = vset.pattern.permute.xlu0 5
        %3864 = vperm.xlu0 %3863, %v1377
        %v3865 = vpop.permute.xlu0 %3864
        %3866 = vset.pattern.permute.xlu0 5
        %3867 = vperm.xlu0 %3866, %v1378
        %v3868 = vpop.permute.xlu0 %3867
        %3869 = vset.pattern.permute.xlu0 5
        %3870 = vperm.xlu0 %3869, %v1379
        %v3871 = vpop.permute.xlu0 %3870
        %3872 = vset.pattern.permute.xlu0 5
        %3873 = vperm.xlu0 %3872, %v1380
        %v3874 = vpop.permute.xlu0 %3873
        %3875 = vset.pattern.permute.xlu0 5
        %3876 = vperm.xlu0 %3875, %v1381
        %v3877 = vpop.permute.xlu0 %3876
        %vm3878 = vcmp.eq.s32.totalorder %v990, %v3784
        %vm3879 = vcmp.eq.s32.totalorder %v991, %v3784
        %vm3880 = vcmp.eq.s32.totalorder %v992, %v3784
        %vm3881 = vcmp.eq.s32.totalorder %v993, %v3784
        %vm3882 = vcmp.eq.s32.totalorder %v990, %v3787
        %vm3883 = vcmp.eq.s32.totalorder %v991, %v3787
        %vm3884 = vcmp.eq.s32.totalorder %v992, %v3787
        %vm3885 = vcmp.eq.s32.totalorder %v993, %v3787
        %vm3886 = vcmp.eq.s32.totalorder %v990, %v3790
        %vm3887 = vcmp.eq.s32.totalorder %v991, %v3790
        %vm3888 = vcmp.eq.s32.totalorder %v992, %v3790
        %vm3889 = vcmp.eq.s32.totalorder %v993, %v3790
        %vm3890 = vcmp.eq.s32.totalorder %v990, %v3793
        %vm3891 = vcmp.eq.s32.totalorder %v991, %v3793
        %vm3892 = vcmp.eq.s32.totalorder %v992, %v3793
        %vm3893 = vcmp.eq.s32.totalorder %v993, %v3793
        %vm3894 = vcmp.eq.s32.totalorder %v990, %v3796
        %vm3895 = vcmp.eq.s32.totalorder %v991, %v3796
        %vm3896 = vcmp.eq.s32.totalorder %v992, %v3796
        %vm3897 = vcmp.eq.s32.totalorder %v993, %v3796
        %vm3898 = vcmp.eq.s32.totalorder %v990, %v3799
        %vm3899 = vcmp.eq.s32.totalorder %v991, %v3799
        %vm3900 = vcmp.eq.s32.totalorder %v992, %v3799
        %vm3901 = vcmp.eq.s32.totalorder %v993, %v3799
        %vm3902 = vcmp.eq.s32.totalorder %v990, %v3802
        %vm3903 = vcmp.eq.s32.totalorder %v991, %v3802
        %vm3904 = vcmp.eq.s32.totalorder %v992, %v3802
        %vm3905 = vcmp.eq.s32.totalorder %v993, %v3802
        %vm3906 = vcmp.eq.s32.totalorder %v990, %v3805
        %vm3907 = vcmp.eq.s32.totalorder %v991, %v3805
        %vm3908 = vcmp.eq.s32.totalorder %v992, %v3805
        %vm3909 = vcmp.eq.s32.totalorder %v993, %v3805
        %vm3910 = vcmp.eq.s32.totalorder %v990, %v3808
        %vm3911 = vcmp.eq.s32.totalorder %v991, %v3808
        %vm3912 = vcmp.eq.s32.totalorder %v992, %v3808
        %vm3913 = vcmp.eq.s32.totalorder %v993, %v3808
        %vm3914 = vcmp.eq.s32.totalorder %v990, %v3811
        %vm3915 = vcmp.eq.s32.totalorder %v991, %v3811
        %vm3916 = vcmp.eq.s32.totalorder %v992, %v3811
        %vm3917 = vcmp.eq.s32.totalorder %v993, %v3811
        %vm3918 = vcmp.eq.s32.totalorder %v990, %v3814
        %vm3919 = vcmp.eq.s32.totalorder %v991, %v3814
        %vm3920 = vcmp.eq.s32.totalorder %v992, %v3814
        %vm3921 = vcmp.eq.s32.totalorder %v993, %v3814
        %vm3922 = vcmp.eq.s32.totalorder %v990, %v3817
        %vm3923 = vcmp.eq.s32.totalorder %v991, %v3817
        %vm3924 = vcmp.eq.s32.totalorder %v992, %v3817
        %vm3925 = vcmp.eq.s32.totalorder %v993, %v3817
        %vm3926 = vcmp.eq.s32.totalorder %v990, %v3820
        %vm3927 = vcmp.eq.s32.totalorder %v991, %v3820
        %vm3928 = vcmp.eq.s32.totalorder %v992, %v3820
        %vm3929 = vcmp.eq.s32.totalorder %v993, %v3820
        %vm3930 = vcmp.eq.s32.totalorder %v990, %v3823
        %vm3931 = vcmp.eq.s32.totalorder %v991, %v3823
        %vm3932 = vcmp.eq.s32.totalorder %v992, %v3823
        %vm3933 = vcmp.eq.s32.totalorder %v993, %v3823
        %vm3934 = vcmp.eq.s32.totalorder %v990, %v3826
        %vm3935 = vcmp.eq.s32.totalorder %v991, %v3826
        %vm3936 = vcmp.eq.s32.totalorder %v992, %v3826
        %vm3937 = vcmp.eq.s32.totalorder %v993, %v3826
        %vm3938 = vcmp.eq.s32.totalorder %v990, %v3829
        %vm3939 = vcmp.eq.s32.totalorder %v991, %v3829
        %vm3940 = vcmp.eq.s32.totalorder %v992, %v3829
        %vm3941 = vcmp.eq.s32.totalorder %v993, %v3829
        %vm3942 = vcmp.eq.s32.totalorder %v990, %v3832
        %vm3943 = vcmp.eq.s32.totalorder %v991, %v3832
        %vm3944 = vcmp.eq.s32.totalorder %v992, %v3832
        %vm3945 = vcmp.eq.s32.totalorder %v993, %v3832
        %vm3946 = vcmp.eq.s32.totalorder %v990, %v3835
        %vm3947 = vcmp.eq.s32.totalorder %v991, %v3835
        %vm3948 = vcmp.eq.s32.totalorder %v992, %v3835
        %vm3949 = vcmp.eq.s32.totalorder %v993, %v3835
        %vm3950 = vcmp.eq.s32.totalorder %v990, %v3838
        %vm3951 = vcmp.eq.s32.totalorder %v991, %v3838
        %vm3952 = vcmp.eq.s32.totalorder %v992, %v3838
        %vm3953 = vcmp.eq.s32.totalorder %v993, %v3838
        %vm3954 = vcmp.eq.s32.totalorder %v990, %v3841
        %vm3955 = vcmp.eq.s32.totalorder %v991, %v3841
        %vm3956 = vcmp.eq.s32.totalorder %v992, %v3841
        %vm3957 = vcmp.eq.s32.totalorder %v993, %v3841
        %vm3958 = vcmp.eq.s32.totalorder %v990, %v3844
        %vm3959 = vcmp.eq.s32.totalorder %v991, %v3844
        %vm3960 = vcmp.eq.s32.totalorder %v992, %v3844
        %vm3961 = vcmp.eq.s32.totalorder %v993, %v3844
        %vm3962 = vcmp.eq.s32.totalorder %v990, %v3847
        %vm3963 = vcmp.eq.s32.totalorder %v991, %v3847
        %vm3964 = vcmp.eq.s32.totalorder %v992, %v3847
        %vm3965 = vcmp.eq.s32.totalorder %v993, %v3847
        %vm3966 = vcmp.eq.s32.totalorder %v990, %v3850
        %vm3967 = vcmp.eq.s32.totalorder %v991, %v3850
        %vm3968 = vcmp.eq.s32.totalorder %v992, %v3850
        %vm3969 = vcmp.eq.s32.totalorder %v993, %v3850
        %vm3970 = vcmp.eq.s32.totalorder %v990, %v3853
        %vm3971 = vcmp.eq.s32.totalorder %v991, %v3853
        %vm3972 = vcmp.eq.s32.totalorder %v992, %v3853
        %vm3973 = vcmp.eq.s32.totalorder %v993, %v3853
        %vm3974 = vcmp.eq.s32.totalorder %v990, %v3856
        %vm3975 = vcmp.eq.s32.totalorder %v991, %v3856
        %vm3976 = vcmp.eq.s32.totalorder %v992, %v3856
        %vm3977 = vcmp.eq.s32.totalorder %v993, %v3856
        %vm3978 = vcmp.eq.s32.totalorder %v990, %v3859
        %vm3979 = vcmp.eq.s32.totalorder %v991, %v3859
        %vm3980 = vcmp.eq.s32.totalorder %v992, %v3859
        %vm3981 = vcmp.eq.s32.totalorder %v993, %v3859
        %vm3982 = vcmp.eq.s32.totalorder %v990, %v3862
        %vm3983 = vcmp.eq.s32.totalorder %v991, %v3862
        %vm3984 = vcmp.eq.s32.totalorder %v992, %v3862
        %vm3985 = vcmp.eq.s32.totalorder %v993, %v3862
        %vm3986 = vcmp.eq.s32.totalorder %v990, %v3865
        %vm3987 = vcmp.eq.s32.totalorder %v991, %v3865
        %vm3988 = vcmp.eq.s32.totalorder %v992, %v3865
        %vm3989 = vcmp.eq.s32.totalorder %v993, %v3865
        %vm3990 = vcmp.eq.s32.totalorder %v990, %v3868
        %vm3991 = vcmp.eq.s32.totalorder %v991, %v3868
        %vm3992 = vcmp.eq.s32.totalorder %v992, %v3868
        %vm3993 = vcmp.eq.s32.totalorder %v993, %v3868
        %vm3994 = vcmp.eq.s32.totalorder %v990, %v3871
        %vm3995 = vcmp.eq.s32.totalorder %v991, %v3871
        %vm3996 = vcmp.eq.s32.totalorder %v992, %v3871
        %vm3997 = vcmp.eq.s32.totalorder %v993, %v3871
        %vm3998 = vcmp.eq.s32.totalorder %v990, %v3874
        %vm3999 = vcmp.eq.s32.totalorder %v991, %v3874
        %vm4000 = vcmp.eq.s32.totalorder %v992, %v3874
        %vm4001 = vcmp.eq.s32.totalorder %v993, %v3874
        %vm4002 = vcmp.eq.s32.totalorder %v990, %v3877
        %vm4003 = vcmp.eq.s32.totalorder %v991, %v3877
        %vm4004 = vcmp.eq.s32.totalorder %v992, %v3877
        %vm4005 = vcmp.eq.s32.totalorder %v993, %v3877
        %v4006 = vsel %vm3878, 1, 0
        %v4007 = vsel %vm3879, 1, 0
        %v4008 = vsel %vm3880, 1, 0
        %v4009 = vsel %vm3881, 1, 0
        %v4010 = vsel %vm3882, 1, 0
        %v4011 = vsel %vm3883, 1, 0
        %v4012 = vsel %vm3884, 1, 0
        %v4013 = vsel %vm3885, 1, 0
        %v4014 = vsel %vm3886, 1, 0
        %v4015 = vsel %vm3887, 1, 0
        %v4016 = vsel %vm3888, 1, 0
        %v4017 = vsel %vm3889, 1, 0
        %v4018 = vsel %vm3890, 1, 0
        %v4019 = vsel %vm3891, 1, 0
        %v4020 = vsel %vm3892, 1, 0
        %v4021 = vsel %vm3893, 1, 0
        %v4022 = vsel %vm3894, 1, 0
        %v4023 = vsel %vm3895, 1, 0
        %v4024 = vsel %vm3896, 1, 0
        %v4025 = vsel %vm3897, 1, 0
        %v4026 = vsel %vm3898, 1, 0
        %v4027 = vsel %vm3899, 1, 0
        %v4028 = vsel %vm3900, 1, 0
        %v4029 = vsel %vm3901, 1, 0
        %v4030 = vsel %vm3902, 1, 0
        %v4031 = vsel %vm3903, 1, 0
        %v4032 = vsel %vm3904, 1, 0
        %v4033 = vsel %vm3905, 1, 0
        %v4034 = vsel %vm3906, 1, 0
        %v4035 = vsel %vm3907, 1, 0
        %v4036 = vsel %vm3908, 1, 0
        %v4037 = vsel %vm3909, 1, 0
        %v4038 = vsel %vm3910, 1, 0
        %v4039 = vsel %vm3911, 1, 0
        %v4040 = vsel %vm3912, 1, 0
        %v4041 = vsel %vm3913, 1, 0
        %v4042 = vsel %vm3914, 1, 0
        %v4043 = vsel %vm3915, 1, 0
        %v4044 = vsel %vm3916, 1, 0
        %v4045 = vsel %vm3917, 1, 0
        %v4046 = vsel %vm3918, 1, 0
        %v4047 = vsel %vm3919, 1, 0
        %v4048 = vsel %vm3920, 1, 0
        %v4049 = vsel %vm3921, 1, 0
        %v4050 = vsel %vm3922, 1, 0
        %v4051 = vsel %vm3923, 1, 0
        %v4052 = vsel %vm3924, 1, 0
        %v4053 = vsel %vm3925, 1, 0
        %v4054 = vsel %vm3926, 1, 0
        %v4055 = vsel %vm3927, 1, 0
        %v4056 = vsel %vm3928, 1, 0
        %v4057 = vsel %vm3929, 1, 0
        %v4058 = vsel %vm3930, 1, 0
        %v4059 = vsel %vm3931, 1, 0
        %v4060 = vsel %vm3932, 1, 0
        %v4061 = vsel %vm3933, 1, 0
        %v4062 = vsel %vm3934, 1, 0
        %v4063 = vsel %vm3935, 1, 0
        %v4064 = vsel %vm3936, 1, 0
        %v4065 = vsel %vm3937, 1, 0
        %v4066 = vsel %vm3938, 1, 0
        %v4067 = vsel %vm3939, 1, 0
        %v4068 = vsel %vm3940, 1, 0
        %v4069 = vsel %vm3941, 1, 0
        %v4070 = vsel %vm3942, 1, 0
        %v4071 = vsel %vm3943, 1, 0
        %v4072 = vsel %vm3944, 1, 0
        %v4073 = vsel %vm3945, 1, 0
        %v4074 = vsel %vm3946, 1, 0
        %v4075 = vsel %vm3947, 1, 0
        %v4076 = vsel %vm3948, 1, 0
        %v4077 = vsel %vm3949, 1, 0
        %v4078 = vsel %vm3950, 1, 0
        %v4079 = vsel %vm3951, 1, 0
        %v4080 = vsel %vm3952, 1, 0
        %v4081 = vsel %vm3953, 1, 0
        %v4082 = vsel %vm3954, 1, 0
        %v4083 = vsel %vm3955, 1, 0
        %v4084 = vsel %vm3956, 1, 0
        %v4085 = vsel %vm3957, 1, 0
        %v4086 = vsel %vm3958, 1, 0
        %v4087 = vsel %vm3959, 1, 0
        %v4088 = vsel %vm3960, 1, 0
        %v4089 = vsel %vm3961, 1, 0
        %v4090 = vsel %vm3962, 1, 0
        %v4091 = vsel %vm3963, 1, 0
        %v4092 = vsel %vm3964, 1, 0
        %v4093 = vsel %vm3965, 1, 0
        %v4094 = vsel %vm3966, 1, 0
        %v4095 = vsel %vm3967, 1, 0
        %v4096 = vsel %vm3968, 1, 0
        %v4097 = vsel %vm3969, 1, 0
        %v4098 = vsel %vm3970, 1, 0
        %v4099 = vsel %vm3971, 1, 0
        %v4100 = vsel %vm3972, 1, 0
        %v4101 = vsel %vm3973, 1, 0
        %v4102 = vsel %vm3974, 1, 0
        %v4103 = vsel %vm3975, 1, 0
        %v4104 = vsel %vm3976, 1, 0
        %v4105 = vsel %vm3977, 1, 0
        %v4106 = vsel %vm3978, 1, 0
        %v4107 = vsel %vm3979, 1, 0
        %v4108 = vsel %vm3980, 1, 0
        %v4109 = vsel %vm3981, 1, 0
        %v4110 = vsel %vm3982, 1, 0
        %v4111 = vsel %vm3983, 1, 0
        %v4112 = vsel %vm3984, 1, 0
        %v4113 = vsel %vm3985, 1, 0
        %v4114 = vsel %vm3986, 1, 0
        %v4115 = vsel %vm3987, 1, 0
        %v4116 = vsel %vm3988, 1, 0
        %v4117 = vsel %vm3989, 1, 0
        %v4118 = vsel %vm3990, 1, 0
        %v4119 = vsel %vm3991, 1, 0
        %v4120 = vsel %vm3992, 1, 0
        %v4121 = vsel %vm3993, 1, 0
        %v4122 = vsel %vm3994, 1, 0
        %v4123 = vsel %vm3995, 1, 0
        %v4124 = vsel %vm3996, 1, 0
        %v4125 = vsel %vm3997, 1, 0
        %v4126 = vsel %vm3998, 1, 0
        %v4127 = vsel %vm3999, 1, 0
        %v4128 = vsel %vm4000, 1, 0
        %v4129 = vsel %vm4001, 1, 0
        %v4130 = vsel %vm4002, 1, 0
        %v4131 = vsel %vm4003, 1, 0
        %v4132 = vsel %vm4004, 1, 0
        %v4133 = vsel %vm4005, 1, 0
        %v4134 = vadd.s32 %v3654, %v4006
        %v4135 = vadd.s32 %v3655, %v4007
        %v4136 = vadd.s32 %v3656, %v4008
        %v4137 = vadd.s32 %v3657, %v4009
        %v4138 = vadd.s32 %v3658, %v4010
        %v4139 = vadd.s32 %v3659, %v4011
        %v4140 = vadd.s32 %v3660, %v4012
        %v4141 = vadd.s32 %v3661, %v4013
        %v4142 = vadd.s32 %v3662, %v4014
        %v4143 = vadd.s32 %v3663, %v4015
        %v4144 = vadd.s32 %v3664, %v4016
        %v4145 = vadd.s32 %v3665, %v4017
        %v4146 = vadd.s32 %v3666, %v4018
        %v4147 = vadd.s32 %v3667, %v4019
        %v4148 = vadd.s32 %v3668, %v4020
        %v4149 = vadd.s32 %v3669, %v4021
        %v4150 = vadd.s32 %v3670, %v4022
        %v4151 = vadd.s32 %v3671, %v4023
        %v4152 = vadd.s32 %v3672, %v4024
        %v4153 = vadd.s32 %v3673, %v4025
        %v4154 = vadd.s32 %v3674, %v4026
        %v4155 = vadd.s32 %v3675, %v4027
        %v4156 = vadd.s32 %v3676, %v4028
        %v4157 = vadd.s32 %v3677, %v4029
        %v4158 = vadd.s32 %v3678, %v4030
        %v4159 = vadd.s32 %v3679, %v4031
        %v4160 = vadd.s32 %v3680, %v4032
        %v4161 = vadd.s32 %v3681, %v4033
        %v4162 = vadd.s32 %v3682, %v4034
        %v4163 = vadd.s32 %v3683, %v4035
        %v4164 = vadd.s32 %v3684, %v4036
        %v4165 = vadd.s32 %v3685, %v4037
        %v4166 = vadd.s32 %v3686, %v4038
        %v4167 = vadd.s32 %v3687, %v4039
        %v4168 = vadd.s32 %v3688, %v4040
        %v4169 = vadd.s32 %v3689, %v4041
        %v4170 = vadd.s32 %v3690, %v4042
        %v4171 = vadd.s32 %v3691, %v4043
        %v4172 = vadd.s32 %v3692, %v4044
        %v4173 = vadd.s32 %v3693, %v4045
        %v4174 = vadd.s32 %v3694, %v4046
        %v4175 = vadd.s32 %v3695, %v4047
        %v4176 = vadd.s32 %v3696, %v4048
        %v4177 = vadd.s32 %v3697, %v4049
        %v4178 = vadd.s32 %v3698, %v4050
        %v4179 = vadd.s32 %v3699, %v4051
        %v4180 = vadd.s32 %v3700, %v4052
        %v4181 = vadd.s32 %v3701, %v4053
        %v4182 = vadd.s32 %v3702, %v4054
        %v4183 = vadd.s32 %v3703, %v4055
        %v4184 = vadd.s32 %v3704, %v4056
        %v4185 = vadd.s32 %v3705, %v4057
        %v4186 = vadd.s32 %v3706, %v4058
        %v4187 = vadd.s32 %v3707, %v4059
        %v4188 = vadd.s32 %v3708, %v4060
        %v4189 = vadd.s32 %v3709, %v4061
        %v4190 = vadd.s32 %v3710, %v4062
        %v4191 = vadd.s32 %v3711, %v4063
        %v4192 = vadd.s32 %v3712, %v4064
        %v4193 = vadd.s32 %v3713, %v4065
        %v4194 = vadd.s32 %v3714, %v4066
        %v4195 = vadd.s32 %v3715, %v4067
        %v4196 = vadd.s32 %v3716, %v4068
        %v4197 = vadd.s32 %v3717, %v4069
        %v4198 = vadd.s32 %v3718, %v4070
        %v4199 = vadd.s32 %v3719, %v4071
        %v4200 = vadd.s32 %v3720, %v4072
        %v4201 = vadd.s32 %v3721, %v4073
        %v4202 = vadd.s32 %v3722, %v4074
        %v4203 = vadd.s32 %v3723, %v4075
        %v4204 = vadd.s32 %v3724, %v4076
        %v4205 = vadd.s32 %v3725, %v4077
        %v4206 = vadd.s32 %v3726, %v4078
        %v4207 = vadd.s32 %v3727, %v4079
        %v4208 = vadd.s32 %v3728, %v4080
        %v4209 = vadd.s32 %v3729, %v4081
        %v4210 = vadd.s32 %v3730, %v4082
        %v4211 = vadd.s32 %v3731, %v4083
        %v4212 = vadd.s32 %v3732, %v4084
        %v4213 = vadd.s32 %v3733, %v4085
        %v4214 = vadd.s32 %v3734, %v4086
        %v4215 = vadd.s32 %v3735, %v4087
        %v4216 = vadd.s32 %v3736, %v4088
        %v4217 = vadd.s32 %v3737, %v4089
        %v4218 = vadd.s32 %v3738, %v4090
        %v4219 = vadd.s32 %v3739, %v4091
        %v4220 = vadd.s32 %v3740, %v4092
        %v4221 = vadd.s32 %v3741, %v4093
        %v4222 = vadd.s32 %v3742, %v4094
        %v4223 = vadd.s32 %v3743, %v4095
        %v4224 = vadd.s32 %v3744, %v4096
        %v4225 = vadd.s32 %v3745, %v4097
        %v4226 = vadd.s32 %v3746, %v4098
        %v4227 = vadd.s32 %v3747, %v4099
        %v4228 = vadd.s32 %v3748, %v4100
        %v4229 = vadd.s32 %v3749, %v4101
        %v4230 = vadd.s32 %v3750, %v4102
        %v4231 = vadd.s32 %v3751, %v4103
        %v4232 = vadd.s32 %v3752, %v4104
        %v4233 = vadd.s32 %v3753, %v4105
        %v4234 = vadd.s32 %v3754, %v4106
        %v4235 = vadd.s32 %v3755, %v4107
        %v4236 = vadd.s32 %v3756, %v4108
        %v4237 = vadd.s32 %v3757, %v4109
        %v4238 = vadd.s32 %v3758, %v4110
        %v4239 = vadd.s32 %v3759, %v4111
        %v4240 = vadd.s32 %v3760, %v4112
        %v4241 = vadd.s32 %v3761, %v4113
        %v4242 = vadd.s32 %v3762, %v4114
        %v4243 = vadd.s32 %v3763, %v4115
        %v4244 = vadd.s32 %v3764, %v4116
        %v4245 = vadd.s32 %v3765, %v4117
        %v4246 = vadd.s32 %v3766, %v4118
        %v4247 = vadd.s32 %v3767, %v4119
        %v4248 = vadd.s32 %v3768, %v4120
        %v4249 = vadd.s32 %v3769, %v4121
        %v4250 = vadd.s32 %v3770, %v4122
        %v4251 = vadd.s32 %v3771, %v4123
        %v4252 = vadd.s32 %v3772, %v4124
        %v4253 = vadd.s32 %v3773, %v4125
        %v4254 = vadd.s32 %v3774, %v4126
        %v4255 = vadd.s32 %v3775, %v4127
        %v4256 = vadd.s32 %v3776, %v4128
        %v4257 = vadd.s32 %v3777, %v4129
        %v4258 = vadd.s32 %v3778, %v4130
        %v4259 = vadd.s32 %v3779, %v4131
        %v4260 = vadd.s32 %v3780, %v4132
        %v4261 = vadd.s32 %v3781, %v4133
        %4262 = vset.pattern.permute.xlu0 6
        %4263 = vperm.xlu0 %4262, %v1350
        %v4264 = vpop.permute.xlu0 %4263
        %4265 = vset.pattern.permute.xlu0 6
        %4266 = vperm.xlu0 %4265, %v1351
        %v4267 = vpop.permute.xlu0 %4266
        %4268 = vset.pattern.permute.xlu0 6
        %4269 = vperm.xlu0 %4268, %v1352
        %v4270 = vpop.permute.xlu0 %4269
        %4271 = vset.pattern.permute.xlu0 6
        %4272 = vperm.xlu0 %4271, %v1353
        %v4273 = vpop.permute.xlu0 %4272
        %4274 = vset.pattern.permute.xlu0 6
        %4275 = vperm.xlu0 %4274, %v1354
        %v4276 = vpop.permute.xlu0 %4275
        %4277 = vset.pattern.permute.xlu0 6
        %4278 = vperm.xlu0 %4277, %v1355
        %v4279 = vpop.permute.xlu0 %4278
        %4280 = vset.pattern.permute.xlu0 6
        %4281 = vperm.xlu0 %4280, %v1356
        %v4282 = vpop.permute.xlu0 %4281
        %4283 = vset.pattern.permute.xlu0 6
        %4284 = vperm.xlu0 %4283, %v1357
        %v4285 = vpop.permute.xlu0 %4284
        %4286 = vset.pattern.permute.xlu0 6
        %4287 = vperm.xlu0 %4286, %v1358
        %v4288 = vpop.permute.xlu0 %4287
        %4289 = vset.pattern.permute.xlu0 6
        %4290 = vperm.xlu0 %4289, %v1359
        %v4291 = vpop.permute.xlu0 %4290
        %4292 = vset.pattern.permute.xlu0 6
        %4293 = vperm.xlu0 %4292, %v1360
        %v4294 = vpop.permute.xlu0 %4293
        %4295 = vset.pattern.permute.xlu0 6
        %4296 = vperm.xlu0 %4295, %v1361
        %v4297 = vpop.permute.xlu0 %4296
        %4298 = vset.pattern.permute.xlu0 6
        %4299 = vperm.xlu0 %4298, %v1362
        %v4300 = vpop.permute.xlu0 %4299
        %4301 = vset.pattern.permute.xlu0 6
        %4302 = vperm.xlu0 %4301, %v1363
        %v4303 = vpop.permute.xlu0 %4302
        %4304 = vset.pattern.permute.xlu0 6
        %4305 = vperm.xlu0 %4304, %v1364
        %v4306 = vpop.permute.xlu0 %4305
        %4307 = vset.pattern.permute.xlu0 6
        %4308 = vperm.xlu0 %4307, %v1365
        %v4309 = vpop.permute.xlu0 %4308
        %4310 = vset.pattern.permute.xlu0 6
        %4311 = vperm.xlu0 %4310, %v1366
        %v4312 = vpop.permute.xlu0 %4311
        %4313 = vset.pattern.permute.xlu0 6
        %4314 = vperm.xlu0 %4313, %v1367
        %v4315 = vpop.permute.xlu0 %4314
        %4316 = vset.pattern.permute.xlu0 6
        %4317 = vperm.xlu0 %4316, %v1368
        %v4318 = vpop.permute.xlu0 %4317
        %4319 = vset.pattern.permute.xlu0 6
        %4320 = vperm.xlu0 %4319, %v1369
        %v4321 = vpop.permute.xlu0 %4320
        %4322 = vset.pattern.permute.xlu0 6
        %4323 = vperm.xlu0 %4322, %v1370
        %v4324 = vpop.permute.xlu0 %4323
        %4325 = vset.pattern.permute.xlu0 6
        %4326 = vperm.xlu0 %4325, %v1371
        %v4327 = vpop.permute.xlu0 %4326
        %4328 = vset.pattern.permute.xlu0 6
        %4329 = vperm.xlu0 %4328, %v1372
        %v4330 = vpop.permute.xlu0 %4329
        %4331 = vset.pattern.permute.xlu0 6
        %4332 = vperm.xlu0 %4331, %v1373
        %v4333 = vpop.permute.xlu0 %4332
        %4334 = vset.pattern.permute.xlu0 6
        %4335 = vperm.xlu0 %4334, %v1374
        %v4336 = vpop.permute.xlu0 %4335
        %4337 = vset.pattern.permute.xlu0 6
        %4338 = vperm.xlu0 %4337, %v1375
        %v4339 = vpop.permute.xlu0 %4338
        %4340 = vset.pattern.permute.xlu0 6
        %4341 = vperm.xlu0 %4340, %v1376
        %v4342 = vpop.permute.xlu0 %4341
        %4343 = vset.pattern.permute.xlu0 6
        %4344 = vperm.xlu0 %4343, %v1377
        %v4345 = vpop.permute.xlu0 %4344
        %4346 = vset.pattern.permute.xlu0 6
        %4347 = vperm.xlu0 %4346, %v1378
        %v4348 = vpop.permute.xlu0 %4347
        %4349 = vset.pattern.permute.xlu0 6
        %4350 = vperm.xlu0 %4349, %v1379
        %v4351 = vpop.permute.xlu0 %4350
        %4352 = vset.pattern.permute.xlu0 6
        %4353 = vperm.xlu0 %4352, %v1380
        %v4354 = vpop.permute.xlu0 %4353
        %4355 = vset.pattern.permute.xlu0 6
        %4356 = vperm.xlu0 %4355, %v1381
        %v4357 = vpop.permute.xlu0 %4356
        %vm4358 = vcmp.eq.s32.totalorder %v990, %v4264
        %vm4359 = vcmp.eq.s32.totalorder %v991, %v4264
        %vm4360 = vcmp.eq.s32.totalorder %v992, %v4264
        %vm4361 = vcmp.eq.s32.totalorder %v993, %v4264
        %vm4362 = vcmp.eq.s32.totalorder %v990, %v4267
        %vm4363 = vcmp.eq.s32.totalorder %v991, %v4267
        %vm4364 = vcmp.eq.s32.totalorder %v992, %v4267
        %vm4365 = vcmp.eq.s32.totalorder %v993, %v4267
        %vm4366 = vcmp.eq.s32.totalorder %v990, %v4270
        %vm4367 = vcmp.eq.s32.totalorder %v991, %v4270
        %vm4368 = vcmp.eq.s32.totalorder %v992, %v4270
        %vm4369 = vcmp.eq.s32.totalorder %v993, %v4270
        %vm4370 = vcmp.eq.s32.totalorder %v990, %v4273
        %vm4371 = vcmp.eq.s32.totalorder %v991, %v4273
        %vm4372 = vcmp.eq.s32.totalorder %v992, %v4273
        %vm4373 = vcmp.eq.s32.totalorder %v993, %v4273
        %vm4374 = vcmp.eq.s32.totalorder %v990, %v4276
        %vm4375 = vcmp.eq.s32.totalorder %v991, %v4276
        %vm4376 = vcmp.eq.s32.totalorder %v992, %v4276
        %vm4377 = vcmp.eq.s32.totalorder %v993, %v4276
        %vm4378 = vcmp.eq.s32.totalorder %v990, %v4279
        %vm4379 = vcmp.eq.s32.totalorder %v991, %v4279
        %vm4380 = vcmp.eq.s32.totalorder %v992, %v4279
        %vm4381 = vcmp.eq.s32.totalorder %v993, %v4279
        %vm4382 = vcmp.eq.s32.totalorder %v990, %v4282
        %vm4383 = vcmp.eq.s32.totalorder %v991, %v4282
        %vm4384 = vcmp.eq.s32.totalorder %v992, %v4282
        %vm4385 = vcmp.eq.s32.totalorder %v993, %v4282
        %vm4386 = vcmp.eq.s32.totalorder %v990, %v4285
        %vm4387 = vcmp.eq.s32.totalorder %v991, %v4285
        %vm4388 = vcmp.eq.s32.totalorder %v992, %v4285
        %vm4389 = vcmp.eq.s32.totalorder %v993, %v4285
        %vm4390 = vcmp.eq.s32.totalorder %v990, %v4288
        %vm4391 = vcmp.eq.s32.totalorder %v991, %v4288
        %vm4392 = vcmp.eq.s32.totalorder %v992, %v4288
        %vm4393 = vcmp.eq.s32.totalorder %v993, %v4288
        %vm4394 = vcmp.eq.s32.totalorder %v990, %v4291
        %vm4395 = vcmp.eq.s32.totalorder %v991, %v4291
        %vm4396 = vcmp.eq.s32.totalorder %v992, %v4291
        %vm4397 = vcmp.eq.s32.totalorder %v993, %v4291
        %vm4398 = vcmp.eq.s32.totalorder %v990, %v4294
        %vm4399 = vcmp.eq.s32.totalorder %v991, %v4294
        %vm4400 = vcmp.eq.s32.totalorder %v992, %v4294
        %vm4401 = vcmp.eq.s32.totalorder %v993, %v4294
        %vm4402 = vcmp.eq.s32.totalorder %v990, %v4297
        %vm4403 = vcmp.eq.s32.totalorder %v991, %v4297
        %vm4404 = vcmp.eq.s32.totalorder %v992, %v4297
        %vm4405 = vcmp.eq.s32.totalorder %v993, %v4297
        %vm4406 = vcmp.eq.s32.totalorder %v990, %v4300
        %vm4407 = vcmp.eq.s32.totalorder %v991, %v4300
        %vm4408 = vcmp.eq.s32.totalorder %v992, %v4300
        %vm4409 = vcmp.eq.s32.totalorder %v993, %v4300
        %vm4410 = vcmp.eq.s32.totalorder %v990, %v4303
        %vm4411 = vcmp.eq.s32.totalorder %v991, %v4303
        %vm4412 = vcmp.eq.s32.totalorder %v992, %v4303
        %vm4413 = vcmp.eq.s32.totalorder %v993, %v4303
        %vm4414 = vcmp.eq.s32.totalorder %v990, %v4306
        %vm4415 = vcmp.eq.s32.totalorder %v991, %v4306
        %vm4416 = vcmp.eq.s32.totalorder %v992, %v4306
        %vm4417 = vcmp.eq.s32.totalorder %v993, %v4306
        %vm4418 = vcmp.eq.s32.totalorder %v990, %v4309
        %vm4419 = vcmp.eq.s32.totalorder %v991, %v4309
        %vm4420 = vcmp.eq.s32.totalorder %v992, %v4309
        %vm4421 = vcmp.eq.s32.totalorder %v993, %v4309
        %vm4422 = vcmp.eq.s32.totalorder %v990, %v4312
        %vm4423 = vcmp.eq.s32.totalorder %v991, %v4312
        %vm4424 = vcmp.eq.s32.totalorder %v992, %v4312
        %vm4425 = vcmp.eq.s32.totalorder %v993, %v4312
        %vm4426 = vcmp.eq.s32.totalorder %v990, %v4315
        %vm4427 = vcmp.eq.s32.totalorder %v991, %v4315
        %vm4428 = vcmp.eq.s32.totalorder %v992, %v4315
        %vm4429 = vcmp.eq.s32.totalorder %v993, %v4315
        %vm4430 = vcmp.eq.s32.totalorder %v990, %v4318
        %vm4431 = vcmp.eq.s32.totalorder %v991, %v4318
        %vm4432 = vcmp.eq.s32.totalorder %v992, %v4318
        %vm4433 = vcmp.eq.s32.totalorder %v993, %v4318
        %vm4434 = vcmp.eq.s32.totalorder %v990, %v4321
        %vm4435 = vcmp.eq.s32.totalorder %v991, %v4321
        %vm4436 = vcmp.eq.s32.totalorder %v992, %v4321
        %vm4437 = vcmp.eq.s32.totalorder %v993, %v4321
        %vm4438 = vcmp.eq.s32.totalorder %v990, %v4324
        %vm4439 = vcmp.eq.s32.totalorder %v991, %v4324
        %vm4440 = vcmp.eq.s32.totalorder %v992, %v4324
        %vm4441 = vcmp.eq.s32.totalorder %v993, %v4324
        %vm4442 = vcmp.eq.s32.totalorder %v990, %v4327
        %vm4443 = vcmp.eq.s32.totalorder %v991, %v4327
        %vm4444 = vcmp.eq.s32.totalorder %v992, %v4327
        %vm4445 = vcmp.eq.s32.totalorder %v993, %v4327
        %vm4446 = vcmp.eq.s32.totalorder %v990, %v4330
        %vm4447 = vcmp.eq.s32.totalorder %v991, %v4330
        %vm4448 = vcmp.eq.s32.totalorder %v992, %v4330
        %vm4449 = vcmp.eq.s32.totalorder %v993, %v4330
        %vm4450 = vcmp.eq.s32.totalorder %v990, %v4333
        %vm4451 = vcmp.eq.s32.totalorder %v991, %v4333
        %vm4452 = vcmp.eq.s32.totalorder %v992, %v4333
        %vm4453 = vcmp.eq.s32.totalorder %v993, %v4333
        %vm4454 = vcmp.eq.s32.totalorder %v990, %v4336
        %vm4455 = vcmp.eq.s32.totalorder %v991, %v4336
        %vm4456 = vcmp.eq.s32.totalorder %v992, %v4336
        %vm4457 = vcmp.eq.s32.totalorder %v993, %v4336
        %vm4458 = vcmp.eq.s32.totalorder %v990, %v4339
        %vm4459 = vcmp.eq.s32.totalorder %v991, %v4339
        %vm4460 = vcmp.eq.s32.totalorder %v992, %v4339
        %vm4461 = vcmp.eq.s32.totalorder %v993, %v4339
        %vm4462 = vcmp.eq.s32.totalorder %v990, %v4342
        %vm4463 = vcmp.eq.s32.totalorder %v991, %v4342
        %vm4464 = vcmp.eq.s32.totalorder %v992, %v4342
        %vm4465 = vcmp.eq.s32.totalorder %v993, %v4342
        %vm4466 = vcmp.eq.s32.totalorder %v990, %v4345
        %vm4467 = vcmp.eq.s32.totalorder %v991, %v4345
        %vm4468 = vcmp.eq.s32.totalorder %v992, %v4345
        %vm4469 = vcmp.eq.s32.totalorder %v993, %v4345
        %vm4470 = vcmp.eq.s32.totalorder %v990, %v4348
        %vm4471 = vcmp.eq.s32.totalorder %v991, %v4348
        %vm4472 = vcmp.eq.s32.totalorder %v992, %v4348
        %vm4473 = vcmp.eq.s32.totalorder %v993, %v4348
        %vm4474 = vcmp.eq.s32.totalorder %v990, %v4351
        %vm4475 = vcmp.eq.s32.totalorder %v991, %v4351
        %vm4476 = vcmp.eq.s32.totalorder %v992, %v4351
        %vm4477 = vcmp.eq.s32.totalorder %v993, %v4351
        %vm4478 = vcmp.eq.s32.totalorder %v990, %v4354
        %vm4479 = vcmp.eq.s32.totalorder %v991, %v4354
        %vm4480 = vcmp.eq.s32.totalorder %v992, %v4354
        %vm4481 = vcmp.eq.s32.totalorder %v993, %v4354
        %vm4482 = vcmp.eq.s32.totalorder %v990, %v4357
        %vm4483 = vcmp.eq.s32.totalorder %v991, %v4357
        %vm4484 = vcmp.eq.s32.totalorder %v992, %v4357
        %vm4485 = vcmp.eq.s32.totalorder %v993, %v4357
        %v4486 = vsel %vm4358, 1, 0
        %v4487 = vsel %vm4359, 1, 0
        %v4488 = vsel %vm4360, 1, 0
        %v4489 = vsel %vm4361, 1, 0
        %v4490 = vsel %vm4362, 1, 0
        %v4491 = vsel %vm4363, 1, 0
        %v4492 = vsel %vm4364, 1, 0
        %v4493 = vsel %vm4365, 1, 0
        %v4494 = vsel %vm4366, 1, 0
        %v4495 = vsel %vm4367, 1, 0
        %v4496 = vsel %vm4368, 1, 0
        %v4497 = vsel %vm4369, 1, 0
        %v4498 = vsel %vm4370, 1, 0
        %v4499 = vsel %vm4371, 1, 0
        %v4500 = vsel %vm4372, 1, 0
        %v4501 = vsel %vm4373, 1, 0
        %v4502 = vsel %vm4374, 1, 0
        %v4503 = vsel %vm4375, 1, 0
        %v4504 = vsel %vm4376, 1, 0
        %v4505 = vsel %vm4377, 1, 0
        %v4506 = vsel %vm4378, 1, 0
        %v4507 = vsel %vm4379, 1, 0
        %v4508 = vsel %vm4380, 1, 0
        %v4509 = vsel %vm4381, 1, 0
        %v4510 = vsel %vm4382, 1, 0
        %v4511 = vsel %vm4383, 1, 0
        %v4512 = vsel %vm4384, 1, 0
        %v4513 = vsel %vm4385, 1, 0
        %v4514 = vsel %vm4386, 1, 0
        %v4515 = vsel %vm4387, 1, 0
        %v4516 = vsel %vm4388, 1, 0
        %v4517 = vsel %vm4389, 1, 0
        %v4518 = vsel %vm4390, 1, 0
        %v4519 = vsel %vm4391, 1, 0
        %v4520 = vsel %vm4392, 1, 0
        %v4521 = vsel %vm4393, 1, 0
        %v4522 = vsel %vm4394, 1, 0
        %v4523 = vsel %vm4395, 1, 0
        %v4524 = vsel %vm4396, 1, 0
        %v4525 = vsel %vm4397, 1, 0
        %v4526 = vsel %vm4398, 1, 0
        %v4527 = vsel %vm4399, 1, 0
        %v4528 = vsel %vm4400, 1, 0
        %v4529 = vsel %vm4401, 1, 0
        %v4530 = vsel %vm4402, 1, 0
        %v4531 = vsel %vm4403, 1, 0
        %v4532 = vsel %vm4404, 1, 0
        %v4533 = vsel %vm4405, 1, 0
        %v4534 = vsel %vm4406, 1, 0
        %v4535 = vsel %vm4407, 1, 0
        %v4536 = vsel %vm4408, 1, 0
        %v4537 = vsel %vm4409, 1, 0
        %v4538 = vsel %vm4410, 1, 0
        %v4539 = vsel %vm4411, 1, 0
        %v4540 = vsel %vm4412, 1, 0
        %v4541 = vsel %vm4413, 1, 0
        %v4542 = vsel %vm4414, 1, 0
        %v4543 = vsel %vm4415, 1, 0
        %v4544 = vsel %vm4416, 1, 0
        %v4545 = vsel %vm4417, 1, 0
        %v4546 = vsel %vm4418, 1, 0
        %v4547 = vsel %vm4419, 1, 0
        %v4548 = vsel %vm4420, 1, 0
        %v4549 = vsel %vm4421, 1, 0
        %v4550 = vsel %vm4422, 1, 0
        %v4551 = vsel %vm4423, 1, 0
        %v4552 = vsel %vm4424, 1, 0
        %v4553 = vsel %vm4425, 1, 0
        %v4554 = vsel %vm4426, 1, 0
        %v4555 = vsel %vm4427, 1, 0
        %v4556 = vsel %vm4428, 1, 0
        %v4557 = vsel %vm4429, 1, 0
        %v4558 = vsel %vm4430, 1, 0
        %v4559 = vsel %vm4431, 1, 0
        %v4560 = vsel %vm4432, 1, 0
        %v4561 = vsel %vm4433, 1, 0
        %v4562 = vsel %vm4434, 1, 0
        %v4563 = vsel %vm4435, 1, 0
        %v4564 = vsel %vm4436, 1, 0
        %v4565 = vsel %vm4437, 1, 0
        %v4566 = vsel %vm4438, 1, 0
        %v4567 = vsel %vm4439, 1, 0
        %v4568 = vsel %vm4440, 1, 0
        %v4569 = vsel %vm4441, 1, 0
        %v4570 = vsel %vm4442, 1, 0
        %v4571 = vsel %vm4443, 1, 0
        %v4572 = vsel %vm4444, 1, 0
        %v4573 = vsel %vm4445, 1, 0
        %v4574 = vsel %vm4446, 1, 0
        %v4575 = vsel %vm4447, 1, 0
        %v4576 = vsel %vm4448, 1, 0
        %v4577 = vsel %vm4449, 1, 0
        %v4578 = vsel %vm4450, 1, 0
        %v4579 = vsel %vm4451, 1, 0
        %v4580 = vsel %vm4452, 1, 0
        %v4581 = vsel %vm4453, 1, 0
        %v4582 = vsel %vm4454, 1, 0
        %v4583 = vsel %vm4455, 1, 0
        %v4584 = vsel %vm4456, 1, 0
        %v4585 = vsel %vm4457, 1, 0
        %v4586 = vsel %vm4458, 1, 0
        %v4587 = vsel %vm4459, 1, 0
        %v4588 = vsel %vm4460, 1, 0
        %v4589 = vsel %vm4461, 1, 0
        %v4590 = vsel %vm4462, 1, 0
        %v4591 = vsel %vm4463, 1, 0
        %v4592 = vsel %vm4464, 1, 0
        %v4593 = vsel %vm4465, 1, 0
        %v4594 = vsel %vm4466, 1, 0
        %v4595 = vsel %vm4467, 1, 0
        %v4596 = vsel %vm4468, 1, 0
        %v4597 = vsel %vm4469, 1, 0
        %v4598 = vsel %vm4470, 1, 0
        %v4599 = vsel %vm4471, 1, 0
        %v4600 = vsel %vm4472, 1, 0
        %v4601 = vsel %vm4473, 1, 0
        %v4602 = vsel %vm4474, 1, 0
        %v4603 = vsel %vm4475, 1, 0
        %v4604 = vsel %vm4476, 1, 0
        %v4605 = vsel %vm4477, 1, 0
        %v4606 = vsel %vm4478, 1, 0
        %v4607 = vsel %vm4479, 1, 0
        %v4608 = vsel %vm4480, 1, 0
        %v4609 = vsel %vm4481, 1, 0
        %v4610 = vsel %vm4482, 1, 0
        %v4611 = vsel %vm4483, 1, 0
        %v4612 = vsel %vm4484, 1, 0
        %v4613 = vsel %vm4485, 1, 0
        %v4614 = vadd.s32 %v4134, %v4486
        %v4615 = vadd.s32 %v4135, %v4487
        %v4616 = vadd.s32 %v4136, %v4488
        %v4617 = vadd.s32 %v4137, %v4489
        %v4618 = vadd.s32 %v4138, %v4490
        %v4619 = vadd.s32 %v4139, %v4491
        %v4620 = vadd.s32 %v4140, %v4492
        %v4621 = vadd.s32 %v4141, %v4493
        %v4622 = vadd.s32 %v4142, %v4494
        %v4623 = vadd.s32 %v4143, %v4495
        %v4624 = vadd.s32 %v4144, %v4496
        %v4625 = vadd.s32 %v4145, %v4497
        %v4626 = vadd.s32 %v4146, %v4498
        %v4627 = vadd.s32 %v4147, %v4499
        %v4628 = vadd.s32 %v4148, %v4500
        %v4629 = vadd.s32 %v4149, %v4501
        %v4630 = vadd.s32 %v4150, %v4502
        %v4631 = vadd.s32 %v4151, %v4503
        %v4632 = vadd.s32 %v4152, %v4504
        %v4633 = vadd.s32 %v4153, %v4505
        %v4634 = vadd.s32 %v4154, %v4506
        %v4635 = vadd.s32 %v4155, %v4507
        %v4636 = vadd.s32 %v4156, %v4508
        %v4637 = vadd.s32 %v4157, %v4509
        %v4638 = vadd.s32 %v4158, %v4510
        %v4639 = vadd.s32 %v4159, %v4511
        %v4640 = vadd.s32 %v4160, %v4512
        %v4641 = vadd.s32 %v4161, %v4513
        %v4642 = vadd.s32 %v4162, %v4514
        %v4643 = vadd.s32 %v4163, %v4515
        %v4644 = vadd.s32 %v4164, %v4516
        %v4645 = vadd.s32 %v4165, %v4517
        %v4646 = vadd.s32 %v4166, %v4518
        %v4647 = vadd.s32 %v4167, %v4519
        %v4648 = vadd.s32 %v4168, %v4520
        %v4649 = vadd.s32 %v4169, %v4521
        %v4650 = vadd.s32 %v4170, %v4522
        %v4651 = vadd.s32 %v4171, %v4523
        %v4652 = vadd.s32 %v4172, %v4524
        %v4653 = vadd.s32 %v4173, %v4525
        %v4654 = vadd.s32 %v4174, %v4526
        %v4655 = vadd.s32 %v4175, %v4527
        %v4656 = vadd.s32 %v4176, %v4528
        %v4657 = vadd.s32 %v4177, %v4529
        %v4658 = vadd.s32 %v4178, %v4530
        %v4659 = vadd.s32 %v4179, %v4531
        %v4660 = vadd.s32 %v4180, %v4532
        %v4661 = vadd.s32 %v4181, %v4533
        %v4662 = vadd.s32 %v4182, %v4534
        %v4663 = vadd.s32 %v4183, %v4535
        %v4664 = vadd.s32 %v4184, %v4536
        %v4665 = vadd.s32 %v4185, %v4537
        %v4666 = vadd.s32 %v4186, %v4538
        %v4667 = vadd.s32 %v4187, %v4539
        %v4668 = vadd.s32 %v4188, %v4540
        %v4669 = vadd.s32 %v4189, %v4541
        %v4670 = vadd.s32 %v4190, %v4542
        %v4671 = vadd.s32 %v4191, %v4543
        %v4672 = vadd.s32 %v4192, %v4544
        %v4673 = vadd.s32 %v4193, %v4545
        %v4674 = vadd.s32 %v4194, %v4546
        %v4675 = vadd.s32 %v4195, %v4547
        %v4676 = vadd.s32 %v4196, %v4548
        %v4677 = vadd.s32 %v4197, %v4549
        %v4678 = vadd.s32 %v4198, %v4550
        %v4679 = vadd.s32 %v4199, %v4551
        %v4680 = vadd.s32 %v4200, %v4552
        %v4681 = vadd.s32 %v4201, %v4553
        %v4682 = vadd.s32 %v4202, %v4554
        %v4683 = vadd.s32 %v4203, %v4555
        %v4684 = vadd.s32 %v4204, %v4556
        %v4685 = vadd.s32 %v4205, %v4557
        %v4686 = vadd.s32 %v4206, %v4558
        %v4687 = vadd.s32 %v4207, %v4559
        %v4688 = vadd.s32 %v4208, %v4560
        %v4689 = vadd.s32 %v4209, %v4561
        %v4690 = vadd.s32 %v4210, %v4562
        %v4691 = vadd.s32 %v4211, %v4563
        %v4692 = vadd.s32 %v4212, %v4564
        %v4693 = vadd.s32 %v4213, %v4565
        %v4694 = vadd.s32 %v4214, %v4566
        %v4695 = vadd.s32 %v4215, %v4567
        %v4696 = vadd.s32 %v4216, %v4568
        %v4697 = vadd.s32 %v4217, %v4569
        %v4698 = vadd.s32 %v4218, %v4570
        %v4699 = vadd.s32 %v4219, %v4571
        %v4700 = vadd.s32 %v4220, %v4572
        %v4701 = vadd.s32 %v4221, %v4573
        %v4702 = vadd.s32 %v4222, %v4574
        %v4703 = vadd.s32 %v4223, %v4575
        %v4704 = vadd.s32 %v4224, %v4576
        %v4705 = vadd.s32 %v4225, %v4577
        %v4706 = vadd.s32 %v4226, %v4578
        %v4707 = vadd.s32 %v4227, %v4579
        %v4708 = vadd.s32 %v4228, %v4580
        %v4709 = vadd.s32 %v4229, %v4581
        %v4710 = vadd.s32 %v4230, %v4582
        %v4711 = vadd.s32 %v4231, %v4583
        %v4712 = vadd.s32 %v4232, %v4584
        %v4713 = vadd.s32 %v4233, %v4585
        %v4714 = vadd.s32 %v4234, %v4586
        %v4715 = vadd.s32 %v4235, %v4587
        %v4716 = vadd.s32 %v4236, %v4588
        %v4717 = vadd.s32 %v4237, %v4589
        %v4718 = vadd.s32 %v4238, %v4590
        %v4719 = vadd.s32 %v4239, %v4591
        %v4720 = vadd.s32 %v4240, %v4592
        %v4721 = vadd.s32 %v4241, %v4593
        %v4722 = vadd.s32 %v4242, %v4594
        %v4723 = vadd.s32 %v4243, %v4595
        %v4724 = vadd.s32 %v4244, %v4596
        %v4725 = vadd.s32 %v4245, %v4597
        %v4726 = vadd.s32 %v4246, %v4598
        %v4727 = vadd.s32 %v4247, %v4599
        %v4728 = vadd.s32 %v4248, %v4600
        %v4729 = vadd.s32 %v4249, %v4601
        %v4730 = vadd.s32 %v4250, %v4602
        %v4731 = vadd.s32 %v4251, %v4603
        %v4732 = vadd.s32 %v4252, %v4604
        %v4733 = vadd.s32 %v4253, %v4605
        %v4734 = vadd.s32 %v4254, %v4606
        %v4735 = vadd.s32 %v4255, %v4607
        %v4736 = vadd.s32 %v4256, %v4608
        %v4737 = vadd.s32 %v4257, %v4609
        %v4738 = vadd.s32 %v4258, %v4610
        %v4739 = vadd.s32 %v4259, %v4611
        %v4740 = vadd.s32 %v4260, %v4612
        %v4741 = vadd.s32 %v4261, %v4613
        %4742 = vset.pattern.permute.xlu0 7
        %4743 = vperm.xlu0 %4742, %v1350
        %v4744 = vpop.permute.xlu0 %4743
        %4745 = vset.pattern.permute.xlu0 7
        %4746 = vperm.xlu0 %4745, %v1351
        %v4747 = vpop.permute.xlu0 %4746
        %4748 = vset.pattern.permute.xlu0 7
        %4749 = vperm.xlu0 %4748, %v1352
        %v4750 = vpop.permute.xlu0 %4749
        %4751 = vset.pattern.permute.xlu0 7
        %4752 = vperm.xlu0 %4751, %v1353
        %v4753 = vpop.permute.xlu0 %4752
        %4754 = vset.pattern.permute.xlu0 7
        %4755 = vperm.xlu0 %4754, %v1354
        %v4756 = vpop.permute.xlu0 %4755
        %4757 = vset.pattern.permute.xlu0 7
        %4758 = vperm.xlu0 %4757, %v1355
        %v4759 = vpop.permute.xlu0 %4758
        %4760 = vset.pattern.permute.xlu0 7
        %4761 = vperm.xlu0 %4760, %v1356
        %v4762 = vpop.permute.xlu0 %4761
        %4763 = vset.pattern.permute.xlu0 7
        %4764 = vperm.xlu0 %4763, %v1357
        %v4765 = vpop.permute.xlu0 %4764
        %4766 = vset.pattern.permute.xlu0 7
        %4767 = vperm.xlu0 %4766, %v1358
        %v4768 = vpop.permute.xlu0 %4767
        %4769 = vset.pattern.permute.xlu0 7
        %4770 = vperm.xlu0 %4769, %v1359
        %v4771 = vpop.permute.xlu0 %4770
        %4772 = vset.pattern.permute.xlu0 7
        %4773 = vperm.xlu0 %4772, %v1360
        %v4774 = vpop.permute.xlu0 %4773
        %4775 = vset.pattern.permute.xlu0 7
        %4776 = vperm.xlu0 %4775, %v1361
        %v4777 = vpop.permute.xlu0 %4776
        %4778 = vset.pattern.permute.xlu0 7
        %4779 = vperm.xlu0 %4778, %v1362
        %v4780 = vpop.permute.xlu0 %4779
        %4781 = vset.pattern.permute.xlu0 7
        %4782 = vperm.xlu0 %4781, %v1363
        %v4783 = vpop.permute.xlu0 %4782
        %4784 = vset.pattern.permute.xlu0 7
        %4785 = vperm.xlu0 %4784, %v1364
        %v4786 = vpop.permute.xlu0 %4785
        %4787 = vset.pattern.permute.xlu0 7
        %4788 = vperm.xlu0 %4787, %v1365
        %v4789 = vpop.permute.xlu0 %4788
        %4790 = vset.pattern.permute.xlu0 7
        %4791 = vperm.xlu0 %4790, %v1366
        %v4792 = vpop.permute.xlu0 %4791
        %4793 = vset.pattern.permute.xlu0 7
        %4794 = vperm.xlu0 %4793, %v1367
        %v4795 = vpop.permute.xlu0 %4794
        %4796 = vset.pattern.permute.xlu0 7
        %4797 = vperm.xlu0 %4796, %v1368
        %v4798 = vpop.permute.xlu0 %4797
        %4799 = vset.pattern.permute.xlu0 7
        %4800 = vperm.xlu0 %4799, %v1369
        %v4801 = vpop.permute.xlu0 %4800
        %4802 = vset.pattern.permute.xlu0 7
        %4803 = vperm.xlu0 %4802, %v1370
        %v4804 = vpop.permute.xlu0 %4803
        %4805 = vset.pattern.permute.xlu0 7
        %4806 = vperm.xlu0 %4805, %v1371
        %v4807 = vpop.permute.xlu0 %4806
        %4808 = vset.pattern.permute.xlu0 7
        %4809 = vperm.xlu0 %4808, %v1372
        %v4810 = vpop.permute.xlu0 %4809
        %4811 = vset.pattern.permute.xlu0 7
        %4812 = vperm.xlu0 %4811, %v1373
        %v4813 = vpop.permute.xlu0 %4812
        %4814 = vset.pattern.permute.xlu0 7
        %4815 = vperm.xlu0 %4814, %v1374
        %v4816 = vpop.permute.xlu0 %4815
        %4817 = vset.pattern.permute.xlu0 7
        %4818 = vperm.xlu0 %4817, %v1375
        %v4819 = vpop.permute.xlu0 %4818
        %4820 = vset.pattern.permute.xlu0 7
        %4821 = vperm.xlu0 %4820, %v1376
        %v4822 = vpop.permute.xlu0 %4821
        %4823 = vset.pattern.permute.xlu0 7
        %4824 = vperm.xlu0 %4823, %v1377
        %v4825 = vpop.permute.xlu0 %4824
        %4826 = vset.pattern.permute.xlu0 7
        %4827 = vperm.xlu0 %4826, %v1378
        %v4828 = vpop.permute.xlu0 %4827
        %4829 = vset.pattern.permute.xlu0 7
        %4830 = vperm.xlu0 %4829, %v1379
        %v4831 = vpop.permute.xlu0 %4830
        %4832 = vset.pattern.permute.xlu0 7
        %4833 = vperm.xlu0 %4832, %v1380
        %v4834 = vpop.permute.xlu0 %4833
        %4835 = vset.pattern.permute.xlu0 7
        %4836 = vperm.xlu0 %4835, %v1381
        %v4837 = vpop.permute.xlu0 %4836
        %vm4838 = vcmp.eq.s32.totalorder %v990, %v4744
        %vm4839 = vcmp.eq.s32.totalorder %v991, %v4744
        %vm4840 = vcmp.eq.s32.totalorder %v992, %v4744
        %vm4841 = vcmp.eq.s32.totalorder %v993, %v4744
        %vm4842 = vcmp.eq.s32.totalorder %v990, %v4747
        %vm4843 = vcmp.eq.s32.totalorder %v991, %v4747
        %vm4844 = vcmp.eq.s32.totalorder %v992, %v4747
        %vm4845 = vcmp.eq.s32.totalorder %v993, %v4747
        %vm4846 = vcmp.eq.s32.totalorder %v990, %v4750
        %vm4847 = vcmp.eq.s32.totalorder %v991, %v4750
        %vm4848 = vcmp.eq.s32.totalorder %v992, %v4750
        %vm4849 = vcmp.eq.s32.totalorder %v993, %v4750
        %vm4850 = vcmp.eq.s32.totalorder %v990, %v4753
        %vm4851 = vcmp.eq.s32.totalorder %v991, %v4753
        %vm4852 = vcmp.eq.s32.totalorder %v992, %v4753
        %vm4853 = vcmp.eq.s32.totalorder %v993, %v4753
        %vm4854 = vcmp.eq.s32.totalorder %v990, %v4756
        %vm4855 = vcmp.eq.s32.totalorder %v991, %v4756
        %vm4856 = vcmp.eq.s32.totalorder %v992, %v4756
        %vm4857 = vcmp.eq.s32.totalorder %v993, %v4756
        %vm4858 = vcmp.eq.s32.totalorder %v990, %v4759
        %vm4859 = vcmp.eq.s32.totalorder %v991, %v4759
        %vm4860 = vcmp.eq.s32.totalorder %v992, %v4759
        %vm4861 = vcmp.eq.s32.totalorder %v993, %v4759
        %vm4862 = vcmp.eq.s32.totalorder %v990, %v4762
        %vm4863 = vcmp.eq.s32.totalorder %v991, %v4762
        %vm4864 = vcmp.eq.s32.totalorder %v992, %v4762
        %vm4865 = vcmp.eq.s32.totalorder %v993, %v4762
        %vm4866 = vcmp.eq.s32.totalorder %v990, %v4765
        %vm4867 = vcmp.eq.s32.totalorder %v991, %v4765
        %vm4868 = vcmp.eq.s32.totalorder %v992, %v4765
        %vm4869 = vcmp.eq.s32.totalorder %v993, %v4765
        %vm4870 = vcmp.eq.s32.totalorder %v990, %v4768
        %vm4871 = vcmp.eq.s32.totalorder %v991, %v4768
        %vm4872 = vcmp.eq.s32.totalorder %v992, %v4768
        %vm4873 = vcmp.eq.s32.totalorder %v993, %v4768
        %vm4874 = vcmp.eq.s32.totalorder %v990, %v4771
        %vm4875 = vcmp.eq.s32.totalorder %v991, %v4771
        %vm4876 = vcmp.eq.s32.totalorder %v992, %v4771
        %vm4877 = vcmp.eq.s32.totalorder %v993, %v4771
        %vm4878 = vcmp.eq.s32.totalorder %v990, %v4774
        %vm4879 = vcmp.eq.s32.totalorder %v991, %v4774
        %vm4880 = vcmp.eq.s32.totalorder %v992, %v4774
        %vm4881 = vcmp.eq.s32.totalorder %v993, %v4774
        %vm4882 = vcmp.eq.s32.totalorder %v990, %v4777
        %vm4883 = vcmp.eq.s32.totalorder %v991, %v4777
        %vm4884 = vcmp.eq.s32.totalorder %v992, %v4777
        %vm4885 = vcmp.eq.s32.totalorder %v993, %v4777
        %vm4886 = vcmp.eq.s32.totalorder %v990, %v4780
        %vm4887 = vcmp.eq.s32.totalorder %v991, %v4780
        %vm4888 = vcmp.eq.s32.totalorder %v992, %v4780
        %vm4889 = vcmp.eq.s32.totalorder %v993, %v4780
        %vm4890 = vcmp.eq.s32.totalorder %v990, %v4783
        %vm4891 = vcmp.eq.s32.totalorder %v991, %v4783
        %vm4892 = vcmp.eq.s32.totalorder %v992, %v4783
        %vm4893 = vcmp.eq.s32.totalorder %v993, %v4783
        %vm4894 = vcmp.eq.s32.totalorder %v990, %v4786
        %vm4895 = vcmp.eq.s32.totalorder %v991, %v4786
        %vm4896 = vcmp.eq.s32.totalorder %v992, %v4786
        %vm4897 = vcmp.eq.s32.totalorder %v993, %v4786
        %vm4898 = vcmp.eq.s32.totalorder %v990, %v4789
        %vm4899 = vcmp.eq.s32.totalorder %v991, %v4789
        %vm4900 = vcmp.eq.s32.totalorder %v992, %v4789
        %vm4901 = vcmp.eq.s32.totalorder %v993, %v4789
        %vm4902 = vcmp.eq.s32.totalorder %v990, %v4792
        %vm4903 = vcmp.eq.s32.totalorder %v991, %v4792
        %vm4904 = vcmp.eq.s32.totalorder %v992, %v4792
        %vm4905 = vcmp.eq.s32.totalorder %v993, %v4792
        %vm4906 = vcmp.eq.s32.totalorder %v990, %v4795
        %vm4907 = vcmp.eq.s32.totalorder %v991, %v4795
        %vm4908 = vcmp.eq.s32.totalorder %v992, %v4795
        %vm4909 = vcmp.eq.s32.totalorder %v993, %v4795
        %vm4910 = vcmp.eq.s32.totalorder %v990, %v4798
        %vm4911 = vcmp.eq.s32.totalorder %v991, %v4798
        %vm4912 = vcmp.eq.s32.totalorder %v992, %v4798
        %vm4913 = vcmp.eq.s32.totalorder %v993, %v4798
        %vm4914 = vcmp.eq.s32.totalorder %v990, %v4801
        %vm4915 = vcmp.eq.s32.totalorder %v991, %v4801
        %vm4916 = vcmp.eq.s32.totalorder %v992, %v4801
        %vm4917 = vcmp.eq.s32.totalorder %v993, %v4801
        %vm4918 = vcmp.eq.s32.totalorder %v990, %v4804
        %vm4919 = vcmp.eq.s32.totalorder %v991, %v4804
        %vm4920 = vcmp.eq.s32.totalorder %v992, %v4804
        %vm4921 = vcmp.eq.s32.totalorder %v993, %v4804
        %vm4922 = vcmp.eq.s32.totalorder %v990, %v4807
        %vm4923 = vcmp.eq.s32.totalorder %v991, %v4807
        %vm4924 = vcmp.eq.s32.totalorder %v992, %v4807
        %vm4925 = vcmp.eq.s32.totalorder %v993, %v4807
        %vm4926 = vcmp.eq.s32.totalorder %v990, %v4810
        %vm4927 = vcmp.eq.s32.totalorder %v991, %v4810
        %vm4928 = vcmp.eq.s32.totalorder %v992, %v4810
        %vm4929 = vcmp.eq.s32.totalorder %v993, %v4810
        %vm4930 = vcmp.eq.s32.totalorder %v990, %v4813
        %vm4931 = vcmp.eq.s32.totalorder %v991, %v4813
        %vm4932 = vcmp.eq.s32.totalorder %v992, %v4813
        %vm4933 = vcmp.eq.s32.totalorder %v993, %v4813
        %vm4934 = vcmp.eq.s32.totalorder %v990, %v4816
        %vm4935 = vcmp.eq.s32.totalorder %v991, %v4816
        %vm4936 = vcmp.eq.s32.totalorder %v992, %v4816
        %vm4937 = vcmp.eq.s32.totalorder %v993, %v4816
        %vm4938 = vcmp.eq.s32.totalorder %v990, %v4819
        %vm4939 = vcmp.eq.s32.totalorder %v991, %v4819
        %vm4940 = vcmp.eq.s32.totalorder %v992, %v4819
        %vm4941 = vcmp.eq.s32.totalorder %v993, %v4819
        %vm4942 = vcmp.eq.s32.totalorder %v990, %v4822
        %vm4943 = vcmp.eq.s32.totalorder %v991, %v4822
        %vm4944 = vcmp.eq.s32.totalorder %v992, %v4822
        %vm4945 = vcmp.eq.s32.totalorder %v993, %v4822
        %vm4946 = vcmp.eq.s32.totalorder %v990, %v4825
        %vm4947 = vcmp.eq.s32.totalorder %v991, %v4825
        %vm4948 = vcmp.eq.s32.totalorder %v992, %v4825
        %vm4949 = vcmp.eq.s32.totalorder %v993, %v4825
        %vm4950 = vcmp.eq.s32.totalorder %v990, %v4828
        %vm4951 = vcmp.eq.s32.totalorder %v991, %v4828
        %vm4952 = vcmp.eq.s32.totalorder %v992, %v4828
        %vm4953 = vcmp.eq.s32.totalorder %v993, %v4828
        %vm4954 = vcmp.eq.s32.totalorder %v990, %v4831
        %vm4955 = vcmp.eq.s32.totalorder %v991, %v4831
        %vm4956 = vcmp.eq.s32.totalorder %v992, %v4831
        %vm4957 = vcmp.eq.s32.totalorder %v993, %v4831
        %vm4958 = vcmp.eq.s32.totalorder %v990, %v4834
        %vm4959 = vcmp.eq.s32.totalorder %v991, %v4834
        %vm4960 = vcmp.eq.s32.totalorder %v992, %v4834
        %vm4961 = vcmp.eq.s32.totalorder %v993, %v4834
        %vm4962 = vcmp.eq.s32.totalorder %v990, %v4837
        %vm4963 = vcmp.eq.s32.totalorder %v991, %v4837
        %vm4964 = vcmp.eq.s32.totalorder %v992, %v4837
        %vm4965 = vcmp.eq.s32.totalorder %v993, %v4837
        %v4966 = vsel %vm4838, 1, 0
        %v4967 = vsel %vm4839, 1, 0
        %v4968 = vsel %vm4840, 1, 0
        %v4969 = vsel %vm4841, 1, 0
        %v4970 = vsel %vm4842, 1, 0
        %v4971 = vsel %vm4843, 1, 0
        %v4972 = vsel %vm4844, 1, 0
        %v4973 = vsel %vm4845, 1, 0
        %v4974 = vsel %vm4846, 1, 0
        %v4975 = vsel %vm4847, 1, 0
        %v4976 = vsel %vm4848, 1, 0
        %v4977 = vsel %vm4849, 1, 0
        %v4978 = vsel %vm4850, 1, 0
        %v4979 = vsel %vm4851, 1, 0
        %v4980 = vsel %vm4852, 1, 0
        %v4981 = vsel %vm4853, 1, 0
        %v4982 = vsel %vm4854, 1, 0
        %v4983 = vsel %vm4855, 1, 0
        %v4984 = vsel %vm4856, 1, 0
        %v4985 = vsel %vm4857, 1, 0
        %v4986 = vsel %vm4858, 1, 0
        %v4987 = vsel %vm4859, 1, 0
        %v4988 = vsel %vm4860, 1, 0
        %v4989 = vsel %vm4861, 1, 0
        %v4990 = vsel %vm4862, 1, 0
        %v4991 = vsel %vm4863, 1, 0
        %v4992 = vsel %vm4864, 1, 0
        %v4993 = vsel %vm4865, 1, 0
        %v4994 = vsel %vm4866, 1, 0
        %v4995 = vsel %vm4867, 1, 0
        %v4996 = vsel %vm4868, 1, 0
        %v4997 = vsel %vm4869, 1, 0
        %v4998 = vsel %vm4870, 1, 0
        %v4999 = vsel %vm4871, 1, 0
        %v5000 = vsel %vm4872, 1, 0
        %v5001 = vsel %vm4873, 1, 0
        %v5002 = vsel %vm4874, 1, 0
        %v5003 = vsel %vm4875, 1, 0
        %v5004 = vsel %vm4876, 1, 0
        %v5005 = vsel %vm4877, 1, 0
        %v5006 = vsel %vm4878, 1, 0
        %v5007 = vsel %vm4879, 1, 0
        %v5008 = vsel %vm4880, 1, 0
        %v5009 = vsel %vm4881, 1, 0
        %v5010 = vsel %vm4882, 1, 0
        %v5011 = vsel %vm4883, 1, 0
        %v5012 = vsel %vm4884, 1, 0
        %v5013 = vsel %vm4885, 1, 0
        %v5014 = vsel %vm4886, 1, 0
        %v5015 = vsel %vm4887, 1, 0
        %v5016 = vsel %vm4888, 1, 0
        %v5017 = vsel %vm4889, 1, 0
        %v5018 = vsel %vm4890, 1, 0
        %v5019 = vsel %vm4891, 1, 0
        %v5020 = vsel %vm4892, 1, 0
        %v5021 = vsel %vm4893, 1, 0
        %v5022 = vsel %vm4894, 1, 0
        %v5023 = vsel %vm4895, 1, 0
        %v5024 = vsel %vm4896, 1, 0
        %v5025 = vsel %vm4897, 1, 0
        %v5026 = vsel %vm4898, 1, 0
        %v5027 = vsel %vm4899, 1, 0
        %v5028 = vsel %vm4900, 1, 0
        %v5029 = vsel %vm4901, 1, 0
        %v5030 = vsel %vm4902, 1, 0
        %v5031 = vsel %vm4903, 1, 0
        %v5032 = vsel %vm4904, 1, 0
        %v5033 = vsel %vm4905, 1, 0
        %v5034 = vsel %vm4906, 1, 0
        %v5035 = vsel %vm4907, 1, 0
        %v5036 = vsel %vm4908, 1, 0
        %v5037 = vsel %vm4909, 1, 0
        %v5038 = vsel %vm4910, 1, 0
        %v5039 = vsel %vm4911, 1, 0
        %v5040 = vsel %vm4912, 1, 0
        %v5041 = vsel %vm4913, 1, 0
        %v5042 = vsel %vm4914, 1, 0
        %v5043 = vsel %vm4915, 1, 0
        %v5044 = vsel %vm4916, 1, 0
        %v5045 = vsel %vm4917, 1, 0
        %v5046 = vsel %vm4918, 1, 0
        %v5047 = vsel %vm4919, 1, 0
        %v5048 = vsel %vm4920, 1, 0
        %v5049 = vsel %vm4921, 1, 0
        %v5050 = vsel %vm4922, 1, 0
        %v5051 = vsel %vm4923, 1, 0
        %v5052 = vsel %vm4924, 1, 0
        %v5053 = vsel %vm4925, 1, 0
        %v5054 = vsel %vm4926, 1, 0
        %v5055 = vsel %vm4927, 1, 0
        %v5056 = vsel %vm4928, 1, 0
        %v5057 = vsel %vm4929, 1, 0
        %v5058 = vsel %vm4930, 1, 0
        %v5059 = vsel %vm4931, 1, 0
        %v5060 = vsel %vm4932, 1, 0
        %v5061 = vsel %vm4933, 1, 0
        %v5062 = vsel %vm4934, 1, 0
        %v5063 = vsel %vm4935, 1, 0
        %v5064 = vsel %vm4936, 1, 0
        %v5065 = vsel %vm4937, 1, 0
        %v5066 = vsel %vm4938, 1, 0
        %v5067 = vsel %vm4939, 1, 0
        %v5068 = vsel %vm4940, 1, 0
        %v5069 = vsel %vm4941, 1, 0
        %v5070 = vsel %vm4942, 1, 0
        %v5071 = vsel %vm4943, 1, 0
        %v5072 = vsel %vm4944, 1, 0
        %v5073 = vsel %vm4945, 1, 0
        %v5074 = vsel %vm4946, 1, 0
        %v5075 = vsel %vm4947, 1, 0
        %v5076 = vsel %vm4948, 1, 0
        %v5077 = vsel %vm4949, 1, 0
        %v5078 = vsel %vm4950, 1, 0
        %v5079 = vsel %vm4951, 1, 0
        %v5080 = vsel %vm4952, 1, 0
        %v5081 = vsel %vm4953, 1, 0
        %v5082 = vsel %vm4954, 1, 0
        %v5083 = vsel %vm4955, 1, 0
        %v5084 = vsel %vm4956, 1, 0
        %v5085 = vsel %vm4957, 1, 0
        %v5086 = vsel %vm4958, 1, 0
        %v5087 = vsel %vm4959, 1, 0
        %v5088 = vsel %vm4960, 1, 0
        %v5089 = vsel %vm4961, 1, 0
        %v5090 = vsel %vm4962, 1, 0
        %v5091 = vsel %vm4963, 1, 0
        %v5092 = vsel %vm4964, 1, 0
        %v5093 = vsel %vm4965, 1, 0
        %v5094 = vadd.s32 %v4614, %v4966
        %v5095 = vadd.s32 %v4615, %v4967
        %v5096 = vadd.s32 %v4616, %v4968
        %v5097 = vadd.s32 %v4617, %v4969
        %v5098 = vadd.s32 %v4618, %v4970
        %v5099 = vadd.s32 %v4619, %v4971
        %v5100 = vadd.s32 %v4620, %v4972
        %v5101 = vadd.s32 %v4621, %v4973
        %v5102 = vadd.s32 %v4622, %v4974
        %v5103 = vadd.s32 %v4623, %v4975
        %v5104 = vadd.s32 %v4624, %v4976
        %v5105 = vadd.s32 %v4625, %v4977
        %v5106 = vadd.s32 %v4626, %v4978
        %v5107 = vadd.s32 %v4627, %v4979
        %v5108 = vadd.s32 %v4628, %v4980
        %v5109 = vadd.s32 %v4629, %v4981
        %v5110 = vadd.s32 %v4630, %v4982
        %v5111 = vadd.s32 %v4631, %v4983
        %v5112 = vadd.s32 %v4632, %v4984
        %v5113 = vadd.s32 %v4633, %v4985
        %v5114 = vadd.s32 %v4634, %v4986
        %v5115 = vadd.s32 %v4635, %v4987
        %v5116 = vadd.s32 %v4636, %v4988
        %v5117 = vadd.s32 %v4637, %v4989
        %v5118 = vadd.s32 %v4638, %v4990
        %v5119 = vadd.s32 %v4639, %v4991
        %v5120 = vadd.s32 %v4640, %v4992
        %v5121 = vadd.s32 %v4641, %v4993
        %v5122 = vadd.s32 %v4642, %v4994
        %v5123 = vadd.s32 %v4643, %v4995
        %v5124 = vadd.s32 %v4644, %v4996
        %v5125 = vadd.s32 %v4645, %v4997
        %v5126 = vadd.s32 %v4646, %v4998
        %v5127 = vadd.s32 %v4647, %v4999
        %v5128 = vadd.s32 %v4648, %v5000
        %v5129 = vadd.s32 %v4649, %v5001
        %v5130 = vadd.s32 %v4650, %v5002
        %v5131 = vadd.s32 %v4651, %v5003
        %v5132 = vadd.s32 %v4652, %v5004
        %v5133 = vadd.s32 %v4653, %v5005
        %v5134 = vadd.s32 %v4654, %v5006
        %v5135 = vadd.s32 %v4655, %v5007
        %v5136 = vadd.s32 %v4656, %v5008
        %v5137 = vadd.s32 %v4657, %v5009
        %v5138 = vadd.s32 %v4658, %v5010
        %v5139 = vadd.s32 %v4659, %v5011
        %v5140 = vadd.s32 %v4660, %v5012
        %v5141 = vadd.s32 %v4661, %v5013
        %v5142 = vadd.s32 %v4662, %v5014
        %v5143 = vadd.s32 %v4663, %v5015
        %v5144 = vadd.s32 %v4664, %v5016
        %v5145 = vadd.s32 %v4665, %v5017
        %v5146 = vadd.s32 %v4666, %v5018
        %v5147 = vadd.s32 %v4667, %v5019
        %v5148 = vadd.s32 %v4668, %v5020
        %v5149 = vadd.s32 %v4669, %v5021
        %v5150 = vadd.s32 %v4670, %v5022
        %v5151 = vadd.s32 %v4671, %v5023
        %v5152 = vadd.s32 %v4672, %v5024
        %v5153 = vadd.s32 %v4673, %v5025
        %v5154 = vadd.s32 %v4674, %v5026
        %v5155 = vadd.s32 %v4675, %v5027
        %v5156 = vadd.s32 %v4676, %v5028
        %v5157 = vadd.s32 %v4677, %v5029
        %v5158 = vadd.s32 %v4678, %v5030
        %v5159 = vadd.s32 %v4679, %v5031
        %v5160 = vadd.s32 %v4680, %v5032
        %v5161 = vadd.s32 %v4681, %v5033
        %v5162 = vadd.s32 %v4682, %v5034
        %v5163 = vadd.s32 %v4683, %v5035
        %v5164 = vadd.s32 %v4684, %v5036
        %v5165 = vadd.s32 %v4685, %v5037
        %v5166 = vadd.s32 %v4686, %v5038
        %v5167 = vadd.s32 %v4687, %v5039
        %v5168 = vadd.s32 %v4688, %v5040
        %v5169 = vadd.s32 %v4689, %v5041
        %v5170 = vadd.s32 %v4690, %v5042
        %v5171 = vadd.s32 %v4691, %v5043
        %v5172 = vadd.s32 %v4692, %v5044
        %v5173 = vadd.s32 %v4693, %v5045
        %v5174 = vadd.s32 %v4694, %v5046
        %v5175 = vadd.s32 %v4695, %v5047
        %v5176 = vadd.s32 %v4696, %v5048
        %v5177 = vadd.s32 %v4697, %v5049
        %v5178 = vadd.s32 %v4698, %v5050
        %v5179 = vadd.s32 %v4699, %v5051
        %v5180 = vadd.s32 %v4700, %v5052
        %v5181 = vadd.s32 %v4701, %v5053
        %v5182 = vadd.s32 %v4702, %v5054
        %v5183 = vadd.s32 %v4703, %v5055
        %v5184 = vadd.s32 %v4704, %v5056
        %v5185 = vadd.s32 %v4705, %v5057
        %v5186 = vadd.s32 %v4706, %v5058
        %v5187 = vadd.s32 %v4707, %v5059
        %v5188 = vadd.s32 %v4708, %v5060
        %v5189 = vadd.s32 %v4709, %v5061
        %v5190 = vadd.s32 %v4710, %v5062
        %v5191 = vadd.s32 %v4711, %v5063
        %v5192 = vadd.s32 %v4712, %v5064
        %v5193 = vadd.s32 %v4713, %v5065
        %v5194 = vadd.s32 %v4714, %v5066
        %v5195 = vadd.s32 %v4715, %v5067
        %v5196 = vadd.s32 %v4716, %v5068
        %v5197 = vadd.s32 %v4717, %v5069
        %v5198 = vadd.s32 %v4718, %v5070
        %v5199 = vadd.s32 %v4719, %v5071
        %v5200 = vadd.s32 %v4720, %v5072
        %v5201 = vadd.s32 %v4721, %v5073
        %v5202 = vadd.s32 %v4722, %v5074
        %v5203 = vadd.s32 %v4723, %v5075
        %v5204 = vadd.s32 %v4724, %v5076
        %v5205 = vadd.s32 %v4725, %v5077
        %v5206 = vadd.s32 %v4726, %v5078
        %v5207 = vadd.s32 %v4727, %v5079
        %v5208 = vadd.s32 %v4728, %v5080
        %v5209 = vadd.s32 %v4729, %v5081
        %v5210 = vadd.s32 %v4730, %v5082
        %v5211 = vadd.s32 %v4731, %v5083
        %v5212 = vadd.s32 %v4732, %v5084
        %v5213 = vadd.s32 %v4733, %v5085
        %v5214 = vadd.s32 %v4734, %v5086
        %v5215 = vadd.s32 %v4735, %v5087
        %v5216 = vadd.s32 %v4736, %v5088
        %v5217 = vadd.s32 %v4737, %v5089
        %v5218 = vadd.s32 %v4738, %v5090
        %v5219 = vadd.s32 %v4739, %v5091
        %v5220 = vadd.s32 %v4740, %v5092
        %v5221 = vadd.s32 %v4741, %v5093
        %5222 = vset.pattern.permute.xlu0 8
        %5223 = vperm.xlu0 %5222, %v1350
        %v5224 = vpop.permute.xlu0 %5223
        %5225 = vset.pattern.permute.xlu0 8
        %5226 = vperm.xlu0 %5225, %v1351
        %v5227 = vpop.permute.xlu0 %5226
        %5228 = vset.pattern.permute.xlu0 8
        %5229 = vperm.xlu0 %5228, %v1352
        %v5230 = vpop.permute.xlu0 %5229
        %5231 = vset.pattern.permute.xlu0 8
        %5232 = vperm.xlu0 %5231, %v1353
        %v5233 = vpop.permute.xlu0 %5232
        %5234 = vset.pattern.permute.xlu0 8
        %5235 = vperm.xlu0 %5234, %v1354
        %v5236 = vpop.permute.xlu0 %5235
        %5237 = vset.pattern.permute.xlu0 8
        %5238 = vperm.xlu0 %5237, %v1355
        %v5239 = vpop.permute.xlu0 %5238
        %5240 = vset.pattern.permute.xlu0 8
        %5241 = vperm.xlu0 %5240, %v1356
        %v5242 = vpop.permute.xlu0 %5241
        %5243 = vset.pattern.permute.xlu0 8
        %5244 = vperm.xlu0 %5243, %v1357
        %v5245 = vpop.permute.xlu0 %5244
        %5246 = vset.pattern.permute.xlu0 8
        %5247 = vperm.xlu0 %5246, %v1358
        %v5248 = vpop.permute.xlu0 %5247
        %5249 = vset.pattern.permute.xlu0 8
        %5250 = vperm.xlu0 %5249, %v1359
        %v5251 = vpop.permute.xlu0 %5250
        %5252 = vset.pattern.permute.xlu0 8
        %5253 = vperm.xlu0 %5252, %v1360
        %v5254 = vpop.permute.xlu0 %5253
        %5255 = vset.pattern.permute.xlu0 8
        %5256 = vperm.xlu0 %5255, %v1361
        %v5257 = vpop.permute.xlu0 %5256
        %5258 = vset.pattern.permute.xlu0 8
        %5259 = vperm.xlu0 %5258, %v1362
        %v5260 = vpop.permute.xlu0 %5259
        %5261 = vset.pattern.permute.xlu0 8
        %5262 = vperm.xlu0 %5261, %v1363
        %v5263 = vpop.permute.xlu0 %5262
        %5264 = vset.pattern.permute.xlu0 8
        %5265 = vperm.xlu0 %5264, %v1364
        %v5266 = vpop.permute.xlu0 %5265
        %5267 = vset.pattern.permute.xlu0 8
        %5268 = vperm.xlu0 %5267, %v1365
        %v5269 = vpop.permute.xlu0 %5268
        %5270 = vset.pattern.permute.xlu0 8
        %5271 = vperm.xlu0 %5270, %v1366
        %v5272 = vpop.permute.xlu0 %5271
        %5273 = vset.pattern.permute.xlu0 8
        %5274 = vperm.xlu0 %5273, %v1367
        %v5275 = vpop.permute.xlu0 %5274
        %5276 = vset.pattern.permute.xlu0 8
        %5277 = vperm.xlu0 %5276, %v1368
        %v5278 = vpop.permute.xlu0 %5277
        %5279 = vset.pattern.permute.xlu0 8
        %5280 = vperm.xlu0 %5279, %v1369
        %v5281 = vpop.permute.xlu0 %5280
        %5282 = vset.pattern.permute.xlu0 8
        %5283 = vperm.xlu0 %5282, %v1370
        %v5284 = vpop.permute.xlu0 %5283
        %5285 = vset.pattern.permute.xlu0 8
        %5286 = vperm.xlu0 %5285, %v1371
        %v5287 = vpop.permute.xlu0 %5286
        %5288 = vset.pattern.permute.xlu0 8
        %5289 = vperm.xlu0 %5288, %v1372
        %v5290 = vpop.permute.xlu0 %5289
        %5291 = vset.pattern.permute.xlu0 8
        %5292 = vperm.xlu0 %5291, %v1373
        %v5293 = vpop.permute.xlu0 %5292
        %5294 = vset.pattern.permute.xlu0 8
        %5295 = vperm.xlu0 %5294, %v1374
        %v5296 = vpop.permute.xlu0 %5295
        %5297 = vset.pattern.permute.xlu0 8
        %5298 = vperm.xlu0 %5297, %v1375
        %v5299 = vpop.permute.xlu0 %5298
        %5300 = vset.pattern.permute.xlu0 8
        %5301 = vperm.xlu0 %5300, %v1376
        %v5302 = vpop.permute.xlu0 %5301
        %5303 = vset.pattern.permute.xlu0 8
        %5304 = vperm.xlu0 %5303, %v1377
        %v5305 = vpop.permute.xlu0 %5304
        %5306 = vset.pattern.permute.xlu0 8
        %5307 = vperm.xlu0 %5306, %v1378
        %v5308 = vpop.permute.xlu0 %5307
        %5309 = vset.pattern.permute.xlu0 8
        %5310 = vperm.xlu0 %5309, %v1379
        %v5311 = vpop.permute.xlu0 %5310
        %5312 = vset.pattern.permute.xlu0 8
        %5313 = vperm.xlu0 %5312, %v1380
        %v5314 = vpop.permute.xlu0 %5313
        %5315 = vset.pattern.permute.xlu0 8
        %5316 = vperm.xlu0 %5315, %v1381
        %v5317 = vpop.permute.xlu0 %5316
        %vm5318 = vcmp.eq.s32.totalorder %v990, %v5224
        %vm5319 = vcmp.eq.s32.totalorder %v991, %v5224
        %vm5320 = vcmp.eq.s32.totalorder %v992, %v5224
        %vm5321 = vcmp.eq.s32.totalorder %v993, %v5224
        %vm5322 = vcmp.eq.s32.totalorder %v990, %v5227
        %vm5323 = vcmp.eq.s32.totalorder %v991, %v5227
        %vm5324 = vcmp.eq.s32.totalorder %v992, %v5227
        %vm5325 = vcmp.eq.s32.totalorder %v993, %v5227
        %vm5326 = vcmp.eq.s32.totalorder %v990, %v5230
        %vm5327 = vcmp.eq.s32.totalorder %v991, %v5230
        %vm5328 = vcmp.eq.s32.totalorder %v992, %v5230
        %vm5329 = vcmp.eq.s32.totalorder %v993, %v5230
        %vm5330 = vcmp.eq.s32.totalorder %v990, %v5233
        %vm5331 = vcmp.eq.s32.totalorder %v991, %v5233
        %vm5332 = vcmp.eq.s32.totalorder %v992, %v5233
        %vm5333 = vcmp.eq.s32.totalorder %v993, %v5233
        %vm5334 = vcmp.eq.s32.totalorder %v990, %v5236
        %vm5335 = vcmp.eq.s32.totalorder %v991, %v5236
        %vm5336 = vcmp.eq.s32.totalorder %v992, %v5236
        %vm5337 = vcmp.eq.s32.totalorder %v993, %v5236
        %vm5338 = vcmp.eq.s32.totalorder %v990, %v5239
        %vm5339 = vcmp.eq.s32.totalorder %v991, %v5239
        %vm5340 = vcmp.eq.s32.totalorder %v992, %v5239
        %vm5341 = vcmp.eq.s32.totalorder %v993, %v5239
        %vm5342 = vcmp.eq.s32.totalorder %v990, %v5242
        %vm5343 = vcmp.eq.s32.totalorder %v991, %v5242
        %vm5344 = vcmp.eq.s32.totalorder %v992, %v5242
        %vm5345 = vcmp.eq.s32.totalorder %v993, %v5242
        %vm5346 = vcmp.eq.s32.totalorder %v990, %v5245
        %vm5347 = vcmp.eq.s32.totalorder %v991, %v5245
        %vm5348 = vcmp.eq.s32.totalorder %v992, %v5245
        %vm5349 = vcmp.eq.s32.totalorder %v993, %v5245
        %vm5350 = vcmp.eq.s32.totalorder %v990, %v5248
        %vm5351 = vcmp.eq.s32.totalorder %v991, %v5248
        %vm5352 = vcmp.eq.s32.totalorder %v992, %v5248
        %vm5353 = vcmp.eq.s32.totalorder %v993, %v5248
        %vm5354 = vcmp.eq.s32.totalorder %v990, %v5251
        %vm5355 = vcmp.eq.s32.totalorder %v991, %v5251
        %vm5356 = vcmp.eq.s32.totalorder %v992, %v5251
        %vm5357 = vcmp.eq.s32.totalorder %v993, %v5251
        %vm5358 = vcmp.eq.s32.totalorder %v990, %v5254
        %vm5359 = vcmp.eq.s32.totalorder %v991, %v5254
        %vm5360 = vcmp.eq.s32.totalorder %v992, %v5254
        %vm5361 = vcmp.eq.s32.totalorder %v993, %v5254
        %vm5362 = vcmp.eq.s32.totalorder %v990, %v5257
        %vm5363 = vcmp.eq.s32.totalorder %v991, %v5257
        %vm5364 = vcmp.eq.s32.totalorder %v992, %v5257
        %vm5365 = vcmp.eq.s32.totalorder %v993, %v5257
        %vm5366 = vcmp.eq.s32.totalorder %v990, %v5260
        %vm5367 = vcmp.eq.s32.totalorder %v991, %v5260
        %vm5368 = vcmp.eq.s32.totalorder %v992, %v5260
        %vm5369 = vcmp.eq.s32.totalorder %v993, %v5260
        %vm5370 = vcmp.eq.s32.totalorder %v990, %v5263
        %vm5371 = vcmp.eq.s32.totalorder %v991, %v5263
        %vm5372 = vcmp.eq.s32.totalorder %v992, %v5263
        %vm5373 = vcmp.eq.s32.totalorder %v993, %v5263
        %vm5374 = vcmp.eq.s32.totalorder %v990, %v5266
        %vm5375 = vcmp.eq.s32.totalorder %v991, %v5266
        %vm5376 = vcmp.eq.s32.totalorder %v992, %v5266
        %vm5377 = vcmp.eq.s32.totalorder %v993, %v5266
        %vm5378 = vcmp.eq.s32.totalorder %v990, %v5269
        %vm5379 = vcmp.eq.s32.totalorder %v991, %v5269
        %vm5380 = vcmp.eq.s32.totalorder %v992, %v5269
        %vm5381 = vcmp.eq.s32.totalorder %v993, %v5269
        %vm5382 = vcmp.eq.s32.totalorder %v990, %v5272
        %vm5383 = vcmp.eq.s32.totalorder %v991, %v5272
        %vm5384 = vcmp.eq.s32.totalorder %v992, %v5272
        %vm5385 = vcmp.eq.s32.totalorder %v993, %v5272
        %vm5386 = vcmp.eq.s32.totalorder %v990, %v5275
        %vm5387 = vcmp.eq.s32.totalorder %v991, %v5275
        %vm5388 = vcmp.eq.s32.totalorder %v992, %v5275
        %vm5389 = vcmp.eq.s32.totalorder %v993, %v5275
        %vm5390 = vcmp.eq.s32.totalorder %v990, %v5278
        %vm5391 = vcmp.eq.s32.totalorder %v991, %v5278
        %vm5392 = vcmp.eq.s32.totalorder %v992, %v5278
        %vm5393 = vcmp.eq.s32.totalorder %v993, %v5278
        %vm5394 = vcmp.eq.s32.totalorder %v990, %v5281
        %vm5395 = vcmp.eq.s32.totalorder %v991, %v5281
        %vm5396 = vcmp.eq.s32.totalorder %v992, %v5281
        %vm5397 = vcmp.eq.s32.totalorder %v993, %v5281
        %vm5398 = vcmp.eq.s32.totalorder %v990, %v5284
        %vm5399 = vcmp.eq.s32.totalorder %v991, %v5284
        %vm5400 = vcmp.eq.s32.totalorder %v992, %v5284
        %vm5401 = vcmp.eq.s32.totalorder %v993, %v5284
        %vm5402 = vcmp.eq.s32.totalorder %v990, %v5287
        %vm5403 = vcmp.eq.s32.totalorder %v991, %v5287
        %vm5404 = vcmp.eq.s32.totalorder %v992, %v5287
        %vm5405 = vcmp.eq.s32.totalorder %v993, %v5287
        %vm5406 = vcmp.eq.s32.totalorder %v990, %v5290
        %vm5407 = vcmp.eq.s32.totalorder %v991, %v5290
        %vm5408 = vcmp.eq.s32.totalorder %v992, %v5290
        %vm5409 = vcmp.eq.s32.totalorder %v993, %v5290
        %vm5410 = vcmp.eq.s32.totalorder %v990, %v5293
        %vm5411 = vcmp.eq.s32.totalorder %v991, %v5293
        %vm5412 = vcmp.eq.s32.totalorder %v992, %v5293
        %vm5413 = vcmp.eq.s32.totalorder %v993, %v5293
        %vm5414 = vcmp.eq.s32.totalorder %v990, %v5296
        %vm5415 = vcmp.eq.s32.totalorder %v991, %v5296
        %vm5416 = vcmp.eq.s32.totalorder %v992, %v5296
        %vm5417 = vcmp.eq.s32.totalorder %v993, %v5296
        %vm5418 = vcmp.eq.s32.totalorder %v990, %v5299
        %vm5419 = vcmp.eq.s32.totalorder %v991, %v5299
        %vm5420 = vcmp.eq.s32.totalorder %v992, %v5299
        %vm5421 = vcmp.eq.s32.totalorder %v993, %v5299
        %vm5422 = vcmp.eq.s32.totalorder %v990, %v5302
        %vm5423 = vcmp.eq.s32.totalorder %v991, %v5302
        %vm5424 = vcmp.eq.s32.totalorder %v992, %v5302
        %vm5425 = vcmp.eq.s32.totalorder %v993, %v5302
        %vm5426 = vcmp.eq.s32.totalorder %v990, %v5305
        %vm5427 = vcmp.eq.s32.totalorder %v991, %v5305
        %vm5428 = vcmp.eq.s32.totalorder %v992, %v5305
        %vm5429 = vcmp.eq.s32.totalorder %v993, %v5305
        %vm5430 = vcmp.eq.s32.totalorder %v990, %v5308
        %vm5431 = vcmp.eq.s32.totalorder %v991, %v5308
        %vm5432 = vcmp.eq.s32.totalorder %v992, %v5308
        %vm5433 = vcmp.eq.s32.totalorder %v993, %v5308
        %vm5434 = vcmp.eq.s32.totalorder %v990, %v5311
        %vm5435 = vcmp.eq.s32.totalorder %v991, %v5311
        %vm5436 = vcmp.eq.s32.totalorder %v992, %v5311
        %vm5437 = vcmp.eq.s32.totalorder %v993, %v5311
        %vm5438 = vcmp.eq.s32.totalorder %v990, %v5314
        %vm5439 = vcmp.eq.s32.totalorder %v991, %v5314
        %vm5440 = vcmp.eq.s32.totalorder %v992, %v5314
        %vm5441 = vcmp.eq.s32.totalorder %v993, %v5314
        %vm5442 = vcmp.eq.s32.totalorder %v990, %v5317
        %vm5443 = vcmp.eq.s32.totalorder %v991, %v5317
        %vm5444 = vcmp.eq.s32.totalorder %v992, %v5317
        %vm5445 = vcmp.eq.s32.totalorder %v993, %v5317
        %v5446 = vsel %vm5318, 1, 0
        %v5447 = vsel %vm5319, 1, 0
        %v5448 = vsel %vm5320, 1, 0
        %v5449 = vsel %vm5321, 1, 0
        %v5450 = vsel %vm5322, 1, 0
        %v5451 = vsel %vm5323, 1, 0
        %v5452 = vsel %vm5324, 1, 0
        %v5453 = vsel %vm5325, 1, 0
        %v5454 = vsel %vm5326, 1, 0
        %v5455 = vsel %vm5327, 1, 0
        %v5456 = vsel %vm5328, 1, 0
        %v5457 = vsel %vm5329, 1, 0
        %v5458 = vsel %vm5330, 1, 0
        %v5459 = vsel %vm5331, 1, 0
        %v5460 = vsel %vm5332, 1, 0
        %v5461 = vsel %vm5333, 1, 0
        %v5462 = vsel %vm5334, 1, 0
        %v5463 = vsel %vm5335, 1, 0
        %v5464 = vsel %vm5336, 1, 0
        %v5465 = vsel %vm5337, 1, 0
        %v5466 = vsel %vm5338, 1, 0
        %v5467 = vsel %vm5339, 1, 0
        %v5468 = vsel %vm5340, 1, 0
        %v5469 = vsel %vm5341, 1, 0
        %v5470 = vsel %vm5342, 1, 0
        %v5471 = vsel %vm5343, 1, 0
        %v5472 = vsel %vm5344, 1, 0
        %v5473 = vsel %vm5345, 1, 0
        %v5474 = vsel %vm5346, 1, 0
        %v5475 = vsel %vm5347, 1, 0
        %v5476 = vsel %vm5348, 1, 0
        %v5477 = vsel %vm5349, 1, 0
        %v5478 = vsel %vm5350, 1, 0
        %v5479 = vsel %vm5351, 1, 0
        %v5480 = vsel %vm5352, 1, 0
        %v5481 = vsel %vm5353, 1, 0
        %v5482 = vsel %vm5354, 1, 0
        %v5483 = vsel %vm5355, 1, 0
        %v5484 = vsel %vm5356, 1, 0
        %v5485 = vsel %vm5357, 1, 0
        %v5486 = vsel %vm5358, 1, 0
        %v5487 = vsel %vm5359, 1, 0
        %v5488 = vsel %vm5360, 1, 0
        %v5489 = vsel %vm5361, 1, 0
        %v5490 = vsel %vm5362, 1, 0
        %v5491 = vsel %vm5363, 1, 0
        %v5492 = vsel %vm5364, 1, 0
        %v5493 = vsel %vm5365, 1, 0
        %v5494 = vsel %vm5366, 1, 0
        %v5495 = vsel %vm5367, 1, 0
        %v5496 = vsel %vm5368, 1, 0
        %v5497 = vsel %vm5369, 1, 0
        %v5498 = vsel %vm5370, 1, 0
        %v5499 = vsel %vm5371, 1, 0
        %v5500 = vsel %vm5372, 1, 0
        %v5501 = vsel %vm5373, 1, 0
        %v5502 = vsel %vm5374, 1, 0
        %v5503 = vsel %vm5375, 1, 0
        %v5504 = vsel %vm5376, 1, 0
        %v5505 = vsel %vm5377, 1, 0
        %v5506 = vsel %vm5378, 1, 0
        %v5507 = vsel %vm5379, 1, 0
        %v5508 = vsel %vm5380, 1, 0
        %v5509 = vsel %vm5381, 1, 0
        %v5510 = vsel %vm5382, 1, 0
        %v5511 = vsel %vm5383, 1, 0
        %v5512 = vsel %vm5384, 1, 0
        %v5513 = vsel %vm5385, 1, 0
        %v5514 = vsel %vm5386, 1, 0
        %v5515 = vsel %vm5387, 1, 0
        %v5516 = vsel %vm5388, 1, 0
        %v5517 = vsel %vm5389, 1, 0
        %v5518 = vsel %vm5390, 1, 0
        %v5519 = vsel %vm5391, 1, 0
        %v5520 = vsel %vm5392, 1, 0
        %v5521 = vsel %vm5393, 1, 0
        %v5522 = vsel %vm5394, 1, 0
        %v5523 = vsel %vm5395, 1, 0
        %v5524 = vsel %vm5396, 1, 0
        %v5525 = vsel %vm5397, 1, 0
        %v5526 = vsel %vm5398, 1, 0
        %v5527 = vsel %vm5399, 1, 0
        %v5528 = vsel %vm5400, 1, 0
        %v5529 = vsel %vm5401, 1, 0
        %v5530 = vsel %vm5402, 1, 0
        %v5531 = vsel %vm5403, 1, 0
        %v5532 = vsel %vm5404, 1, 0
        %v5533 = vsel %vm5405, 1, 0
        %v5534 = vsel %vm5406, 1, 0
        %v5535 = vsel %vm5407, 1, 0
        %v5536 = vsel %vm5408, 1, 0
        %v5537 = vsel %vm5409, 1, 0
        %v5538 = vsel %vm5410, 1, 0
        %v5539 = vsel %vm5411, 1, 0
        %v5540 = vsel %vm5412, 1, 0
        %v5541 = vsel %vm5413, 1, 0
        %v5542 = vsel %vm5414, 1, 0
        %v5543 = vsel %vm5415, 1, 0
        %v5544 = vsel %vm5416, 1, 0
        %v5545 = vsel %vm5417, 1, 0
        %v5546 = vsel %vm5418, 1, 0
        %v5547 = vsel %vm5419, 1, 0
        %v5548 = vsel %vm5420, 1, 0
        %v5549 = vsel %vm5421, 1, 0
        %v5550 = vsel %vm5422, 1, 0
        %v5551 = vsel %vm5423, 1, 0
        %v5552 = vsel %vm5424, 1, 0
        %v5553 = vsel %vm5425, 1, 0
        %v5554 = vsel %vm5426, 1, 0
        %v5555 = vsel %vm5427, 1, 0
        %v5556 = vsel %vm5428, 1, 0
        %v5557 = vsel %vm5429, 1, 0
        %v5558 = vsel %vm5430, 1, 0
        %v5559 = vsel %vm5431, 1, 0
        %v5560 = vsel %vm5432, 1, 0
        %v5561 = vsel %vm5433, 1, 0
        %v5562 = vsel %vm5434, 1, 0
        %v5563 = vsel %vm5435, 1, 0
        %v5564 = vsel %vm5436, 1, 0
        %v5565 = vsel %vm5437, 1, 0
        %v5566 = vsel %vm5438, 1, 0
        %v5567 = vsel %vm5439, 1, 0
        %v5568 = vsel %vm5440, 1, 0
        %v5569 = vsel %vm5441, 1, 0
        %v5570 = vsel %vm5442, 1, 0
        %v5571 = vsel %vm5443, 1, 0
        %v5572 = vsel %vm5444, 1, 0
        %v5573 = vsel %vm5445, 1, 0
        %v5574 = vadd.s32 %v5094, %v5446
        %v5575 = vadd.s32 %v5095, %v5447
        %v5576 = vadd.s32 %v5096, %v5448
        %v5577 = vadd.s32 %v5097, %v5449
        %v5578 = vadd.s32 %v5098, %v5450
        %v5579 = vadd.s32 %v5099, %v5451
        %v5580 = vadd.s32 %v5100, %v5452
        %v5581 = vadd.s32 %v5101, %v5453
        %v5582 = vadd.s32 %v5102, %v5454
        %v5583 = vadd.s32 %v5103, %v5455
        %v5584 = vadd.s32 %v5104, %v5456
        %v5585 = vadd.s32 %v5105, %v5457
        %v5586 = vadd.s32 %v5106, %v5458
        %v5587 = vadd.s32 %v5107, %v5459
        %v5588 = vadd.s32 %v5108, %v5460
        %v5589 = vadd.s32 %v5109, %v5461
        %v5590 = vadd.s32 %v5110, %v5462
        %v5591 = vadd.s32 %v5111, %v5463
        %v5592 = vadd.s32 %v5112, %v5464
        %v5593 = vadd.s32 %v5113, %v5465
        %v5594 = vadd.s32 %v5114, %v5466
        %v5595 = vadd.s32 %v5115, %v5467
        %v5596 = vadd.s32 %v5116, %v5468
        %v5597 = vadd.s32 %v5117, %v5469
        %v5598 = vadd.s32 %v5118, %v5470
        %v5599 = vadd.s32 %v5119, %v5471
        %v5600 = vadd.s32 %v5120, %v5472
        %v5601 = vadd.s32 %v5121, %v5473
        %v5602 = vadd.s32 %v5122, %v5474
        %v5603 = vadd.s32 %v5123, %v5475
        %v5604 = vadd.s32 %v5124, %v5476
        %v5605 = vadd.s32 %v5125, %v5477
        %v5606 = vadd.s32 %v5126, %v5478
        %v5607 = vadd.s32 %v5127, %v5479
        %v5608 = vadd.s32 %v5128, %v5480
        %v5609 = vadd.s32 %v5129, %v5481
        %v5610 = vadd.s32 %v5130, %v5482
        %v5611 = vadd.s32 %v5131, %v5483
        %v5612 = vadd.s32 %v5132, %v5484
        %v5613 = vadd.s32 %v5133, %v5485
        %v5614 = vadd.s32 %v5134, %v5486
        %v5615 = vadd.s32 %v5135, %v5487
        %v5616 = vadd.s32 %v5136, %v5488
        %v5617 = vadd.s32 %v5137, %v5489
        %v5618 = vadd.s32 %v5138, %v5490
        %v5619 = vadd.s32 %v5139, %v5491
        %v5620 = vadd.s32 %v5140, %v5492
        %v5621 = vadd.s32 %v5141, %v5493
        %v5622 = vadd.s32 %v5142, %v5494
        %v5623 = vadd.s32 %v5143, %v5495
        %v5624 = vadd.s32 %v5144, %v5496
        %v5625 = vadd.s32 %v5145, %v5497
        %v5626 = vadd.s32 %v5146, %v5498
        %v5627 = vadd.s32 %v5147, %v5499
        %v5628 = vadd.s32 %v5148, %v5500
        %v5629 = vadd.s32 %v5149, %v5501
        %v5630 = vadd.s32 %v5150, %v5502
        %v5631 = vadd.s32 %v5151, %v5503
        %v5632 = vadd.s32 %v5152, %v5504
        %v5633 = vadd.s32 %v5153, %v5505
        %v5634 = vadd.s32 %v5154, %v5506
        %v5635 = vadd.s32 %v5155, %v5507
        %v5636 = vadd.s32 %v5156, %v5508
        %v5637 = vadd.s32 %v5157, %v5509
        %v5638 = vadd.s32 %v5158, %v5510
        %v5639 = vadd.s32 %v5159, %v5511
        %v5640 = vadd.s32 %v5160, %v5512
        %v5641 = vadd.s32 %v5161, %v5513
        %v5642 = vadd.s32 %v5162, %v5514
        %v5643 = vadd.s32 %v5163, %v5515
        %v5644 = vadd.s32 %v5164, %v5516
        %v5645 = vadd.s32 %v5165, %v5517
        %v5646 = vadd.s32 %v5166, %v5518
        %v5647 = vadd.s32 %v5167, %v5519
        %v5648 = vadd.s32 %v5168, %v5520
        %v5649 = vadd.s32 %v5169, %v5521
        %v5650 = vadd.s32 %v5170, %v5522
        %v5651 = vadd.s32 %v5171, %v5523
        %v5652 = vadd.s32 %v5172, %v5524
        %v5653 = vadd.s32 %v5173, %v5525
        %v5654 = vadd.s32 %v5174, %v5526
        %v5655 = vadd.s32 %v5175, %v5527
        %v5656 = vadd.s32 %v5176, %v5528
        %v5657 = vadd.s32 %v5177, %v5529
        %v5658 = vadd.s32 %v5178, %v5530
        %v5659 = vadd.s32 %v5179, %v5531
        %v5660 = vadd.s32 %v5180, %v5532
        %v5661 = vadd.s32 %v5181, %v5533
        %v5662 = vadd.s32 %v5182, %v5534
        %v5663 = vadd.s32 %v5183, %v5535
        %v5664 = vadd.s32 %v5184, %v5536
        %v5665 = vadd.s32 %v5185, %v5537
        %v5666 = vadd.s32 %v5186, %v5538
        %v5667 = vadd.s32 %v5187, %v5539
        %v5668 = vadd.s32 %v5188, %v5540
        %v5669 = vadd.s32 %v5189, %v5541
        %v5670 = vadd.s32 %v5190, %v5542
        %v5671 = vadd.s32 %v5191, %v5543
        %v5672 = vadd.s32 %v5192, %v5544
        %v5673 = vadd.s32 %v5193, %v5545
        %v5674 = vadd.s32 %v5194, %v5546
        %v5675 = vadd.s32 %v5195, %v5547
        %v5676 = vadd.s32 %v5196, %v5548
        %v5677 = vadd.s32 %v5197, %v5549
        %v5678 = vadd.s32 %v5198, %v5550
        %v5679 = vadd.s32 %v5199, %v5551
        %v5680 = vadd.s32 %v5200, %v5552
        %v5681 = vadd.s32 %v5201, %v5553
        %v5682 = vadd.s32 %v5202, %v5554
        %v5683 = vadd.s32 %v5203, %v5555
        %v5684 = vadd.s32 %v5204, %v5556
        %v5685 = vadd.s32 %v5205, %v5557
        %v5686 = vadd.s32 %v5206, %v5558
        %v5687 = vadd.s32 %v5207, %v5559
        %v5688 = vadd.s32 %v5208, %v5560
        %v5689 = vadd.s32 %v5209, %v5561
        %v5690 = vadd.s32 %v5210, %v5562
        %v5691 = vadd.s32 %v5211, %v5563
        %v5692 = vadd.s32 %v5212, %v5564
        %v5693 = vadd.s32 %v5213, %v5565
        %v5694 = vadd.s32 %v5214, %v5566
        %v5695 = vadd.s32 %v5215, %v5567
        %v5696 = vadd.s32 %v5216, %v5568
        %v5697 = vadd.s32 %v5217, %v5569
        %v5698 = vadd.s32 %v5218, %v5570
        %v5699 = vadd.s32 %v5219, %v5571
        %v5700 = vadd.s32 %v5220, %v5572
        %v5701 = vadd.s32 %v5221, %v5573
        %5702 = vset.pattern.permute.xlu0 9
        %5703 = vperm.xlu0 %5702, %v1350
        %v5704 = vpop.permute.xlu0 %5703
        %5705 = vset.pattern.permute.xlu0 9
        %5706 = vperm.xlu0 %5705, %v1351
        %v5707 = vpop.permute.xlu0 %5706
        %5708 = vset.pattern.permute.xlu0 9
        %5709 = vperm.xlu0 %5708, %v1352
        %v5710 = vpop.permute.xlu0 %5709
        %5711 = vset.pattern.permute.xlu0 9
        %5712 = vperm.xlu0 %5711, %v1353
        %v5713 = vpop.permute.xlu0 %5712
        %5714 = vset.pattern.permute.xlu0 9
        %5715 = vperm.xlu0 %5714, %v1354
        %v5716 = vpop.permute.xlu0 %5715
        %5717 = vset.pattern.permute.xlu0 9
        %5718 = vperm.xlu0 %5717, %v1355
        %v5719 = vpop.permute.xlu0 %5718
        %5720 = vset.pattern.permute.xlu0 9
        %5721 = vperm.xlu0 %5720, %v1356
        %v5722 = vpop.permute.xlu0 %5721
        %5723 = vset.pattern.permute.xlu0 9
        %5724 = vperm.xlu0 %5723, %v1357
        %v5725 = vpop.permute.xlu0 %5724
        %5726 = vset.pattern.permute.xlu0 9
        %5727 = vperm.xlu0 %5726, %v1358
        %v5728 = vpop.permute.xlu0 %5727
        %5729 = vset.pattern.permute.xlu0 9
        %5730 = vperm.xlu0 %5729, %v1359
        %v5731 = vpop.permute.xlu0 %5730
        %5732 = vset.pattern.permute.xlu0 9
        %5733 = vperm.xlu0 %5732, %v1360
        %v5734 = vpop.permute.xlu0 %5733
        %5735 = vset.pattern.permute.xlu0 9
        %5736 = vperm.xlu0 %5735, %v1361
        %v5737 = vpop.permute.xlu0 %5736
        %5738 = vset.pattern.permute.xlu0 9
        %5739 = vperm.xlu0 %5738, %v1362
        %v5740 = vpop.permute.xlu0 %5739
        %5741 = vset.pattern.permute.xlu0 9
        %5742 = vperm.xlu0 %5741, %v1363
        %v5743 = vpop.permute.xlu0 %5742
        %5744 = vset.pattern.permute.xlu0 9
        %5745 = vperm.xlu0 %5744, %v1364
        %v5746 = vpop.permute.xlu0 %5745
        %5747 = vset.pattern.permute.xlu0 9
        %5748 = vperm.xlu0 %5747, %v1365
        %v5749 = vpop.permute.xlu0 %5748
        %5750 = vset.pattern.permute.xlu0 9
        %5751 = vperm.xlu0 %5750, %v1366
        %v5752 = vpop.permute.xlu0 %5751
        %5753 = vset.pattern.permute.xlu0 9
        %5754 = vperm.xlu0 %5753, %v1367
        %v5755 = vpop.permute.xlu0 %5754
        %5756 = vset.pattern.permute.xlu0 9
        %5757 = vperm.xlu0 %5756, %v1368
        %v5758 = vpop.permute.xlu0 %5757
        %5759 = vset.pattern.permute.xlu0 9
        %5760 = vperm.xlu0 %5759, %v1369
        %v5761 = vpop.permute.xlu0 %5760
        %5762 = vset.pattern.permute.xlu0 9
        %5763 = vperm.xlu0 %5762, %v1370
        %v5764 = vpop.permute.xlu0 %5763
        %5765 = vset.pattern.permute.xlu0 9
        %5766 = vperm.xlu0 %5765, %v1371
        %v5767 = vpop.permute.xlu0 %5766
        %5768 = vset.pattern.permute.xlu0 9
        %5769 = vperm.xlu0 %5768, %v1372
        %v5770 = vpop.permute.xlu0 %5769
        %5771 = vset.pattern.permute.xlu0 9
        %5772 = vperm.xlu0 %5771, %v1373
        %v5773 = vpop.permute.xlu0 %5772
        %5774 = vset.pattern.permute.xlu0 9
        %5775 = vperm.xlu0 %5774, %v1374
        %v5776 = vpop.permute.xlu0 %5775
        %5777 = vset.pattern.permute.xlu0 9
        %5778 = vperm.xlu0 %5777, %v1375
        %v5779 = vpop.permute.xlu0 %5778
        %5780 = vset.pattern.permute.xlu0 9
        %5781 = vperm.xlu0 %5780, %v1376
        %v5782 = vpop.permute.xlu0 %5781
        %5783 = vset.pattern.permute.xlu0 9
        %5784 = vperm.xlu0 %5783, %v1377
        %v5785 = vpop.permute.xlu0 %5784
        %5786 = vset.pattern.permute.xlu0 9
        %5787 = vperm.xlu0 %5786, %v1378
        %v5788 = vpop.permute.xlu0 %5787
        %5789 = vset.pattern.permute.xlu0 9
        %5790 = vperm.xlu0 %5789, %v1379
        %v5791 = vpop.permute.xlu0 %5790
        %5792 = vset.pattern.permute.xlu0 9
        %5793 = vperm.xlu0 %5792, %v1380
        %v5794 = vpop.permute.xlu0 %5793
        %5795 = vset.pattern.permute.xlu0 9
        %5796 = vperm.xlu0 %5795, %v1381
        %v5797 = vpop.permute.xlu0 %5796
        %vm5798 = vcmp.eq.s32.totalorder %v990, %v5704
        %vm5799 = vcmp.eq.s32.totalorder %v991, %v5704
        %vm5800 = vcmp.eq.s32.totalorder %v992, %v5704
        %vm5801 = vcmp.eq.s32.totalorder %v993, %v5704
        %vm5802 = vcmp.eq.s32.totalorder %v990, %v5707
        %vm5803 = vcmp.eq.s32.totalorder %v991, %v5707
        %vm5804 = vcmp.eq.s32.totalorder %v992, %v5707
        %vm5805 = vcmp.eq.s32.totalorder %v993, %v5707
        %vm5806 = vcmp.eq.s32.totalorder %v990, %v5710
        %vm5807 = vcmp.eq.s32.totalorder %v991, %v5710
        %vm5808 = vcmp.eq.s32.totalorder %v992, %v5710
        %vm5809 = vcmp.eq.s32.totalorder %v993, %v5710
        %vm5810 = vcmp.eq.s32.totalorder %v990, %v5713
        %vm5811 = vcmp.eq.s32.totalorder %v991, %v5713
        %vm5812 = vcmp.eq.s32.totalorder %v992, %v5713
        %vm5813 = vcmp.eq.s32.totalorder %v993, %v5713
        %vm5814 = vcmp.eq.s32.totalorder %v990, %v5716
        %vm5815 = vcmp.eq.s32.totalorder %v991, %v5716
        %vm5816 = vcmp.eq.s32.totalorder %v992, %v5716
        %vm5817 = vcmp.eq.s32.totalorder %v993, %v5716
        %vm5818 = vcmp.eq.s32.totalorder %v990, %v5719
        %vm5819 = vcmp.eq.s32.totalorder %v991, %v5719
        %vm5820 = vcmp.eq.s32.totalorder %v992, %v5719
        %vm5821 = vcmp.eq.s32.totalorder %v993, %v5719
        %vm5822 = vcmp.eq.s32.totalorder %v990, %v5722
        %vm5823 = vcmp.eq.s32.totalorder %v991, %v5722
        %vm5824 = vcmp.eq.s32.totalorder %v992, %v5722
        %vm5825 = vcmp.eq.s32.totalorder %v993, %v5722
        %vm5826 = vcmp.eq.s32.totalorder %v990, %v5725
        %vm5827 = vcmp.eq.s32.totalorder %v991, %v5725
        %vm5828 = vcmp.eq.s32.totalorder %v992, %v5725
        %vm5829 = vcmp.eq.s32.totalorder %v993, %v5725
        %vm5830 = vcmp.eq.s32.totalorder %v990, %v5728
        %vm5831 = vcmp.eq.s32.totalorder %v991, %v5728
        %vm5832 = vcmp.eq.s32.totalorder %v992, %v5728
        %vm5833 = vcmp.eq.s32.totalorder %v993, %v5728
        %vm5834 = vcmp.eq.s32.totalorder %v990, %v5731
        %vm5835 = vcmp.eq.s32.totalorder %v991, %v5731
        %vm5836 = vcmp.eq.s32.totalorder %v992, %v5731
        %vm5837 = vcmp.eq.s32.totalorder %v993, %v5731
        %vm5838 = vcmp.eq.s32.totalorder %v990, %v5734
        %vm5839 = vcmp.eq.s32.totalorder %v991, %v5734
        %vm5840 = vcmp.eq.s32.totalorder %v992, %v5734
        %vm5841 = vcmp.eq.s32.totalorder %v993, %v5734
        %vm5842 = vcmp.eq.s32.totalorder %v990, %v5737
        %vm5843 = vcmp.eq.s32.totalorder %v991, %v5737
        %vm5844 = vcmp.eq.s32.totalorder %v992, %v5737
        %vm5845 = vcmp.eq.s32.totalorder %v993, %v5737
        %vm5846 = vcmp.eq.s32.totalorder %v990, %v5740
        %vm5847 = vcmp.eq.s32.totalorder %v991, %v5740
        %vm5848 = vcmp.eq.s32.totalorder %v992, %v5740
        %vm5849 = vcmp.eq.s32.totalorder %v993, %v5740
        %vm5850 = vcmp.eq.s32.totalorder %v990, %v5743
        %vm5851 = vcmp.eq.s32.totalorder %v991, %v5743
        %vm5852 = vcmp.eq.s32.totalorder %v992, %v5743
        %vm5853 = vcmp.eq.s32.totalorder %v993, %v5743
        %vm5854 = vcmp.eq.s32.totalorder %v990, %v5746
        %vm5855 = vcmp.eq.s32.totalorder %v991, %v5746
        %vm5856 = vcmp.eq.s32.totalorder %v992, %v5746
        %vm5857 = vcmp.eq.s32.totalorder %v993, %v5746
        %vm5858 = vcmp.eq.s32.totalorder %v990, %v5749
        %vm5859 = vcmp.eq.s32.totalorder %v991, %v5749
        %vm5860 = vcmp.eq.s32.totalorder %v992, %v5749
        %vm5861 = vcmp.eq.s32.totalorder %v993, %v5749
        %vm5862 = vcmp.eq.s32.totalorder %v990, %v5752
        %vm5863 = vcmp.eq.s32.totalorder %v991, %v5752
        %vm5864 = vcmp.eq.s32.totalorder %v992, %v5752
        %vm5865 = vcmp.eq.s32.totalorder %v993, %v5752
        %vm5866 = vcmp.eq.s32.totalorder %v990, %v5755
        %vm5867 = vcmp.eq.s32.totalorder %v991, %v5755
        %vm5868 = vcmp.eq.s32.totalorder %v992, %v5755
        %vm5869 = vcmp.eq.s32.totalorder %v993, %v5755
        %vm5870 = vcmp.eq.s32.totalorder %v990, %v5758
        %vm5871 = vcmp.eq.s32.totalorder %v991, %v5758
        %vm5872 = vcmp.eq.s32.totalorder %v992, %v5758
        %vm5873 = vcmp.eq.s32.totalorder %v993, %v5758
        %vm5874 = vcmp.eq.s32.totalorder %v990, %v5761
        %vm5875 = vcmp.eq.s32.totalorder %v991, %v5761
        %vm5876 = vcmp.eq.s32.totalorder %v992, %v5761
        %vm5877 = vcmp.eq.s32.totalorder %v993, %v5761
        %vm5878 = vcmp.eq.s32.totalorder %v990, %v5764
        %vm5879 = vcmp.eq.s32.totalorder %v991, %v5764
        %vm5880 = vcmp.eq.s32.totalorder %v992, %v5764
        %vm5881 = vcmp.eq.s32.totalorder %v993, %v5764
        %vm5882 = vcmp.eq.s32.totalorder %v990, %v5767
        %vm5883 = vcmp.eq.s32.totalorder %v991, %v5767
        %vm5884 = vcmp.eq.s32.totalorder %v992, %v5767
        %vm5885 = vcmp.eq.s32.totalorder %v993, %v5767
        %vm5886 = vcmp.eq.s32.totalorder %v990, %v5770
        %vm5887 = vcmp.eq.s32.totalorder %v991, %v5770
        %vm5888 = vcmp.eq.s32.totalorder %v992, %v5770
        %vm5889 = vcmp.eq.s32.totalorder %v993, %v5770
        %vm5890 = vcmp.eq.s32.totalorder %v990, %v5773
        %vm5891 = vcmp.eq.s32.totalorder %v991, %v5773
        %vm5892 = vcmp.eq.s32.totalorder %v992, %v5773
        %vm5893 = vcmp.eq.s32.totalorder %v993, %v5773
        %vm5894 = vcmp.eq.s32.totalorder %v990, %v5776
        %vm5895 = vcmp.eq.s32.totalorder %v991, %v5776
        %vm5896 = vcmp.eq.s32.totalorder %v992, %v5776
        %vm5897 = vcmp.eq.s32.totalorder %v993, %v5776
        %vm5898 = vcmp.eq.s32.totalorder %v990, %v5779
        %vm5899 = vcmp.eq.s32.totalorder %v991, %v5779
        %vm5900 = vcmp.eq.s32.totalorder %v992, %v5779
        %vm5901 = vcmp.eq.s32.totalorder %v993, %v5779
        %vm5902 = vcmp.eq.s32.totalorder %v990, %v5782
        %vm5903 = vcmp.eq.s32.totalorder %v991, %v5782
        %vm5904 = vcmp.eq.s32.totalorder %v992, %v5782
        %vm5905 = vcmp.eq.s32.totalorder %v993, %v5782
        %vm5906 = vcmp.eq.s32.totalorder %v990, %v5785
        %vm5907 = vcmp.eq.s32.totalorder %v991, %v5785
        %vm5908 = vcmp.eq.s32.totalorder %v992, %v5785
        %vm5909 = vcmp.eq.s32.totalorder %v993, %v5785
        %vm5910 = vcmp.eq.s32.totalorder %v990, %v5788
        %vm5911 = vcmp.eq.s32.totalorder %v991, %v5788
        %vm5912 = vcmp.eq.s32.totalorder %v992, %v5788
        %vm5913 = vcmp.eq.s32.totalorder %v993, %v5788
        %vm5914 = vcmp.eq.s32.totalorder %v990, %v5791
        %vm5915 = vcmp.eq.s32.totalorder %v991, %v5791
        %vm5916 = vcmp.eq.s32.totalorder %v992, %v5791
        %vm5917 = vcmp.eq.s32.totalorder %v993, %v5791
        %vm5918 = vcmp.eq.s32.totalorder %v990, %v5794
        %vm5919 = vcmp.eq.s32.totalorder %v991, %v5794
        %vm5920 = vcmp.eq.s32.totalorder %v992, %v5794
        %vm5921 = vcmp.eq.s32.totalorder %v993, %v5794
        %vm5922 = vcmp.eq.s32.totalorder %v990, %v5797
        %vm5923 = vcmp.eq.s32.totalorder %v991, %v5797
        %vm5924 = vcmp.eq.s32.totalorder %v992, %v5797
        %vm5925 = vcmp.eq.s32.totalorder %v993, %v5797
        %v5926 = vsel %vm5798, 1, 0
        %v5927 = vsel %vm5799, 1, 0
        %v5928 = vsel %vm5800, 1, 0
        %v5929 = vsel %vm5801, 1, 0
        %v5930 = vsel %vm5802, 1, 0
        %v5931 = vsel %vm5803, 1, 0
        %v5932 = vsel %vm5804, 1, 0
        %v5933 = vsel %vm5805, 1, 0
        %v5934 = vsel %vm5806, 1, 0
        %v5935 = vsel %vm5807, 1, 0
        %v5936 = vsel %vm5808, 1, 0
        %v5937 = vsel %vm5809, 1, 0
        %v5938 = vsel %vm5810, 1, 0
        %v5939 = vsel %vm5811, 1, 0
        %v5940 = vsel %vm5812, 1, 0
        %v5941 = vsel %vm5813, 1, 0
        %v5942 = vsel %vm5814, 1, 0
        %v5943 = vsel %vm5815, 1, 0
        %v5944 = vsel %vm5816, 1, 0
        %v5945 = vsel %vm5817, 1, 0
        %v5946 = vsel %vm5818, 1, 0
        %v5947 = vsel %vm5819, 1, 0
        %v5948 = vsel %vm5820, 1, 0
        %v5949 = vsel %vm5821, 1, 0
        %v5950 = vsel %vm5822, 1, 0
        %v5951 = vsel %vm5823, 1, 0
        %v5952 = vsel %vm5824, 1, 0
        %v5953 = vsel %vm5825, 1, 0
        %v5954 = vsel %vm5826, 1, 0
        %v5955 = vsel %vm5827, 1, 0
        %v5956 = vsel %vm5828, 1, 0
        %v5957 = vsel %vm5829, 1, 0
        %v5958 = vsel %vm5830, 1, 0
        %v5959 = vsel %vm5831, 1, 0
        %v5960 = vsel %vm5832, 1, 0
        %v5961 = vsel %vm5833, 1, 0
        %v5962 = vsel %vm5834, 1, 0
        %v5963 = vsel %vm5835, 1, 0
        %v5964 = vsel %vm5836, 1, 0
        %v5965 = vsel %vm5837, 1, 0
        %v5966 = vsel %vm5838, 1, 0
        %v5967 = vsel %vm5839, 1, 0
        %v5968 = vsel %vm5840, 1, 0
        %v5969 = vsel %vm5841, 1, 0
        %v5970 = vsel %vm5842, 1, 0
        %v5971 = vsel %vm5843, 1, 0
        %v5972 = vsel %vm5844, 1, 0
        %v5973 = vsel %vm5845, 1, 0
        %v5974 = vsel %vm5846, 1, 0
        %v5975 = vsel %vm5847, 1, 0
        %v5976 = vsel %vm5848, 1, 0
        %v5977 = vsel %vm5849, 1, 0
        %v5978 = vsel %vm5850, 1, 0
        %v5979 = vsel %vm5851, 1, 0
        %v5980 = vsel %vm5852, 1, 0
        %v5981 = vsel %vm5853, 1, 0
        %v5982 = vsel %vm5854, 1, 0
        %v5983 = vsel %vm5855, 1, 0
        %v5984 = vsel %vm5856, 1, 0
        %v5985 = vsel %vm5857, 1, 0
        %v5986 = vsel %vm5858, 1, 0
        %v5987 = vsel %vm5859, 1, 0
        %v5988 = vsel %vm5860, 1, 0
        %v5989 = vsel %vm5861, 1, 0
        %v5990 = vsel %vm5862, 1, 0
        %v5991 = vsel %vm5863, 1, 0
        %v5992 = vsel %vm5864, 1, 0
        %v5993 = vsel %vm5865, 1, 0
        %v5994 = vsel %vm5866, 1, 0
        %v5995 = vsel %vm5867, 1, 0
        %v5996 = vsel %vm5868, 1, 0
        %v5997 = vsel %vm5869, 1, 0
        %v5998 = vsel %vm5870, 1, 0
        %v5999 = vsel %vm5871, 1, 0
        %v6000 = vsel %vm5872, 1, 0
        %v6001 = vsel %vm5873, 1, 0
        %v6002 = vsel %vm5874, 1, 0
        %v6003 = vsel %vm5875, 1, 0
        %v6004 = vsel %vm5876, 1, 0
        %v6005 = vsel %vm5877, 1, 0
        %v6006 = vsel %vm5878, 1, 0
        %v6007 = vsel %vm5879, 1, 0
        %v6008 = vsel %vm5880, 1, 0
        %v6009 = vsel %vm5881, 1, 0
        %v6010 = vsel %vm5882, 1, 0
        %v6011 = vsel %vm5883, 1, 0
        %v6012 = vsel %vm5884, 1, 0
        %v6013 = vsel %vm5885, 1, 0
        %v6014 = vsel %vm5886, 1, 0
        %v6015 = vsel %vm5887, 1, 0
        %v6016 = vsel %vm5888, 1, 0
        %v6017 = vsel %vm5889, 1, 0
        %v6018 = vsel %vm5890, 1, 0
        %v6019 = vsel %vm5891, 1, 0
        %v6020 = vsel %vm5892, 1, 0
        %v6021 = vsel %vm5893, 1, 0
        %v6022 = vsel %vm5894, 1, 0
        %v6023 = vsel %vm5895, 1, 0
        %v6024 = vsel %vm5896, 1, 0
        %v6025 = vsel %vm5897, 1, 0
        %v6026 = vsel %vm5898, 1, 0
        %v6027 = vsel %vm5899, 1, 0
        %v6028 = vsel %vm5900, 1, 0
        %v6029 = vsel %vm5901, 1, 0
        %v6030 = vsel %vm5902, 1, 0
        %v6031 = vsel %vm5903, 1, 0
        %v6032 = vsel %vm5904, 1, 0
        %v6033 = vsel %vm5905, 1, 0
        %v6034 = vsel %vm5906, 1, 0
        %v6035 = vsel %vm5907, 1, 0
        %v6036 = vsel %vm5908, 1, 0
        %v6037 = vsel %vm5909, 1, 0
        %v6038 = vsel %vm5910, 1, 0
        %v6039 = vsel %vm5911, 1, 0
        %v6040 = vsel %vm5912, 1, 0
        %v6041 = vsel %vm5913, 1, 0
        %v6042 = vsel %vm5914, 1, 0
        %v6043 = vsel %vm5915, 1, 0
        %v6044 = vsel %vm5916, 1, 0
        %v6045 = vsel %vm5917, 1, 0
        %v6046 = vsel %vm5918, 1, 0
        %v6047 = vsel %vm5919, 1, 0
        %v6048 = vsel %vm5920, 1, 0
        %v6049 = vsel %vm5921, 1, 0
        %v6050 = vsel %vm5922, 1, 0
        %v6051 = vsel %vm5923, 1, 0
        %v6052 = vsel %vm5924, 1, 0
        %v6053 = vsel %vm5925, 1, 0
        %v6054 = vadd.s32 %v5574, %v5926
        %v6055 = vadd.s32 %v5575, %v5927
        %v6056 = vadd.s32 %v5576, %v5928
        %v6057 = vadd.s32 %v5577, %v5929
        %v6058 = vadd.s32 %v5578, %v5930
        %v6059 = vadd.s32 %v5579, %v5931
        %v6060 = vadd.s32 %v5580, %v5932
        %v6061 = vadd.s32 %v5581, %v5933
        %v6062 = vadd.s32 %v5582, %v5934
        %v6063 = vadd.s32 %v5583, %v5935
        %v6064 = vadd.s32 %v5584, %v5936
        %v6065 = vadd.s32 %v5585, %v5937
        %v6066 = vadd.s32 %v5586, %v5938
        %v6067 = vadd.s32 %v5587, %v5939
        %v6068 = vadd.s32 %v5588, %v5940
        %v6069 = vadd.s32 %v5589, %v5941
        %v6070 = vadd.s32 %v5590, %v5942
        %v6071 = vadd.s32 %v5591, %v5943
        %v6072 = vadd.s32 %v5592, %v5944
        %v6073 = vadd.s32 %v5593, %v5945
        %v6074 = vadd.s32 %v5594, %v5946
        %v6075 = vadd.s32 %v5595, %v5947
        %v6076 = vadd.s32 %v5596, %v5948
        %v6077 = vadd.s32 %v5597, %v5949
        %v6078 = vadd.s32 %v5598, %v5950
        %v6079 = vadd.s32 %v5599, %v5951
        %v6080 = vadd.s32 %v5600, %v5952
        %v6081 = vadd.s32 %v5601, %v5953
        %v6082 = vadd.s32 %v5602, %v5954
        %v6083 = vadd.s32 %v5603, %v5955
        %v6084 = vadd.s32 %v5604, %v5956
        %v6085 = vadd.s32 %v5605, %v5957
        %v6086 = vadd.s32 %v5606, %v5958
        %v6087 = vadd.s32 %v5607, %v5959
        %v6088 = vadd.s32 %v5608, %v5960
        %v6089 = vadd.s32 %v5609, %v5961
        %v6090 = vadd.s32 %v5610, %v5962
        %v6091 = vadd.s32 %v5611, %v5963
        %v6092 = vadd.s32 %v5612, %v5964
        %v6093 = vadd.s32 %v5613, %v5965
        %v6094 = vadd.s32 %v5614, %v5966
        %v6095 = vadd.s32 %v5615, %v5967
        %v6096 = vadd.s32 %v5616, %v5968
        %v6097 = vadd.s32 %v5617, %v5969
        %v6098 = vadd.s32 %v5618, %v5970
        %v6099 = vadd.s32 %v5619, %v5971
        %v6100 = vadd.s32 %v5620, %v5972
        %v6101 = vadd.s32 %v5621, %v5973
        %v6102 = vadd.s32 %v5622, %v5974
        %v6103 = vadd.s32 %v5623, %v5975
        %v6104 = vadd.s32 %v5624, %v5976
        %v6105 = vadd.s32 %v5625, %v5977
        %v6106 = vadd.s32 %v5626, %v5978
        %v6107 = vadd.s32 %v5627, %v5979
        %v6108 = vadd.s32 %v5628, %v5980
        %v6109 = vadd.s32 %v5629, %v5981
        %v6110 = vadd.s32 %v5630, %v5982
        %v6111 = vadd.s32 %v5631, %v5983
        %v6112 = vadd.s32 %v5632, %v5984
        %v6113 = vadd.s32 %v5633, %v5985
        %v6114 = vadd.s32 %v5634, %v5986
        %v6115 = vadd.s32 %v5635, %v5987
        %v6116 = vadd.s32 %v5636, %v5988
        %v6117 = vadd.s32 %v5637, %v5989
        %v6118 = vadd.s32 %v5638, %v5990
        %v6119 = vadd.s32 %v5639, %v5991
        %v6120 = vadd.s32 %v5640, %v5992
        %v6121 = vadd.s32 %v5641, %v5993
        %v6122 = vadd.s32 %v5642, %v5994
        %v6123 = vadd.s32 %v5643, %v5995
        %v6124 = vadd.s32 %v5644, %v5996
        %v6125 = vadd.s32 %v5645, %v5997
        %v6126 = vadd.s32 %v5646, %v5998
        %v6127 = vadd.s32 %v5647, %v5999
        %v6128 = vadd.s32 %v5648, %v6000
        %v6129 = vadd.s32 %v5649, %v6001
        %v6130 = vadd.s32 %v5650, %v6002
        %v6131 = vadd.s32 %v5651, %v6003
        %v6132 = vadd.s32 %v5652, %v6004
        %v6133 = vadd.s32 %v5653, %v6005
        %v6134 = vadd.s32 %v5654, %v6006
        %v6135 = vadd.s32 %v5655, %v6007
        %v6136 = vadd.s32 %v5656, %v6008
        %v6137 = vadd.s32 %v5657, %v6009
        %v6138 = vadd.s32 %v5658, %v6010
        %v6139 = vadd.s32 %v5659, %v6011
        %v6140 = vadd.s32 %v5660, %v6012
        %v6141 = vadd.s32 %v5661, %v6013
        %v6142 = vadd.s32 %v5662, %v6014
        %v6143 = vadd.s32 %v5663, %v6015
        %v6144 = vadd.s32 %v5664, %v6016
        %v6145 = vadd.s32 %v5665, %v6017
        %v6146 = vadd.s32 %v5666, %v6018
        %v6147 = vadd.s32 %v5667, %v6019
        %v6148 = vadd.s32 %v5668, %v6020
        %v6149 = vadd.s32 %v5669, %v6021
        %v6150 = vadd.s32 %v5670, %v6022
        %v6151 = vadd.s32 %v5671, %v6023
        %v6152 = vadd.s32 %v5672, %v6024
        %v6153 = vadd.s32 %v5673, %v6025
        %v6154 = vadd.s32 %v5674, %v6026
        %v6155 = vadd.s32 %v5675, %v6027
        %v6156 = vadd.s32 %v5676, %v6028
        %v6157 = vadd.s32 %v5677, %v6029
        %v6158 = vadd.s32 %v5678, %v6030
        %v6159 = vadd.s32 %v5679, %v6031
        %v6160 = vadd.s32 %v5680, %v6032
        %v6161 = vadd.s32 %v5681, %v6033
        %v6162 = vadd.s32 %v5682, %v6034
        %v6163 = vadd.s32 %v5683, %v6035
        %v6164 = vadd.s32 %v5684, %v6036
        %v6165 = vadd.s32 %v5685, %v6037
        %v6166 = vadd.s32 %v5686, %v6038
        %v6167 = vadd.s32 %v5687, %v6039
        %v6168 = vadd.s32 %v5688, %v6040
        %v6169 = vadd.s32 %v5689, %v6041
        %v6170 = vadd.s32 %v5690, %v6042
        %v6171 = vadd.s32 %v5691, %v6043
        %v6172 = vadd.s32 %v5692, %v6044
        %v6173 = vadd.s32 %v5693, %v6045
        %v6174 = vadd.s32 %v5694, %v6046
        %v6175 = vadd.s32 %v5695, %v6047
        %v6176 = vadd.s32 %v5696, %v6048
        %v6177 = vadd.s32 %v5697, %v6049
        %v6178 = vadd.s32 %v5698, %v6050
        %v6179 = vadd.s32 %v5699, %v6051
        %v6180 = vadd.s32 %v5700, %v6052
        %v6181 = vadd.s32 %v5701, %v6053
        %vm6182 = vcmp.gt.s32.totalorder %v6054, 0
        %vm6183 = vcmp.gt.s32.totalorder %v6055, 0
        %vm6184 = vcmp.gt.s32.totalorder %v6056, 0
        %vm6185 = vcmp.gt.s32.totalorder %v6057, 0
        %vm6186 = vcmp.gt.s32.totalorder %v6058, 0
        %vm6187 = vcmp.gt.s32.totalorder %v6059, 0
        %vm6188 = vcmp.gt.s32.totalorder %v6060, 0
        %vm6189 = vcmp.gt.s32.totalorder %v6061, 0
        %vm6190 = vcmp.gt.s32.totalorder %v6062, 0
        %vm6191 = vcmp.gt.s32.totalorder %v6063, 0
        %vm6192 = vcmp.gt.s32.totalorder %v6064, 0
        %vm6193 = vcmp.gt.s32.totalorder %v6065, 0
        %vm6194 = vcmp.gt.s32.totalorder %v6066, 0
        %vm6195 = vcmp.gt.s32.totalorder %v6067, 0
        %vm6196 = vcmp.gt.s32.totalorder %v6068, 0
        %vm6197 = vcmp.gt.s32.totalorder %v6069, 0
        %vm6198 = vcmp.gt.s32.totalorder %v6070, 0
        %vm6199 = vcmp.gt.s32.totalorder %v6071, 0
        %vm6200 = vcmp.gt.s32.totalorder %v6072, 0
        %vm6201 = vcmp.gt.s32.totalorder %v6073, 0
        %vm6202 = vcmp.gt.s32.totalorder %v6074, 0
        %vm6203 = vcmp.gt.s32.totalorder %v6075, 0
        %vm6204 = vcmp.gt.s32.totalorder %v6076, 0
        %vm6205 = vcmp.gt.s32.totalorder %v6077, 0
        %vm6206 = vcmp.gt.s32.totalorder %v6078, 0
        %vm6207 = vcmp.gt.s32.totalorder %v6079, 0
        %vm6208 = vcmp.gt.s32.totalorder %v6080, 0
        %vm6209 = vcmp.gt.s32.totalorder %v6081, 0
        %vm6210 = vcmp.gt.s32.totalorder %v6082, 0
        %vm6211 = vcmp.gt.s32.totalorder %v6083, 0
        %vm6212 = vcmp.gt.s32.totalorder %v6084, 0
        %vm6213 = vcmp.gt.s32.totalorder %v6085, 0
        %vm6214 = vcmp.gt.s32.totalorder %v6086, 0
        %vm6215 = vcmp.gt.s32.totalorder %v6087, 0
        %vm6216 = vcmp.gt.s32.totalorder %v6088, 0
        %vm6217 = vcmp.gt.s32.totalorder %v6089, 0
        %vm6218 = vcmp.gt.s32.totalorder %v6090, 0
        %vm6219 = vcmp.gt.s32.totalorder %v6091, 0
        %vm6220 = vcmp.gt.s32.totalorder %v6092, 0
        %vm6221 = vcmp.gt.s32.totalorder %v6093, 0
        %vm6222 = vcmp.gt.s32.totalorder %v6094, 0
        %vm6223 = vcmp.gt.s32.totalorder %v6095, 0
        %vm6224 = vcmp.gt.s32.totalorder %v6096, 0
        %vm6225 = vcmp.gt.s32.totalorder %v6097, 0
        %vm6226 = vcmp.gt.s32.totalorder %v6098, 0
        %vm6227 = vcmp.gt.s32.totalorder %v6099, 0
        %vm6228 = vcmp.gt.s32.totalorder %v6100, 0
        %vm6229 = vcmp.gt.s32.totalorder %v6101, 0
        %vm6230 = vcmp.gt.s32.totalorder %v6102, 0
        %vm6231 = vcmp.gt.s32.totalorder %v6103, 0
        %vm6232 = vcmp.gt.s32.totalorder %v6104, 0
        %vm6233 = vcmp.gt.s32.totalorder %v6105, 0
        %vm6234 = vcmp.gt.s32.totalorder %v6106, 0
        %vm6235 = vcmp.gt.s32.totalorder %v6107, 0
        %vm6236 = vcmp.gt.s32.totalorder %v6108, 0
        %vm6237 = vcmp.gt.s32.totalorder %v6109, 0
        %vm6238 = vcmp.gt.s32.totalorder %v6110, 0
        %vm6239 = vcmp.gt.s32.totalorder %v6111, 0
        %vm6240 = vcmp.gt.s32.totalorder %v6112, 0
        %vm6241 = vcmp.gt.s32.totalorder %v6113, 0
        %vm6242 = vcmp.gt.s32.totalorder %v6114, 0
        %vm6243 = vcmp.gt.s32.totalorder %v6115, 0
        %vm6244 = vcmp.gt.s32.totalorder %v6116, 0
        %vm6245 = vcmp.gt.s32.totalorder %v6117, 0
        %vm6246 = vcmp.gt.s32.totalorder %v6118, 0
        %vm6247 = vcmp.gt.s32.totalorder %v6119, 0
        %vm6248 = vcmp.gt.s32.totalorder %v6120, 0
        %vm6249 = vcmp.gt.s32.totalorder %v6121, 0
        %vm6250 = vcmp.gt.s32.totalorder %v6122, 0
        %vm6251 = vcmp.gt.s32.totalorder %v6123, 0
        %vm6252 = vcmp.gt.s32.totalorder %v6124, 0
        %vm6253 = vcmp.gt.s32.totalorder %v6125, 0
        %vm6254 = vcmp.gt.s32.totalorder %v6126, 0
        %vm6255 = vcmp.gt.s32.totalorder %v6127, 0
        %vm6256 = vcmp.gt.s32.totalorder %v6128, 0
        %vm6257 = vcmp.gt.s32.totalorder %v6129, 0
        %vm6258 = vcmp.gt.s32.totalorder %v6130, 0
        %vm6259 = vcmp.gt.s32.totalorder %v6131, 0
        %vm6260 = vcmp.gt.s32.totalorder %v6132, 0
        %vm6261 = vcmp.gt.s32.totalorder %v6133, 0
        %vm6262 = vcmp.gt.s32.totalorder %v6134, 0
        %vm6263 = vcmp.gt.s32.totalorder %v6135, 0
        %vm6264 = vcmp.gt.s32.totalorder %v6136, 0
        %vm6265 = vcmp.gt.s32.totalorder %v6137, 0
        %vm6266 = vcmp.gt.s32.totalorder %v6138, 0
        %vm6267 = vcmp.gt.s32.totalorder %v6139, 0
        %vm6268 = vcmp.gt.s32.totalorder %v6140, 0
        %vm6269 = vcmp.gt.s32.totalorder %v6141, 0
        %vm6270 = vcmp.gt.s32.totalorder %v6142, 0
        %vm6271 = vcmp.gt.s32.totalorder %v6143, 0
        %vm6272 = vcmp.gt.s32.totalorder %v6144, 0
        %vm6273 = vcmp.gt.s32.totalorder %v6145, 0
        %vm6274 = vcmp.gt.s32.totalorder %v6146, 0
        %vm6275 = vcmp.gt.s32.totalorder %v6147, 0
        %vm6276 = vcmp.gt.s32.totalorder %v6148, 0
        %vm6277 = vcmp.gt.s32.totalorder %v6149, 0
        %vm6278 = vcmp.gt.s32.totalorder %v6150, 0
        %vm6279 = vcmp.gt.s32.totalorder %v6151, 0
        %vm6280 = vcmp.gt.s32.totalorder %v6152, 0
        %vm6281 = vcmp.gt.s32.totalorder %v6153, 0
        %vm6282 = vcmp.gt.s32.totalorder %v6154, 0
        %vm6283 = vcmp.gt.s32.totalorder %v6155, 0
        %vm6284 = vcmp.gt.s32.totalorder %v6156, 0
        %vm6285 = vcmp.gt.s32.totalorder %v6157, 0
        %vm6286 = vcmp.gt.s32.totalorder %v6158, 0
        %vm6287 = vcmp.gt.s32.totalorder %v6159, 0
        %vm6288 = vcmp.gt.s32.totalorder %v6160, 0
        %vm6289 = vcmp.gt.s32.totalorder %v6161, 0
        %vm6290 = vcmp.gt.s32.totalorder %v6162, 0
        %vm6291 = vcmp.gt.s32.totalorder %v6163, 0
        %vm6292 = vcmp.gt.s32.totalorder %v6164, 0
        %vm6293 = vcmp.gt.s32.totalorder %v6165, 0
        %vm6294 = vcmp.gt.s32.totalorder %v6166, 0
        %vm6295 = vcmp.gt.s32.totalorder %v6167, 0
        %vm6296 = vcmp.gt.s32.totalorder %v6168, 0
        %vm6297 = vcmp.gt.s32.totalorder %v6169, 0
        %vm6298 = vcmp.gt.s32.totalorder %v6170, 0
        %vm6299 = vcmp.gt.s32.totalorder %v6171, 0
        %vm6300 = vcmp.gt.s32.totalorder %v6172, 0
        %vm6301 = vcmp.gt.s32.totalorder %v6173, 0
        %vm6302 = vcmp.gt.s32.totalorder %v6174, 0
        %vm6303 = vcmp.gt.s32.totalorder %v6175, 0
        %vm6304 = vcmp.gt.s32.totalorder %v6176, 0
        %vm6305 = vcmp.gt.s32.totalorder %v6177, 0
        %vm6306 = vcmp.gt.s32.totalorder %v6178, 0
        %vm6307 = vcmp.gt.s32.totalorder %v6179, 0
        %vm6308 = vcmp.gt.s32.totalorder %v6180, 0
        %vm6309 = vcmp.gt.s32.totalorder %v6181, 0
        %v6310 = vsel %vm6182, %v555, -inf
        %v6311 = vsel %vm6183, %v668, -inf
        %v6312 = vsel %vm6184, %v781, -inf
        %v6313 = vsel %vm6185, %v894, -inf
        %v6314 = vsel %vm6186, %v558, -inf
        %v6315 = vsel %vm6187, %v671, -inf
        %v6316 = vsel %vm6188, %v784, -inf
        %v6317 = vsel %vm6189, %v897, -inf
        %v6318 = vsel %vm6190, %v561, -inf
        %v6319 = vsel %vm6191, %v674, -inf
        %v6320 = vsel %vm6192, %v787, -inf
        %v6321 = vsel %vm6193, %v900, -inf
        %v6322 = vsel %vm6194, %v564, -inf
        %v6323 = vsel %vm6195, %v677, -inf
        %v6324 = vsel %vm6196, %v790, -inf
        %v6325 = vsel %vm6197, %v903, -inf
        %v6326 = vsel %vm6198, %v567, -inf
        %v6327 = vsel %vm6199, %v680, -inf
        %v6328 = vsel %vm6200, %v793, -inf
        %v6329 = vsel %vm6201, %v906, -inf
        %v6330 = vsel %vm6202, %v570, -inf
        %v6331 = vsel %vm6203, %v683, -inf
        %v6332 = vsel %vm6204, %v796, -inf
        %v6333 = vsel %vm6205, %v909, -inf
        %v6334 = vsel %vm6206, %v573, -inf
        %v6335 = vsel %vm6207, %v686, -inf
        %v6336 = vsel %vm6208, %v799, -inf
        %v6337 = vsel %vm6209, %v912, -inf
        %v6338 = vsel %vm6210, %v576, -inf
        %v6339 = vsel %vm6211, %v689, -inf
        %v6340 = vsel %vm6212, %v802, -inf
        %v6341 = vsel %vm6213, %v915, -inf
        %v6342 = vsel %vm6214, %v579, -inf
        %v6343 = vsel %vm6215, %v692, -inf
        %v6344 = vsel %vm6216, %v805, -inf
        %v6345 = vsel %vm6217, %v918, -inf
        %v6346 = vsel %vm6218, %v582, -inf
        %v6347 = vsel %vm6219, %v695, -inf
        %v6348 = vsel %vm6220, %v808, -inf
        %v6349 = vsel %vm6221, %v921, -inf
        %v6350 = vsel %vm6222, %v585, -inf
        %v6351 = vsel %vm6223, %v698, -inf
        %v6352 = vsel %vm6224, %v811, -inf
        %v6353 = vsel %vm6225, %v924, -inf
        %v6354 = vsel %vm6226, %v588, -inf
        %v6355 = vsel %vm6227, %v701, -inf
        %v6356 = vsel %vm6228, %v814, -inf
        %v6357 = vsel %vm6229, %v927, -inf
        %v6358 = vsel %vm6230, %v591, -inf
        %v6359 = vsel %vm6231, %v704, -inf
        %v6360 = vsel %vm6232, %v817, -inf
        %v6361 = vsel %vm6233, %v930, -inf
        %v6362 = vsel %vm6234, %v594, -inf
        %v6363 = vsel %vm6235, %v707, -inf
        %v6364 = vsel %vm6236, %v820, -inf
        %v6365 = vsel %vm6237, %v933, -inf
        %v6366 = vsel %vm6238, %v597, -inf
        %v6367 = vsel %vm6239, %v710, -inf
        %v6368 = vsel %vm6240, %v823, -inf
        %v6369 = vsel %vm6241, %v936, -inf
        %v6370 = vsel %vm6242, %v600, -inf
        %v6371 = vsel %vm6243, %v713, -inf
        %v6372 = vsel %vm6244, %v826, -inf
        %v6373 = vsel %vm6245, %v939, -inf
        %v6374 = vsel %vm6246, %v603, -inf
        %v6375 = vsel %vm6247, %v716, -inf
        %v6376 = vsel %vm6248, %v829, -inf
        %v6377 = vsel %vm6249, %v942, -inf
        %v6378 = vsel %vm6250, %v606, -inf
        %v6379 = vsel %vm6251, %v719, -inf
        %v6380 = vsel %vm6252, %v832, -inf
        %v6381 = vsel %vm6253, %v945, -inf
        %v6382 = vsel %vm6254, %v609, -inf
        %v6383 = vsel %vm6255, %v722, -inf
        %v6384 = vsel %vm6256, %v835, -inf
        %v6385 = vsel %vm6257, %v948, -inf
        %v6386 = vsel %vm6258, %v612, -inf
        %v6387 = vsel %vm6259, %v725, -inf
        %v6388 = vsel %vm6260, %v838, -inf
        %v6389 = vsel %vm6261, %v951, -inf
        %v6390 = vsel %vm6262, %v615, -inf
        %v6391 = vsel %vm6263, %v728, -inf
        %v6392 = vsel %vm6264, %v841, -inf
        %v6393 = vsel %vm6265, %v954, -inf
        %v6394 = vsel %vm6266, %v618, -inf
        %v6395 = vsel %vm6267, %v731, -inf
        %v6396 = vsel %vm6268, %v844, -inf
        %v6397 = vsel %vm6269, %v957, -inf
        %v6398 = vsel %vm6270, %v621, -inf
        %v6399 = vsel %vm6271, %v734, -inf
        %v6400 = vsel %vm6272, %v847, -inf
        %v6401 = vsel %vm6273, %v960, -inf
        %v6402 = vsel %vm6274, %v624, -inf
        %v6403 = vsel %vm6275, %v737, -inf
        %v6404 = vsel %vm6276, %v850, -inf
        %v6405 = vsel %vm6277, %v963, -inf
        %v6406 = vsel %vm6278, %v627, -inf
        %v6407 = vsel %vm6279, %v740, -inf
        %v6408 = vsel %vm6280, %v853, -inf
        %v6409 = vsel %vm6281, %v966, -inf
        %v6410 = vsel %vm6282, %v630, -inf
        %v6411 = vsel %vm6283, %v743, -inf
        %v6412 = vsel %vm6284, %v856, -inf
        %v6413 = vsel %vm6285, %v969, -inf
        %v6414 = vsel %vm6286, %v633, -inf
        %v6415 = vsel %vm6287, %v746, -inf
        %v6416 = vsel %vm6288, %v859, -inf
        %v6417 = vsel %vm6289, %v972, -inf
        %v6418 = vsel %vm6290, %v636, -inf
        %v6419 = vsel %vm6291, %v749, -inf
        %v6420 = vsel %vm6292, %v862, -inf
        %v6421 = vsel %vm6293, %v975, -inf
        %v6422 = vsel %vm6294, %v639, -inf
        %v6423 = vsel %vm6295, %v752, -inf
        %v6424 = vsel %vm6296, %v865, -inf
        %v6425 = vsel %vm6297, %v978, -inf
        %v6426 = vsel %vm6298, %v642, -inf
        %v6427 = vsel %vm6299, %v755, -inf
        %v6428 = vsel %vm6300, %v868, -inf
        %v6429 = vsel %vm6301, %v981, -inf
        %v6430 = vsel %vm6302, %v645, -inf
        %v6431 = vsel %vm6303, %v758, -inf
        %v6432 = vsel %vm6304, %v871, -inf
        %v6433 = vsel %vm6305, %v984, -inf
        %v6434 = vsel %vm6306, %v648, -inf
        %v6435 = vsel %vm6307, %v761, -inf
        %v6436 = vsel %vm6308, %v874, -inf
        %v6437 = vsel %vm6309, %v987, -inf
        %v6438 = vmax.f32 %v6310, %v6311
        %v6439 = vmax.f32 %v6438, %v6312
        %v6440 = vmax.f32 %v6439, %v6313
        %6441 = vmax.xlane.f32.xlu0 %v6440
        %v6442 = vpop.xlane.xlu0 %6441
        %v6443 = vmax.f32 %v6314, %v6315
        %v6444 = vmax.f32 %v6443, %v6316
        %v6445 = vmax.f32 %v6444, %v6317
        %6446 = vmax.xlane.f32.xlu0 %v6445
        %v6447 = vpop.xlane.xlu0 %6446
        %v6448 = vmax.f32 %v6318, %v6319
        %v6449 = vmax.f32 %v6448, %v6320
        %v6450 = vmax.f32 %v6449, %v6321
        %6451 = vmax.xlane.f32.xlu0 %v6450
        %v6452 = vpop.xlane.xlu0 %6451
        %v6453 = vmax.f32 %v6322, %v6323
        %v6454 = vmax.f32 %v6453, %v6324
        %v6455 = vmax.f32 %v6454, %v6325
        %6456 = vmax.xlane.f32.xlu0 %v6455
        %v6457 = vpop.xlane.xlu0 %6456
        %v6458 = vmax.f32 %v6326, %v6327
        %v6459 = vmax.f32 %v6458, %v6328
        %v6460 = vmax.f32 %v6459, %v6329
        %6461 = vmax.xlane.f32.xlu0 %v6460
        %v6462 = vpop.xlane.xlu0 %6461
        %v6463 = vmax.f32 %v6330, %v6331
        %v6464 = vmax.f32 %v6463, %v6332
        %v6465 = vmax.f32 %v6464, %v6333
        %6466 = vmax.xlane.f32.xlu0 %v6465
        %v6467 = vpop.xlane.xlu0 %6466
        %v6468 = vmax.f32 %v6334, %v6335
        %v6469 = vmax.f32 %v6468, %v6336
        %v6470 = vmax.f32 %v6469, %v6337
        %6471 = vmax.xlane.f32.xlu0 %v6470
        %v6472 = vpop.xlane.xlu0 %6471
        %v6473 = vmax.f32 %v6338, %v6339
        %v6474 = vmax.f32 %v6473, %v6340
        %v6475 = vmax.f32 %v6474, %v6341
        %6476 = vmax.xlane.f32.xlu0 %v6475
        %v6477 = vpop.xlane.xlu0 %6476
        %v6478 = vmax.f32 %v6342, %v6343
        %v6479 = vmax.f32 %v6478, %v6344
        %v6480 = vmax.f32 %v6479, %v6345
        %6481 = vmax.xlane.f32.xlu0 %v6480
        %v6482 = vpop.xlane.xlu0 %6481
        %v6483 = vmax.f32 %v6346, %v6347
        %v6484 = vmax.f32 %v6483, %v6348
        %v6485 = vmax.f32 %v6484, %v6349
        %6486 = vmax.xlane.f32.xlu0 %v6485
        %v6487 = vpop.xlane.xlu0 %6486
        %v6488 = vmax.f32 %v6350, %v6351
        %v6489 = vmax.f32 %v6488, %v6352
        %v6490 = vmax.f32 %v6489, %v6353
        %6491 = vmax.xlane.f32.xlu0 %v6490
        %v6492 = vpop.xlane.xlu0 %6491
        %v6493 = vmax.f32 %v6354, %v6355
        %v6494 = vmax.f32 %v6493, %v6356
        %v6495 = vmax.f32 %v6494, %v6357
        %6496 = vmax.xlane.f32.xlu0 %v6495
        %v6497 = vpop.xlane.xlu0 %6496
        %v6498 = vmax.f32 %v6358, %v6359
        %v6499 = vmax.f32 %v6498, %v6360
        %v6500 = vmax.f32 %v6499, %v6361
        %6501 = vmax.xlane.f32.xlu0 %v6500
        %v6502 = vpop.xlane.xlu0 %6501
        %v6503 = vmax.f32 %v6362, %v6363
        %v6504 = vmax.f32 %v6503, %v6364
        %v6505 = vmax.f32 %v6504, %v6365
        %6506 = vmax.xlane.f32.xlu0 %v6505
        %v6507 = vpop.xlane.xlu0 %6506
        %v6508 = vmax.f32 %v6366, %v6367
        %v6509 = vmax.f32 %v6508, %v6368
        %v6510 = vmax.f32 %v6509, %v6369
        %6511 = vmax.xlane.f32.xlu0 %v6510
        %v6512 = vpop.xlane.xlu0 %6511
        %v6513 = vmax.f32 %v6370, %v6371
        %v6514 = vmax.f32 %v6513, %v6372
        %v6515 = vmax.f32 %v6514, %v6373
        %6516 = vmax.xlane.f32.xlu0 %v6515
        %v6517 = vpop.xlane.xlu0 %6516
        %v6518 = vmax.f32 %v6374, %v6375
        %v6519 = vmax.f32 %v6518, %v6376
        %v6520 = vmax.f32 %v6519, %v6377
        %6521 = vmax.xlane.f32.xlu0 %v6520
        %v6522 = vpop.xlane.xlu0 %6521
        %v6523 = vmax.f32 %v6378, %v6379
        %v6524 = vmax.f32 %v6523, %v6380
        %v6525 = vmax.f32 %v6524, %v6381
        %6526 = vmax.xlane.f32.xlu0 %v6525
        %v6527 = vpop.xlane.xlu0 %6526
        %v6528 = vmax.f32 %v6382, %v6383
        %v6529 = vmax.f32 %v6528, %v6384
        %v6530 = vmax.f32 %v6529, %v6385
        %6531 = vmax.xlane.f32.xlu0 %v6530
        %v6532 = vpop.xlane.xlu0 %6531
        %v6533 = vmax.f32 %v6386, %v6387
        %v6534 = vmax.f32 %v6533, %v6388
        %v6535 = vmax.f32 %v6534, %v6389
        %6536 = vmax.xlane.f32.xlu0 %v6535
        %v6537 = vpop.xlane.xlu0 %6536
        %v6538 = vmax.f32 %v6390, %v6391
        %v6539 = vmax.f32 %v6538, %v6392
        %v6540 = vmax.f32 %v6539, %v6393
        %6541 = vmax.xlane.f32.xlu0 %v6540
        %v6542 = vpop.xlane.xlu0 %6541
        %v6543 = vmax.f32 %v6394, %v6395
        %v6544 = vmax.f32 %v6543, %v6396
        %v6545 = vmax.f32 %v6544, %v6397
        %6546 = vmax.xlane.f32.xlu0 %v6545
        %v6547 = vpop.xlane.xlu0 %6546
        %v6548 = vmax.f32 %v6398, %v6399
        %v6549 = vmax.f32 %v6548, %v6400
        %v6550 = vmax.f32 %v6549, %v6401
        %6551 = vmax.xlane.f32.xlu0 %v6550
        %v6552 = vpop.xlane.xlu0 %6551
        %v6553 = vmax.f32 %v6402, %v6403
        %v6554 = vmax.f32 %v6553, %v6404
        %v6555 = vmax.f32 %v6554, %v6405
        %6556 = vmax.xlane.f32.xlu0 %v6555
        %v6557 = vpop.xlane.xlu0 %6556
        %v6558 = vmax.f32 %v6406, %v6407
        %v6559 = vmax.f32 %v6558, %v6408
        %v6560 = vmax.f32 %v6559, %v6409
        %6561 = vmax.xlane.f32.xlu0 %v6560
        %v6562 = vpop.xlane.xlu0 %6561
        %v6563 = vmax.f32 %v6410, %v6411
        %v6564 = vmax.f32 %v6563, %v6412
        %v6565 = vmax.f32 %v6564, %v6413
        %6566 = vmax.xlane.f32.xlu0 %v6565
        %v6567 = vpop.xlane.xlu0 %6566
        %v6568 = vmax.f32 %v6414, %v6415
        %v6569 = vmax.f32 %v6568, %v6416
        %v6570 = vmax.f32 %v6569, %v6417
        %6571 = vmax.xlane.f32.xlu0 %v6570
        %v6572 = vpop.xlane.xlu0 %6571
        %v6573 = vmax.f32 %v6418, %v6419
        %v6574 = vmax.f32 %v6573, %v6420
        %v6575 = vmax.f32 %v6574, %v6421
        %6576 = vmax.xlane.f32.xlu0 %v6575
        %v6577 = vpop.xlane.xlu0 %6576
        %v6578 = vmax.f32 %v6422, %v6423
        %v6579 = vmax.f32 %v6578, %v6424
        %v6580 = vmax.f32 %v6579, %v6425
        %6581 = vmax.xlane.f32.xlu0 %v6580
        %v6582 = vpop.xlane.xlu0 %6581
        %v6583 = vmax.f32 %v6426, %v6427
        %v6584 = vmax.f32 %v6583, %v6428
        %v6585 = vmax.f32 %v6584, %v6429
        %6586 = vmax.xlane.f32.xlu0 %v6585
        %v6587 = vpop.xlane.xlu0 %6586
        %v6588 = vmax.f32 %v6430, %v6431
        %v6589 = vmax.f32 %v6588, %v6432
        %v6590 = vmax.f32 %v6589, %v6433
        %6591 = vmax.xlane.f32.xlu0 %v6590
        %v6592 = vpop.xlane.xlu0 %6591
        %v6593 = vmax.f32 %v6434, %v6435
        %v6594 = vmax.f32 %v6593, %v6436
        %v6595 = vmax.f32 %v6594, %v6437
        %6596 = vmax.xlane.f32.xlu0 %v6595
        %v6597 = vpop.xlane.xlu0 %6596
        %v6598 = vsub.f32 %v555, %v6442
        %v6599 = vsub.f32 %v668, %v6442
        %v6600 = vsub.f32 %v781, %v6442
        %v6601 = vsub.f32 %v894, %v6442
        %v6602 = vsub.f32 %v558, %v6447
        %v6603 = vsub.f32 %v671, %v6447
        %v6604 = vsub.f32 %v784, %v6447
        %v6605 = vsub.f32 %v897, %v6447
        %v6606 = vsub.f32 %v561, %v6452
        %v6607 = vsub.f32 %v674, %v6452
        %v6608 = vsub.f32 %v787, %v6452
        %v6609 = vsub.f32 %v900, %v6452
        %v6610 = vsub.f32 %v564, %v6457
        %v6611 = vsub.f32 %v677, %v6457
        %v6612 = vsub.f32 %v790, %v6457
        %v6613 = vsub.f32 %v903, %v6457
        %v6614 = vsub.f32 %v567, %v6462
        %v6615 = vsub.f32 %v680, %v6462
        %v6616 = vsub.f32 %v793, %v6462
        %v6617 = vsub.f32 %v906, %v6462
        %v6618 = vsub.f32 %v570, %v6467
        %v6619 = vsub.f32 %v683, %v6467
        %v6620 = vsub.f32 %v796, %v6467
        %v6621 = vsub.f32 %v909, %v6467
        %v6622 = vsub.f32 %v573, %v6472
        %v6623 = vsub.f32 %v686, %v6472
        %v6624 = vsub.f32 %v799, %v6472
        %v6625 = vsub.f32 %v912, %v6472
        %v6626 = vsub.f32 %v576, %v6477
        %v6627 = vsub.f32 %v689, %v6477
        %v6628 = vsub.f32 %v802, %v6477
        %v6629 = vsub.f32 %v915, %v6477
        %v6630 = vsub.f32 %v579, %v6482
        %v6631 = vsub.f32 %v692, %v6482
        %v6632 = vsub.f32 %v805, %v6482
        %v6633 = vsub.f32 %v918, %v6482
        %v6634 = vsub.f32 %v582, %v6487
        %v6635 = vsub.f32 %v695, %v6487
        %v6636 = vsub.f32 %v808, %v6487
        %v6637 = vsub.f32 %v921, %v6487
        %v6638 = vsub.f32 %v585, %v6492
        %v6639 = vsub.f32 %v698, %v6492
        %v6640 = vsub.f32 %v811, %v6492
        %v6641 = vsub.f32 %v924, %v6492
        %v6642 = vsub.f32 %v588, %v6497
        %v6643 = vsub.f32 %v701, %v6497
        %v6644 = vsub.f32 %v814, %v6497
        %v6645 = vsub.f32 %v927, %v6497
        %v6646 = vsub.f32 %v591, %v6502
        %v6647 = vsub.f32 %v704, %v6502
        %v6648 = vsub.f32 %v817, %v6502
        %v6649 = vsub.f32 %v930, %v6502
        %v6650 = vsub.f32 %v594, %v6507
        %v6651 = vsub.f32 %v707, %v6507
        %v6652 = vsub.f32 %v820, %v6507
        %v6653 = vsub.f32 %v933, %v6507
        %v6654 = vsub.f32 %v597, %v6512
        %v6655 = vsub.f32 %v710, %v6512
        %v6656 = vsub.f32 %v823, %v6512
        %v6657 = vsub.f32 %v936, %v6512
        %v6658 = vsub.f32 %v600, %v6517
        %v6659 = vsub.f32 %v713, %v6517
        %v6660 = vsub.f32 %v826, %v6517
        %v6661 = vsub.f32 %v939, %v6517
        %v6662 = vsub.f32 %v603, %v6522
        %v6663 = vsub.f32 %v716, %v6522
        %v6664 = vsub.f32 %v829, %v6522
        %v6665 = vsub.f32 %v942, %v6522
        %v6666 = vsub.f32 %v606, %v6527
        %v6667 = vsub.f32 %v719, %v6527
        %v6668 = vsub.f32 %v832, %v6527
        %v6669 = vsub.f32 %v945, %v6527
        %v6670 = vsub.f32 %v609, %v6532
        %v6671 = vsub.f32 %v722, %v6532
        %v6672 = vsub.f32 %v835, %v6532
        %v6673 = vsub.f32 %v948, %v6532
        %v6674 = vsub.f32 %v612, %v6537
        %v6675 = vsub.f32 %v725, %v6537
        %v6676 = vsub.f32 %v838, %v6537
        %v6677 = vsub.f32 %v951, %v6537
        %v6678 = vsub.f32 %v615, %v6542
        %v6679 = vsub.f32 %v728, %v6542
        %v6680 = vsub.f32 %v841, %v6542
        %v6681 = vsub.f32 %v954, %v6542
        %v6682 = vsub.f32 %v618, %v6547
        %v6683 = vsub.f32 %v731, %v6547
        %v6684 = vsub.f32 %v844, %v6547
        %v6685 = vsub.f32 %v957, %v6547
        %v6686 = vsub.f32 %v621, %v6552
        %v6687 = vsub.f32 %v734, %v6552
        %v6688 = vsub.f32 %v847, %v6552
        %v6689 = vsub.f32 %v960, %v6552
        %v6690 = vsub.f32 %v624, %v6557
        %v6691 = vsub.f32 %v737, %v6557
        %v6692 = vsub.f32 %v850, %v6557
        %v6693 = vsub.f32 %v963, %v6557
        %v6694 = vsub.f32 %v627, %v6562
        %v6695 = vsub.f32 %v740, %v6562
        %v6696 = vsub.f32 %v853, %v6562
        %v6697 = vsub.f32 %v966, %v6562
        %v6698 = vsub.f32 %v630, %v6567
        %v6699 = vsub.f32 %v743, %v6567
        %v6700 = vsub.f32 %v856, %v6567
        %v6701 = vsub.f32 %v969, %v6567
        %v6702 = vsub.f32 %v633, %v6572
        %v6703 = vsub.f32 %v746, %v6572
        %v6704 = vsub.f32 %v859, %v6572
        %v6705 = vsub.f32 %v972, %v6572
        %v6706 = vsub.f32 %v636, %v6577
        %v6707 = vsub.f32 %v749, %v6577
        %v6708 = vsub.f32 %v862, %v6577
        %v6709 = vsub.f32 %v975, %v6577
        %v6710 = vsub.f32 %v639, %v6582
        %v6711 = vsub.f32 %v752, %v6582
        %v6712 = vsub.f32 %v865, %v6582
        %v6713 = vsub.f32 %v978, %v6582
        %v6714 = vsub.f32 %v642, %v6587
        %v6715 = vsub.f32 %v755, %v6587
        %v6716 = vsub.f32 %v868, %v6587
        %v6717 = vsub.f32 %v981, %v6587
        %v6718 = vsub.f32 %v645, %v6592
        %v6719 = vsub.f32 %v758, %v6592
        %v6720 = vsub.f32 %v871, %v6592
        %v6721 = vsub.f32 %v984, %v6592
        %v6722 = vsub.f32 %v648, %v6597
        %v6723 = vsub.f32 %v761, %v6597
        %v6724 = vsub.f32 %v874, %v6597
        %v6725 = vsub.f32 %v987, %v6597
        %v6726 = vmin.f32 %v6598, 0.0
        %v6727 = vmin.f32 %v6599, 0.0
        %v6728 = vmin.f32 %v6600, 0.0
        %v6729 = vmin.f32 %v6601, 0.0
        %v6730 = vmin.f32 %v6602, 0.0
        %v6731 = vmin.f32 %v6603, 0.0
        %v6732 = vmin.f32 %v6604, 0.0
        %v6733 = vmin.f32 %v6605, 0.0
        %v6734 = vmin.f32 %v6606, 0.0
        %v6735 = vmin.f32 %v6607, 0.0
        %v6736 = vmin.f32 %v6608, 0.0
        %v6737 = vmin.f32 %v6609, 0.0
        %v6738 = vmin.f32 %v6610, 0.0
        %v6739 = vmin.f32 %v6611, 0.0
        %v6740 = vmin.f32 %v6612, 0.0
        %v6741 = vmin.f32 %v6613, 0.0
        %v6742 = vmin.f32 %v6614, 0.0
        %v6743 = vmin.f32 %v6615, 0.0
        %v6744 = vmin.f32 %v6616, 0.0
        %v6745 = vmin.f32 %v6617, 0.0
        %v6746 = vmin.f32 %v6618, 0.0
        %v6747 = vmin.f32 %v6619, 0.0
        %v6748 = vmin.f32 %v6620, 0.0
        %v6749 = vmin.f32 %v6621, 0.0
        %v6750 = vmin.f32 %v6622, 0.0
        %v6751 = vmin.f32 %v6623, 0.0
        %v6752 = vmin.f32 %v6624, 0.0
        %v6753 = vmin.f32 %v6625, 0.0
        %v6754 = vmin.f32 %v6626, 0.0
        %v6755 = vmin.f32 %v6627, 0.0
        %v6756 = vmin.f32 %v6628, 0.0
        %v6757 = vmin.f32 %v6629, 0.0
        %v6758 = vmin.f32 %v6630, 0.0
        %v6759 = vmin.f32 %v6631, 0.0
        %v6760 = vmin.f32 %v6632, 0.0
        %v6761 = vmin.f32 %v6633, 0.0
        %v6762 = vmin.f32 %v6634, 0.0
        %v6763 = vmin.f32 %v6635, 0.0
        %v6764 = vmin.f32 %v6636, 0.0
        %v6765 = vmin.f32 %v6637, 0.0
        %v6766 = vmin.f32 %v6638, 0.0
        %v6767 = vmin.f32 %v6639, 0.0
        %v6768 = vmin.f32 %v6640, 0.0
        %v6769 = vmin.f32 %v6641, 0.0
        %v6770 = vmin.f32 %v6642, 0.0
        %v6771 = vmin.f32 %v6643, 0.0
        %v6772 = vmin.f32 %v6644, 0.0
        %v6773 = vmin.f32 %v6645, 0.0
        %v6774 = vmin.f32 %v6646, 0.0
        %v6775 = vmin.f32 %v6647, 0.0
        %v6776 = vmin.f32 %v6648, 0.0
        %v6777 = vmin.f32 %v6649, 0.0
        %v6778 = vmin.f32 %v6650, 0.0
        %v6779 = vmin.f32 %v6651, 0.0
        %v6780 = vmin.f32 %v6652, 0.0
        %v6781 = vmin.f32 %v6653, 0.0
        %v6782 = vmin.f32 %v6654, 0.0
        %v6783 = vmin.f32 %v6655, 0.0
        %v6784 = vmin.f32 %v6656, 0.0
        %v6785 = vmin.f32 %v6657, 0.0
        %v6786 = vmin.f32 %v6658, 0.0
        %v6787 = vmin.f32 %v6659, 0.0
        %v6788 = vmin.f32 %v6660, 0.0
        %v6789 = vmin.f32 %v6661, 0.0
        %v6790 = vmin.f32 %v6662, 0.0
        %v6791 = vmin.f32 %v6663, 0.0
        %v6792 = vmin.f32 %v6664, 0.0
        %v6793 = vmin.f32 %v6665, 0.0
        %v6794 = vmin.f32 %v6666, 0.0
        %v6795 = vmin.f32 %v6667, 0.0
        %v6796 = vmin.f32 %v6668, 0.0
        %v6797 = vmin.f32 %v6669, 0.0
        %v6798 = vmin.f32 %v6670, 0.0
        %v6799 = vmin.f32 %v6671, 0.0
        %v6800 = vmin.f32 %v6672, 0.0
        %v6801 = vmin.f32 %v6673, 0.0
        %v6802 = vmin.f32 %v6674, 0.0
        %v6803 = vmin.f32 %v6675, 0.0
        %v6804 = vmin.f32 %v6676, 0.0
        %v6805 = vmin.f32 %v6677, 0.0
        %v6806 = vmin.f32 %v6678, 0.0
        %v6807 = vmin.f32 %v6679, 0.0
        %v6808 = vmin.f32 %v6680, 0.0
        %v6809 = vmin.f32 %v6681, 0.0
        %v6810 = vmin.f32 %v6682, 0.0
        %v6811 = vmin.f32 %v6683, 0.0
        %v6812 = vmin.f32 %v6684, 0.0
        %v6813 = vmin.f32 %v6685, 0.0
        %v6814 = vmin.f32 %v6686, 0.0
        %v6815 = vmin.f32 %v6687, 0.0
        %v6816 = vmin.f32 %v6688, 0.0
        %v6817 = vmin.f32 %v6689, 0.0
        %v6818 = vmin.f32 %v6690, 0.0
        %v6819 = vmin.f32 %v6691, 0.0
        %v6820 = vmin.f32 %v6692, 0.0
        %v6821 = vmin.f32 %v6693, 0.0
        %v6822 = vmin.f32 %v6694, 0.0
        %v6823 = vmin.f32 %v6695, 0.0
        %v6824 = vmin.f32 %v6696, 0.0
        %v6825 = vmin.f32 %v6697, 0.0
        %v6826 = vmin.f32 %v6698, 0.0
        %v6827 = vmin.f32 %v6699, 0.0
        %v6828 = vmin.f32 %v6700, 0.0
        %v6829 = vmin.f32 %v6701, 0.0
        %v6830 = vmin.f32 %v6702, 0.0
        %v6831 = vmin.f32 %v6703, 0.0
        %v6832 = vmin.f32 %v6704, 0.0
        %v6833 = vmin.f32 %v6705, 0.0
        %v6834 = vmin.f32 %v6706, 0.0
        %v6835 = vmin.f32 %v6707, 0.0
        %v6836 = vmin.f32 %v6708, 0.0
        %v6837 = vmin.f32 %v6709, 0.0
        %v6838 = vmin.f32 %v6710, 0.0
        %v6839 = vmin.f32 %v6711, 0.0
        %v6840 = vmin.f32 %v6712, 0.0
        %v6841 = vmin.f32 %v6713, 0.0
        %v6842 = vmin.f32 %v6714, 0.0
        %v6843 = vmin.f32 %v6715, 0.0
        %v6844 = vmin.f32 %v6716, 0.0
        %v6845 = vmin.f32 %v6717, 0.0
        %v6846 = vmin.f32 %v6718, 0.0
        %v6847 = vmin.f32 %v6719, 0.0
        %v6848 = vmin.f32 %v6720, 0.0
        %v6849 = vmin.f32 %v6721, 0.0
        %v6850 = vmin.f32 %v6722, 0.0
        %v6851 = vmin.f32 %v6723, 0.0
        %v6852 = vmin.f32 %v6724, 0.0
        %v6853 = vmin.f32 %v6725, 0.0
        %v6854 = vmul.f32 %v6726, 1.442695
        %v6855 = vpow.pop %v6854
        %v6856 = vmul.f32 %v6727, 1.442695
        %v6857 = vpow.pop %v6856
        %v6858 = vmul.f32 %v6728, 1.442695
        %v6859 = vpow.pop %v6858
        %v6860 = vmul.f32 %v6729, 1.442695
        %v6861 = vpow.pop %v6860
        %v6862 = vmul.f32 %v6730, 1.442695
        %v6863 = vpow.pop %v6862
        %v6864 = vmul.f32 %v6731, 1.442695
        %v6865 = vpow.pop %v6864
        %v6866 = vmul.f32 %v6732, 1.442695
        %v6867 = vpow.pop %v6866
        %v6868 = vmul.f32 %v6733, 1.442695
        %v6869 = vpow.pop %v6868
        %v6870 = vmul.f32 %v6734, 1.442695
        %v6871 = vpow.pop %v6870
        %v6872 = vmul.f32 %v6735, 1.442695
        %v6873 = vpow.pop %v6872
        %v6874 = vmul.f32 %v6736, 1.442695
        %v6875 = vpow.pop %v6874
        %v6876 = vmul.f32 %v6737, 1.442695
        %v6877 = vpow.pop %v6876
        %v6878 = vmul.f32 %v6738, 1.442695
        %v6879 = vpow.pop %v6878
        %v6880 = vmul.f32 %v6739, 1.442695
        %v6881 = vpow.pop %v6880
        %v6882 = vmul.f32 %v6740, 1.442695
        %v6883 = vpow.pop %v6882
        %v6884 = vmul.f32 %v6741, 1.442695
        %v6885 = vpow.pop %v6884
        %v6886 = vmul.f32 %v6742, 1.442695
        %v6887 = vpow.pop %v6886
        %v6888 = vmul.f32 %v6743, 1.442695
        %v6889 = vpow.pop %v6888
        %v6890 = vmul.f32 %v6744, 1.442695
        %v6891 = vpow.pop %v6890
        %v6892 = vmul.f32 %v6745, 1.442695
        %v6893 = vpow.pop %v6892
        %v6894 = vmul.f32 %v6746, 1.442695
        %v6895 = vpow.pop %v6894
        %v6896 = vmul.f32 %v6747, 1.442695
        %v6897 = vpow.pop %v6896
        %v6898 = vmul.f32 %v6748, 1.442695
        %v6899 = vpow.pop %v6898
        %v6900 = vmul.f32 %v6749, 1.442695
        %v6901 = vpow.pop %v6900
        %v6902 = vmul.f32 %v6750, 1.442695
        %v6903 = vpow.pop %v6902
        %v6904 = vmul.f32 %v6751, 1.442695
        %v6905 = vpow.pop %v6904
        %v6906 = vmul.f32 %v6752, 1.442695
        %v6907 = vpow.pop %v6906
        %v6908 = vmul.f32 %v6753, 1.442695
        %v6909 = vpow.pop %v6908
        %v6910 = vmul.f32 %v6754, 1.442695
        %v6911 = vpow.pop %v6910
        %v6912 = vmul.f32 %v6755, 1.442695
        %v6913 = vpow.pop %v6912
        %v6914 = vmul.f32 %v6756, 1.442695
        %v6915 = vpow.pop %v6914
        %v6916 = vmul.f32 %v6757, 1.442695
        %v6917 = vpow.pop %v6916
        %v6918 = vmul.f32 %v6758, 1.442695
        %v6919 = vpow.pop %v6918
        %v6920 = vmul.f32 %v6759, 1.442695
        %v6921 = vpow.pop %v6920
        %v6922 = vmul.f32 %v6760, 1.442695
        %v6923 = vpow.pop %v6922
        %v6924 = vmul.f32 %v6761, 1.442695
        %v6925 = vpow.pop %v6924
        %v6926 = vmul.f32 %v6762, 1.442695
        %v6927 = vpow.pop %v6926
        %v6928 = vmul.f32 %v6763, 1.442695
        %v6929 = vpow.pop %v6928
        %v6930 = vmul.f32 %v6764, 1.442695
        %v6931 = vpow.pop %v6930
        %v6932 = vmul.f32 %v6765, 1.442695
        %v6933 = vpow.pop %v6932
        %v6934 = vmul.f32 %v6766, 1.442695
        %v6935 = vpow.pop %v6934
        %v6936 = vmul.f32 %v6767, 1.442695
        %v6937 = vpow.pop %v6936
        %v6938 = vmul.f32 %v6768, 1.442695
        %v6939 = vpow.pop %v6938
        %v6940 = vmul.f32 %v6769, 1.442695
        %v6941 = vpow.pop %v6940
        %v6942 = vmul.f32 %v6770, 1.442695
        %v6943 = vpow.pop %v6942
        %v6944 = vmul.f32 %v6771, 1.442695
        %v6945 = vpow.pop %v6944
        %v6946 = vmul.f32 %v6772, 1.442695
        %v6947 = vpow.pop %v6946
        %v6948 = vmul.f32 %v6773, 1.442695
        %v6949 = vpow.pop %v6948
        %v6950 = vmul.f32 %v6774, 1.442695
        %v6951 = vpow.pop %v6950
        %v6952 = vmul.f32 %v6775, 1.442695
        %v6953 = vpow.pop %v6952
        %v6954 = vmul.f32 %v6776, 1.442695
        %v6955 = vpow.pop %v6954
        %v6956 = vmul.f32 %v6777, 1.442695
        %v6957 = vpow.pop %v6956
        %v6958 = vmul.f32 %v6778, 1.442695
        %v6959 = vpow.pop %v6958
        %v6960 = vmul.f32 %v6779, 1.442695
        %v6961 = vpow.pop %v6960
        %v6962 = vmul.f32 %v6780, 1.442695
        %v6963 = vpow.pop %v6962
        %v6964 = vmul.f32 %v6781, 1.442695
        %v6965 = vpow.pop %v6964
        %v6966 = vmul.f32 %v6782, 1.442695
        %v6967 = vpow.pop %v6966
        %v6968 = vmul.f32 %v6783, 1.442695
        %v6969 = vpow.pop %v6968
        %v6970 = vmul.f32 %v6784, 1.442695
        %v6971 = vpow.pop %v6970
        %v6972 = vmul.f32 %v6785, 1.442695
        %v6973 = vpow.pop %v6972
        %v6974 = vmul.f32 %v6786, 1.442695
        %v6975 = vpow.pop %v6974
        %v6976 = vmul.f32 %v6787, 1.442695
        %v6977 = vpow.pop %v6976
        %v6978 = vmul.f32 %v6788, 1.442695
        %v6979 = vpow.pop %v6978
        %v6980 = vmul.f32 %v6789, 1.442695
        %v6981 = vpow.pop %v6980
        %v6982 = vmul.f32 %v6790, 1.442695
        %v6983 = vpow.pop %v6982
        %v6984 = vmul.f32 %v6791, 1.442695
        %v6985 = vpow.pop %v6984
        %v6986 = vmul.f32 %v6792, 1.442695
        %v6987 = vpow.pop %v6986
        %v6988 = vmul.f32 %v6793, 1.442695
        %v6989 = vpow.pop %v6988
        %v6990 = vmul.f32 %v6794, 1.442695
        %v6991 = vpow.pop %v6990
        %v6992 = vmul.f32 %v6795, 1.442695
        %v6993 = vpow.pop %v6992
        %v6994 = vmul.f32 %v6796, 1.442695
        %v6995 = vpow.pop %v6994
        %v6996 = vmul.f32 %v6797, 1.442695
        %v6997 = vpow.pop %v6996
        %v6998 = vmul.f32 %v6798, 1.442695
        %v6999 = vpow.pop %v6998
        %v7000 = vmul.f32 %v6799, 1.442695
        %v7001 = vpow.pop %v7000
        %v7002 = vmul.f32 %v6800, 1.442695
        %v7003 = vpow.pop %v7002
        %v7004 = vmul.f32 %v6801, 1.442695
        %v7005 = vpow.pop %v7004
        %v7006 = vmul.f32 %v6802, 1.442695
        %v7007 = vpow.pop %v7006
        %v7008 = vmul.f32 %v6803, 1.442695
        %v7009 = vpow.pop %v7008
        %v7010 = vmul.f32 %v6804, 1.442695
        %v7011 = vpow.pop %v7010
        %v7012 = vmul.f32 %v6805, 1.442695
        %v7013 = vpow.pop %v7012
        %v7014 = vmul.f32 %v6806, 1.442695
        %v7015 = vpow.pop %v7014
        %v7016 = vmul.f32 %v6807, 1.442695
        %v7017 = vpow.pop %v7016
        %v7018 = vmul.f32 %v6808, 1.442695
        %v7019 = vpow.pop %v7018
        %v7020 = vmul.f32 %v6809, 1.442695
        %v7021 = vpow.pop %v7020
        %v7022 = vmul.f32 %v6810, 1.442695
        %v7023 = vpow.pop %v7022
        %v7024 = vmul.f32 %v6811, 1.442695
        %v7025 = vpow.pop %v7024
        %v7026 = vmul.f32 %v6812, 1.442695
        %v7027 = vpow.pop %v7026
        %v7028 = vmul.f32 %v6813, 1.442695
        %v7029 = vpow.pop %v7028
        %v7030 = vmul.f32 %v6814, 1.442695
        %v7031 = vpow.pop %v7030
        %v7032 = vmul.f32 %v6815, 1.442695
        %v7033 = vpow.pop %v7032
        %v7034 = vmul.f32 %v6816, 1.442695
        %v7035 = vpow.pop %v7034
        %v7036 = vmul.f32 %v6817, 1.442695
        %v7037 = vpow.pop %v7036
        %v7038 = vmul.f32 %v6818, 1.442695
        %v7039 = vpow.pop %v7038
        %v7040 = vmul.f32 %v6819, 1.442695
        %v7041 = vpow.pop %v7040
        %v7042 = vmul.f32 %v6820, 1.442695
        %v7043 = vpow.pop %v7042
        %v7044 = vmul.f32 %v6821, 1.442695
        %v7045 = vpow.pop %v7044
        %v7046 = vmul.f32 %v6822, 1.442695
        %v7047 = vpow.pop %v7046
        %v7048 = vmul.f32 %v6823, 1.442695
        %v7049 = vpow.pop %v7048
        %v7050 = vmul.f32 %v6824, 1.442695
        %v7051 = vpow.pop %v7050
        %v7052 = vmul.f32 %v6825, 1.442695
        %v7053 = vpow.pop %v7052
        %v7054 = vmul.f32 %v6826, 1.442695
        %v7055 = vpow.pop %v7054
        %v7056 = vmul.f32 %v6827, 1.442695
        %v7057 = vpow.pop %v7056
        %v7058 = vmul.f32 %v6828, 1.442695
        %v7059 = vpow.pop %v7058
        %v7060 = vmul.f32 %v6829, 1.442695
        %v7061 = vpow.pop %v7060
        %v7062 = vmul.f32 %v6830, 1.442695
        %v7063 = vpow.pop %v7062
        %v7064 = vmul.f32 %v6831, 1.442695
        %v7065 = vpow.pop %v7064
        %v7066 = vmul.f32 %v6832, 1.442695
        %v7067 = vpow.pop %v7066
        %v7068 = vmul.f32 %v6833, 1.442695
        %v7069 = vpow.pop %v7068
        %v7070 = vmul.f32 %v6834, 1.442695
        %v7071 = vpow.pop %v7070
        %v7072 = vmul.f32 %v6835, 1.442695
        %v7073 = vpow.pop %v7072
        %v7074 = vmul.f32 %v6836, 1.442695
        %v7075 = vpow.pop %v7074
        %v7076 = vmul.f32 %v6837, 1.442695
        %v7077 = vpow.pop %v7076
        %v7078 = vmul.f32 %v6838, 1.442695
        %v7079 = vpow.pop %v7078
        %v7080 = vmul.f32 %v6839, 1.442695
        %v7081 = vpow.pop %v7080
        %v7082 = vmul.f32 %v6840, 1.442695
        %v7083 = vpow.pop %v7082
        %v7084 = vmul.f32 %v6841, 1.442695
        %v7085 = vpow.pop %v7084
        %v7086 = vmul.f32 %v6842, 1.442695
        %v7087 = vpow.pop %v7086
        %v7088 = vmul.f32 %v6843, 1.442695
        %v7089 = vpow.pop %v7088
        %v7090 = vmul.f32 %v6844, 1.442695
        %v7091 = vpow.pop %v7090
        %v7092 = vmul.f32 %v6845, 1.442695
        %v7093 = vpow.pop %v7092
        %v7094 = vmul.f32 %v6846, 1.442695
        %v7095 = vpow.pop %v7094
        %v7096 = vmul.f32 %v6847, 1.442695
        %v7097 = vpow.pop %v7096
        %v7098 = vmul.f32 %v6848, 1.442695
        %v7099 = vpow.pop %v7098
        %v7100 = vmul.f32 %v6849, 1.442695
        %v7101 = vpow.pop %v7100
        %v7102 = vmul.f32 %v6850, 1.442695
        %v7103 = vpow.pop %v7102
        %v7104 = vmul.f32 %v6851, 1.442695
        %v7105 = vpow.pop %v7104
        %v7106 = vmul.f32 %v6852, 1.442695
        %v7107 = vpow.pop %v7106
        %v7108 = vmul.f32 %v6853, 1.442695
        %v7109 = vpow.pop %v7108
        %v7110 = vcvt.s32.f32 %v6054
        %v7111 = vcvt.s32.f32 %v6055
        %v7112 = vcvt.s32.f32 %v6056
        %v7113 = vcvt.s32.f32 %v6057
        %v7114 = vcvt.s32.f32 %v6058
        %v7115 = vcvt.s32.f32 %v6059
        %v7116 = vcvt.s32.f32 %v6060
        %v7117 = vcvt.s32.f32 %v6061
        %v7118 = vcvt.s32.f32 %v6062
        %v7119 = vcvt.s32.f32 %v6063
        %v7120 = vcvt.s32.f32 %v6064
        %v7121 = vcvt.s32.f32 %v6065
        %v7122 = vcvt.s32.f32 %v6066
        %v7123 = vcvt.s32.f32 %v6067
        %v7124 = vcvt.s32.f32 %v6068
        %v7125 = vcvt.s32.f32 %v6069
        %v7126 = vcvt.s32.f32 %v6070
        %v7127 = vcvt.s32.f32 %v6071
        %v7128 = vcvt.s32.f32 %v6072
        %v7129 = vcvt.s32.f32 %v6073
        %v7130 = vcvt.s32.f32 %v6074
        %v7131 = vcvt.s32.f32 %v6075
        %v7132 = vcvt.s32.f32 %v6076
        %v7133 = vcvt.s32.f32 %v6077
        %v7134 = vcvt.s32.f32 %v6078
        %v7135 = vcvt.s32.f32 %v6079
        %v7136 = vcvt.s32.f32 %v6080
        %v7137 = vcvt.s32.f32 %v6081
        %v7138 = vcvt.s32.f32 %v6082
        %v7139 = vcvt.s32.f32 %v6083
        %v7140 = vcvt.s32.f32 %v6084
        %v7141 = vcvt.s32.f32 %v6085
        %v7142 = vcvt.s32.f32 %v6086
        %v7143 = vcvt.s32.f32 %v6087
        %v7144 = vcvt.s32.f32 %v6088
        %v7145 = vcvt.s32.f32 %v6089
        %v7146 = vcvt.s32.f32 %v6090
        %v7147 = vcvt.s32.f32 %v6091
        %v7148 = vcvt.s32.f32 %v6092
        %v7149 = vcvt.s32.f32 %v6093
        %v7150 = vcvt.s32.f32 %v6094
        %v7151 = vcvt.s32.f32 %v6095
        %v7152 = vcvt.s32.f32 %v6096
        %v7153 = vcvt.s32.f32 %v6097
        %v7154 = vcvt.s32.f32 %v6098
        %v7155 = vcvt.s32.f32 %v6099
        %v7156 = vcvt.s32.f32 %v6100
        %v7157 = vcvt.s32.f32 %v6101
        %v7158 = vcvt.s32.f32 %v6102
        %v7159 = vcvt.s32.f32 %v6103
        %v7160 = vcvt.s32.f32 %v6104
        %v7161 = vcvt.s32.f32 %v6105
        %v7162 = vcvt.s32.f32 %v6106
        %v7163 = vcvt.s32.f32 %v6107
        %v7164 = vcvt.s32.f32 %v6108
        %v7165 = vcvt.s32.f32 %v6109
        %v7166 = vcvt.s32.f32 %v6110
        %v7167 = vcvt.s32.f32 %v6111
        %v7168 = vcvt.s32.f32 %v6112
        %v7169 = vcvt.s32.f32 %v6113
        %v7170 = vcvt.s32.f32 %v6114
        %v7171 = vcvt.s32.f32 %v6115
        %v7172 = vcvt.s32.f32 %v6116
        %v7173 = vcvt.s32.f32 %v6117
        %v7174 = vcvt.s32.f32 %v6118
        %v7175 = vcvt.s32.f32 %v6119
        %v7176 = vcvt.s32.f32 %v6120
        %v7177 = vcvt.s32.f32 %v6121
        %v7178 = vcvt.s32.f32 %v6122
        %v7179 = vcvt.s32.f32 %v6123
        %v7180 = vcvt.s32.f32 %v6124
        %v7181 = vcvt.s32.f32 %v6125
        %v7182 = vcvt.s32.f32 %v6126
        %v7183 = vcvt.s32.f32 %v6127
        %v7184 = vcvt.s32.f32 %v6128
        %v7185 = vcvt.s32.f32 %v6129
        %v7186 = vcvt.s32.f32 %v6130
        %v7187 = vcvt.s32.f32 %v6131
        %v7188 = vcvt.s32.f32 %v6132
        %v7189 = vcvt.s32.f32 %v6133
        %v7190 = vcvt.s32.f32 %v6134
        %v7191 = vcvt.s32.f32 %v6135
        %v7192 = vcvt.s32.f32 %v6136
        %v7193 = vcvt.s32.f32 %v6137
        %v7194 = vcvt.s32.f32 %v6138
        %v7195 = vcvt.s32.f32 %v6139
        %v7196 = vcvt.s32.f32 %v6140
        %v7197 = vcvt.s32.f32 %v6141
        %v7198 = vcvt.s32.f32 %v6142
        %v7199 = vcvt.s32.f32 %v6143
        %v7200 = vcvt.s32.f32 %v6144
        %v7201 = vcvt.s32.f32 %v6145
        %v7202 = vcvt.s32.f32 %v6146
        %v7203 = vcvt.s32.f32 %v6147
        %v7204 = vcvt.s32.f32 %v6148
        %v7205 = vcvt.s32.f32 %v6149
        %v7206 = vcvt.s32.f32 %v6150
        %v7207 = vcvt.s32.f32 %v6151
        %v7208 = vcvt.s32.f32 %v6152
        %v7209 = vcvt.s32.f32 %v6153
        %v7210 = vcvt.s32.f32 %v6154
        %v7211 = vcvt.s32.f32 %v6155
        %v7212 = vcvt.s32.f32 %v6156
        %v7213 = vcvt.s32.f32 %v6157
        %v7214 = vcvt.s32.f32 %v6158
        %v7215 = vcvt.s32.f32 %v6159
        %v7216 = vcvt.s32.f32 %v6160
        %v7217 = vcvt.s32.f32 %v6161
        %v7218 = vcvt.s32.f32 %v6162
        %v7219 = vcvt.s32.f32 %v6163
        %v7220 = vcvt.s32.f32 %v6164
        %v7221 = vcvt.s32.f32 %v6165
        %v7222 = vcvt.s32.f32 %v6166
        %v7223 = vcvt.s32.f32 %v6167
        %v7224 = vcvt.s32.f32 %v6168
        %v7225 = vcvt.s32.f32 %v6169
        %v7226 = vcvt.s32.f32 %v6170
        %v7227 = vcvt.s32.f32 %v6171
        %v7228 = vcvt.s32.f32 %v6172
        %v7229 = vcvt.s32.f32 %v6173
        %v7230 = vcvt.s32.f32 %v6174
        %v7231 = vcvt.s32.f32 %v6175
        %v7232 = vcvt.s32.f32 %v6176
        %v7233 = vcvt.s32.f32 %v6177
        %v7234 = vcvt.s32.f32 %v6178
        %v7235 = vcvt.s32.f32 %v6179
        %v7236 = vcvt.s32.f32 %v6180
        %v7237 = vcvt.s32.f32 %v6181
        %v7238 = vmul.f32 %v7110, %v6855
        %v7239 = vmul.f32 %v7111, %v6857
        %v7240 = vmul.f32 %v7112, %v6859
        %v7241 = vmul.f32 %v7113, %v6861
        %v7242 = vmul.f32 %v7114, %v6863
        %v7243 = vmul.f32 %v7115, %v6865
        %v7244 = vmul.f32 %v7116, %v6867
        %v7245 = vmul.f32 %v7117, %v6869
        %v7246 = vmul.f32 %v7118, %v6871
        %v7247 = vmul.f32 %v7119, %v6873
        %v7248 = vmul.f32 %v7120, %v6875
        %v7249 = vmul.f32 %v7121, %v6877
        %v7250 = vmul.f32 %v7122, %v6879
        %v7251 = vmul.f32 %v7123, %v6881
        %v7252 = vmul.f32 %v7124, %v6883
        %v7253 = vmul.f32 %v7125, %v6885
        %v7254 = vmul.f32 %v7126, %v6887
        %v7255 = vmul.f32 %v7127, %v6889
        %v7256 = vmul.f32 %v7128, %v6891
        %v7257 = vmul.f32 %v7129, %v6893
        %v7258 = vmul.f32 %v7130, %v6895
        %v7259 = vmul.f32 %v7131, %v6897
        %v7260 = vmul.f32 %v7132, %v6899
        %v7261 = vmul.f32 %v7133, %v6901
        %v7262 = vmul.f32 %v7134, %v6903
        %v7263 = vmul.f32 %v7135, %v6905
        %v7264 = vmul.f32 %v7136, %v6907
        %v7265 = vmul.f32 %v7137, %v6909
        %v7266 = vmul.f32 %v7138, %v6911
        %v7267 = vmul.f32 %v7139, %v6913
        %v7268 = vmul.f32 %v7140, %v6915
        %v7269 = vmul.f32 %v7141, %v6917
        %v7270 = vmul.f32 %v7142, %v6919
        %v7271 = vmul.f32 %v7143, %v6921
        %v7272 = vmul.f32 %v7144, %v6923
        %v7273 = vmul.f32 %v7145, %v6925
        %v7274 = vmul.f32 %v7146, %v6927
        %v7275 = vmul.f32 %v7147, %v6929
        %v7276 = vmul.f32 %v7148, %v6931
        %v7277 = vmul.f32 %v7149, %v6933
        %v7278 = vmul.f32 %v7150, %v6935
        %v7279 = vmul.f32 %v7151, %v6937
        %v7280 = vmul.f32 %v7152, %v6939
        %v7281 = vmul.f32 %v7153, %v6941
        %v7282 = vmul.f32 %v7154, %v6943
        %v7283 = vmul.f32 %v7155, %v6945
        %v7284 = vmul.f32 %v7156, %v6947
        %v7285 = vmul.f32 %v7157, %v6949
        %v7286 = vmul.f32 %v7158, %v6951
        %v7287 = vmul.f32 %v7159, %v6953
        %v7288 = vmul.f32 %v7160, %v6955
        %v7289 = vmul.f32 %v7161, %v6957
        %v7290 = vmul.f32 %v7162, %v6959
        %v7291 = vmul.f32 %v7163, %v6961
        %v7292 = vmul.f32 %v7164, %v6963
        %v7293 = vmul.f32 %v7165, %v6965
        %v7294 = vmul.f32 %v7166, %v6967
        %v7295 = vmul.f32 %v7167, %v6969
        %v7296 = vmul.f32 %v7168, %v6971
        %v7297 = vmul.f32 %v7169, %v6973
        %v7298 = vmul.f32 %v7170, %v6975
        %v7299 = vmul.f32 %v7171, %v6977
        %v7300 = vmul.f32 %v7172, %v6979
        %v7301 = vmul.f32 %v7173, %v6981
        %v7302 = vmul.f32 %v7174, %v6983
        %v7303 = vmul.f32 %v7175, %v6985
        %v7304 = vmul.f32 %v7176, %v6987
        %v7305 = vmul.f32 %v7177, %v6989
        %v7306 = vmul.f32 %v7178, %v6991
        %v7307 = vmul.f32 %v7179, %v6993
        %v7308 = vmul.f32 %v7180, %v6995
        %v7309 = vmul.f32 %v7181, %v6997
        %v7310 = vmul.f32 %v7182, %v6999
        %v7311 = vmul.f32 %v7183, %v7001
        %v7312 = vmul.f32 %v7184, %v7003
        %v7313 = vmul.f32 %v7185, %v7005
        %v7314 = vmul.f32 %v7186, %v7007
        %v7315 = vmul.f32 %v7187, %v7009
        %v7316 = vmul.f32 %v7188, %v7011
        %v7317 = vmul.f32 %v7189, %v7013
        %v7318 = vmul.f32 %v7190, %v7015
        %v7319 = vmul.f32 %v7191, %v7017
        %v7320 = vmul.f32 %v7192, %v7019
        %v7321 = vmul.f32 %v7193, %v7021
        %v7322 = vmul.f32 %v7194, %v7023
        %v7323 = vmul.f32 %v7195, %v7025
        %v7324 = vmul.f32 %v7196, %v7027
        %v7325 = vmul.f32 %v7197, %v7029
        %v7326 = vmul.f32 %v7198, %v7031
        %v7327 = vmul.f32 %v7199, %v7033
        %v7328 = vmul.f32 %v7200, %v7035
        %v7329 = vmul.f32 %v7201, %v7037
        %v7330 = vmul.f32 %v7202, %v7039
        %v7331 = vmul.f32 %v7203, %v7041
        %v7332 = vmul.f32 %v7204, %v7043
        %v7333 = vmul.f32 %v7205, %v7045
        %v7334 = vmul.f32 %v7206, %v7047
        %v7335 = vmul.f32 %v7207, %v7049
        %v7336 = vmul.f32 %v7208, %v7051
        %v7337 = vmul.f32 %v7209, %v7053
        %v7338 = vmul.f32 %v7210, %v7055
        %v7339 = vmul.f32 %v7211, %v7057
        %v7340 = vmul.f32 %v7212, %v7059
        %v7341 = vmul.f32 %v7213, %v7061
        %v7342 = vmul.f32 %v7214, %v7063
        %v7343 = vmul.f32 %v7215, %v7065
        %v7344 = vmul.f32 %v7216, %v7067
        %v7345 = vmul.f32 %v7217, %v7069
        %v7346 = vmul.f32 %v7218, %v7071
        %v7347 = vmul.f32 %v7219, %v7073
        %v7348 = vmul.f32 %v7220, %v7075
        %v7349 = vmul.f32 %v7221, %v7077
        %v7350 = vmul.f32 %v7222, %v7079
        %v7351 = vmul.f32 %v7223, %v7081
        %v7352 = vmul.f32 %v7224, %v7083
        %v7353 = vmul.f32 %v7225, %v7085
        %v7354 = vmul.f32 %v7226, %v7087
        %v7355 = vmul.f32 %v7227, %v7089
        %v7356 = vmul.f32 %v7228, %v7091
        %v7357 = vmul.f32 %v7229, %v7093
        %v7358 = vmul.f32 %v7230, %v7095
        %v7359 = vmul.f32 %v7231, %v7097
        %v7360 = vmul.f32 %v7232, %v7099
        %v7361 = vmul.f32 %v7233, %v7101
        %v7362 = vmul.f32 %v7234, %v7103
        %v7363 = vmul.f32 %v7235, %v7105
        %v7364 = vmul.f32 %v7236, %v7107
        %v7365 = vmul.f32 %v7237, %v7109
        %v7366 = vadd.f32 %v7238, %v7239
        %v7367 = vadd.f32 %v7366, %v7240
        %v7368 = vadd.f32 %v7367, %v7241
        %7369 = vadd.xlane.f32.xlu0 %v7368
        %v7370 = vpop.xlane.xlu0 %7369
        %v7371 = vadd.f32 %v7242, %v7243
        %v7372 = vadd.f32 %v7371, %v7244
        %v7373 = vadd.f32 %v7372, %v7245
        %7374 = vadd.xlane.f32.xlu0 %v7373
        %v7375 = vpop.xlane.xlu0 %7374
        %v7376 = vadd.f32 %v7246, %v7247
        %v7377 = vadd.f32 %v7376, %v7248
        %v7378 = vadd.f32 %v7377, %v7249
        %7379 = vadd.xlane.f32.xlu0 %v7378
        %v7380 = vpop.xlane.xlu0 %7379
        %v7381 = vadd.f32 %v7250, %v7251
        %v7382 = vadd.f32 %v7381, %v7252
        %v7383 = vadd.f32 %v7382, %v7253
        %7384 = vadd.xlane.f32.xlu0 %v7383
        %v7385 = vpop.xlane.xlu0 %7384
        %v7386 = vadd.f32 %v7254, %v7255
        %v7387 = vadd.f32 %v7386, %v7256
        %v7388 = vadd.f32 %v7387, %v7257
        %7389 = vadd.xlane.f32.xlu0 %v7388
        %v7390 = vpop.xlane.xlu0 %7389
        %v7391 = vadd.f32 %v7258, %v7259
        %v7392 = vadd.f32 %v7391, %v7260
        %v7393 = vadd.f32 %v7392, %v7261
        %7394 = vadd.xlane.f32.xlu0 %v7393
        %v7395 = vpop.xlane.xlu0 %7394
        %v7396 = vadd.f32 %v7262, %v7263
        %v7397 = vadd.f32 %v7396, %v7264
        %v7398 = vadd.f32 %v7397, %v7265
        %7399 = vadd.xlane.f32.xlu0 %v7398
        %v7400 = vpop.xlane.xlu0 %7399
        %v7401 = vadd.f32 %v7266, %v7267
        %v7402 = vadd.f32 %v7401, %v7268
        %v7403 = vadd.f32 %v7402, %v7269
        %7404 = vadd.xlane.f32.xlu0 %v7403
        %v7405 = vpop.xlane.xlu0 %7404
        %v7406 = vadd.f32 %v7270, %v7271
        %v7407 = vadd.f32 %v7406, %v7272
        %v7408 = vadd.f32 %v7407, %v7273
        %7409 = vadd.xlane.f32.xlu0 %v7408
        %v7410 = vpop.xlane.xlu0 %7409
        %v7411 = vadd.f32 %v7274, %v7275
        %v7412 = vadd.f32 %v7411, %v7276
        %v7413 = vadd.f32 %v7412, %v7277
        %7414 = vadd.xlane.f32.xlu0 %v7413
        %v7415 = vpop.xlane.xlu0 %7414
        %v7416 = vadd.f32 %v7278, %v7279
        %v7417 = vadd.f32 %v7416, %v7280
        %v7418 = vadd.f32 %v7417, %v7281
        %7419 = vadd.xlane.f32.xlu0 %v7418
        %v7420 = vpop.xlane.xlu0 %7419
        %v7421 = vadd.f32 %v7282, %v7283
        %v7422 = vadd.f32 %v7421, %v7284
        %v7423 = vadd.f32 %v7422, %v7285
        %7424 = vadd.xlane.f32.xlu0 %v7423
        %v7425 = vpop.xlane.xlu0 %7424
        %v7426 = vadd.f32 %v7286, %v7287
        %v7427 = vadd.f32 %v7426, %v7288
        %v7428 = vadd.f32 %v7427, %v7289
        %7429 = vadd.xlane.f32.xlu0 %v7428
        %v7430 = vpop.xlane.xlu0 %7429
        %v7431 = vadd.f32 %v7290, %v7291
        %v7432 = vadd.f32 %v7431, %v7292
        %v7433 = vadd.f32 %v7432, %v7293
        %7434 = vadd.xlane.f32.xlu0 %v7433
        %v7435 = vpop.xlane.xlu0 %7434
        %v7436 = vadd.f32 %v7294, %v7295
        %v7437 = vadd.f32 %v7436, %v7296
        %v7438 = vadd.f32 %v7437, %v7297
        %7439 = vadd.xlane.f32.xlu0 %v7438
        %v7440 = vpop.xlane.xlu0 %7439
        %v7441 = vadd.f32 %v7298, %v7299
        %v7442 = vadd.f32 %v7441, %v7300
        %v7443 = vadd.f32 %v7442, %v7301
        %7444 = vadd.xlane.f32.xlu0 %v7443
        %v7445 = vpop.xlane.xlu0 %7444
        %v7446 = vadd.f32 %v7302, %v7303
        %v7447 = vadd.f32 %v7446, %v7304
        %v7448 = vadd.f32 %v7447, %v7305
        %7449 = vadd.xlane.f32.xlu0 %v7448
        %v7450 = vpop.xlane.xlu0 %7449
        %v7451 = vadd.f32 %v7306, %v7307
        %v7452 = vadd.f32 %v7451, %v7308
        %v7453 = vadd.f32 %v7452, %v7309
        %7454 = vadd.xlane.f32.xlu0 %v7453
        %v7455 = vpop.xlane.xlu0 %7454
        %v7456 = vadd.f32 %v7310, %v7311
        %v7457 = vadd.f32 %v7456, %v7312
        %v7458 = vadd.f32 %v7457, %v7313
        %7459 = vadd.xlane.f32.xlu0 %v7458
        %v7460 = vpop.xlane.xlu0 %7459
        %v7461 = vadd.f32 %v7314, %v7315
        %v7462 = vadd.f32 %v7461, %v7316
        %v7463 = vadd.f32 %v7462, %v7317
        %7464 = vadd.xlane.f32.xlu0 %v7463
        %v7465 = vpop.xlane.xlu0 %7464
        %v7466 = vadd.f32 %v7318, %v7319
        %v7467 = vadd.f32 %v7466, %v7320
        %v7468 = vadd.f32 %v7467, %v7321
        %7469 = vadd.xlane.f32.xlu0 %v7468
        %v7470 = vpop.xlane.xlu0 %7469
        %v7471 = vadd.f32 %v7322, %v7323
        %v7472 = vadd.f32 %v7471, %v7324
        %v7473 = vadd.f32 %v7472, %v7325
        %7474 = vadd.xlane.f32.xlu0 %v7473
        %v7475 = vpop.xlane.xlu0 %7474
        %v7476 = vadd.f32 %v7326, %v7327
        %v7477 = vadd.f32 %v7476, %v7328
        %v7478 = vadd.f32 %v7477, %v7329
        %7479 = vadd.xlane.f32.xlu0 %v7478
        %v7480 = vpop.xlane.xlu0 %7479
        %v7481 = vadd.f32 %v7330, %v7331
        %v7482 = vadd.f32 %v7481, %v7332
        %v7483 = vadd.f32 %v7482, %v7333
        %7484 = vadd.xlane.f32.xlu0 %v7483
        %v7485 = vpop.xlane.xlu0 %7484
        %v7486 = vadd.f32 %v7334, %v7335
        %v7487 = vadd.f32 %v7486, %v7336
        %v7488 = vadd.f32 %v7487, %v7337
        %7489 = vadd.xlane.f32.xlu0 %v7488
        %v7490 = vpop.xlane.xlu0 %7489
        %v7491 = vadd.f32 %v7338, %v7339
        %v7492 = vadd.f32 %v7491, %v7340
        %v7493 = vadd.f32 %v7492, %v7341
        %7494 = vadd.xlane.f32.xlu0 %v7493
        %v7495 = vpop.xlane.xlu0 %7494
        %v7496 = vadd.f32 %v7342, %v7343
        %v7497 = vadd.f32 %v7496, %v7344
        %v7498 = vadd.f32 %v7497, %v7345
        %7499 = vadd.xlane.f32.xlu0 %v7498
        %v7500 = vpop.xlane.xlu0 %7499
        %v7501 = vadd.f32 %v7346, %v7347
        %v7502 = vadd.f32 %v7501, %v7348
        %v7503 = vadd.f32 %v7502, %v7349
        %7504 = vadd.xlane.f32.xlu0 %v7503
        %v7505 = vpop.xlane.xlu0 %7504
        %v7506 = vadd.f32 %v7350, %v7351
        %v7507 = vadd.f32 %v7506, %v7352
        %v7508 = vadd.f32 %v7507, %v7353
        %7509 = vadd.xlane.f32.xlu0 %v7508
        %v7510 = vpop.xlane.xlu0 %7509
        %v7511 = vadd.f32 %v7354, %v7355
        %v7512 = vadd.f32 %v7511, %v7356
        %v7513 = vadd.f32 %v7512, %v7357
        %7514 = vadd.xlane.f32.xlu0 %v7513
        %v7515 = vpop.xlane.xlu0 %7514
        %v7516 = vadd.f32 %v7358, %v7359
        %v7517 = vadd.f32 %v7516, %v7360
        %v7518 = vadd.f32 %v7517, %v7361
        %7519 = vadd.xlane.f32.xlu0 %v7518
        %v7520 = vpop.xlane.xlu0 %7519
        %v7521 = vadd.f32 %v7362, %v7363
        %v7522 = vadd.f32 %v7521, %v7364
        %v7523 = vadd.f32 %v7522, %v7365
        %7524 = vadd.xlane.f32.xlu0 %v7523
        %v7525 = vpop.xlane.xlu0 %7524
        %v7526 = vsel %vm1061, %v6855, 0.0
        %v7527 = vsel %vm1062, %v6857, 0.0
        %v7528 = vsel %vm1063, %v6859, 0.0
        %v7529 = vsel %vm1064, %v6861, 0.0
        %v7530 = vsel %vm1065, %v6863, 0.0
        %v7531 = vsel %vm1066, %v6865, 0.0
        %v7532 = vsel %vm1067, %v6867, 0.0
        %v7533 = vsel %vm1068, %v6869, 0.0
        %v7534 = vsel %vm1069, %v6871, 0.0
        %v7535 = vsel %vm1070, %v6873, 0.0
        %v7536 = vsel %vm1071, %v6875, 0.0
        %v7537 = vsel %vm1072, %v6877, 0.0
        %v7538 = vsel %vm1073, %v6879, 0.0
        %v7539 = vsel %vm1074, %v6881, 0.0
        %v7540 = vsel %vm1075, %v6883, 0.0
        %v7541 = vsel %vm1076, %v6885, 0.0
        %v7542 = vsel %vm1077, %v6887, 0.0
        %v7543 = vsel %vm1078, %v6889, 0.0
        %v7544 = vsel %vm1079, %v6891, 0.0
        %v7545 = vsel %vm1080, %v6893, 0.0
        %v7546 = vsel %vm1081, %v6895, 0.0
        %v7547 = vsel %vm1082, %v6897, 0.0
        %v7548 = vsel %vm1083, %v6899, 0.0
        %v7549 = vsel %vm1084, %v6901, 0.0
        %v7550 = vsel %vm1085, %v6903, 0.0
        %v7551 = vsel %vm1086, %v6905, 0.0
        %v7552 = vsel %vm1087, %v6907, 0.0
        %v7553 = vsel %vm1088, %v6909, 0.0
        %v7554 = vsel %vm1089, %v6911, 0.0
        %v7555 = vsel %vm1090, %v6913, 0.0
        %v7556 = vsel %vm1091, %v6915, 0.0
        %v7557 = vsel %vm1092, %v6917, 0.0
        %v7558 = vsel %vm1093, %v6919, 0.0
        %v7559 = vsel %vm1094, %v6921, 0.0
        %v7560 = vsel %vm1095, %v6923, 0.0
        %v7561 = vsel %vm1096, %v6925, 0.0
        %v7562 = vsel %vm1097, %v6927, 0.0
        %v7563 = vsel %vm1098, %v6929, 0.0
        %v7564 = vsel %vm1099, %v6931, 0.0
        %v7565 = vsel %vm1100, %v6933, 0.0
        %v7566 = vsel %vm1101, %v6935, 0.0
        %v7567 = vsel %vm1102, %v6937, 0.0
        %v7568 = vsel %vm1103, %v6939, 0.0
        %v7569 = vsel %vm1104, %v6941, 0.0
        %v7570 = vsel %vm1105, %v6943, 0.0
        %v7571 = vsel %vm1106, %v6945, 0.0
        %v7572 = vsel %vm1107, %v6947, 0.0
        %v7573 = vsel %vm1108, %v6949, 0.0
        %v7574 = vsel %vm1109, %v6951, 0.0
        %v7575 = vsel %vm1110, %v6953, 0.0
        %v7576 = vsel %vm1111, %v6955, 0.0
        %v7577 = vsel %vm1112, %v6957, 0.0
        %v7578 = vsel %vm1113, %v6959, 0.0
        %v7579 = vsel %vm1114, %v6961, 0.0
        %v7580 = vsel %vm1115, %v6963, 0.0
        %v7581 = vsel %vm1116, %v6965, 0.0
        %v7582 = vsel %vm1117, %v6967, 0.0
        %v7583 = vsel %vm1118, %v6969, 0.0
        %v7584 = vsel %vm1119, %v6971, 0.0
        %v7585 = vsel %vm1120, %v6973, 0.0
        %v7586 = vsel %vm1121, %v6975, 0.0
        %v7587 = vsel %vm1122, %v6977, 0.0
        %v7588 = vsel %vm1123, %v6979, 0.0
        %v7589 = vsel %vm1124, %v6981, 0.0
        %v7590 = vsel %vm1125, %v6983, 0.0
        %v7591 = vsel %vm1126, %v6985, 0.0
        %v7592 = vsel %vm1127, %v6987, 0.0
        %v7593 = vsel %vm1128, %v6989, 0.0
        %v7594 = vsel %vm1129, %v6991, 0.0
        %v7595 = vsel %vm1130, %v6993, 0.0
        %v7596 = vsel %vm1131, %v6995, 0.0
        %v7597 = vsel %vm1132, %v6997, 0.0
        %v7598 = vsel %vm1133, %v6999, 0.0
        %v7599 = vsel %vm1134, %v7001, 0.0
        %v7600 = vsel %vm1135, %v7003, 0.0
        %v7601 = vsel %vm1136, %v7005, 0.0
        %v7602 = vsel %vm1137, %v7007, 0.0
        %v7603 = vsel %vm1138, %v7009, 0.0
        %v7604 = vsel %vm1139, %v7011, 0.0
        %v7605 = vsel %vm1140, %v7013, 0.0
        %v7606 = vsel %vm1141, %v7015, 0.0
        %v7607 = vsel %vm1142, %v7017, 0.0
        %v7608 = vsel %vm1143, %v7019, 0.0
        %v7609 = vsel %vm1144, %v7021, 0.0
        %v7610 = vsel %vm1145, %v7023, 0.0
        %v7611 = vsel %vm1146, %v7025, 0.0
        %v7612 = vsel %vm1147, %v7027, 0.0
        %v7613 = vsel %vm1148, %v7029, 0.0
        %v7614 = vsel %vm1149, %v7031, 0.0
        %v7615 = vsel %vm1150, %v7033, 0.0
        %v7616 = vsel %vm1151, %v7035, 0.0
        %v7617 = vsel %vm1152, %v7037, 0.0
        %v7618 = vsel %vm1153, %v7039, 0.0
        %v7619 = vsel %vm1154, %v7041, 0.0
        %v7620 = vsel %vm1155, %v7043, 0.0
        %v7621 = vsel %vm1156, %v7045, 0.0
        %v7622 = vsel %vm1157, %v7047, 0.0
        %v7623 = vsel %vm1158, %v7049, 0.0
        %v7624 = vsel %vm1159, %v7051, 0.0
        %v7625 = vsel %vm1160, %v7053, 0.0
        %v7626 = vsel %vm1161, %v7055, 0.0
        %v7627 = vsel %vm1162, %v7057, 0.0
        %v7628 = vsel %vm1163, %v7059, 0.0
        %v7629 = vsel %vm1164, %v7061, 0.0
        %v7630 = vsel %vm1165, %v7063, 0.0
        %v7631 = vsel %vm1166, %v7065, 0.0
        %v7632 = vsel %vm1167, %v7067, 0.0
        %v7633 = vsel %vm1168, %v7069, 0.0
        %v7634 = vsel %vm1169, %v7071, 0.0
        %v7635 = vsel %vm1170, %v7073, 0.0
        %v7636 = vsel %vm1171, %v7075, 0.0
        %v7637 = vsel %vm1172, %v7077, 0.0
        %v7638 = vsel %vm1173, %v7079, 0.0
        %v7639 = vsel %vm1174, %v7081, 0.0
        %v7640 = vsel %vm1175, %v7083, 0.0
        %v7641 = vsel %vm1176, %v7085, 0.0
        %v7642 = vsel %vm1177, %v7087, 0.0
        %v7643 = vsel %vm1178, %v7089, 0.0
        %v7644 = vsel %vm1179, %v7091, 0.0
        %v7645 = vsel %vm1180, %v7093, 0.0
        %v7646 = vsel %vm1181, %v7095, 0.0
        %v7647 = vsel %vm1182, %v7097, 0.0
        %v7648 = vsel %vm1183, %v7099, 0.0
        %v7649 = vsel %vm1184, %v7101, 0.0
        %v7650 = vsel %vm1185, %v7103, 0.0
        %v7651 = vsel %vm1186, %v7105, 0.0
        %v7652 = vsel %vm1187, %v7107, 0.0
        %v7653 = vsel %vm1188, %v7109, 0.0
        %v7654 = vadd.f32 %v7526, %v7527
        %v7655 = vadd.f32 %v7654, %v7528
        %v7656 = vadd.f32 %v7655, %v7529
        %7657 = vadd.xlane.f32.xlu0 %v7656
        %v7658 = vpop.xlane.xlu0 %7657
        %v7659 = vadd.f32 %v7530, %v7531
        %v7660 = vadd.f32 %v7659, %v7532
        %v7661 = vadd.f32 %v7660, %v7533
        %7662 = vadd.xlane.f32.xlu0 %v7661
        %v7663 = vpop.xlane.xlu0 %7662
        %v7664 = vadd.f32 %v7534, %v7535
        %v7665 = vadd.f32 %v7664, %v7536
        %v7666 = vadd.f32 %v7665, %v7537
        %7667 = vadd.xlane.f32.xlu0 %v7666
        %v7668 = vpop.xlane.xlu0 %7667
        %v7669 = vadd.f32 %v7538, %v7539
        %v7670 = vadd.f32 %v7669, %v7540
        %v7671 = vadd.f32 %v7670, %v7541
        %7672 = vadd.xlane.f32.xlu0 %v7671
        %v7673 = vpop.xlane.xlu0 %7672
        %v7674 = vadd.f32 %v7542, %v7543
        %v7675 = vadd.f32 %v7674, %v7544
        %v7676 = vadd.f32 %v7675, %v7545
        %7677 = vadd.xlane.f32.xlu0 %v7676
        %v7678 = vpop.xlane.xlu0 %7677
        %v7679 = vadd.f32 %v7546, %v7547
        %v7680 = vadd.f32 %v7679, %v7548
        %v7681 = vadd.f32 %v7680, %v7549
        %7682 = vadd.xlane.f32.xlu0 %v7681
        %v7683 = vpop.xlane.xlu0 %7682
        %v7684 = vadd.f32 %v7550, %v7551
        %v7685 = vadd.f32 %v7684, %v7552
        %v7686 = vadd.f32 %v7685, %v7553
        %7687 = vadd.xlane.f32.xlu0 %v7686
        %v7688 = vpop.xlane.xlu0 %7687
        %v7689 = vadd.f32 %v7554, %v7555
        %v7690 = vadd.f32 %v7689, %v7556
        %v7691 = vadd.f32 %v7690, %v7557
        %7692 = vadd.xlane.f32.xlu0 %v7691
        %v7693 = vpop.xlane.xlu0 %7692
        %v7694 = vadd.f32 %v7558, %v7559
        %v7695 = vadd.f32 %v7694, %v7560
        %v7696 = vadd.f32 %v7695, %v7561
        %7697 = vadd.xlane.f32.xlu0 %v7696
        %v7698 = vpop.xlane.xlu0 %7697
        %v7699 = vadd.f32 %v7562, %v7563
        %v7700 = vadd.f32 %v7699, %v7564
        %v7701 = vadd.f32 %v7700, %v7565
        %7702 = vadd.xlane.f32.xlu0 %v7701
        %v7703 = vpop.xlane.xlu0 %7702
        %v7704 = vadd.f32 %v7566, %v7567
        %v7705 = vadd.f32 %v7704, %v7568
        %v7706 = vadd.f32 %v7705, %v7569
        %7707 = vadd.xlane.f32.xlu0 %v7706
        %v7708 = vpop.xlane.xlu0 %7707
        %v7709 = vadd.f32 %v7570, %v7571
        %v7710 = vadd.f32 %v7709, %v7572
        %v7711 = vadd.f32 %v7710, %v7573
        %7712 = vadd.xlane.f32.xlu0 %v7711
        %v7713 = vpop.xlane.xlu0 %7712
        %v7714 = vadd.f32 %v7574, %v7575
        %v7715 = vadd.f32 %v7714, %v7576
        %v7716 = vadd.f32 %v7715, %v7577
        %7717 = vadd.xlane.f32.xlu0 %v7716
        %v7718 = vpop.xlane.xlu0 %7717
        %v7719 = vadd.f32 %v7578, %v7579
        %v7720 = vadd.f32 %v7719, %v7580
        %v7721 = vadd.f32 %v7720, %v7581
        %7722 = vadd.xlane.f32.xlu0 %v7721
        %v7723 = vpop.xlane.xlu0 %7722
        %v7724 = vadd.f32 %v7582, %v7583
        %v7725 = vadd.f32 %v7724, %v7584
        %v7726 = vadd.f32 %v7725, %v7585
        %7727 = vadd.xlane.f32.xlu0 %v7726
        %v7728 = vpop.xlane.xlu0 %7727
        %v7729 = vadd.f32 %v7586, %v7587
        %v7730 = vadd.f32 %v7729, %v7588
        %v7731 = vadd.f32 %v7730, %v7589
        %7732 = vadd.xlane.f32.xlu0 %v7731
        %v7733 = vpop.xlane.xlu0 %7732
        %v7734 = vadd.f32 %v7590, %v7591
        %v7735 = vadd.f32 %v7734, %v7592
        %v7736 = vadd.f32 %v7735, %v7593
        %7737 = vadd.xlane.f32.xlu0 %v7736
        %v7738 = vpop.xlane.xlu0 %7737
        %v7739 = vadd.f32 %v7594, %v7595
        %v7740 = vadd.f32 %v7739, %v7596
        %v7741 = vadd.f32 %v7740, %v7597
        %7742 = vadd.xlane.f32.xlu0 %v7741
        %v7743 = vpop.xlane.xlu0 %7742
        %v7744 = vadd.f32 %v7598, %v7599
        %v7745 = vadd.f32 %v7744, %v7600
        %v7746 = vadd.f32 %v7745, %v7601
        %7747 = vadd.xlane.f32.xlu0 %v7746
        %v7748 = vpop.xlane.xlu0 %7747
        %v7749 = vadd.f32 %v7602, %v7603
        %v7750 = vadd.f32 %v7749, %v7604
        %v7751 = vadd.f32 %v7750, %v7605
        %7752 = vadd.xlane.f32.xlu0 %v7751
        %v7753 = vpop.xlane.xlu0 %7752
        %v7754 = vadd.f32 %v7606, %v7607
        %v7755 = vadd.f32 %v7754, %v7608
        %v7756 = vadd.f32 %v7755, %v7609
        %7757 = vadd.xlane.f32.xlu0 %v7756
        %v7758 = vpop.xlane.xlu0 %7757
        %v7759 = vadd.f32 %v7610, %v7611
        %v7760 = vadd.f32 %v7759, %v7612
        %v7761 = vadd.f32 %v7760, %v7613
        %7762 = vadd.xlane.f32.xlu0 %v7761
        %v7763 = vpop.xlane.xlu0 %7762
        %v7764 = vadd.f32 %v7614, %v7615
        %v7765 = vadd.f32 %v7764, %v7616
        %v7766 = vadd.f32 %v7765, %v7617
        %7767 = vadd.xlane.f32.xlu0 %v7766
        %v7768 = vpop.xlane.xlu0 %7767
        %v7769 = vadd.f32 %v7618, %v7619
        %v7770 = vadd.f32 %v7769, %v7620
        %v7771 = vadd.f32 %v7770, %v7621
        %7772 = vadd.xlane.f32.xlu0 %v7771
        %v7773 = vpop.xlane.xlu0 %7772
        %v7774 = vadd.f32 %v7622, %v7623
        %v7775 = vadd.f32 %v7774, %v7624
        %v7776 = vadd.f32 %v7775, %v7625
        %7777 = vadd.xlane.f32.xlu0 %v7776
        %v7778 = vpop.xlane.xlu0 %7777
        %v7779 = vadd.f32 %v7626, %v7627
        %v7780 = vadd.f32 %v7779, %v7628
        %v7781 = vadd.f32 %v7780, %v7629
        %7782 = vadd.xlane.f32.xlu0 %v7781
        %v7783 = vpop.xlane.xlu0 %7782
        %v7784 = vadd.f32 %v7630, %v7631
        %v7785 = vadd.f32 %v7784, %v7632
        %v7786 = vadd.f32 %v7785, %v7633
        %7787 = vadd.xlane.f32.xlu0 %v7786
        %v7788 = vpop.xlane.xlu0 %7787
        %v7789 = vadd.f32 %v7634, %v7635
        %v7790 = vadd.f32 %v7789, %v7636
        %v7791 = vadd.f32 %v7790, %v7637
        %7792 = vadd.xlane.f32.xlu0 %v7791
        %v7793 = vpop.xlane.xlu0 %7792
        %v7794 = vadd.f32 %v7638, %v7639
        %v7795 = vadd.f32 %v7794, %v7640
        %v7796 = vadd.f32 %v7795, %v7641
        %7797 = vadd.xlane.f32.xlu0 %v7796
        %v7798 = vpop.xlane.xlu0 %7797
        %v7799 = vadd.f32 %v7642, %v7643
        %v7800 = vadd.f32 %v7799, %v7644
        %v7801 = vadd.f32 %v7800, %v7645
        %7802 = vadd.xlane.f32.xlu0 %v7801
        %v7803 = vpop.xlane.xlu0 %7802
        %v7804 = vadd.f32 %v7646, %v7647
        %v7805 = vadd.f32 %v7804, %v7648
        %v7806 = vadd.f32 %v7805, %v7649
        %7807 = vadd.xlane.f32.xlu0 %v7806
        %v7808 = vpop.xlane.xlu0 %7807
        %v7809 = vadd.f32 %v7650, %v7651
        %v7810 = vadd.f32 %v7809, %v7652
        %v7811 = vadd.f32 %v7810, %v7653
        %7812 = vadd.xlane.f32.xlu0 %v7811
        %v7813 = vpop.xlane.xlu0 %7812
        %v7814 = vrcp.pop %v7370
        %v7815 = vmul.f32 %v7370, %v7814
        %v7816 = vsub.f32 1.0, %v7815
        %v7817 = vmul.f32 %v7814, %v7816
        %v7818 = vadd.f32 %v7814, %v7817
        %vm7819 = vweird.f32 %v7370
        %vm7820 = vweird.f32 %v7814
        %vm7821 = vmor %vm7819, %vm7820
        %v7822 = vsel %vm7821, %v7814, %v7818
        %v7823 = vand.u32 2147483647, %v7370
        %vm7824 = vcmp.eq.f32.partialorder %v7823, 8.507059e+37
        %v7825 = vand.u32 %v7370, 2147483648
        %v7826 = vor.u32 1.1754944e-38, %v7825
        %v7827 = vsel %vm7824, %v7826, %v7822
        %v7828 = vmul.f32 %v7658, %v7827
        %v7829 = vrcp.pop %v7375
        %v7830 = vmul.f32 %v7375, %v7829
        %v7831 = vsub.f32 1.0, %v7830
        %v7832 = vmul.f32 %v7829, %v7831
        %v7833 = vadd.f32 %v7829, %v7832
        %vm7834 = vweird.f32 %v7375
        %vm7835 = vweird.f32 %v7829
        %vm7836 = vmor %vm7834, %vm7835
        %v7837 = vsel %vm7836, %v7829, %v7833
        %v7838 = vand.u32 2147483647, %v7375
        %vm7839 = vcmp.eq.f32.partialorder %v7838, 8.507059e+37
        %v7840 = vand.u32 %v7375, 2147483648
        %v7841 = vor.u32 1.1754944e-38, %v7840
        %v7842 = vsel %vm7839, %v7841, %v7837
        %v7843 = vmul.f32 %v7663, %v7842
        %v7844 = vrcp.pop %v7380
        %v7845 = vmul.f32 %v7380, %v7844
        %v7846 = vsub.f32 1.0, %v7845
        %v7847 = vmul.f32 %v7844, %v7846
        %v7848 = vadd.f32 %v7844, %v7847
        %vm7849 = vweird.f32 %v7380
        %vm7850 = vweird.f32 %v7844
        %vm7851 = vmor %vm7849, %vm7850
        %v7852 = vsel %vm7851, %v7844, %v7848
        %v7853 = vand.u32 2147483647, %v7380
        %vm7854 = vcmp.eq.f32.partialorder %v7853, 8.507059e+37
        %v7855 = vand.u32 %v7380, 2147483648
        %v7856 = vor.u32 1.1754944e-38, %v7855
        %v7857 = vsel %vm7854, %v7856, %v7852
        %v7858 = vmul.f32 %v7668, %v7857
        %v7859 = vrcp.pop %v7385
        %v7860 = vmul.f32 %v7385, %v7859
        %v7861 = vsub.f32 1.0, %v7860
        %v7862 = vmul.f32 %v7859, %v7861
        %v7863 = vadd.f32 %v7859, %v7862
        %vm7864 = vweird.f32 %v7385
        %vm7865 = vweird.f32 %v7859
        %vm7866 = vmor %vm7864, %vm7865
        %v7867 = vsel %vm7866, %v7859, %v7863
        %v7868 = vand.u32 2147483647, %v7385
        %vm7869 = vcmp.eq.f32.partialorder %v7868, 8.507059e+37
        %v7870 = vand.u32 %v7385, 2147483648
        %v7871 = vor.u32 1.1754944e-38, %v7870
        %v7872 = vsel %vm7869, %v7871, %v7867
        %v7873 = vmul.f32 %v7673, %v7872
        %v7874 = vrcp.pop %v7390
        %v7875 = vmul.f32 %v7390, %v7874
        %v7876 = vsub.f32 1.0, %v7875
        %v7877 = vmul.f32 %v7874, %v7876
        %v7878 = vadd.f32 %v7874, %v7877
        %vm7879 = vweird.f32 %v7390
        %vm7880 = vweird.f32 %v7874
        %vm7881 = vmor %vm7879, %vm7880
        %v7882 = vsel %vm7881, %v7874, %v7878
        %v7883 = vand.u32 2147483647, %v7390
        %vm7884 = vcmp.eq.f32.partialorder %v7883, 8.507059e+37
        %v7885 = vand.u32 %v7390, 2147483648
        %v7886 = vor.u32 1.1754944e-38, %v7885
        %v7887 = vsel %vm7884, %v7886, %v7882
        %v7888 = vmul.f32 %v7678, %v7887
        %v7889 = vrcp.pop %v7395
        %v7890 = vmul.f32 %v7395, %v7889
        %v7891 = vsub.f32 1.0, %v7890
        %v7892 = vmul.f32 %v7889, %v7891
        %v7893 = vadd.f32 %v7889, %v7892
        %vm7894 = vweird.f32 %v7395
        %vm7895 = vweird.f32 %v7889
        %vm7896 = vmor %vm7894, %vm7895
        %v7897 = vsel %vm7896, %v7889, %v7893
        %v7898 = vand.u32 2147483647, %v7395
        %vm7899 = vcmp.eq.f32.partialorder %v7898, 8.507059e+37
        %v7900 = vand.u32 %v7395, 2147483648
        %v7901 = vor.u32 1.1754944e-38, %v7900
        %v7902 = vsel %vm7899, %v7901, %v7897
        %v7903 = vmul.f32 %v7683, %v7902
        %v7904 = vrcp.pop %v7400
        %v7905 = vmul.f32 %v7400, %v7904
        %v7906 = vsub.f32 1.0, %v7905
        %v7907 = vmul.f32 %v7904, %v7906
        %v7908 = vadd.f32 %v7904, %v7907
        %vm7909 = vweird.f32 %v7400
        %vm7910 = vweird.f32 %v7904
        %vm7911 = vmor %vm7909, %vm7910
        %v7912 = vsel %vm7911, %v7904, %v7908
        %v7913 = vand.u32 2147483647, %v7400
        %vm7914 = vcmp.eq.f32.partialorder %v7913, 8.507059e+37
        %v7915 = vand.u32 %v7400, 2147483648
        %v7916 = vor.u32 1.1754944e-38, %v7915
        %v7917 = vsel %vm7914, %v7916, %v7912
        %v7918 = vmul.f32 %v7688, %v7917
        %v7919 = vrcp.pop %v7405
        %v7920 = vmul.f32 %v7405, %v7919
        %v7921 = vsub.f32 1.0, %v7920
        %v7922 = vmul.f32 %v7919, %v7921
        %v7923 = vadd.f32 %v7919, %v7922
        %vm7924 = vweird.f32 %v7405
        %vm7925 = vweird.f32 %v7919
        %vm7926 = vmor %vm7924, %vm7925
        %v7927 = vsel %vm7926, %v7919, %v7923
        %v7928 = vand.u32 2147483647, %v7405
        %vm7929 = vcmp.eq.f32.partialorder %v7928, 8.507059e+37
        %v7930 = vand.u32 %v7405, 2147483648
        %v7931 = vor.u32 1.1754944e-38, %v7930
        %v7932 = vsel %vm7929, %v7931, %v7927
        %v7933 = vmul.f32 %v7693, %v7932
        %v7934 = vrcp.pop %v7410
        %v7935 = vmul.f32 %v7410, %v7934
        %v7936 = vsub.f32 1.0, %v7935
        %v7937 = vmul.f32 %v7934, %v7936
        %v7938 = vadd.f32 %v7934, %v7937
        %vm7939 = vweird.f32 %v7410
        %vm7940 = vweird.f32 %v7934
        %vm7941 = vmor %vm7939, %vm7940
        %v7942 = vsel %vm7941, %v7934, %v7938
        %v7943 = vand.u32 2147483647, %v7410
        %vm7944 = vcmp.eq.f32.partialorder %v7943, 8.507059e+37
        %v7945 = vand.u32 %v7410, 2147483648
        %v7946 = vor.u32 1.1754944e-38, %v7945
        %v7947 = vsel %vm7944, %v7946, %v7942
        %v7948 = vmul.f32 %v7698, %v7947
        %v7949 = vrcp.pop %v7415
        %v7950 = vmul.f32 %v7415, %v7949
        %v7951 = vsub.f32 1.0, %v7950
        %v7952 = vmul.f32 %v7949, %v7951
        %v7953 = vadd.f32 %v7949, %v7952
        %vm7954 = vweird.f32 %v7415
        %vm7955 = vweird.f32 %v7949
        %vm7956 = vmor %vm7954, %vm7955
        %v7957 = vsel %vm7956, %v7949, %v7953
        %v7958 = vand.u32 2147483647, %v7415
        %vm7959 = vcmp.eq.f32.partialorder %v7958, 8.507059e+37
        %v7960 = vand.u32 %v7415, 2147483648
        %v7961 = vor.u32 1.1754944e-38, %v7960
        %v7962 = vsel %vm7959, %v7961, %v7957
        %v7963 = vmul.f32 %v7703, %v7962
        %v7964 = vrcp.pop %v7420
        %v7965 = vmul.f32 %v7420, %v7964
        %v7966 = vsub.f32 1.0, %v7965
        %v7967 = vmul.f32 %v7964, %v7966
        %v7968 = vadd.f32 %v7964, %v7967
        %vm7969 = vweird.f32 %v7420
        %vm7970 = vweird.f32 %v7964
        %vm7971 = vmor %vm7969, %vm7970
        %v7972 = vsel %vm7971, %v7964, %v7968
        %v7973 = vand.u32 2147483647, %v7420
        %vm7974 = vcmp.eq.f32.partialorder %v7973, 8.507059e+37
        %v7975 = vand.u32 %v7420, 2147483648
        %v7976 = vor.u32 1.1754944e-38, %v7975
        %v7977 = vsel %vm7974, %v7976, %v7972
        %v7978 = vmul.f32 %v7708, %v7977
        %v7979 = vrcp.pop %v7425
        %v7980 = vmul.f32 %v7425, %v7979
        %v7981 = vsub.f32 1.0, %v7980
        %v7982 = vmul.f32 %v7979, %v7981
        %v7983 = vadd.f32 %v7979, %v7982
        %vm7984 = vweird.f32 %v7425
        %vm7985 = vweird.f32 %v7979
        %vm7986 = vmor %vm7984, %vm7985
        %v7987 = vsel %vm7986, %v7979, %v7983
        %v7988 = vand.u32 2147483647, %v7425
        %vm7989 = vcmp.eq.f32.partialorder %v7988, 8.507059e+37
        %v7990 = vand.u32 %v7425, 2147483648
        %v7991 = vor.u32 1.1754944e-38, %v7990
        %v7992 = vsel %vm7989, %v7991, %v7987
        %v7993 = vmul.f32 %v7713, %v7992
        %v7994 = vrcp.pop %v7430
        %v7995 = vmul.f32 %v7430, %v7994
        %v7996 = vsub.f32 1.0, %v7995
        %v7997 = vmul.f32 %v7994, %v7996
        %v7998 = vadd.f32 %v7994, %v7997
        %vm7999 = vweird.f32 %v7430
        %vm8000 = vweird.f32 %v7994
        %vm8001 = vmor %vm7999, %vm8000
        %v8002 = vsel %vm8001, %v7994, %v7998
        %v8003 = vand.u32 2147483647, %v7430
        %vm8004 = vcmp.eq.f32.partialorder %v8003, 8.507059e+37
        %v8005 = vand.u32 %v7430, 2147483648
        %v8006 = vor.u32 1.1754944e-38, %v8005
        %v8007 = vsel %vm8004, %v8006, %v8002
        %v8008 = vmul.f32 %v7718, %v8007
        %v8009 = vrcp.pop %v7435
        %v8010 = vmul.f32 %v7435, %v8009
        %v8011 = vsub.f32 1.0, %v8010
        %v8012 = vmul.f32 %v8009, %v8011
        %v8013 = vadd.f32 %v8009, %v8012
        %vm8014 = vweird.f32 %v7435
        %vm8015 = vweird.f32 %v8009
        %vm8016 = vmor %vm8014, %vm8015
        %v8017 = vsel %vm8016, %v8009, %v8013
        %v8018 = vand.u32 2147483647, %v7435
        %vm8019 = vcmp.eq.f32.partialorder %v8018, 8.507059e+37
        %v8020 = vand.u32 %v7435, 2147483648
        %v8021 = vor.u32 1.1754944e-38, %v8020
        %v8022 = vsel %vm8019, %v8021, %v8017
        %v8023 = vmul.f32 %v7723, %v8022
        %v8024 = vrcp.pop %v7440
        %v8025 = vmul.f32 %v7440, %v8024
        %v8026 = vsub.f32 1.0, %v8025
        %v8027 = vmul.f32 %v8024, %v8026
        %v8028 = vadd.f32 %v8024, %v8027
        %vm8029 = vweird.f32 %v7440
        %vm8030 = vweird.f32 %v8024
        %vm8031 = vmor %vm8029, %vm8030
        %v8032 = vsel %vm8031, %v8024, %v8028
        %v8033 = vand.u32 2147483647, %v7440
        %vm8034 = vcmp.eq.f32.partialorder %v8033, 8.507059e+37
        %v8035 = vand.u32 %v7440, 2147483648
        %v8036 = vor.u32 1.1754944e-38, %v8035
        %v8037 = vsel %vm8034, %v8036, %v8032
        %v8038 = vmul.f32 %v7728, %v8037
        %v8039 = vrcp.pop %v7445
        %v8040 = vmul.f32 %v7445, %v8039
        %v8041 = vsub.f32 1.0, %v8040
        %v8042 = vmul.f32 %v8039, %v8041
        %v8043 = vadd.f32 %v8039, %v8042
        %vm8044 = vweird.f32 %v7445
        %vm8045 = vweird.f32 %v8039
        %vm8046 = vmor %vm8044, %vm8045
        %v8047 = vsel %vm8046, %v8039, %v8043
        %v8048 = vand.u32 2147483647, %v7445
        %vm8049 = vcmp.eq.f32.partialorder %v8048, 8.507059e+37
        %v8050 = vand.u32 %v7445, 2147483648
        %v8051 = vor.u32 1.1754944e-38, %v8050
        %v8052 = vsel %vm8049, %v8051, %v8047
        %v8053 = vmul.f32 %v7733, %v8052
        %v8054 = vrcp.pop %v7450
        %v8055 = vmul.f32 %v7450, %v8054
        %v8056 = vsub.f32 1.0, %v8055
        %v8057 = vmul.f32 %v8054, %v8056
        %v8058 = vadd.f32 %v8054, %v8057
        %vm8059 = vweird.f32 %v7450
        %vm8060 = vweird.f32 %v8054
        %vm8061 = vmor %vm8059, %vm8060
        %v8062 = vsel %vm8061, %v8054, %v8058
        %v8063 = vand.u32 2147483647, %v7450
        %vm8064 = vcmp.eq.f32.partialorder %v8063, 8.507059e+37
        %v8065 = vand.u32 %v7450, 2147483648
        %v8066 = vor.u32 1.1754944e-38, %v8065
        %v8067 = vsel %vm8064, %v8066, %v8062
        %v8068 = vmul.f32 %v7738, %v8067
        %v8069 = vrcp.pop %v7455
        %v8070 = vmul.f32 %v7455, %v8069
        %v8071 = vsub.f32 1.0, %v8070
        %v8072 = vmul.f32 %v8069, %v8071
        %v8073 = vadd.f32 %v8069, %v8072
        %vm8074 = vweird.f32 %v7455
        %vm8075 = vweird.f32 %v8069
        %vm8076 = vmor %vm8074, %vm8075
        %v8077 = vsel %vm8076, %v8069, %v8073
        %v8078 = vand.u32 2147483647, %v7455
        %vm8079 = vcmp.eq.f32.partialorder %v8078, 8.507059e+37
        %v8080 = vand.u32 %v7455, 2147483648
        %v8081 = vor.u32 1.1754944e-38, %v8080
        %v8082 = vsel %vm8079, %v8081, %v8077
        %v8083 = vmul.f32 %v7743, %v8082
        %v8084 = vrcp.pop %v7460
        %v8085 = vmul.f32 %v7460, %v8084
        %v8086 = vsub.f32 1.0, %v8085
        %v8087 = vmul.f32 %v8084, %v8086
        %v8088 = vadd.f32 %v8084, %v8087
        %vm8089 = vweird.f32 %v7460
        %vm8090 = vweird.f32 %v8084
        %vm8091 = vmor %vm8089, %vm8090
        %v8092 = vsel %vm8091, %v8084, %v8088
        %v8093 = vand.u32 2147483647, %v7460
        %vm8094 = vcmp.eq.f32.partialorder %v8093, 8.507059e+37
        %v8095 = vand.u32 %v7460, 2147483648
        %v8096 = vor.u32 1.1754944e-38, %v8095
        %v8097 = vsel %vm8094, %v8096, %v8092
        %v8098 = vmul.f32 %v7748, %v8097
        %v8099 = vrcp.pop %v7465
        %v8100 = vmul.f32 %v7465, %v8099
        %v8101 = vsub.f32 1.0, %v8100
        %v8102 = vmul.f32 %v8099, %v8101
        %v8103 = vadd.f32 %v8099, %v8102
        %vm8104 = vweird.f32 %v7465
        %vm8105 = vweird.f32 %v8099
        %vm8106 = vmor %vm8104, %vm8105
        %v8107 = vsel %vm8106, %v8099, %v8103
        %v8108 = vand.u32 2147483647, %v7465
        %vm8109 = vcmp.eq.f32.partialorder %v8108, 8.507059e+37
        %v8110 = vand.u32 %v7465, 2147483648
        %v8111 = vor.u32 1.1754944e-38, %v8110
        %v8112 = vsel %vm8109, %v8111, %v8107
        %v8113 = vmul.f32 %v7753, %v8112
        %v8114 = vrcp.pop %v7470
        %v8115 = vmul.f32 %v7470, %v8114
        %v8116 = vsub.f32 1.0, %v8115
        %v8117 = vmul.f32 %v8114, %v8116
        %v8118 = vadd.f32 %v8114, %v8117
        %vm8119 = vweird.f32 %v7470
        %vm8120 = vweird.f32 %v8114
        %vm8121 = vmor %vm8119, %vm8120
        %v8122 = vsel %vm8121, %v8114, %v8118
        %v8123 = vand.u32 2147483647, %v7470
        %vm8124 = vcmp.eq.f32.partialorder %v8123, 8.507059e+37
        %v8125 = vand.u32 %v7470, 2147483648
        %v8126 = vor.u32 1.1754944e-38, %v8125
        %v8127 = vsel %vm8124, %v8126, %v8122
        %v8128 = vmul.f32 %v7758, %v8127
        %v8129 = vrcp.pop %v7475
        %v8130 = vmul.f32 %v7475, %v8129
        %v8131 = vsub.f32 1.0, %v8130
        %v8132 = vmul.f32 %v8129, %v8131
        %v8133 = vadd.f32 %v8129, %v8132
        %vm8134 = vweird.f32 %v7475
        %vm8135 = vweird.f32 %v8129
        %vm8136 = vmor %vm8134, %vm8135
        %v8137 = vsel %vm8136, %v8129, %v8133
        %v8138 = vand.u32 2147483647, %v7475
        %vm8139 = vcmp.eq.f32.partialorder %v8138, 8.507059e+37
        %v8140 = vand.u32 %v7475, 2147483648
        %v8141 = vor.u32 1.1754944e-38, %v8140
        %v8142 = vsel %vm8139, %v8141, %v8137
        %v8143 = vmul.f32 %v7763, %v8142
        %v8144 = vrcp.pop %v7480
        %v8145 = vmul.f32 %v7480, %v8144
        %v8146 = vsub.f32 1.0, %v8145
        %v8147 = vmul.f32 %v8144, %v8146
        %v8148 = vadd.f32 %v8144, %v8147
        %vm8149 = vweird.f32 %v7480
        %vm8150 = vweird.f32 %v8144
        %vm8151 = vmor %vm8149, %vm8150
        %v8152 = vsel %vm8151, %v8144, %v8148
        %v8153 = vand.u32 2147483647, %v7480
        %vm8154 = vcmp.eq.f32.partialorder %v8153, 8.507059e+37
        %v8155 = vand.u32 %v7480, 2147483648
        %v8156 = vor.u32 1.1754944e-38, %v8155
        %v8157 = vsel %vm8154, %v8156, %v8152
        %v8158 = vmul.f32 %v7768, %v8157
        %v8159 = vrcp.pop %v7485
        %v8160 = vmul.f32 %v7485, %v8159
        %v8161 = vsub.f32 1.0, %v8160
        %v8162 = vmul.f32 %v8159, %v8161
        %v8163 = vadd.f32 %v8159, %v8162
        %vm8164 = vweird.f32 %v7485
        %vm8165 = vweird.f32 %v8159
        %vm8166 = vmor %vm8164, %vm8165
        %v8167 = vsel %vm8166, %v8159, %v8163
        %v8168 = vand.u32 2147483647, %v7485
        %vm8169 = vcmp.eq.f32.partialorder %v8168, 8.507059e+37
        %v8170 = vand.u32 %v7485, 2147483648
        %v8171 = vor.u32 1.1754944e-38, %v8170
        %v8172 = vsel %vm8169, %v8171, %v8167
        %v8173 = vmul.f32 %v7773, %v8172
        %v8174 = vrcp.pop %v7490
        %v8175 = vmul.f32 %v7490, %v8174
        %v8176 = vsub.f32 1.0, %v8175
        %v8177 = vmul.f32 %v8174, %v8176
        %v8178 = vadd.f32 %v8174, %v8177
        %vm8179 = vweird.f32 %v7490
        %vm8180 = vweird.f32 %v8174
        %vm8181 = vmor %vm8179, %vm8180
        %v8182 = vsel %vm8181, %v8174, %v8178
        %v8183 = vand.u32 2147483647, %v7490
        %vm8184 = vcmp.eq.f32.partialorder %v8183, 8.507059e+37
        %v8185 = vand.u32 %v7490, 2147483648
        %v8186 = vor.u32 1.1754944e-38, %v8185
        %v8187 = vsel %vm8184, %v8186, %v8182
        %v8188 = vmul.f32 %v7778, %v8187
        %v8189 = vrcp.pop %v7495
        %v8190 = vmul.f32 %v7495, %v8189
        %v8191 = vsub.f32 1.0, %v8190
        %v8192 = vmul.f32 %v8189, %v8191
        %v8193 = vadd.f32 %v8189, %v8192
        %vm8194 = vweird.f32 %v7495
        %vm8195 = vweird.f32 %v8189
        %vm8196 = vmor %vm8194, %vm8195
        %v8197 = vsel %vm8196, %v8189, %v8193
        %v8198 = vand.u32 2147483647, %v7495
        %vm8199 = vcmp.eq.f32.partialorder %v8198, 8.507059e+37
        %v8200 = vand.u32 %v7495, 2147483648
        %v8201 = vor.u32 1.1754944e-38, %v8200
        %v8202 = vsel %vm8199, %v8201, %v8197
        %v8203 = vmul.f32 %v7783, %v8202
        %v8204 = vrcp.pop %v7500
        %v8205 = vmul.f32 %v7500, %v8204
        %v8206 = vsub.f32 1.0, %v8205
        %v8207 = vmul.f32 %v8204, %v8206
        %v8208 = vadd.f32 %v8204, %v8207
        %vm8209 = vweird.f32 %v7500
        %vm8210 = vweird.f32 %v8204
        %vm8211 = vmor %vm8209, %vm8210
        %v8212 = vsel %vm8211, %v8204, %v8208
        %v8213 = vand.u32 2147483647, %v7500
        %vm8214 = vcmp.eq.f32.partialorder %v8213, 8.507059e+37
        %v8215 = vand.u32 %v7500, 2147483648
        %v8216 = vor.u32 1.1754944e-38, %v8215
        %v8217 = vsel %vm8214, %v8216, %v8212
        %v8218 = vmul.f32 %v7788, %v8217
        %v8219 = vrcp.pop %v7505
        %v8220 = vmul.f32 %v7505, %v8219
        %v8221 = vsub.f32 1.0, %v8220
        %v8222 = vmul.f32 %v8219, %v8221
        %v8223 = vadd.f32 %v8219, %v8222
        %vm8224 = vweird.f32 %v7505
        %vm8225 = vweird.f32 %v8219
        %vm8226 = vmor %vm8224, %vm8225
        %v8227 = vsel %vm8226, %v8219, %v8223
        %v8228 = vand.u32 2147483647, %v7505
        %vm8229 = vcmp.eq.f32.partialorder %v8228, 8.507059e+37
        %v8230 = vand.u32 %v7505, 2147483648
        %v8231 = vor.u32 1.1754944e-38, %v8230
        %v8232 = vsel %vm8229, %v8231, %v8227
        %v8233 = vmul.f32 %v7793, %v8232
        %v8234 = vrcp.pop %v7510
        %v8235 = vmul.f32 %v7510, %v8234
        %v8236 = vsub.f32 1.0, %v8235
        %v8237 = vmul.f32 %v8234, %v8236
        %v8238 = vadd.f32 %v8234, %v8237
        %vm8239 = vweird.f32 %v7510
        %vm8240 = vweird.f32 %v8234
        %vm8241 = vmor %vm8239, %vm8240
        %v8242 = vsel %vm8241, %v8234, %v8238
        %v8243 = vand.u32 2147483647, %v7510
        %vm8244 = vcmp.eq.f32.partialorder %v8243, 8.507059e+37
        %v8245 = vand.u32 %v7510, 2147483648
        %v8246 = vor.u32 1.1754944e-38, %v8245
        %v8247 = vsel %vm8244, %v8246, %v8242
        %v8248 = vmul.f32 %v7798, %v8247
        %v8249 = vrcp.pop %v7515
        %v8250 = vmul.f32 %v7515, %v8249
        %v8251 = vsub.f32 1.0, %v8250
        %v8252 = vmul.f32 %v8249, %v8251
        %v8253 = vadd.f32 %v8249, %v8252
        %vm8254 = vweird.f32 %v7515
        %vm8255 = vweird.f32 %v8249
        %vm8256 = vmor %vm8254, %vm8255
        %v8257 = vsel %vm8256, %v8249, %v8253
        %v8258 = vand.u32 2147483647, %v7515
        %vm8259 = vcmp.eq.f32.partialorder %v8258, 8.507059e+37
        %v8260 = vand.u32 %v7515, 2147483648
        %v8261 = vor.u32 1.1754944e-38, %v8260
        %v8262 = vsel %vm8259, %v8261, %v8257
        %v8263 = vmul.f32 %v7803, %v8262
        %v8264 = vrcp.pop %v7520
        %v8265 = vmul.f32 %v7520, %v8264
        %v8266 = vsub.f32 1.0, %v8265
        %v8267 = vmul.f32 %v8264, %v8266
        %v8268 = vadd.f32 %v8264, %v8267
        %vm8269 = vweird.f32 %v7520
        %vm8270 = vweird.f32 %v8264
        %vm8271 = vmor %vm8269, %vm8270
        %v8272 = vsel %vm8271, %v8264, %v8268
        %v8273 = vand.u32 2147483647, %v7520
        %vm8274 = vcmp.eq.f32.partialorder %v8273, 8.507059e+37
        %v8275 = vand.u32 %v7520, 2147483648
        %v8276 = vor.u32 1.1754944e-38, %v8275
        %v8277 = vsel %vm8274, %v8276, %v8272
        %v8278 = vmul.f32 %v7808, %v8277
        %v8279 = vrcp.pop %v7525
        %v8280 = vmul.f32 %v7525, %v8279
        %v8281 = vsub.f32 1.0, %v8280
        %v8282 = vmul.f32 %v8279, %v8281
        %v8283 = vadd.f32 %v8279, %v8282
        %vm8284 = vweird.f32 %v7525
        %vm8285 = vweird.f32 %v8279
        %vm8286 = vmor %vm8284, %vm8285
        %v8287 = vsel %vm8286, %v8279, %v8283
        %v8288 = vand.u32 2147483647, %v7525
        %vm8289 = vcmp.eq.f32.partialorder %v8288, 8.507059e+37
        %v8290 = vand.u32 %v7525, 2147483648
        %v8291 = vor.u32 1.1754944e-38, %v8290
        %v8292 = vsel %vm8289, %v8291, %v8287
        %v8293 = vmul.f32 %v7813, %v8292
        %v8294 = vadd.f32 %v7828, 1e-11
        %v8295 = vadd.f32 %v7843, 1e-11
        %v8296 = vadd.f32 %v7858, 1e-11
        %v8297 = vadd.f32 %v7873, 1e-11
        %v8298 = vadd.f32 %v7888, 1e-11
        %v8299 = vadd.f32 %v7903, 1e-11
        %v8300 = vadd.f32 %v7918, 1e-11
        %v8301 = vadd.f32 %v7933, 1e-11
        %v8302 = vadd.f32 %v7948, 1e-11
        %v8303 = vadd.f32 %v7963, 1e-11
        %v8304 = vadd.f32 %v7978, 1e-11
        %v8305 = vadd.f32 %v7993, 1e-11
        %v8306 = vadd.f32 %v8008, 1e-11
        %v8307 = vadd.f32 %v8023, 1e-11
        %v8308 = vadd.f32 %v8038, 1e-11
        %v8309 = vadd.f32 %v8053, 1e-11
        %v8310 = vadd.f32 %v8068, 1e-11
        %v8311 = vadd.f32 %v8083, 1e-11
        %v8312 = vadd.f32 %v8098, 1e-11
        %v8313 = vadd.f32 %v8113, 1e-11
        %v8314 = vadd.f32 %v8128, 1e-11
        %v8315 = vadd.f32 %v8143, 1e-11
        %v8316 = vadd.f32 %v8158, 1e-11
        %v8317 = vadd.f32 %v8173, 1e-11
        %v8318 = vadd.f32 %v8188, 1e-11
        %v8319 = vadd.f32 %v8203, 1e-11
        %v8320 = vadd.f32 %v8218, 1e-11
        %v8321 = vadd.f32 %v8233, 1e-11
        %v8322 = vadd.f32 %v8248, 1e-11
        %v8323 = vadd.f32 %v8263, 1e-11
        %v8324 = vadd.f32 %v8278, 1e-11
        %v8325 = vadd.f32 %v8293, 1e-11
        %v8326 = vlog2.pop %v8294
        %v8327 = vmul.f32 %v8326, 0.6931472
        %v8328 = vlog2.pop %v8295
        %v8329 = vmul.f32 %v8328, 0.6931472
        %v8330 = vlog2.pop %v8296
        %v8331 = vmul.f32 %v8330, 0.6931472
        %v8332 = vlog2.pop %v8297
        %v8333 = vmul.f32 %v8332, 0.6931472
        %v8334 = vlog2.pop %v8298
        %v8335 = vmul.f32 %v8334, 0.6931472
        %v8336 = vlog2.pop %v8299
        %v8337 = vmul.f32 %v8336, 0.6931472
        %v8338 = vlog2.pop %v8300
        %v8339 = vmul.f32 %v8338, 0.6931472
        %v8340 = vlog2.pop %v8301
        %v8341 = vmul.f32 %v8340, 0.6931472
        %v8342 = vlog2.pop %v8302
        %v8343 = vmul.f32 %v8342, 0.6931472
        %v8344 = vlog2.pop %v8303
        %v8345 = vmul.f32 %v8344, 0.6931472
        %v8346 = vlog2.pop %v8304
        %v8347 = vmul.f32 %v8346, 0.6931472
        %v8348 = vlog2.pop %v8305
        %v8349 = vmul.f32 %v8348, 0.6931472
        %v8350 = vlog2.pop %v8306
        %v8351 = vmul.f32 %v8350, 0.6931472
        %v8352 = vlog2.pop %v8307
        %v8353 = vmul.f32 %v8352, 0.6931472
        %v8354 = vlog2.pop %v8308
        %v8355 = vmul.f32 %v8354, 0.6931472
        %v8356 = vlog2.pop %v8309
        %v8357 = vmul.f32 %v8356, 0.6931472
        %v8358 = vlog2.pop %v8310
        %v8359 = vmul.f32 %v8358, 0.6931472
        %v8360 = vlog2.pop %v8311
        %v8361 = vmul.f32 %v8360, 0.6931472
        %v8362 = vlog2.pop %v8312
        %v8363 = vmul.f32 %v8362, 0.6931472
        %v8364 = vlog2.pop %v8313
        %v8365 = vmul.f32 %v8364, 0.6931472
        %v8366 = vlog2.pop %v8314
        %v8367 = vmul.f32 %v8366, 0.6931472
        %v8368 = vlog2.pop %v8315
        %v8369 = vmul.f32 %v8368, 0.6931472
        %v8370 = vlog2.pop %v8316
        %v8371 = vmul.f32 %v8370, 0.6931472
        %v8372 = vlog2.pop %v8317
        %v8373 = vmul.f32 %v8372, 0.6931472
        %v8374 = vlog2.pop %v8318
        %v8375 = vmul.f32 %v8374, 0.6931472
        %v8376 = vlog2.pop %v8319
        %v8377 = vmul.f32 %v8376, 0.6931472
        %v8378 = vlog2.pop %v8320
        %v8379 = vmul.f32 %v8378, 0.6931472
        %v8380 = vlog2.pop %v8321
        %v8381 = vmul.f32 %v8380, 0.6931472
        %v8382 = vlog2.pop %v8322
        %v8383 = vmul.f32 %v8382, 0.6931472
        %v8384 = vlog2.pop %v8323
        %v8385 = vmul.f32 %v8384, 0.6931472
        %v8386 = vlog2.pop %v8324
        %v8387 = vmul.f32 %v8386, 0.6931472
        %v8388 = vlog2.pop %v8325
        %v8389 = vmul.f32 %v8388, 0.6931472
        %v8390 = vsub.f32 0.0, %v8327
        %v8391 = vsub.f32 0.0, %v8329
        %v8392 = vsub.f32 0.0, %v8331
        %v8393 = vsub.f32 0.0, %v8333
        %v8394 = vsub.f32 0.0, %v8335
        %v8395 = vsub.f32 0.0, %v8337
        %v8396 = vsub.f32 0.0, %v8339
        %v8397 = vsub.f32 0.0, %v8341
        %v8398 = vsub.f32 0.0, %v8343
        %v8399 = vsub.f32 0.0, %v8345
        %v8400 = vsub.f32 0.0, %v8347
        %v8401 = vsub.f32 0.0, %v8349
        %v8402 = vsub.f32 0.0, %v8351
        %v8403 = vsub.f32 0.0, %v8353
        %v8404 = vsub.f32 0.0, %v8355
        %v8405 = vsub.f32 0.0, %v8357
        %v8406 = vsub.f32 0.0, %v8359
        %v8407 = vsub.f32 0.0, %v8361
        %v8408 = vsub.f32 0.0, %v8363
        %v8409 = vsub.f32 0.0, %v8365
        %v8410 = vsub.f32 0.0, %v8367
        %v8411 = vsub.f32 0.0, %v8369
        %v8412 = vsub.f32 0.0, %v8371
        %v8413 = vsub.f32 0.0, %v8373
        %v8414 = vsub.f32 0.0, %v8375
        %v8415 = vsub.f32 0.0, %v8377
        %v8416 = vsub.f32 0.0, %v8379
        %v8417 = vsub.f32 0.0, %v8381
        %v8418 = vsub.f32 0.0, %v8383
        %v8419 = vsub.f32 0.0, %v8385
        %v8420 = vsub.f32 0.0, %v8387
        %v8421 = vsub.f32 0.0, %v8389
        %v8422 = vstv %s293
        %v8423 = vadd.s32 %v995, %v8422
        %v8424 = vadd.s32 %v996, %v8422
        %v8425 = vadd.s32 %v997, %v8422
        %v8426 = vadd.s32 %v998, %v8422
        %v8427 = vadd.s32 %v999, %v8422
        %v8428 = vadd.s32 %v1000, %v8422
        %v8429 = vadd.s32 %v1001, %v8422
        %v8430 = vadd.s32 %v1002, %v8422
        %v8431 = vadd.s32 %v1003, %v8422
        %v8432 = vadd.s32 %v1004, %v8422
        %v8433 = vadd.s32 %v1005, %v8422
        %v8434 = vadd.s32 %v1006, %v8422
        %v8435 = vadd.s32 %v1007, %v8422
        %v8436 = vadd.s32 %v1008, %v8422
        %v8437 = vadd.s32 %v1009, %v8422
        %v8438 = vadd.s32 %v1010, %v8422
        %v8439 = vadd.s32 %v1011, %v8422
        %v8440 = vadd.s32 %v1012, %v8422
        %v8441 = vadd.s32 %v1013, %v8422
        %v8442 = vadd.s32 %v1014, %v8422
        %v8443 = vadd.s32 %v1015, %v8422
        %v8444 = vadd.s32 %v1016, %v8422
        %v8445 = vadd.s32 %v1017, %v8422
        %v8446 = vadd.s32 %v1018, %v8422
        %v8447 = vadd.s32 %v1019, %v8422
        %v8448 = vadd.s32 %v1020, %v8422
        %v8449 = vadd.s32 %v1021, %v8422
        %v8450 = vadd.s32 %v1022, %v8422
        %v8451 = vadd.s32 %v1023, %v8422
        %v8452 = vadd.s32 %v1024, %v8422
        %v8453 = vadd.s32 %v1025, %v8422
        %v8454 = vadd.s32 %v1026, %v8422
        %v8455 = vstv %s292
        %vm8456 = vcmp.lt.s32.totalorder %v8423, %v8455
        %vm8457 = vcmp.lt.s32.totalorder %v8424, %v8455
        %vm8458 = vcmp.lt.s32.totalorder %v8425, %v8455
        %vm8459 = vcmp.lt.s32.totalorder %v8426, %v8455
        %vm8460 = vcmp.lt.s32.totalorder %v8427, %v8455
        %vm8461 = vcmp.lt.s32.totalorder %v8428, %v8455
        %vm8462 = vcmp.lt.s32.totalorder %v8429, %v8455
        %vm8463 = vcmp.lt.s32.totalorder %v8430, %v8455
        %vm8464 = vcmp.lt.s32.totalorder %v8431, %v8455
        %vm8465 = vcmp.lt.s32.totalorder %v8432, %v8455
        %vm8466 = vcmp.lt.s32.totalorder %v8433, %v8455
        %vm8467 = vcmp.lt.s32.totalorder %v8434, %v8455
        %vm8468 = vcmp.lt.s32.totalorder %v8435, %v8455
        %vm8469 = vcmp.lt.s32.totalorder %v8436, %v8455
        %vm8470 = vcmp.lt.s32.totalorder %v8437, %v8455
        %vm8471 = vcmp.lt.s32.totalorder %v8438, %v8455
        %vm8472 = vcmp.lt.s32.totalorder %v8439, %v8455
        %vm8473 = vcmp.lt.s32.totalorder %v8440, %v8455
        %vm8474 = vcmp.lt.s32.totalorder %v8441, %v8455
        %vm8475 = vcmp.lt.s32.totalorder %v8442, %v8455
        %vm8476 = vcmp.lt.s32.totalorder %v8443, %v8455
        %vm8477 = vcmp.lt.s32.totalorder %v8444, %v8455
        %vm8478 = vcmp.lt.s32.totalorder %v8445, %v8455
        %vm8479 = vcmp.lt.s32.totalorder %v8446, %v8455
        %vm8480 = vcmp.lt.s32.totalorder %v8447, %v8455
        %vm8481 = vcmp.lt.s32.totalorder %v8448, %v8455
        %vm8482 = vcmp.lt.s32.totalorder %v8449, %v8455
        %vm8483 = vcmp.lt.s32.totalorder %v8450, %v8455
        %vm8484 = vcmp.lt.s32.totalorder %v8451, %v8455
        %vm8485 = vcmp.lt.s32.totalorder %v8452, %v8455
        %vm8486 = vcmp.lt.s32.totalorder %v8453, %v8455
        %vm8487 = vcmp.lt.s32.totalorder %v8454, %v8455
        %v8488 = vsel %vm8456, %v8390, 0.0
        %v8489 = vsel %vm8457, %v8391, 0.0
        %v8490 = vsel %vm8458, %v8392, 0.0
        %v8491 = vsel %vm8459, %v8393, 0.0
        %v8492 = vsel %vm8460, %v8394, 0.0
        %v8493 = vsel %vm8461, %v8395, 0.0
        %v8494 = vsel %vm8462, %v8396, 0.0
        %v8495 = vsel %vm8463, %v8397, 0.0
        %v8496 = vsel %vm8464, %v8398, 0.0
        %v8497 = vsel %vm8465, %v8399, 0.0
        %v8498 = vsel %vm8466, %v8400, 0.0
        %v8499 = vsel %vm8467, %v8401, 0.0
        %v8500 = vsel %vm8468, %v8402, 0.0
        %v8501 = vsel %vm8469, %v8403, 0.0
        %v8502 = vsel %vm8470, %v8404, 0.0
        %v8503 = vsel %vm8471, %v8405, 0.0
        %v8504 = vsel %vm8472, %v8406, 0.0
        %v8505 = vsel %vm8473, %v8407, 0.0
        %v8506 = vsel %vm8474, %v8408, 0.0
        %v8507 = vsel %vm8475, %v8409, 0.0
        %v8508 = vsel %vm8476, %v8410, 0.0
        %v8509 = vsel %vm8477, %v8411, 0.0
        %v8510 = vsel %vm8478, %v8412, 0.0
        %v8511 = vsel %vm8479, %v8413, 0.0
        %v8512 = vsel %vm8480, %v8414, 0.0
        %v8513 = vsel %vm8481, %v8415, 0.0
        %v8514 = vsel %vm8482, %v8416, 0.0
        %v8515 = vsel %vm8483, %v8417, 0.0
        %v8516 = vsel %vm8484, %v8418, 0.0
        %v8517 = vsel %vm8485, %v8419, 0.0
        %v8518 = vsel %vm8486, %v8420, 0.0
        %v8519 = vsel %vm8487, %v8421, 0.0
        %v8520 = vadd.f32 %v8488, %v8489
        %v8521 = vadd.f32 %v8520, %v8490
        %v8522 = vadd.f32 %v8521, %v8491
        %v8523 = vadd.f32 %v8522, %v8492
        %v8524 = vadd.f32 %v8523, %v8493
        %v8525 = vadd.f32 %v8524, %v8494
        %v8526 = vadd.f32 %v8525, %v8495
        %v8527 = vadd.f32 %v8526, %v8496
        %v8528 = vadd.f32 %v8527, %v8497
        %v8529 = vadd.f32 %v8528, %v8498
        %v8530 = vadd.f32 %v8529, %v8499
        %v8531 = vadd.f32 %v8530, %v8500
        %v8532 = vadd.f32 %v8531, %v8501
        %v8533 = vadd.f32 %v8532, %v8502
        %v8534 = vadd.f32 %v8533, %v8503
        %v8535 = vadd.f32 %v8534, %v8504
        %v8536 = vadd.f32 %v8535, %v8505
        %v8537 = vadd.f32 %v8536, %v8506
        %v8538 = vadd.f32 %v8537, %v8507
        %v8539 = vadd.f32 %v8538, %v8508
        %v8540 = vadd.f32 %v8539, %v8509
        %v8541 = vadd.f32 %v8540, %v8510
        %v8542 = vadd.f32 %v8541, %v8511
        %v8543 = vadd.f32 %v8542, %v8512
        %v8544 = vadd.f32 %v8543, %v8513
        %v8545 = vadd.f32 %v8544, %v8514
        %v8546 = vadd.f32 %v8545, %v8515
        %v8547 = vadd.f32 %v8546, %v8516
        %v8548 = vadd.f32 %v8547, %v8517
        %v8549 = vadd.f32 %v8548, %v8518
        %v8550 = vadd.f32 %v8549, %v8519
        %v8551 = vrot.slane %v8550, 4
        %v8552 = vadd.f32 %v8550, %v8551
        %v8553 = vrot.slane %v8552, 2
        %v8554 = vadd.f32 %v8552, %v8553
        %v8555 = vrot.slane %v8554, 1
        %v8556 = vadd.f32 %v8554, %v8555
        %v8557 = vadd.f32 %v8556, 0.0
        %8558 = vst [vmem:[%s290] sm:$0xff] %v8557
      $region44: #{infonce_forward.1} parent=35 // pred_fallthru
        _
      %p8559 = scmp.lt.s32.totalorder %s34, 1
      %s8560 = scalar_select %p8559, %s34, 1
      %p8561 = scmp.lt.s32.totalorder %s35, 4
      %s8562 = scalar_select %p8561, %s35, 4
      %s8563 = smul.addr %s8560, 5
      %s8564 = sadd.s32 %s8562, %s8563
      %s8565 = smul.addr %s8564, 8
      %s8566 = scalar_lea.vmem %s6, %s8565
      // Predicated region
      $region45: #{infonce_forward.1} parent=35 // pred_check
        %p8567 = pneg %p163
      $region46: #{infonce_forward.1} parent=35 // pred_check_branch
        %8569 = sbr.rel (%p8567) target = $region48
      $region47: #{infonce_forward.1} parent=35 // pred_region
        _
      $region48: #{infonce_forward.1} parent=35 // pred_fallthru
        _
    $region36: #{infonce_forward.1} parent=5 // pred_fallthru
      _
    %p8570 = scmp.le.s32.totalorder 2, %s25
    // Predicated region
    $region49: #{infonce_forward.1} parent=5 // pred_check
      %p8571 = pneg %p8570
    $region50: #{infonce_forward.1} parent=5 // pred_check_branch
      %8573 = sbr.rel (%p8571) target = $region52
    $region51: #{infonce_forward.1} parent=5 // pred_region
      %s8574 = ssub.s32 %s25, 2
      // Predicated region
      $region53: #{infonce_forward.1} parent=51 // pred_check
        %p8575 = pneg %p169
      $region54: #{infonce_forward.1} parent=51 // pred_check_branch
        %8577 = sbr.rel (%p8575) target = $region56
      $region55: #{infonce_forward.1} parent=51 // pred_region
        %p8578 = scmp.lt.s32.totalorder %s36, 1
        %s8579 = scalar_select %p8578, %s36, 1
        %p8580 = scmp.lt.s32.totalorder %s37, 4
        %s8581 = scalar_select %p8580, %s37, 4
        %s8582 = smul.addr %s8579, 5
        %s8583 = sadd.s32 %s8581, %s8582
        %s8584 = smul.addr %s8583, 8
        %s8585 = scalar_lea.vmem %s6, %s8584
      $region56: #{infonce_forward.1} parent=51 // pred_fallthru
        _
    $region52: #{infonce_forward.1} parent=5 // pred_fallthru
      _
  $region6: #{infonce_forward.1} parent=0 // loop_footer
    %s29 = sadd.s32 1, %s25
  $region7: #{infonce_forward.1} parent=0 // loop_footer_branch
    %24 = sbr.rel target = $region3
  $region8: #{infonce_forward.1} parent=0 // loop_exit
    _

</llo_original>
